<compile_context>
chip_gen: v5e
topology: v5e:2x2
jax: 0.10.0
libtpu: 0.0.40
codegen_flags: <defaults>
</compile_context>

<pallas_src>
import jax
import jax.numpy as jnp
import numpy as np
from jax import lax
from jax.experimental import pallas as pl
from jax.experimental.pallas import tpu as pltpu

_BN_EPS = 1e-12
_INV_SQRT2 = 0.7071067811865476


def _bn_gelu(x, gamma, beta):
    """Training-mode BatchNorm (biased batch stats, two-pass variance) + exact GELU.

    x: (M, C) f32 slab (rows enumerate N*H*W), gamma/beta: (1, C) f32.
    gamma/beta are folded into one per-channel scale/shift FMA pass.
    Two-pass variance is kept on purpose (eps=1e-12; see review concern #3).
    """
    mean = jnp.mean(x, axis=0, keepdims=True)                       # (1, C)
    var = jnp.mean(jnp.square(x - mean), axis=0, keepdims=True)     # biased
    scale = gamma * lax.rsqrt(var + _BN_EPS)
    shift = beta - mean * scale
    xn = x * scale + shift
    return 0.5 * xn * (1.0 + lax.erf(xn * _INV_SQRT2))              # exact GELU


def _fill_padded(pad_ref, interior):
    """Halo-only zero fill + single interior copy into a (n, H+2, W+2, C) ref."""
    n, hh, ww, cc = interior.shape
    zrow = jnp.zeros((n, 1, ww + 2, cc), jnp.float32)
    zcol = jnp.zeros((n, hh, 1, cc), jnp.float32)
    pad_ref[:, 0:1, :, :] = zrow                       # top halo row
    pad_ref[:, hh + 1:hh + 2, :, :] = zrow             # bottom halo row
    pad_ref[:, 1:hh + 1, 0:1, :] = zcol                # left halo column
    pad_ref[:, 1:hh + 1, ww + 1:ww + 2, :] = zcol      # right halo column
    pad_ref[:, 1:hh + 1, 1:ww + 1, :] = interior       # interior written ONCE


def _conv3x3(pad_ref, w_ref):
    """3x3 SAME conv from a padded VMEM ref via a value-level im2col slab.

    pad_ref: (n, H+2, W+2, C) f32.  w_ref: (9*C, Cout) bf16 (tap-major, C-minor).
    Returns (n*H*W, Cout) f32 (single bf16-operand MXU dot, f32 accumulation).
    The slab is never stored to a scratch buffer: it is one lane-concatenated
    value fed straight into jnp.dot (review items 1-3).
    """
    n, hp, wp, c = pad_ref.shape
    h, w = hp - 2, wp - 2
    taps = [pad_ref[:, dy:dy + h, dx:dx + w, :]                 # (n, h, w, c)
            for dy in range(3) for dx in range(3)]
    slab = jnp.concatenate(taps, axis=-1)                       # (n, h, w, 9c)
    slab = slab.reshape(n * h * w, 9 * c)                       # tile-aligned
    return jnp.dot(slab.astype(jnp.bfloat16), w_ref[...],
                   preferred_element_type=jnp.float32)          # (n*h*w, Cout)


def _conv_group_kernel(x_ref, w1_ref, w2_ref, g1_ref, b1_ref, g2_ref, b2_ref,
                       o_ref, xpad_ref, zpad_ref, y1_ref):
    n, h, w, cin = x_ref.shape
    cout = w1_ref.shape[1]
    hh, wh = h // 2, w // 2
    m1, m2 = n * h * w, n * hh * wh

    # ---- conv1: halo-only padded ref, value im2col, one bf16 MXU dot -------
    _fill_padded(xpad_ref, x_ref[...])
    y1_ref[...] = _conv3x3(xpad_ref, w1_ref)                     # (m1, cout) f32

    # ---- maxpool 2x2: rows of y1 are (n, h, w) with w innermost ------------
    # W direction: even/odd rows via native stride-2 sublane reads.
    a = jnp.maximum(y1_ref[pl.ds(0, m1 // 2, stride=2), :],
                    y1_ref[pl.ds(1, m1 // 2, stride=2), :])      # (m1/2, cout)
    # H direction: tile-aligned split (wh == 8 == f32 sublane tile) + parity max.
    a = a.reshape(n, hh, 2, wh, cout)
    pooled = jnp.maximum(a[:, :, 0], a[:, :, 1]).reshape(m2, cout)

    # ---- BN1 (train-mode batch stats, eps=1e-12) + exact GELU --------------
    z1 = _bn_gelu(pooled, g1_ref[...], b1_ref[...])              # (m2, cout) f32

    # ---- conv2: same scheme on the pooled/normalized activations -----------
    _fill_padded(zpad_ref, z1.reshape(n, hh, wh, cout))
    y2 = _conv3x3(zpad_ref, w2_ref)                              # (m2, cout) f32

    # ---- BN2 + exact GELU ---------------------------------------------------
    z2 = _bn_gelu(y2, g2_ref[...], b2_ref[...])                  # (m2, cout) f32

    # ---- lane-dense store: (m2, cout)=(128,32) -> (n*hh, wh*cout)=(16,256) --
    # y1_ref is dead after the pool reads; reuse it as relayout staging so the
    # final HBM-bound store is a full-lane (256-wide) vst instead of 25%-masked.
    y1_ref[pl.ds(0, m2), :] = z2
    pieces = [y1_ref[pl.ds(x0, n * hh, stride=wh), :]            # (n*hh, cout)
              for x0 in range(wh)]
    o_ref[...] = jnp.concatenate(pieces, axis=-1).astype(o_ref.dtype)


def conv_group_forward(x_nchw, params):
    """PyTorch-layout wrapper: NCHW in, NCHW out; single fused Pallas call."""
    w1, w2 = params["w1"], params["w2"]                  # HWIO f32 weights
    n, c_in, h, w = x_nchw.shape
    cout = w1.shape[-1]
    assert h % 2 == 0 and w % 2 == 0, "MaxPool2d(2) requires even H and W"
    hh, wh = h // 2, w // 2

    x = jnp.transpose(x_nchw, (0, 2, 3, 1))              # NCHW -> NHWC
    # Weight prep in the wrapper (tiny): fold the 3x3 taps into the
    # contraction dim (tap-major, channel-minor — matches the slab layout)
    # and cast to bf16 (f32 accumulation happens in-kernel).
    w1f = w1.reshape(9 * c_in, cout).astype(jnp.bfloat16)
    w2f = w2.reshape(9 * cout, cout).astype(jnp.bfloat16)
    g1 = params["g1"].reshape(1, cout).astype(jnp.float32)
    b1 = params["b1"].reshape(1, cout).astype(jnp.float32)
    g2 = params["g2"].reshape(1, cout).astype(jnp.float32)
    b2 = params["b2"].reshape(1, cout).astype(jnp.float32)

    # Lane-dense kernel output: (n*hh, wh*cout) = (16, 256) for this shape.
    out2d = pl.pallas_call(
        _conv_group_kernel,
        out_shape=jax.ShapeDtypeStruct((n * hh, wh * cout), x.dtype),
        scratch_shapes=[
            pltpu.VMEM((n, h + 2, w + 2, c_in), jnp.float32),    # padded conv1 in
            pltpu.VMEM((n, hh + 2, wh + 2, cout), jnp.float32),  # padded conv2 in
            pltpu.VMEM((n * h * w, cout), jnp.float32),          # conv1 out / staging
        ],
    )(x, w1f, w2f, g1, b1, g2, b2)

    # TODO(synk): at larger N/H/W, tile over batch/rows with a "parallel" grid
    # (v7x: 2 TensorCores, 64 MiB VMEM) and split BN into stats + normalize
    # passes; gridless full fusion is only the right call at this toy size.
    out_nhwc = out2d.reshape(n, hh, wh, cout)            # layout plumbing only
    return jnp.transpose(out_nhwc, (0, 3, 1, 2))         # NHWC -> NCHW


def init_conv_weight(key, cin, cout):
    """Deterministic Conv.reset_parameters: kaiming-uniform then dirac_ on the
    first `cin` output filters. Returns OIHW."""
    bound = 1.0 / np.sqrt(cin * 9)
    w = jax.random.uniform(key, (cout, cin, 3, 3), jnp.float32, -bound, bound)
    oi = (jnp.arange(cout)[:, None] == jnp.arange(cin)[None, :])
    center = ((jnp.arange(3)[:, None] == 1) & (jnp.arange(3)[None, :] == 1))
    dirac = (oi[:, :, None, None] & center[None, None]).astype(jnp.float32)
    return jnp.where(jnp.arange(cout)[:, None, None, None] < cin, dirac, w)


# ------------------------------- pure-JAX ref --------------------------------
def reference_forward(x_nchw, params):
    x = jnp.transpose(x_nchw, (0, 2, 3, 1))

    def conv(x, w):
        return lax.conv_general_dilated(
            x, w, (1, 1), "SAME",
            dimension_numbers=("NHWC", "HWIO", "NHWC"),
            precision=lax.Precision.HIGHEST)

    def bn_gelu(x, g, b):
        mean = jnp.mean(x, axis=(0, 1, 2), keepdims=True)
        var = jnp.mean(jnp.square(x - mean), axis=(0, 1, 2), keepdims=True)
        xn = (x - mean) * lax.rsqrt(var + _BN_EPS) * g + b
        return jax.nn.gelu(xn, approximate=False)

    x = conv(x, params["w1"])
    x = lax.reduce_window(x, -jnp.inf, lax.max, (1, 2, 2, 1), (1, 2, 2, 1), "VALID")
    x = bn_gelu(x, params["g1"], params["b1"])
    x = conv(x, params["w2"])
    x = bn_gelu(x, params["g2"], params["b2"])
    return jnp.transpose(x, (0, 3, 1, 2))


if __name__ == "__main__":
    key = jax.random.PRNGKey(0)
    k_x, k_w1, k_w2 = jax.random.split(key, 3)

    N, C_IN, H, W = 2, 4, 16, 16
    C_OUT = 32

    x = jax.random.normal(k_x, (N, C_IN, H, W), jnp.float32)

    w1_oihw = init_conv_weight(k_w1, C_IN, C_OUT)
    w2_oihw = init_conv_weight(k_w2, C_OUT, C_OUT)
    params = dict(
        w1=jnp.transpose(w1_oihw, (2, 3, 1, 0)),         # OIHW -> HWIO
        w2=jnp.transpose(w2_oihw, (2, 3, 1, 0)),
        g1=jnp.ones((C_OUT,), jnp.float32), b1=jnp.zeros((C_OUT,), jnp.float32),
        g2=jnp.ones((C_OUT,), jnp.float32), b2=jnp.zeros((C_OUT,), jnp.float32),
    )

    fwd = jax.jit(conv_group_forward)
    out = jax.block_until_ready(fwd(x, params))
    ref = jax.block_until_ready(reference_forward(x, params))
    assert out.shape == (N, C_OUT, H // 2, W // 2)
    # Kernel uses bf16 MXU operands (f32 accumulation), so the tolerance vs.
    # the pure-f32 reference accounts for bf16 rounding.
    np.testing.assert_allclose(np.asarray(out), np.asarray(ref),
                               rtol=2e-2, atol=2e-2)
    print("KERNEL_OK")
</pallas_src>

<mosaic_0001>
module attributes {stable_mosaic.version = 11 : i64} {
  func.func @_conv_group_kernel(%arg0: memref<2x16x16x4xf32, #tpu.memory_space<vmem>>, %arg1: memref<36x32xbf16, #tpu.memory_space<vmem>>, %arg2: memref<288x32xbf16, #tpu.memory_space<vmem>>, %arg3: memref<1x32xf32, #tpu.memory_space<vmem>>, %arg4: memref<1x32xf32, #tpu.memory_space<vmem>>, %arg5: memref<1x32xf32, #tpu.memory_space<vmem>>, %arg6: memref<1x32xf32, #tpu.memory_space<vmem>>, %arg7: memref<16x256xf32, #tpu.memory_space<vmem>>, %arg8: memref<2x18x18x4xf32, #tpu.memory_space<vmem>>, %arg9: memref<2x10x10x32xf32, #tpu.memory_space<vmem>>, %arg10: memref<512x32xf32, #tpu.memory_space<vmem>>) attributes {dimension_semantics = [], scalar_prefetch = 0 : i64, scratch_operands = 3 : i64, tpu.core_type = #tpu.core_type<tc>} {
    %c0 = arith.constant 0 : index
    %c0_0 = arith.constant 0 : index
    %c0_1 = arith.constant 0 : index
    %c0_2 = arith.constant 0 : index
    %0 = vector.load %arg0[%c0, %c0_0, %c0_1, %c0_2] : memref<2x16x16x4xf32, #tpu.memory_space<vmem>>, vector<2x16x16x4xf32>
    %cst = arith.constant 0.000000e+00 : f32
    %1 = vector.broadcast %cst : f32 to vector<2x1x18x4xf32>
    %cst_3 = arith.constant 0.000000e+00 : f32
    %2 = vector.broadcast %cst_3 : f32 to vector<2x16x1x4xf32>
    %c0_4 = arith.constant 0 : index
    %c0_5 = arith.constant 0 : index
    %c0_6 = arith.constant 0 : index
    %c0_7 = arith.constant 0 : index
    %3 = vector.load %arg8[%c0_4, %c0_5, %c0_6, %c0_7] : memref<2x18x18x4xf32, #tpu.memory_space<vmem>>, vector<2x1x18x4xf32>
    tpu.vector_store %arg8[%c0_4, %c0_5, %c0_6, %c0_7], %1 {strides = array<i32>} : memref<2x18x18x4xf32, #tpu.memory_space<vmem>>, vector<2x1x18x4xf32>,
    %c0_8 = arith.constant 0 : index
    %c17 = arith.constant 17 : index
    %c0_9 = arith.constant 0 : index
    %c0_10 = arith.constant 0 : index
    %4 = vector.load %arg8[%c0_8, %c17, %c0_9, %c0_10] : memref<2x18x18x4xf32, #tpu.memory_space<vmem>>, vector<2x1x18x4xf32>
    tpu.vector_store %arg8[%c0_8, %c17, %c0_9, %c0_10], %1 {strides = array<i32>} : memref<2x18x18x4xf32, #tpu.memory_space<vmem>>, vector<2x1x18x4xf32>,
    %c0_11 = arith.constant 0 : index
    %c1 = arith.constant 1 : index
    %c0_12 = arith.constant 0 : index
    %c0_13 = arith.constant 0 : index
    %5 = vector.load %arg8[%c0_11, %c1, %c0_12, %c0_13] : memref<2x18x18x4xf32, #tpu.memory_space<vmem>>, vector<2x16x1x4xf32>
    tpu.vector_store %arg8[%c0_11, %c1, %c0_12, %c0_13], %2 {strides = array<i32>} : memref<2x18x18x4xf32, #tpu.memory_space<vmem>>, vector<2x16x1x4xf32>,
    %c0_14 = arith.constant 0 : index
    %c1_15 = arith.constant 1 : index
    %c17_16 = arith.constant 17 : index
    %c0_17 = arith.constant 0 : index
    %6 = vector.load %arg8[%c0_14, %c1_15, %c17_16, %c0_17] : memref<2x18x18x4xf32, #tpu.memory_space<vmem>>, vector<2x16x1x4xf32>
    tpu.vector_store %arg8[%c0_14, %c1_15, %c17_16, %c0_17], %2 {strides = array<i32>} : memref<2x18x18x4xf32, #tpu.memory_space<vmem>>, vector<2x16x1x4xf32>,
    %c0_18 = arith.constant 0 : index
    %c1_19 = arith.constant 1 : index
    %c1_20 = arith.constant 1 : index
    %c0_21 = arith.constant 0 : index
    %7 = vector.load %arg8[%c0_18, %c1_19, %c1_20, %c0_21] : memref<2x18x18x4xf32, #tpu.memory_space<vmem>>, vector<2x16x16x4xf32>
    tpu.vector_store %arg8[%c0_18, %c1_19, %c1_20, %c0_21], %0 {strides = array<i32>} : memref<2x18x18x4xf32, #tpu.memory_space<vmem>>, vector<2x16x16x4xf32>,
    %c0_22 = arith.constant 0 : index
    %c0_23 = arith.constant 0 : index
    %c0_24 = arith.constant 0 : index
    %c0_25 = arith.constant 0 : index
    %8 = vector.load %arg8[%c0_22, %c0_23, %c0_24, %c0_25] : memref<2x18x18x4xf32, #tpu.memory_space<vmem>>, vector<2x16x16x4xf32>
    %c0_26 = arith.constant 0 : index
    %c0_27 = arith.constant 0 : index
    %c1_28 = arith.constant 1 : index
    %c0_29 = arith.constant 0 : index
    %9 = vector.load %arg8[%c0_26, %c0_27, %c1_28, %c0_29] : memref<2x18x18x4xf32, #tpu.memory_space<vmem>>, vector<2x16x16x4xf32>
    %c0_30 = arith.constant 0 : index
    %c0_31 = arith.constant 0 : index
    %c2 = arith.constant 2 : index
    %c0_32 = arith.constant 0 : index
    %10 = vector.load %arg8[%c0_30, %c0_31, %c2, %c0_32] : memref<2x18x18x4xf32, #tpu.memory_space<vmem>>, vector<2x16x16x4xf32>
    %c0_33 = arith.constant 0 : index
    %c1_34 = arith.constant 1 : index
    %c0_35 = arith.constant 0 : index
    %c0_36 = arith.constant 0 : index
    %11 = vector.load %arg8[%c0_33, %c1_34, %c0_35, %c0_36] : memref<2x18x18x4xf32, #tpu.memory_space<vmem>>, vector<2x16x16x4xf32>
    %c0_37 = arith.constant 0 : index
    %c1_38 = arith.constant 1 : index
    %c1_39 = arith.constant 1 : index
    %c0_40 = arith.constant 0 : index
    %12 = vector.load %arg8[%c0_37, %c1_38, %c1_39, %c0_40] : memref<2x18x18x4xf32, #tpu.memory_space<vmem>>, vector<2x16x16x4xf32>
    %c0_41 = arith.constant 0 : index
    %c1_42 = arith.constant 1 : index
    %c2_43 = arith.constant 2 : index
    %c0_44 = arith.constant 0 : index
    %13 = vector.load %arg8[%c0_41, %c1_42, %c2_43, %c0_44] : memref<2x18x18x4xf32, #tpu.memory_space<vmem>>, vector<2x16x16x4xf32>
    %c0_45 = arith.constant 0 : index
    %c2_46 = arith.constant 2 : index
    %c0_47 = arith.constant 0 : index
    %c0_48 = arith.constant 0 : index
    %14 = vector.load %arg8[%c0_45, %c2_46, %c0_47, %c0_48] : memref<2x18x18x4xf32, #tpu.memory_space<vmem>>, vector<2x16x16x4xf32>
    %c0_49 = arith.constant 0 : index
    %c2_50 = arith.constant 2 : index
    %c1_51 = arith.constant 1 : index
    %c0_52 = arith.constant 0 : index
    %15 = vector.load %arg8[%c0_49, %c2_50, %c1_51, %c0_52] : memref<2x18x18x4xf32, #tpu.memory_space<vmem>>, vector<2x16x16x4xf32>
    %c0_53 = arith.constant 0 : index
    %c2_54 = arith.constant 2 : index
    %c2_55 = arith.constant 2 : index
    %c0_56 = arith.constant 0 : index
    %16 = vector.load %arg8[%c0_53, %c2_54, %c2_55, %c0_56] : memref<2x18x18x4xf32, #tpu.memory_space<vmem>>, vector<2x16x16x4xf32>
    %17 = tpu.concatenate %8, %9, %10, %11, %12, %13, %14, %15, %16 in 3 : vector<2x16x16x4xf32>, vector<2x16x16x4xf32>, vector<2x16x16x4xf32>, vector<2x16x16x4xf32>, vector<2x16x16x4xf32>, vector<2x16x16x4xf32>, vector<2x16x16x4xf32>, vector<2x16x16x4xf32>, vector<2x16x16x4xf32> -> vector<2x16x16x36xf32>
    %18 = vector.shape_cast %17 : vector<2x16x16x36xf32> to vector<512x36xf32>
    %19 = arith.truncf %18 : vector<512x36xf32> to vector<512x36xbf16>
    %c0_57 = arith.constant 0 : index
    %c0_58 = arith.constant 0 : index
    %20 = vector.load %arg1[%c0_57, %c0_58] : memref<36x32xbf16, #tpu.memory_space<vmem>>, vector<36x32xbf16>
    %cst_59 = arith.constant dense<0.000000e+00> : vector<512x32xf32>
    %21 = tpu.matmul %19, %20, %cst_59 {dimension_numbers = #tpu.dot_dimension_numbers<[1], [0], [0], [1], [0, 0, 1, 1], [], []>} : vector<512x36xbf16>, vector<36x32xbf16>, vector<512x32xf32> -> vector<512x32xf32>
    %c0_60 = arith.constant 0 : index
    %c0_61 = arith.constant 0 : index
    %22 = vector.load %arg10[%c0_60, %c0_61] : memref<512x32xf32, #tpu.memory_space<vmem>>, vector<512x32xf32>
    tpu.vector_store %arg10[%c0_60, %c0_61], %21 {strides = array<i32>} : memref<512x32xf32, #tpu.memory_space<vmem>>, vector<512x32xf32>,
    %c0_62 = arith.constant 0 : index
    %c0_63 = arith.constant 0 : index
    %23 = tpu.strided_load %arg10[%c0_62, %c0_63] {strides = array<i32: 2, 1>} : memref<512x32xf32, #tpu.memory_space<vmem>>, vector<256x32xf32>
    %c1_64 = arith.constant 1 : index
    %c0_65 = arith.constant 0 : index
    %24 = tpu.strided_load %arg10[%c1_64, %c0_65] {strides = array<i32: 2, 1>} : memref<512x32xf32, #tpu.memory_space<vmem>>, vector<256x32xf32>
    %25 = arith.maximumf %23, %24 : vector<256x32xf32>
    %26 = vector.shape_cast %25 : vector<256x32xf32> to vector<2x8x2x8x32xf32>
    %27 = vector.extract_strided_slice %26 {offsets = [0, 0, 0, 0, 0], sizes = [2, 8, 1, 8, 32], strides = [1, 1, 1, 1, 1]} : vector<2x8x2x8x32xf32> to vector<2x8x1x8x32xf32>
    %28 = vector.shape_cast %27 : vector<2x8x1x8x32xf32> to vector<2x8x8x32xf32>
    %29 = vector.extract_strided_slice %26 {offsets = [0, 0, 1, 0, 0], sizes = [2, 8, 1, 8, 32], strides = [1, 1, 1, 1, 1]} : vector<2x8x2x8x32xf32> to vector<2x8x1x8x32xf32>
    %30 = vector.shape_cast %29 : vector<2x8x1x8x32xf32> to vector<2x8x8x32xf32>
    %31 = arith.maximumf %28, %30 : vector<2x8x8x32xf32>
    %32 = vector.shape_cast %31 : vector<2x8x8x32xf32> to vector<128x32xf32>
    %c0_66 = arith.constant 0 : index
    %c0_67 = arith.constant 0 : index
    %33 = vector.load %arg3[%c0_66, %c0_67] : memref<1x32xf32, #tpu.memory_space<vmem>>, vector<1x32xf32>
    %c0_68 = arith.constant 0 : index
    %c0_69 = arith.constant 0 : index
    %34 = vector.load %arg4[%c0_68, %c0_69] : memref<1x32xf32, #tpu.memory_space<vmem>>, vector<1x32xf32>
    %cst_70 = arith.constant dense<0.000000e+00> : vector<32xf32>
    %35 = vector.multi_reduction <add>, %32, %cst_70 [0] : vector<128x32xf32> to vector<32xf32>
    %36 = vector.shape_cast %35 : vector<32xf32> to vector<1x32xf32>
    %cst_71 = arith.constant 1.280000e+02 : f32
    %37 = vector.broadcast %cst_71 : f32 to vector<1x32xf32>
    %38 = arith.divf %36, %37 : vector<1x32xf32>
    %39 = vector.broadcast %38 : vector<1x32xf32> to vector<128x32xf32>
    %40 = arith.subf %32, %39 : vector<128x32xf32>
    %41 = arith.mulf %40, %40 : vector<128x32xf32>
    %cst_72 = arith.constant dense<0.000000e+00> : vector<32xf32>
    %42 = vector.multi_reduction <add>, %41, %cst_72 [0] : vector<128x32xf32> to vector<32xf32>
    %43 = vector.shape_cast %42 : vector<32xf32> to vector<1x32xf32>
    %cst_73 = arith.constant 1.280000e+02 : f32
    %44 = vector.broadcast %cst_73 : f32 to vector<1x32xf32>
    %45 = arith.divf %43, %44 : vector<1x32xf32>
    %cst_74 = arith.constant 9.99999996E-13 : f32
    %46 = vector.broadcast %cst_74 : f32 to vector<1x32xf32>
    %47 = arith.addf %45, %46 : vector<1x32xf32>
    %48 = math.rsqrt %47 : vector<1x32xf32>
    %49 = arith.mulf %33, %48 : vector<1x32xf32>
    %50 = arith.mulf %38, %49 : vector<1x32xf32>
    %51 = arith.subf %34, %50 : vector<1x32xf32>
    %52 = vector.broadcast %49 : vector<1x32xf32> to vector<128x32xf32>
    %53 = arith.mulf %32, %52 : vector<128x32xf32>
    %54 = vector.broadcast %51 : vector<1x32xf32> to vector<128x32xf32>
    %55 = arith.addf %53, %54 : vector<128x32xf32>
    %cst_75 = arith.constant 5.000000e-01 : f32
    %56 = vector.broadcast %cst_75 : f32 to vector<128x32xf32>
    %57 = arith.mulf %56, %55 : vector<128x32xf32>
    %cst_76 = arith.constant 0.707106769 : f32
    %58 = vector.broadcast %cst_76 : f32 to vector<128x32xf32>
    %59 = arith.mulf %55, %58 : vector<128x32xf32>
    %60 = math.erf %59 : vector<128x32xf32>
    %cst_77 = arith.constant 1.000000e+00 : f32
    %61 = vector.broadcast %cst_77 : f32 to vector<128x32xf32>
    %62 = arith.addf %61, %60 : vector<128x32xf32>
    %63 = arith.mulf %57, %62 : vector<128x32xf32>
    %64 = vector.shape_cast %63 : vector<128x32xf32> to vector<2x8x8x32xf32>
    %cst_78 = arith.constant 0.000000e+00 : f32
    %65 = vector.broadcast %cst_78 : f32 to vector<2x1x10x32xf32>
    %cst_79 = arith.constant 0.000000e+00 : f32
    %66 = vector.broadcast %cst_79 : f32 to vector<2x8x1x32xf32>
    %c0_80 = arith.constant 0 : index
    %c0_81 = arith.constant 0 : index
    %c0_82 = arith.constant 0 : index
    %c0_83 = arith.constant 0 : index
    %67 = vector.load %arg9[%c0_80, %c0_81, %c0_82, %c0_83] : memref<2x10x10x32xf32, #tpu.memory_space<vmem>>, vector<2x1x10x32xf32>
    tpu.vector_store %arg9[%c0_80, %c0_81, %c0_82, %c0_83], %65 {strides = array<i32>} : memref<2x10x10x32xf32, #tpu.memory_space<vmem>>, vector<2x1x10x32xf32>,
    %c0_84 = arith.constant 0 : index
    %c9 = arith.constant 9 : index
    %c0_85 = arith.constant 0 : index
    %c0_86 = arith.constant 0 : index
    %68 = vector.load %arg9[%c0_84, %c9, %c0_85, %c0_86] : memref<2x10x10x32xf32, #tpu.memory_space<vmem>>, vector<2x1x10x32xf32>
    tpu.vector_store %arg9[%c0_84, %c9, %c0_85, %c0_86], %65 {strides = array<i32>} : memref<2x10x10x32xf32, #tpu.memory_space<vmem>>, vector<2x1x10x32xf32>,
    %c0_87 = arith.constant 0 : index
    %c1_88 = arith.constant 1 : index
    %c0_89 = arith.constant 0 : index
    %c0_90 = arith.constant 0 : index
    %69 = vector.load %arg9[%c0_87, %c1_88, %c0_89, %c0_90] : memref<2x10x10x32xf32, #tpu.memory_space<vmem>>, vector<2x8x1x32xf32>
    tpu.vector_store %arg9[%c0_87, %c1_88, %c0_89, %c0_90], %66 {strides = array<i32>} : memref<2x10x10x32xf32, #tpu.memory_space<vmem>>, vector<2x8x1x32xf32>,
    %c0_91 = arith.constant 0 : index
    %c1_92 = arith.constant 1 : index
    %c9_93 = arith.constant 9 : index
    %c0_94 = arith.constant 0 : index
    %70 = vector.load %arg9[%c0_91, %c1_92, %c9_93, %c0_94] : memref<2x10x10x32xf32, #tpu.memory_space<vmem>>, vector<2x8x1x32xf32>
    tpu.vector_store %arg9[%c0_91, %c1_92, %c9_93, %c0_94], %66 {strides = array<i32>} : memref<2x10x10x32xf32, #tpu.memory_space<vmem>>, vector<2x8x1x32xf32>,
    %c0_95 = arith.constant 0 : index
    %c1_96 = arith.constant 1 : index
    %c1_97 = arith.constant 1 : index
    %c0_98 = arith.constant 0 : index
    %71 = vector.load %arg9[%c0_95, %c1_96, %c1_97, %c0_98] : memref<2x10x10x32xf32, #tpu.memory_space<vmem>>, vector<2x8x8x32xf32>
    tpu.vector_store %arg9[%c0_95, %c1_96, %c1_97, %c0_98], %64 {strides = array<i32>} : memref<2x10x10x32xf32, #tpu.memory_space<vmem>>, vector<2x8x8x32xf32>,
    %c0_99 = arith.constant 0 : index
    %c0_100 = arith.constant 0 : index
    %c0_101 = arith.constant 0 : index
    %c0_102 = arith.constant 0 : index
    %72 = vector.load %arg9[%c0_99, %c0_100, %c0_101, %c0_102] : memref<2x10x10x32xf32, #tpu.memory_space<vmem>>, vector<2x8x8x32xf32>
    %c0_103 = arith.constant 0 : index
    %c0_104 = arith.constant 0 : index
    %c1_105 = arith.constant 1 : index
    %c0_106 = arith.constant 0 : index
    %73 = vector.load %arg9[%c0_103, %c0_104, %c1_105, %c0_106] : memref<2x10x10x32xf32, #tpu.memory_space<vmem>>, vector<2x8x8x32xf32>
    %c0_107 = arith.constant 0 : index
    %c0_108 = arith.constant 0 : index
    %c2_109 = arith.constant 2 : index
    %c0_110 = arith.constant 0 : index
    %74 = vector.load %arg9[%c0_107, %c0_108, %c2_109, %c0_110] : memref<2x10x10x32xf32, #tpu.memory_space<vmem>>, vector<2x8x8x32xf32>
    %c0_111 = arith.constant 0 : index
    %c1_112 = arith.constant 1 : index
    %c0_113 = arith.constant 0 : index
    %c0_114 = arith.constant 0 : index
    %75 = vector.load %arg9[%c0_111, %c1_112, %c0_113, %c0_114] : memref<2x10x10x32xf32, #tpu.memory_space<vmem>>, vector<2x8x8x32xf32>
    %c0_115 = arith.constant 0 : index
    %c1_116 = arith.constant 1 : index
    %c1_117 = arith.constant 1 : index
    %c0_118 = arith.constant 0 : index
    %76 = vector.load %arg9[%c0_115, %c1_116, %c1_117, %c0_118] : memref<2x10x10x32xf32, #tpu.memory_space<vmem>>, vector<2x8x8x32xf32>
    %c0_119 = arith.constant 0 : index
    %c1_120 = arith.constant 1 : index
    %c2_121 = arith.constant 2 : index
    %c0_122 = arith.constant 0 : index
    %77 = vector.load %arg9[%c0_119, %c1_120, %c2_121, %c0_122] : memref<2x10x10x32xf32, #tpu.memory_space<vmem>>, vector<2x8x8x32xf32>
    %c0_123 = arith.constant 0 : index
    %c2_124 = arith.constant 2 : index
    %c0_125 = arith.constant 0 : index
    %c0_126 = arith.constant 0 : index
    %78 = vector.load %arg9[%c0_123, %c2_124, %c0_125, %c0_126] : memref<2x10x10x32xf32, #tpu.memory_space<vmem>>, vector<2x8x8x32xf32>
    %c0_127 = arith.constant 0 : index
    %c2_128 = arith.constant 2 : index
    %c1_129 = arith.constant 1 : index
    %c0_130 = arith.constant 0 : index
    %79 = vector.load %arg9[%c0_127, %c2_128, %c1_129, %c0_130] : memref<2x10x10x32xf32, #tpu.memory_space<vmem>>, vector<2x8x8x32xf32>
    %c0_131 = arith.constant 0 : index
    %c2_132 = arith.constant 2 : index
    %c2_133 = arith.constant 2 : index
    %c0_134 = arith.constant 0 : index
    %80 = vector.load %arg9[%c0_131, %c2_132, %c2_133, %c0_134] : memref<2x10x10x32xf32, #tpu.memory_space<vmem>>, vector<2x8x8x32xf32>
    %81 = tpu.concatenate %72, %73, %74, %75, %76, %77, %78, %79, %80 in 3 : vector<2x8x8x32xf32>, vector<2x8x8x32xf32>, vector<2x8x8x32xf32>, vector<2x8x8x32xf32>, vector<2x8x8x32xf32>, vector<2x8x8x32xf32>, vector<2x8x8x32xf32>, vector<2x8x8x32xf32>, vector<2x8x8x32xf32> -> vector<2x8x8x288xf32>
    %82 = vector.shape_cast %81 : vector<2x8x8x288xf32> to vector<128x288xf32>
    %83 = arith.truncf %82 : vector<128x288xf32> to vector<128x288xbf16>
    %c0_135 = arith.constant 0 : index
    %c0_136 = arith.constant 0 : index
    %84 = vector.load %arg2[%c0_135, %c0_136] : memref<288x32xbf16, #tpu.memory_space<vmem>>, vector<288x32xbf16>
    %cst_137 = arith.constant dense<0.000000e+00> : vector<128x32xf32>
    %85 = tpu.matmul %83, %84, %cst_137 {dimension_numbers = #tpu.dot_dimension_numbers<[1], [0], [0], [1], [0, 0, 1, 1], [], []>} : vector<128x288xbf16>, vector<288x32xbf16>, vector<128x32xf32> -> vector<128x32xf32>
    %c0_138 = arith.constant 0 : index
    %c0_139 = arith.constant 0 : index
    %86 = vector.load %arg5[%c0_138, %c0_139] : memref<1x32xf32, #tpu.memory_space<vmem>>, vector<1x32xf32>
    %c0_140 = arith.constant 0 : index
    %c0_141 = arith.constant 0 : index
    %87 = vector.load %arg6[%c0_140, %c0_141] : memref<1x32xf32, #tpu.memory_space<vmem>>, vector<1x32xf32>
    %cst_142 = arith.constant dense<0.000000e+00> : vector<32xf32>
    %88 = vector.multi_reduction <add>, %85, %cst_142 [0] : vector<128x32xf32> to vector<32xf32>
    %89 = vector.shape_cast %88 : vector<32xf32> to vector<1x32xf32>
    %cst_143 = arith.constant 1.280000e+02 : f32
    %90 = vector.broadcast %cst_143 : f32 to vector<1x32xf32>
    %91 = arith.divf %89, %90 : vector<1x32xf32>
    %92 = vector.broadcast %91 : vector<1x32xf32> to vector<128x32xf32>
    %93 = arith.subf %85, %92 : vector<128x32xf32>
    %94 = arith.mulf %93, %93 : vector<128x32xf32>
    %cst_144 = arith.constant dense<0.000000e+00> : vector<32xf32>
    %95 = vector.multi_reduction <add>, %94, %cst_144 [0] : vector<128x32xf32> to vector<32xf32>
    %96 = vector.shape_cast %95 : vector<32xf32> to vector<1x32xf32>
    %cst_145 = arith.constant 1.280000e+02 : f32
    %97 = vector.broadcast %cst_145 : f32 to vector<1x32xf32>
    %98 = arith.divf %96, %97 : vector<1x32xf32>
    %cst_146 = arith.constant 9.99999996E-13 : f32
    %99 = vector.broadcast %cst_146 : f32 to vector<1x32xf32>
    %100 = arith.addf %98, %99 : vector<1x32xf32>
    %101 = math.rsqrt %100 : vector<1x32xf32>
    %102 = arith.mulf %86, %101 : vector<1x32xf32>
    %103 = arith.mulf %91, %102 : vector<1x32xf32>
    %104 = arith.subf %87, %103 : vector<1x32xf32>
    %105 = vector.broadcast %102 : vector<1x32xf32> to vector<128x32xf32>
    %106 = arith.mulf %85, %105 : vector<128x32xf32>
    %107 = vector.broadcast %104 : vector<1x32xf32> to vector<128x32xf32>
    %108 = arith.addf %106, %107 : vector<128x32xf32>
    %cst_147 = arith.constant 5.000000e-01 : f32
    %109 = vector.broadcast %cst_147 : f32 to vector<128x32xf32>
    %110 = arith.mulf %109, %108 : vector<128x32xf32>
    %cst_148 = arith.constant 0.707106769 : f32
    %111 = vector.broadcast %cst_148 : f32 to vector<128x32xf32>
    %112 = arith.mulf %108, %111 : vector<128x32xf32>
    %113 = math.erf %112 : vector<128x32xf32>
    %cst_149 = arith.constant 1.000000e+00 : f32
    %114 = vector.broadcast %cst_149 : f32 to vector<128x32xf32>
    %115 = arith.addf %114, %113 : vector<128x32xf32>
    %116 = arith.mulf %110, %115 : vector<128x32xf32>
    %c0_150 = arith.constant 0 : index
    %c0_151 = arith.constant 0 : index
    %117 = vector.load %arg10[%c0_150, %c0_151] : memref<512x32xf32, #tpu.memory_space<vmem>>, vector<128x32xf32>
    tpu.vector_store %arg10[%c0_150, %c0_151], %116 {strides = array<i32>} : memref<512x32xf32, #tpu.memory_space<vmem>>, vector<128x32xf32>,
    %c0_152 = arith.constant 0 : index
    %c0_153 = arith.constant 0 : index
    %118 = tpu.strided_load %arg10[%c0_152, %c0_153] {strides = array<i32: 8, 1>} : memref<512x32xf32, #tpu.memory_space<vmem>>, vector<16x32xf32>
    %c1_154 = arith.constant 1 : index
    %c0_155 = arith.constant 0 : index
    %119 = tpu.strided_load %arg10[%c1_154, %c0_155] {strides = array<i32: 8, 1>} : memref<512x32xf32, #tpu.memory_space<vmem>>, vector<16x32xf32>
    %c2_156 = arith.constant 2 : index
    %c0_157 = arith.constant 0 : index
    %120 = tpu.strided_load %arg10[%c2_156, %c0_157] {strides = array<i32: 8, 1>} : memref<512x32xf32, #tpu.memory_space<vmem>>, vector<16x32xf32>
    %c3 = arith.constant 3 : index
    %c0_158 = arith.constant 0 : index
    %121 = tpu.strided_load %arg10[%c3, %c0_158] {strides = array<i32: 8, 1>} : memref<512x32xf32, #tpu.memory_space<vmem>>, vector<16x32xf32>
    %c4 = arith.constant 4 : index
    %c0_159 = arith.constant 0 : index
    %122 = tpu.strided_load %arg10[%c4, %c0_159] {strides = array<i32: 8, 1>} : memref<512x32xf32, #tpu.memory_space<vmem>>, vector<16x32xf32>
    %c5 = arith.constant 5 : index
    %c0_160 = arith.constant 0 : index
    %123 = tpu.strided_load %arg10[%c5, %c0_160] {strides = array<i32: 8, 1>} : memref<512x32xf32, #tpu.memory_space<vmem>>, vector<16x32xf32>
    %c6 = arith.constant 6 : index
    %c0_161 = arith.constant 0 : index
    %124 = tpu.strided_load %arg10[%c6, %c0_161] {strides = array<i32: 8, 1>} : memref<512x32xf32, #tpu.memory_space<vmem>>, vector<16x32xf32>
    %c7 = arith.constant 7 : index
    %c0_162 = arith.constant 0 : index
    %125 = tpu.strided_load %arg10[%c7, %c0_162] {strides = array<i32: 8, 1>} : memref<512x32xf32, #tpu.memory_space<vmem>>, vector<16x32xf32>
    %126 = tpu.concatenate %118, %119, %120, %121, %122, %123, %124, %125 in 1 : vector<16x32xf32>, vector<16x32xf32>, vector<16x32xf32>, vector<16x32xf32>, vector<16x32xf32>, vector<16x32xf32>, vector<16x32xf32>, vector<16x32xf32> -> vector<16x256xf32>
    %c0_163 = arith.constant 0 : index
    %c0_164 = arith.constant 0 : index
    %127 = vector.load %arg7[%c0_163, %c0_164] : memref<16x256xf32, #tpu.memory_space<vmem>>, vector<16x256xf32>
    tpu.vector_store %arg7[%c0_163, %c0_164], %126 {strides = array<i32>} : memref<16x256xf32, #tpu.memory_space<vmem>>, vector<16x256xf32>,
    return
  }
}

</mosaic_0001>

<llo_original>
// kernel: conv_group_forward.1
$region0: #{conv_group_forward.1}
  #allocation0 [shape = 'u32[]', space=smem, size = 0x4, offset = 0x4, fixed_abs, tag = 'smem constant byte address 0x4 - core index']
  #allocation1 [shape = 'u32[72,128]{1,0:T(1,128)}', space=vmem, size = 0x9000, scoped, tag = 'internal scratch']
  #allocation2 [shape = 'f32[2,18,18,4]{3,2,1,0:T(8,128)}', space=vmem, size = 0x6c000, scoped, tag = 'scratch operand']
  #allocation3 [shape = 'f32[2,10,10,32]{3,2,1,0:T(8,128)}', space=vmem, size = 0x28000, scoped, tag = 'scratch operand']
  #allocation4 [shape = 'f32[512,32]{1,0:T(8,128)}', space=vmem, size = 0x40000, scoped, tag = 'scratch operand']
  %s0 = inlined_call_operand.vmem [shape: f32[2,16,16,4], index: 0, kind: input, shape index: {}]
  %s1 = inlined_call_operand.vmem [shape: bf16[36,32], index: 1, kind: input, shape index: {}]
  %s2 = inlined_call_operand.vmem [shape: bf16[288,32], index: 2, kind: input, shape index: {}]
  %s3 = inlined_call_operand.vmem [shape: f32[1,32], index: 3, kind: input, shape index: {}]
  %s4 = inlined_call_operand.vmem [shape: f32[1,32], index: 4, kind: input, shape index: {}]
  %s5 = inlined_call_operand.vmem [shape: f32[1,32], index: 5, kind: input, shape index: {}]
  %s6 = inlined_call_operand.vmem [shape: f32[1,32], index: 6, kind: input, shape index: {}]
  %s7 = inlined_call_operand.vmem [shape: f32[16,256], index: 7, kind: output, shape index: {}]
  %s8 = sld [smem:[#allocation0]]
  $region38: #{conv_group_forward.1} parent=0
    _
  %s10 = ssub.s32 1, %s8
  %s11 = scalar_select 0, %s10, %s8
  // Predicated region
  $region2: #{conv_group_forward.1} parent=0 // pred_check
    _
  $region3: #{conv_group_forward.1} parent=0 // pred_check_branch
    %13 = sbr.rel (0) target = $region5
  $region4: #{conv_group_forward.1} parent=0 // pred_region
    _
  $region5: #{conv_group_forward.1} parent=0 // pred_fallthru
    _
  // Predicated region
  $region6: #{conv_group_forward.1} parent=0 // pred_check
    _
  $region7: #{conv_group_forward.1} parent=0 // pred_check_branch
    %15 = sbr.rel (0) target = $region9
  $region8: #{conv_group_forward.1} parent=0 // pred_region
    _
  $region9: #{conv_group_forward.1} parent=0 // pred_fallthru
    _
  // Predicated region
  $region10: #{conv_group_forward.1} parent=0 // pred_check
    _
  $region11: #{conv_group_forward.1} parent=0 // pred_check_branch
    %17 = sbr.rel (0) target = $region13
  $region12: #{conv_group_forward.1} parent=0 // pred_region
    _
  $region13: #{conv_group_forward.1} parent=0 // pred_fallthru
    _
  // Predicated region
  $region14: #{conv_group_forward.1} parent=0 // pred_check
    _
  $region15: #{conv_group_forward.1} parent=0 // pred_check_branch
    %19 = sbr.rel (0) target = $region17
  $region16: #{conv_group_forward.1} parent=0 // pred_region
    _
  $region17: #{conv_group_forward.1} parent=0 // pred_fallthru
    _
  // Predicated region
  $region18: #{conv_group_forward.1} parent=0 // pred_check
    _
  $region19: #{conv_group_forward.1} parent=0 // pred_check_branch
    %21 = sbr.rel (0) target = $region21
  $region20: #{conv_group_forward.1} parent=0 // pred_region
    _
  $region21: #{conv_group_forward.1} parent=0 // pred_fallthru
    _
  // Predicated region
  $region22: #{conv_group_forward.1} parent=0 // pred_check
    _
  $region23: #{conv_group_forward.1} parent=0 // pred_check_branch
    %23 = sbr.rel (0) target = $region25
  $region24: #{conv_group_forward.1} parent=0 // pred_region
    _
  $region25: #{conv_group_forward.1} parent=0 // pred_fallthru
    _
  // Predicated region
  $region26: #{conv_group_forward.1} parent=0 // pred_check
    _
  $region27: #{conv_group_forward.1} parent=0 // pred_check_branch
    %25 = sbr.rel (0) target = $region29
  $region28: #{conv_group_forward.1} parent=0 // pred_region
    _
  $region29: #{conv_group_forward.1} parent=0 // pred_fallthru
    _
  %v27 = vld [vmem:[%s0] sm:$0xff]
  %v28 = vld [vmem:[%s0 + $0x8] sm:$0xff]
  %v29 = vld [vmem:[%s0 + $0x10] sm:$0xff]
  %v30 = vld [vmem:[%s0 + $0x18] sm:$0xff]
  %v31 = vld [vmem:[%s0 + $0x20] sm:$0xff]
  %v32 = vld [vmem:[%s0 + $0x28] sm:$0xff]
  %v33 = vld [vmem:[%s0 + $0x30] sm:$0xff]
  %v34 = vld [vmem:[%s0 + $0x38] sm:$0xff]
  %v35 = vld [vmem:[%s0 + $0x40] sm:$0xff]
  %v36 = vld [vmem:[%s0 + $0x48] sm:$0xff]
  %v37 = vld [vmem:[%s0 + $0x50] sm:$0xff]
  %v38 = vld [vmem:[%s0 + $0x58] sm:$0xff]
  %v39 = vld [vmem:[%s0 + $0x60] sm:$0xff]
  %v40 = vld [vmem:[%s0 + $0x68] sm:$0xff]
  %v41 = vld [vmem:[%s0 + $0x70] sm:$0xff]
  %v42 = vld [vmem:[%s0 + $0x78] sm:$0xff]
  %v43 = vld [vmem:[%s0 + $0x80] sm:$0xff]
  %v44 = vld [vmem:[%s0 + $0x88] sm:$0xff]
  %v45 = vld [vmem:[%s0 + $0x90] sm:$0xff]
  %v46 = vld [vmem:[%s0 + $0x98] sm:$0xff]
  %v47 = vld [vmem:[%s0 + $0xa0] sm:$0xff]
  %v48 = vld [vmem:[%s0 + $0xa8] sm:$0xff]
  %v49 = vld [vmem:[%s0 + $0xb0] sm:$0xff]
  %v50 = vld [vmem:[%s0 + $0xb8] sm:$0xff]
  %v51 = vld [vmem:[%s0 + $0xc0] sm:$0xff]
  %v52 = vld [vmem:[%s0 + $0xc8] sm:$0xff]
  %v53 = vld [vmem:[%s0 + $0xd0] sm:$0xff]
  %v54 = vld [vmem:[%s0 + $0xd8] sm:$0xff]
  %v55 = vld [vmem:[%s0 + $0xe0] sm:$0xff]
  %v56 = vld [vmem:[%s0 + $0xe8] sm:$0xff]
  %v57 = vld [vmem:[%s0 + $0xf0] sm:$0xff]
  %v58 = vld [vmem:[%s0 + $0xf8] sm:$0xff]
  %v59 = vld [vmem:[%s0 + $0x100] sm:$0xff]
  %v60 = vld [vmem:[%s0 + $0x108] sm:$0xff]
  %v61 = vld [vmem:[%s0 + $0x110] sm:$0xff]
  %v62 = vld [vmem:[%s0 + $0x118] sm:$0xff]
  %v63 = vld [vmem:[%s0 + $0x120] sm:$0xff]
  %v64 = vld [vmem:[%s0 + $0x128] sm:$0xff]
  %v65 = vld [vmem:[%s0 + $0x130] sm:$0xff]
  %v66 = vld [vmem:[%s0 + $0x138] sm:$0xff]
  %v67 = vld [vmem:[%s0 + $0x140] sm:$0xff]
  %v68 = vld [vmem:[%s0 + $0x148] sm:$0xff]
  %v69 = vld [vmem:[%s0 + $0x150] sm:$0xff]
  %v70 = vld [vmem:[%s0 + $0x158] sm:$0xff]
  %v71 = vld [vmem:[%s0 + $0x160] sm:$0xff]
  %v72 = vld [vmem:[%s0 + $0x168] sm:$0xff]
  %v73 = vld [vmem:[%s0 + $0x170] sm:$0xff]
  %v74 = vld [vmem:[%s0 + $0x178] sm:$0xff]
  %v75 = vld [vmem:[%s0 + $0x180] sm:$0xff]
  %v76 = vld [vmem:[%s0 + $0x188] sm:$0xff]
  %v77 = vld [vmem:[%s0 + $0x190] sm:$0xff]
  %v78 = vld [vmem:[%s0 + $0x198] sm:$0xff]
  %v79 = vld [vmem:[%s0 + $0x1a0] sm:$0xff]
  %v80 = vld [vmem:[%s0 + $0x1a8] sm:$0xff]
  %v81 = vld [vmem:[%s0 + $0x1b0] sm:$0xff]
  %v82 = vld [vmem:[%s0 + $0x1b8] sm:$0xff]
  %v83 = vld [vmem:[%s0 + $0x1c0] sm:$0xff]
  %v84 = vld [vmem:[%s0 + $0x1c8] sm:$0xff]
  %v85 = vld [vmem:[%s0 + $0x1d0] sm:$0xff]
  %v86 = vld [vmem:[%s0 + $0x1d8] sm:$0xff]
  %v87 = vld [vmem:[%s0 + $0x1e0] sm:$0xff]
  %v88 = vld [vmem:[%s0 + $0x1e8] sm:$0xff]
  %v89 = vld [vmem:[%s0 + $0x1f0] sm:$0xff]
  %v90 = vld [vmem:[%s0 + $0x1f8] sm:$0xff]
  %vm91 = vcmask 31744
  %92 = vst.msk [vmem:[#allocation2] sm:$0xff] %vm91, 0.0
  %93 = vst.msk [vmem:[#allocation2 + $0x8] sm:$0xff] %vm91, 0.0
  %vm94 = vcmask 25600
  %95 = vst.msk [vmem:[#allocation2 + $0x10] sm:$0x3] %vm94, 0.0
  %96 = vst.msk [vmem:[#allocation2 + $0x1b0] sm:$0xff] %vm91, 0.0
  %97 = vst.msk [vmem:[#allocation2 + $0x1b8] sm:$0xff] %vm91, 0.0
  %98 = vst.msk [vmem:[#allocation2 + $0x1c0] sm:$0x3] %vm94, 0.0
  %s99 = scalar_lea.vmem [#allocation2], 408
  %100 = vst.msk [vmem:[%s99] sm:$0xff] %vm91, 0.0
  %101 = vst.msk [vmem:[%s99 + $0x8] sm:$0xff] %vm91, 0.0
  %102 = vst.msk [vmem:[%s99 + $0x10] sm:$0x3] %vm94, 0.0
  %103 = vst.msk [vmem:[%s99 + $0x1b0] sm:$0xff] %vm91, 0.0
  %104 = vst.msk [vmem:[%s99 + $0x1b8] sm:$0xff] %vm91, 0.0
  %105 = vst.msk [vmem:[%s99 + $0x1c0] sm:$0x3] %vm94, 0.0
  %s106 = scalar_lea.vmem [#allocation2], 24
  %vm107 = vcmask 24576
  %108 = vst.msk [vmem:[%s106] sm:$0x1] %vm107, 0.0
  %109 = vst.msk [vmem:[%s106 + $0x18] sm:$0x1] %vm107, 0.0
  %110 = vst.msk [vmem:[%s106 + $0x30] sm:$0x1] %vm107, 0.0
  %111 = vst.msk [vmem:[%s106 + $0x48] sm:$0x1] %vm107, 0.0
  %112 = vst.msk [vmem:[%s106 + $0x60] sm:$0x1] %vm107, 0.0
  %113 = vst.msk [vmem:[%s106 + $0x78] sm:$0x1] %vm107, 0.0
  %114 = vst.msk [vmem:[%s106 + $0x90] sm:$0x1] %vm107, 0.0
  %115 = vst.msk [vmem:[%s106 + $0xa8] sm:$0x1] %vm107, 0.0
  %116 = vst.msk [vmem:[%s106 + $0xc0] sm:$0x1] %vm107, 0.0
  %117 = vst.msk [vmem:[%s106 + $0xd8] sm:$0x1] %vm107, 0.0
  %118 = vst.msk [vmem:[%s106 + $0xf0] sm:$0x1] %vm107, 0.0
  %119 = vst.msk [vmem:[%s106 + $0x108] sm:$0x1] %vm107, 0.0
  %120 = vst.msk [vmem:[%s106 + $0x120] sm:$0x1] %vm107, 0.0
  %121 = vst.msk [vmem:[%s106 + $0x138] sm:$0x1] %vm107, 0.0
  %122 = vst.msk [vmem:[%s106 + $0x150] sm:$0x1] %vm107, 0.0
  %123 = vst.msk [vmem:[%s106 + $0x168] sm:$0x1] %vm107, 0.0
  %124 = vst.msk [vmem:[%s106 + $0x1b0] sm:$0x1] %vm107, 0.0
  %125 = vst.msk [vmem:[%s106 + $0x1c8] sm:$0x1] %vm107, 0.0
  %126 = vst.msk [vmem:[%s106 + $0x1e0] sm:$0x1] %vm107, 0.0
  %127 = vst.msk [vmem:[%s106 + $0x1f8] sm:$0x1] %vm107, 0.0
  %128 = vst.msk [vmem:[%s106 + $0x210] sm:$0x1] %vm107, 0.0
  %129 = vst.msk [vmem:[%s106 + $0x228] sm:$0x1] %vm107, 0.0
  %130 = vst.msk [vmem:[%s106 + $0x240] sm:$0x1] %vm107, 0.0
  %131 = vst.msk [vmem:[%s106 + $0x258] sm:$0x1] %vm107, 0.0
  %132 = vst.msk [vmem:[%s106 + $0x270] sm:$0x1] %vm107, 0.0
  %133 = vst.msk [vmem:[%s106 + $0x288] sm:$0x1] %vm107, 0.0
  %134 = vst.msk [vmem:[%s106 + $0x2a0] sm:$0x1] %vm107, 0.0
  %135 = vst.msk [vmem:[%s106 + $0x2b8] sm:$0x1] %vm107, 0.0
  %136 = vst.msk [vmem:[%s106 + $0x2d0] sm:$0x1] %vm107, 0.0
  %137 = vst.msk [vmem:[%s106 + $0x2e8] sm:$0x1] %vm107, 0.0
  %138 = vst.msk [vmem:[%s106 + $0x300] sm:$0x1] %vm107, 0.0
  %139 = vst.msk [vmem:[%s106 + $0x318] sm:$0x1] %vm107, 0.0
  %140 = vst.msk [vmem:[%s106 + $0x11] sm:$0x1] %vm107, 0.0
  %141 = vst.msk [vmem:[%s106 + $0x29] sm:$0x1] %vm107, 0.0
  %142 = vst.msk [vmem:[%s106 + $0x41] sm:$0x1] %vm107, 0.0
  %143 = vst.msk [vmem:[%s106 + $0x59] sm:$0x1] %vm107, 0.0
  %144 = vst.msk [vmem:[%s106 + $0x71] sm:$0x1] %vm107, 0.0
  %145 = vst.msk [vmem:[%s106 + $0x89] sm:$0x1] %vm107, 0.0
  %146 = vst.msk [vmem:[%s106 + $0xa1] sm:$0x1] %vm107, 0.0
  %147 = vst.msk [vmem:[%s106 + $0xb9] sm:$0x1] %vm107, 0.0
  %148 = vst.msk [vmem:[%s106 + $0xd1] sm:$0x1] %vm107, 0.0
  %149 = vst.msk [vmem:[%s106 + $0xe9] sm:$0x1] %vm107, 0.0
  %150 = vst.msk [vmem:[%s106 + $0x101] sm:$0x1] %vm107, 0.0
  %151 = vst.msk [vmem:[%s106 + $0x119] sm:$0x1] %vm107, 0.0
  %152 = vst.msk [vmem:[%s106 + $0x131] sm:$0x1] %vm107, 0.0
  %153 = vst.msk [vmem:[%s106 + $0x149] sm:$0x1] %vm107, 0.0
  %154 = vst.msk [vmem:[%s106 + $0x161] sm:$0x1] %vm107, 0.0
  %155 = vst.msk [vmem:[%s106 + $0x179] sm:$0x1] %vm107, 0.0
  %156 = vst.msk [vmem:[%s106 + $0x1c1] sm:$0x1] %vm107, 0.0
  %157 = vst.msk [vmem:[%s106 + $0x1d9] sm:$0x1] %vm107, 0.0
  %158 = vst.msk [vmem:[%s106 + $0x1f1] sm:$0x1] %vm107, 0.0
  %159 = vst.msk [vmem:[%s106 + $0x209] sm:$0x1] %vm107, 0.0
  %160 = vst.msk [vmem:[%s106 + $0x221] sm:$0x1] %vm107, 0.0
  %161 = vst.msk [vmem:[%s106 + $0x239] sm:$0x1] %vm107, 0.0
  %162 = vst.msk [vmem:[%s106 + $0x251] sm:$0x1] %vm107, 0.0
  %163 = vst.msk [vmem:[%s106 + $0x269] sm:$0x1] %vm107, 0.0
  %164 = vst.msk [vmem:[%s106 + $0x281] sm:$0x1] %vm107, 0.0
  %165 = vst.msk [vmem:[%s106 + $0x299] sm:$0x1] %vm107, 0.0
  %166 = vst.msk [vmem:[%s106 + $0x2b1] sm:$0x1] %vm107, 0.0
  %167 = vst.msk [vmem:[%s106 + $0x2c9] sm:$0x1] %vm107, 0.0
  %168 = vst.msk [vmem:[%s106 + $0x2e1] sm:$0x1] %vm107, 0.0
  %169 = vst.msk [vmem:[%s106 + $0x2f9] sm:$0x1] %vm107, 0.0
  %170 = vst.msk [vmem:[%s106 + $0x311] sm:$0x1] %vm107, 0.0
  %171 = vst.msk [vmem:[%s106 + $0x329] sm:$0x1] %vm107, 0.0
  %172 = vst.msk [vmem:[%s106 + $0x1] sm:$0xff] %vm91, %v27
  %173 = vst.msk [vmem:[%s106 + $0x9] sm:$0xff] %vm91, %v28
  %174 = vst.msk [vmem:[%s106 + $0x19] sm:$0xff] %vm91, %v29
  %175 = vst.msk [vmem:[%s106 + $0x21] sm:$0xff] %vm91, %v30
  %176 = vst.msk [vmem:[%s106 + $0x31] sm:$0xff] %vm91, %v31
  %177 = vst.msk [vmem:[%s106 + $0x39] sm:$0xff] %vm91, %v32
  %178 = vst.msk [vmem:[%s106 + $0x49] sm:$0xff] %vm91, %v33
  %179 = vst.msk [vmem:[%s106 + $0x51] sm:$0xff] %vm91, %v34
  %180 = vst.msk [vmem:[%s106 + $0x61] sm:$0xff] %vm91, %v35
  %181 = vst.msk [vmem:[%s106 + $0x69] sm:$0xff] %vm91, %v36
  %182 = vst.msk [vmem:[%s106 + $0x79] sm:$0xff] %vm91, %v37
  %183 = vst.msk [vmem:[%s106 + $0x81] sm:$0xff] %vm91, %v38
  %184 = vst.msk [vmem:[%s106 + $0x91] sm:$0xff] %vm91, %v39
  %185 = vst.msk [vmem:[%s106 + $0x99] sm:$0xff] %vm91, %v40
  %186 = vst.msk [vmem:[%s106 + $0xa9] sm:$0xff] %vm91, %v41
  %187 = vst.msk [vmem:[%s106 + $0xb1] sm:$0xff] %vm91, %v42
  %188 = vst.msk [vmem:[%s106 + $0xc1] sm:$0xff] %vm91, %v43
  %189 = vst.msk [vmem:[%s106 + $0xc9] sm:$0xff] %vm91, %v44
  %190 = vst.msk [vmem:[%s106 + $0xd9] sm:$0xff] %vm91, %v45
  %191 = vst.msk [vmem:[%s106 + $0xe1] sm:$0xff] %vm91, %v46
  %192 = vst.msk [vmem:[%s106 + $0xf1] sm:$0xff] %vm91, %v47
  %193 = vst.msk [vmem:[%s106 + $0xf9] sm:$0xff] %vm91, %v48
  %194 = vst.msk [vmem:[%s106 + $0x109] sm:$0xff] %vm91, %v49
  %195 = vst.msk [vmem:[%s106 + $0x111] sm:$0xff] %vm91, %v50
  %196 = vst.msk [vmem:[%s106 + $0x121] sm:$0xff] %vm91, %v51
  %197 = vst.msk [vmem:[%s106 + $0x129] sm:$0xff] %vm91, %v52
  %198 = vst.msk [vmem:[%s106 + $0x139] sm:$0xff] %vm91, %v53
  %199 = vst.msk [vmem:[%s106 + $0x141] sm:$0xff] %vm91, %v54
  %200 = vst.msk [vmem:[%s106 + $0x151] sm:$0xff] %vm91, %v55
  %201 = vst.msk [vmem:[%s106 + $0x159] sm:$0xff] %vm91, %v56
  %202 = vst.msk [vmem:[%s106 + $0x169] sm:$0xff] %vm91, %v57
  %203 = vst.msk [vmem:[%s106 + $0x171] sm:$0xff] %vm91, %v58
  %204 = vst.msk [vmem:[%s106 + $0x1b1] sm:$0xff] %vm91, %v59
  %205 = vst.msk [vmem:[%s106 + $0x1b9] sm:$0xff] %vm91, %v60
  %206 = vst.msk [vmem:[%s106 + $0x1c9] sm:$0xff] %vm91, %v61
  %207 = vst.msk [vmem:[%s106 + $0x1d1] sm:$0xff] %vm91, %v62
  %208 = vst.msk [vmem:[%s106 + $0x1e1] sm:$0xff] %vm91, %v63
  %209 = vst.msk [vmem:[%s106 + $0x1e9] sm:$0xff] %vm91, %v64
  %210 = vst.msk [vmem:[%s106 + $0x1f9] sm:$0xff] %vm91, %v65
  %211 = vst.msk [vmem:[%s106 + $0x201] sm:$0xff] %vm91, %v66
  %212 = vst.msk [vmem:[%s106 + $0x211] sm:$0xff] %vm91, %v67
  %213 = vst.msk [vmem:[%s106 + $0x219] sm:$0xff] %vm91, %v68
  %214 = vst.msk [vmem:[%s106 + $0x229] sm:$0xff] %vm91, %v69
  %215 = vst.msk [vmem:[%s106 + $0x231] sm:$0xff] %vm91, %v70
  %216 = vst.msk [vmem:[%s106 + $0x241] sm:$0xff] %vm91, %v71
  %217 = vst.msk [vmem:[%s106 + $0x249] sm:$0xff] %vm91, %v72
  %218 = vst.msk [vmem:[%s106 + $0x259] sm:$0xff] %vm91, %v73
  %219 = vst.msk [vmem:[%s106 + $0x261] sm:$0xff] %vm91, %v74
  %220 = vst.msk [vmem:[%s106 + $0x271] sm:$0xff] %vm91, %v75
  %221 = vst.msk [vmem:[%s106 + $0x279] sm:$0xff] %vm91, %v76
  %222 = vst.msk [vmem:[%s106 + $0x289] sm:$0xff] %vm91, %v77
  %223 = vst.msk [vmem:[%s106 + $0x291] sm:$0xff] %vm91, %v78
  %224 = vst.msk [vmem:[%s106 + $0x2a1] sm:$0xff] %vm91, %v79
  %225 = vst.msk [vmem:[%s106 + $0x2a9] sm:$0xff] %vm91, %v80
  %226 = vst.msk [vmem:[%s106 + $0x2b9] sm:$0xff] %vm91, %v81
  %227 = vst.msk [vmem:[%s106 + $0x2c1] sm:$0xff] %vm91, %v82
  %228 = vst.msk [vmem:[%s106 + $0x2d1] sm:$0xff] %vm91, %v83
  %229 = vst.msk [vmem:[%s106 + $0x2d9] sm:$0xff] %vm91, %v84
  %230 = vst.msk [vmem:[%s106 + $0x2e9] sm:$0xff] %vm91, %v85
  %231 = vst.msk [vmem:[%s106 + $0x2f1] sm:$0xff] %vm91, %v86
  %232 = vst.msk [vmem:[%s106 + $0x301] sm:$0xff] %vm91, %v87
  %233 = vst.msk [vmem:[%s106 + $0x309] sm:$0xff] %vm91, %v88
  %234 = vst.msk [vmem:[%s106 + $0x319] sm:$0xff] %vm91, %v89
  %235 = vst.msk [vmem:[%s106 + $0x321] sm:$0xff] %vm91, %v90
  %v236 = vld [vmem:[#allocation2] sm:$0xff]
  %v237 = vld [vmem:[#allocation2 + $0x8] sm:$0xff]
  %v238 = vld [vmem:[#allocation2 + $0x18] sm:$0xff]
  %v239 = vld [vmem:[#allocation2 + $0x20] sm:$0xff]
  %v240 = vld [vmem:[#allocation2 + $0x30] sm:$0xff]
  %v241 = vld [vmem:[#allocation2 + $0x38] sm:$0xff]
  %v242 = vld [vmem:[#allocation2 + $0x48] sm:$0xff]
  %v243 = vld [vmem:[#allocation2 + $0x50] sm:$0xff]
  %v244 = vld [vmem:[#allocation2 + $0x60] sm:$0xff]
  %v245 = vld [vmem:[#allocation2 + $0x68] sm:$0xff]
  %v246 = vld [vmem:[#allocation2 + $0x78] sm:$0xff]
  %v247 = vld [vmem:[#allocation2 + $0x80] sm:$0xff]
  %v248 = vld [vmem:[#allocation2 + $0x90] sm:$0xff]
  %v249 = vld [vmem:[#allocation2 + $0x98] sm:$0xff]
  %v250 = vld [vmem:[#allocation2 + $0xa8] sm:$0xff]
  %v251 = vld [vmem:[#allocation2 + $0xb0] sm:$0xff]
  %v252 = vld [vmem:[#allocation2 + $0xc0] sm:$0xff]
  %v253 = vld [vmem:[#allocation2 + $0xc8] sm:$0xff]
  %v254 = vld [vmem:[#allocation2 + $0xd8] sm:$0xff]
  %v255 = vld [vmem:[#allocation2 + $0xe0] sm:$0xff]
  %v256 = vld [vmem:[#allocation2 + $0xf0] sm:$0xff]
  %v257 = vld [vmem:[#allocation2 + $0xf8] sm:$0xff]
  %v258 = vld [vmem:[#allocation2 + $0x108] sm:$0xff]
  %v259 = vld [vmem:[#allocation2 + $0x110] sm:$0xff]
  %v260 = vld [vmem:[#allocation2 + $0x120] sm:$0xff]
  %v261 = vld [vmem:[#allocation2 + $0x128] sm:$0xff]
  %v262 = vld [vmem:[#allocation2 + $0x138] sm:$0xff]
  %v263 = vld [vmem:[#allocation2 + $0x140] sm:$0xff]
  %v264 = vld [vmem:[#allocation2 + $0x150] sm:$0xff]
  %v265 = vld [vmem:[#allocation2 + $0x158] sm:$0xff]
  %v266 = vld [vmem:[#allocation2 + $0x168] sm:$0xff]
  %v267 = vld [vmem:[#allocation2 + $0x170] sm:$0xff]
  %v268 = vld [vmem:[#allocation2 + $0x1b0] sm:$0xff]
  %v269 = vld [vmem:[#allocation2 + $0x1b8] sm:$0xff]
  %v270 = vld [vmem:[#allocation2 + $0x1c8] sm:$0xff]
  %v271 = vld [vmem:[#allocation2 + $0x1d0] sm:$0xff]
  %v272 = vld [vmem:[#allocation2 + $0x1e0] sm:$0xff]
  %v273 = vld [vmem:[#allocation2 + $0x1e8] sm:$0xff]
  %v274 = vld [vmem:[#allocation2 + $0x1f8] sm:$0xff]
  %v275 = vld [vmem:[#allocation2 + $0x200] sm:$0xff]
  %v276 = vld [vmem:[#allocation2 + $0x210] sm:$0xff]
  %v277 = vld [vmem:[#allocation2 + $0x218] sm:$0xff]
  %v278 = vld [vmem:[#allocation2 + $0x228] sm:$0xff]
  %v279 = vld [vmem:[#allocation2 + $0x230] sm:$0xff]
  %v280 = vld [vmem:[#allocation2 + $0x240] sm:$0xff]
  %v281 = vld [vmem:[#allocation2 + $0x248] sm:$0xff]
  %v282 = vld [vmem:[#allocation2 + $0x258] sm:$0xff]
  %v283 = vld [vmem:[#allocation2 + $0x260] sm:$0xff]
  %v284 = vld [vmem:[#allocation2 + $0x270] sm:$0xff]
  %v285 = vld [vmem:[#allocation2 + $0x278] sm:$0xff]
  %v286 = vld [vmem:[#allocation2 + $0x288] sm:$0xff]
  %v287 = vld [vmem:[#allocation2 + $0x290] sm:$0xff]
  %v288 = vld [vmem:[#allocation2 + $0x2a0] sm:$0xff]
  %v289 = vld [vmem:[#allocation2 + $0x2a8] sm:$0xff]
  %v290 = vld [vmem:[#allocation2 + $0x2b8] sm:$0xff]
  %v291 = vld [vmem:[#allocation2 + $0x2c0] sm:$0xff]
  %v292 = vld [vmem:[#allocation2 + $0x2d0] sm:$0xff]
  %v293 = vld [vmem:[#allocation2 + $0x2d8] sm:$0xff]
  %v294 = vld [vmem:[#allocation2 + $0x2e8] sm:$0xff]
  %v295 = vld [vmem:[#allocation2 + $0x2f0] sm:$0xff]
  %v296 = vld [vmem:[#allocation2 + $0x300] sm:$0xff]
  %v297 = vld [vmem:[#allocation2 + $0x308] sm:$0xff]
  %v298 = vld [vmem:[#allocation2 + $0x318] sm:$0xff]
  %v299 = vld [vmem:[#allocation2 + $0x320] sm:$0xff]
  %v300 = vld [vmem:[#allocation2 + $0x1] sm:$0xff]
  %v301 = vld [vmem:[#allocation2 + $0x9] sm:$0xff]
  %v302 = vld [vmem:[#allocation2 + $0x19] sm:$0xff]
  %v303 = vld [vmem:[#allocation2 + $0x21] sm:$0xff]
  %v304 = vld [vmem:[#allocation2 + $0x31] sm:$0xff]
  %v305 = vld [vmem:[#allocation2 + $0x39] sm:$0xff]
  %v306 = vld [vmem:[#allocation2 + $0x49] sm:$0xff]
  %v307 = vld [vmem:[#allocation2 + $0x51] sm:$0xff]
  %v308 = vld [vmem:[#allocation2 + $0x61] sm:$0xff]
  %v309 = vld [vmem:[#allocation2 + $0x69] sm:$0xff]
  %v310 = vld [vmem:[#allocation2 + $0x79] sm:$0xff]
  %v311 = vld [vmem:[#allocation2 + $0x81] sm:$0xff]
  %v312 = vld [vmem:[#allocation2 + $0x91] sm:$0xff]
  %v313 = vld [vmem:[#allocation2 + $0x99] sm:$0xff]
  %v314 = vld [vmem:[#allocation2 + $0xa9] sm:$0xff]
  %v315 = vld [vmem:[#allocation2 + $0xb1] sm:$0xff]
  %v316 = vld [vmem:[#allocation2 + $0xc1] sm:$0xff]
  %v317 = vld [vmem:[#allocation2 + $0xc9] sm:$0xff]
  %v318 = vld [vmem:[#allocation2 + $0xd9] sm:$0xff]
  %v319 = vld [vmem:[#allocation2 + $0xe1] sm:$0xff]
  %v320 = vld [vmem:[#allocation2 + $0xf1] sm:$0xff]
  %v321 = vld [vmem:[#allocation2 + $0xf9] sm:$0xff]
  %v322 = vld [vmem:[#allocation2 + $0x109] sm:$0xff]
  %v323 = vld [vmem:[#allocation2 + $0x111] sm:$0xff]
  %v324 = vld [vmem:[#allocation2 + $0x121] sm:$0xff]
  %v325 = vld [vmem:[#allocation2 + $0x129] sm:$0xff]
  %v326 = vld [vmem:[#allocation2 + $0x139] sm:$0xff]
  %v327 = vld [vmem:[#allocation2 + $0x141] sm:$0xff]
  %v328 = vld [vmem:[#allocation2 + $0x151] sm:$0xff]
  %v329 = vld [vmem:[#allocation2 + $0x159] sm:$0xff]
  %v330 = vld [vmem:[#allocation2 + $0x169] sm:$0xff]
  %v331 = vld [vmem:[#allocation2 + $0x171] sm:$0xff]
  %v332 = vld [vmem:[#allocation2 + $0x1b1] sm:$0xff]
  %v333 = vld [vmem:[#allocation2 + $0x1b9] sm:$0xff]
  %v334 = vld [vmem:[#allocation2 + $0x1c9] sm:$0xff]
  %v335 = vld [vmem:[#allocation2 + $0x1d1] sm:$0xff]
  %v336 = vld [vmem:[#allocation2 + $0x1e1] sm:$0xff]
  %v337 = vld [vmem:[#allocation2 + $0x1e9] sm:$0xff]
  %v338 = vld [vmem:[#allocation2 + $0x1f9] sm:$0xff]
  %v339 = vld [vmem:[#allocation2 + $0x201] sm:$0xff]
  %v340 = vld [vmem:[#allocation2 + $0x211] sm:$0xff]
  %v341 = vld [vmem:[#allocation2 + $0x219] sm:$0xff]
  %v342 = vld [vmem:[#allocation2 + $0x229] sm:$0xff]
  %v343 = vld [vmem:[#allocation2 + $0x231] sm:$0xff]
  %v344 = vld [vmem:[#allocation2 + $0x241] sm:$0xff]
  %v345 = vld [vmem:[#allocation2 + $0x249] sm:$0xff]
  %v346 = vld [vmem:[#allocation2 + $0x259] sm:$0xff]
  %v347 = vld [vmem:[#allocation2 + $0x261] sm:$0xff]
  %v348 = vld [vmem:[#allocation2 + $0x271] sm:$0xff]
  %v349 = vld [vmem:[#allocation2 + $0x279] sm:$0xff]
  %v350 = vld [vmem:[#allocation2 + $0x289] sm:$0xff]
  %v351 = vld [vmem:[#allocation2 + $0x291] sm:$0xff]
  %v352 = vld [vmem:[#allocation2 + $0x2a1] sm:$0xff]
  %v353 = vld [vmem:[#allocation2 + $0x2a9] sm:$0xff]
  %v354 = vld [vmem:[#allocation2 + $0x2b9] sm:$0xff]
  %v355 = vld [vmem:[#allocation2 + $0x2c1] sm:$0xff]
  %v356 = vld [vmem:[#allocation2 + $0x2d1] sm:$0xff]
  %v357 = vld [vmem:[#allocation2 + $0x2d9] sm:$0xff]
  %v358 = vld [vmem:[#allocation2 + $0x2e9] sm:$0xff]
  %v359 = vld [vmem:[#allocation2 + $0x2f1] sm:$0xff]
  %v360 = vld [vmem:[#allocation2 + $0x301] sm:$0xff]
  %v361 = vld [vmem:[#allocation2 + $0x309] sm:$0xff]
  %v362 = vld [vmem:[#allocation2 + $0x319] sm:$0xff]
  %v363 = vld [vmem:[#allocation2 + $0x321] sm:$0xff]
  %v364 = vld [vmem:[#allocation2 + $0x2] sm:$0xff]
  %v365 = vld [vmem:[#allocation2 + $0xa] sm:$0xff]
  %v366 = vld [vmem:[#allocation2 + $0x1a] sm:$0xff]
  %v367 = vld [vmem:[#allocation2 + $0x22] sm:$0xff]
  %v368 = vld [vmem:[#allocation2 + $0x32] sm:$0xff]
  %v369 = vld [vmem:[#allocation2 + $0x3a] sm:$0xff]
  %v370 = vld [vmem:[#allocation2 + $0x4a] sm:$0xff]
  %v371 = vld [vmem:[#allocation2 + $0x52] sm:$0xff]
  %v372 = vld [vmem:[#allocation2 + $0x62] sm:$0xff]
  %v373 = vld [vmem:[#allocation2 + $0x6a] sm:$0xff]
  %v374 = vld [vmem:[#allocation2 + $0x7a] sm:$0xff]
  %v375 = vld [vmem:[#allocation2 + $0x82] sm:$0xff]
  %v376 = vld [vmem:[#allocation2 + $0x92] sm:$0xff]
  %v377 = vld [vmem:[#allocation2 + $0x9a] sm:$0xff]
  %v378 = vld [vmem:[#allocation2 + $0xaa] sm:$0xff]
  %v379 = vld [vmem:[#allocation2 + $0xb2] sm:$0xff]
  %v380 = vld [vmem:[#allocation2 + $0xc2] sm:$0xff]
  %v381 = vld [vmem:[#allocation2 + $0xca] sm:$0xff]
  %v382 = vld [vmem:[#allocation2 + $0xda] sm:$0xff]
  %v383 = vld [vmem:[#allocation2 + $0xe2] sm:$0xff]
  %v384 = vld [vmem:[#allocation2 + $0xf2] sm:$0xff]
  %v385 = vld [vmem:[#allocation2 + $0xfa] sm:$0xff]
  %v386 = vld [vmem:[#allocation2 + $0x10a] sm:$0xff]
  %v387 = vld [vmem:[#allocation2 + $0x112] sm:$0xff]
  %v388 = vld [vmem:[#allocation2 + $0x122] sm:$0xff]
  %v389 = vld [vmem:[#allocation2 + $0x12a] sm:$0xff]
  %v390 = vld [vmem:[#allocation2 + $0x13a] sm:$0xff]
  %v391 = vld [vmem:[#allocation2 + $0x142] sm:$0xff]
  %v392 = vld [vmem:[#allocation2 + $0x152] sm:$0xff]
  %v393 = vld [vmem:[#allocation2 + $0x15a] sm:$0xff]
  %v394 = vld [vmem:[#allocation2 + $0x16a] sm:$0xff]
  %v395 = vld [vmem:[#allocation2 + $0x172] sm:$0xff]
  %v396 = vld [vmem:[#allocation2 + $0x1b2] sm:$0xff]
  %v397 = vld [vmem:[#allocation2 + $0x1ba] sm:$0xff]
  %v398 = vld [vmem:[#allocation2 + $0x1ca] sm:$0xff]
  %v399 = vld [vmem:[#allocation2 + $0x1d2] sm:$0xff]
  %v400 = vld [vmem:[#allocation2 + $0x1e2] sm:$0xff]
  %v401 = vld [vmem:[#allocation2 + $0x1ea] sm:$0xff]
  %v402 = vld [vmem:[#allocation2 + $0x1fa] sm:$0xff]
  %v403 = vld [vmem:[#allocation2 + $0x202] sm:$0xff]
  %v404 = vld [vmem:[#allocation2 + $0x212] sm:$0xff]
  %v405 = vld [vmem:[#allocation2 + $0x21a] sm:$0xff]
  %v406 = vld [vmem:[#allocation2 + $0x22a] sm:$0xff]
  %v407 = vld [vmem:[#allocation2 + $0x232] sm:$0xff]
  %v408 = vld [vmem:[#allocation2 + $0x242] sm:$0xff]
  %v409 = vld [vmem:[#allocation2 + $0x24a] sm:$0xff]
  %v410 = vld [vmem:[#allocation2 + $0x25a] sm:$0xff]
  %v411 = vld [vmem:[#allocation2 + $0x262] sm:$0xff]
  %v412 = vld [vmem:[#allocation2 + $0x272] sm:$0xff]
  %v413 = vld [vmem:[#allocation2 + $0x27a] sm:$0xff]
  %v414 = vld [vmem:[#allocation2 + $0x28a] sm:$0xff]
  %v415 = vld [vmem:[#allocation2 + $0x292] sm:$0xff]
  %v416 = vld [vmem:[#allocation2 + $0x2a2] sm:$0xff]
  %v417 = vld [vmem:[#allocation2 + $0x2aa] sm:$0xff]
  %v418 = vld [vmem:[#allocation2 + $0x2ba] sm:$0xff]
  %v419 = vld [vmem:[#allocation2 + $0x2c2] sm:$0xff]
  %v420 = vld [vmem:[#allocation2 + $0x2d2] sm:$0xff]
  %v421 = vld [vmem:[#allocation2 + $0x2da] sm:$0xff]
  %v422 = vld [vmem:[#allocation2 + $0x2ea] sm:$0xff]
  %v423 = vld [vmem:[#allocation2 + $0x2f2] sm:$0xff]
  %v424 = vld [vmem:[#allocation2 + $0x302] sm:$0xff]
  %v425 = vld [vmem:[#allocation2 + $0x30a] sm:$0xff]
  %v426 = vld [vmem:[#allocation2 + $0x31a] sm:$0xff]
  %v427 = vld [vmem:[#allocation2 + $0x322] sm:$0xff]
  %v428 = vld [vmem:[%s106] sm:$0xff]
  %v429 = vld [vmem:[%s106 + $0x8] sm:$0xff]
  %v430 = vld [vmem:[%s106 + $0x18] sm:$0xff]
  %v431 = vld [vmem:[%s106 + $0x20] sm:$0xff]
  %v432 = vld [vmem:[%s106 + $0x30] sm:$0xff]
  %v433 = vld [vmem:[%s106 + $0x38] sm:$0xff]
  %v434 = vld [vmem:[%s106 + $0x48] sm:$0xff]
  %v435 = vld [vmem:[%s106 + $0x50] sm:$0xff]
  %v436 = vld [vmem:[%s106 + $0x60] sm:$0xff]
  %v437 = vld [vmem:[%s106 + $0x68] sm:$0xff]
  %v438 = vld [vmem:[%s106 + $0x78] sm:$0xff]
  %v439 = vld [vmem:[%s106 + $0x80] sm:$0xff]
  %v440 = vld [vmem:[%s106 + $0x90] sm:$0xff]
  %v441 = vld [vmem:[%s106 + $0x98] sm:$0xff]
  %v442 = vld [vmem:[%s106 + $0xa8] sm:$0xff]
  %v443 = vld [vmem:[%s106 + $0xb0] sm:$0xff]
  %v444 = vld [vmem:[%s106 + $0xc0] sm:$0xff]
  %v445 = vld [vmem:[%s106 + $0xc8] sm:$0xff]
  %v446 = vld [vmem:[%s106 + $0xd8] sm:$0xff]
  %v447 = vld [vmem:[%s106 + $0xe0] sm:$0xff]
  %v448 = vld [vmem:[%s106 + $0xf0] sm:$0xff]
  %v449 = vld [vmem:[%s106 + $0xf8] sm:$0xff]
  %v450 = vld [vmem:[%s106 + $0x108] sm:$0xff]
  %v451 = vld [vmem:[%s106 + $0x110] sm:$0xff]
  %v452 = vld [vmem:[%s106 + $0x120] sm:$0xff]
  %v453 = vld [vmem:[%s106 + $0x128] sm:$0xff]
  %v454 = vld [vmem:[%s106 + $0x138] sm:$0xff]
  %v455 = vld [vmem:[%s106 + $0x140] sm:$0xff]
  %v456 = vld [vmem:[%s106 + $0x150] sm:$0xff]
  %v457 = vld [vmem:[%s106 + $0x158] sm:$0xff]
  %v458 = vld [vmem:[%s106 + $0x168] sm:$0xff]
  %v459 = vld [vmem:[%s106 + $0x170] sm:$0xff]
  %v460 = vld [vmem:[%s106 + $0x1b0] sm:$0xff]
  %v461 = vld [vmem:[%s106 + $0x1b8] sm:$0xff]
  %v462 = vld [vmem:[%s106 + $0x1c8] sm:$0xff]
  %v463 = vld [vmem:[%s106 + $0x1d0] sm:$0xff]
  %v464 = vld [vmem:[%s106 + $0x1e0] sm:$0xff]
  %v465 = vld [vmem:[%s106 + $0x1e8] sm:$0xff]
  %v466 = vld [vmem:[%s106 + $0x1f8] sm:$0xff]
  %v467 = vld [vmem:[%s106 + $0x200] sm:$0xff]
  %v468 = vld [vmem:[%s106 + $0x210] sm:$0xff]
  %v469 = vld [vmem:[%s106 + $0x218] sm:$0xff]
  %v470 = vld [vmem:[%s106 + $0x228] sm:$0xff]
  %v471 = vld [vmem:[%s106 + $0x230] sm:$0xff]
  %v472 = vld [vmem:[%s106 + $0x240] sm:$0xff]
  %v473 = vld [vmem:[%s106 + $0x248] sm:$0xff]
  %v474 = vld [vmem:[%s106 + $0x258] sm:$0xff]
  %v475 = vld [vmem:[%s106 + $0x260] sm:$0xff]
  %v476 = vld [vmem:[%s106 + $0x270] sm:$0xff]
  %v477 = vld [vmem:[%s106 + $0x278] sm:$0xff]
  %v478 = vld [vmem:[%s106 + $0x288] sm:$0xff]
  %v479 = vld [vmem:[%s106 + $0x290] sm:$0xff]
  %v480 = vld [vmem:[%s106 + $0x2a0] sm:$0xff]
  %v481 = vld [vmem:[%s106 + $0x2a8] sm:$0xff]
  %v482 = vld [vmem:[%s106 + $0x2b8] sm:$0xff]
  %v483 = vld [vmem:[%s106 + $0x2c0] sm:$0xff]
  %v484 = vld [vmem:[%s106 + $0x2d0] sm:$0xff]
  %v485 = vld [vmem:[%s106 + $0x2d8] sm:$0xff]
  %v486 = vld [vmem:[%s106 + $0x2e8] sm:$0xff]
  %v487 = vld [vmem:[%s106 + $0x2f0] sm:$0xff]
  %v488 = vld [vmem:[%s106 + $0x300] sm:$0xff]
  %v489 = vld [vmem:[%s106 + $0x308] sm:$0xff]
  %v490 = vld [vmem:[%s106 + $0x318] sm:$0xff]
  %v491 = vld [vmem:[%s106 + $0x320] sm:$0xff]
  %v492 = vld [vmem:[%s106 + $0x1] sm:$0xff]
  %v493 = vld [vmem:[%s106 + $0x9] sm:$0xff]
  %v494 = vld [vmem:[%s106 + $0x19] sm:$0xff]
  %v495 = vld [vmem:[%s106 + $0x21] sm:$0xff]
  %v496 = vld [vmem:[%s106 + $0x31] sm:$0xff]
  %v497 = vld [vmem:[%s106 + $0x39] sm:$0xff]
  %v498 = vld [vmem:[%s106 + $0x49] sm:$0xff]
  %v499 = vld [vmem:[%s106 + $0x51] sm:$0xff]
  %v500 = vld [vmem:[%s106 + $0x61] sm:$0xff]
  %v501 = vld [vmem:[%s106 + $0x69] sm:$0xff]
  %v502 = vld [vmem:[%s106 + $0x79] sm:$0xff]
  %v503 = vld [vmem:[%s106 + $0x81] sm:$0xff]
  %v504 = vld [vmem:[%s106 + $0x91] sm:$0xff]
  %v505 = vld [vmem:[%s106 + $0x99] sm:$0xff]
  %v506 = vld [vmem:[%s106 + $0xa9] sm:$0xff]
  %v507 = vld [vmem:[%s106 + $0xb1] sm:$0xff]
  %v508 = vld [vmem:[%s106 + $0xc1] sm:$0xff]
  %v509 = vld [vmem:[%s106 + $0xc9] sm:$0xff]
  %v510 = vld [vmem:[%s106 + $0xd9] sm:$0xff]
  %v511 = vld [vmem:[%s106 + $0xe1] sm:$0xff]
  %v512 = vld [vmem:[%s106 + $0xf1] sm:$0xff]
  %v513 = vld [vmem:[%s106 + $0xf9] sm:$0xff]
  %v514 = vld [vmem:[%s106 + $0x109] sm:$0xff]
  %v515 = vld [vmem:[%s106 + $0x111] sm:$0xff]
  %v516 = vld [vmem:[%s106 + $0x121] sm:$0xff]
  %v517 = vld [vmem:[%s106 + $0x129] sm:$0xff]
  %v518 = vld [vmem:[%s106 + $0x139] sm:$0xff]
  %v519 = vld [vmem:[%s106 + $0x141] sm:$0xff]
  %v520 = vld [vmem:[%s106 + $0x151] sm:$0xff]
  %v521 = vld [vmem:[%s106 + $0x159] sm:$0xff]
  %v522 = vld [vmem:[%s106 + $0x169] sm:$0xff]
  %v523 = vld [vmem:[%s106 + $0x171] sm:$0xff]
  %v524 = vld [vmem:[%s106 + $0x1b1] sm:$0xff]
  %v525 = vld [vmem:[%s106 + $0x1b9] sm:$0xff]
  %v526 = vld [vmem:[%s106 + $0x1c9] sm:$0xff]
  %v527 = vld [vmem:[%s106 + $0x1d1] sm:$0xff]
  %v528 = vld [vmem:[%s106 + $0x1e1] sm:$0xff]
  %v529 = vld [vmem:[%s106 + $0x1e9] sm:$0xff]
  %v530 = vld [vmem:[%s106 + $0x1f9] sm:$0xff]
  %v531 = vld [vmem:[%s106 + $0x201] sm:$0xff]
  %v532 = vld [vmem:[%s106 + $0x211] sm:$0xff]
  %v533 = vld [vmem:[%s106 + $0x219] sm:$0xff]
  %v534 = vld [vmem:[%s106 + $0x229] sm:$0xff]
  %v535 = vld [vmem:[%s106 + $0x231] sm:$0xff]
  %v536 = vld [vmem:[%s106 + $0x241] sm:$0xff]
  %v537 = vld [vmem:[%s106 + $0x249] sm:$0xff]
  %v538 = vld [vmem:[%s106 + $0x259] sm:$0xff]
  %v539 = vld [vmem:[%s106 + $0x261] sm:$0xff]
  %v540 = vld [vmem:[%s106 + $0x271] sm:$0xff]
  %v541 = vld [vmem:[%s106 + $0x279] sm:$0xff]
  %v542 = vld [vmem:[%s106 + $0x289] sm:$0xff]
  %v543 = vld [vmem:[%s106 + $0x291] sm:$0xff]
  %v544 = vld [vmem:[%s106 + $0x2a1] sm:$0xff]
  %v545 = vld [vmem:[%s106 + $0x2a9] sm:$0xff]
  %v546 = vld [vmem:[%s106 + $0x2b9] sm:$0xff]
  %v547 = vld [vmem:[%s106 + $0x2c1] sm:$0xff]
  %v548 = vld [vmem:[%s106 + $0x2d1] sm:$0xff]
  %v549 = vld [vmem:[%s106 + $0x2d9] sm:$0xff]
  %v550 = vld [vmem:[%s106 + $0x2e9] sm:$0xff]
  %v551 = vld [vmem:[%s106 + $0x2f1] sm:$0xff]
  %v552 = vld [vmem:[%s106 + $0x301] sm:$0xff]
  %v553 = vld [vmem:[%s106 + $0x309] sm:$0xff]
  %v554 = vld [vmem:[%s106 + $0x319] sm:$0xff]
  %v555 = vld [vmem:[%s106 + $0x321] sm:$0xff]
  %v556 = vld [vmem:[%s106 + $0x2] sm:$0xff]
  %v557 = vld [vmem:[%s106 + $0xa] sm:$0xff]
  %v558 = vld [vmem:[%s106 + $0x1a] sm:$0xff]
  %v559 = vld [vmem:[%s106 + $0x22] sm:$0xff]
  %v560 = vld [vmem:[%s106 + $0x32] sm:$0xff]
  %v561 = vld [vmem:[%s106 + $0x3a] sm:$0xff]
  %v562 = vld [vmem:[%s106 + $0x4a] sm:$0xff]
  %v563 = vld [vmem:[%s106 + $0x52] sm:$0xff]
  %v564 = vld [vmem:[%s106 + $0x62] sm:$0xff]
  %v565 = vld [vmem:[%s106 + $0x6a] sm:$0xff]
  %v566 = vld [vmem:[%s106 + $0x7a] sm:$0xff]
  %v567 = vld [vmem:[%s106 + $0x82] sm:$0xff]
  %v568 = vld [vmem:[%s106 + $0x92] sm:$0xff]
  %v569 = vld [vmem:[%s106 + $0x9a] sm:$0xff]
  %v570 = vld [vmem:[%s106 + $0xaa] sm:$0xff]
  %v571 = vld [vmem:[%s106 + $0xb2] sm:$0xff]
  %v572 = vld [vmem:[%s106 + $0xc2] sm:$0xff]
  %v573 = vld [vmem:[%s106 + $0xca] sm:$0xff]
  %v574 = vld [vmem:[%s106 + $0xda] sm:$0xff]
  %v575 = vld [vmem:[%s106 + $0xe2] sm:$0xff]
  %v576 = vld [vmem:[%s106 + $0xf2] sm:$0xff]
  %v577 = vld [vmem:[%s106 + $0xfa] sm:$0xff]
  %v578 = vld [vmem:[%s106 + $0x10a] sm:$0xff]
  %v579 = vld [vmem:[%s106 + $0x112] sm:$0xff]
  %v580 = vld [vmem:[%s106 + $0x122] sm:$0xff]
  %v581 = vld [vmem:[%s106 + $0x12a] sm:$0xff]
  %v582 = vld [vmem:[%s106 + $0x13a] sm:$0xff]
  %v583 = vld [vmem:[%s106 + $0x142] sm:$0xff]
  %v584 = vld [vmem:[%s106 + $0x152] sm:$0xff]
  %v585 = vld [vmem:[%s106 + $0x15a] sm:$0xff]
  %v586 = vld [vmem:[%s106 + $0x16a] sm:$0xff]
  %v587 = vld [vmem:[%s106 + $0x172] sm:$0xff]
  %v588 = vld [vmem:[%s106 + $0x1b2] sm:$0xff]
  %v589 = vld [vmem:[%s106 + $0x1ba] sm:$0xff]
  %v590 = vld [vmem:[%s106 + $0x1ca] sm:$0xff]
  %v591 = vld [vmem:[%s106 + $0x1d2] sm:$0xff]
  %v592 = vld [vmem:[%s106 + $0x1e2] sm:$0xff]
  %v593 = vld [vmem:[%s106 + $0x1ea] sm:$0xff]
  %v594 = vld [vmem:[%s106 + $0x1fa] sm:$0xff]
  %v595 = vld [vmem:[%s106 + $0x202] sm:$0xff]
  %v596 = vld [vmem:[%s106 + $0x212] sm:$0xff]
  %v597 = vld [vmem:[%s106 + $0x21a] sm:$0xff]
  %v598 = vld [vmem:[%s106 + $0x22a] sm:$0xff]
  %v599 = vld [vmem:[%s106 + $0x232] sm:$0xff]
  %v600 = vld [vmem:[%s106 + $0x242] sm:$0xff]
  %v601 = vld [vmem:[%s106 + $0x24a] sm:$0xff]
  %v602 = vld [vmem:[%s106 + $0x25a] sm:$0xff]
  %v603 = vld [vmem:[%s106 + $0x262] sm:$0xff]
  %v604 = vld [vmem:[%s106 + $0x272] sm:$0xff]
  %v605 = vld [vmem:[%s106 + $0x27a] sm:$0xff]
  %v606 = vld [vmem:[%s106 + $0x28a] sm:$0xff]
  %v607 = vld [vmem:[%s106 + $0x292] sm:$0xff]
  %v608 = vld [vmem:[%s106 + $0x2a2] sm:$0xff]
  %v609 = vld [vmem:[%s106 + $0x2aa] sm:$0xff]
  %v610 = vld [vmem:[%s106 + $0x2ba] sm:$0xff]
  %v611 = vld [vmem:[%s106 + $0x2c2] sm:$0xff]
  %v612 = vld [vmem:[%s106 + $0x2d2] sm:$0xff]
  %v613 = vld [vmem:[%s106 + $0x2da] sm:$0xff]
  %v614 = vld [vmem:[%s106 + $0x2ea] sm:$0xff]
  %v615 = vld [vmem:[%s106 + $0x2f2] sm:$0xff]
  %v616 = vld [vmem:[%s106 + $0x302] sm:$0xff]
  %v617 = vld [vmem:[%s106 + $0x30a] sm:$0xff]
  %v618 = vld [vmem:[%s106 + $0x31a] sm:$0xff]
  %v619 = vld [vmem:[%s106 + $0x322] sm:$0xff]
  %s620 = scalar_lea.vmem [#allocation2], 48
  %v621 = vld [vmem:[%s620] sm:$0xff]
  %v622 = vld [vmem:[%s620 + $0x8] sm:$0xff]
  %v623 = vld [vmem:[%s620 + $0x18] sm:$0xff]
  %v624 = vld [vmem:[%s620 + $0x20] sm:$0xff]
  %v625 = vld [vmem:[%s620 + $0x30] sm:$0xff]
  %v626 = vld [vmem:[%s620 + $0x38] sm:$0xff]
  %v627 = vld [vmem:[%s620 + $0x48] sm:$0xff]
  %v628 = vld [vmem:[%s620 + $0x50] sm:$0xff]
  %v629 = vld [vmem:[%s620 + $0x60] sm:$0xff]
  %v630 = vld [vmem:[%s620 + $0x68] sm:$0xff]
  %v631 = vld [vmem:[%s620 + $0x78] sm:$0xff]
  %v632 = vld [vmem:[%s620 + $0x80] sm:$0xff]
  %v633 = vld [vmem:[%s620 + $0x90] sm:$0xff]
  %v634 = vld [vmem:[%s620 + $0x98] sm:$0xff]
  %v635 = vld [vmem:[%s620 + $0xa8] sm:$0xff]
  %v636 = vld [vmem:[%s620 + $0xb0] sm:$0xff]
  %v637 = vld [vmem:[%s620 + $0xc0] sm:$0xff]
  %v638 = vld [vmem:[%s620 + $0xc8] sm:$0xff]
  %v639 = vld [vmem:[%s620 + $0xd8] sm:$0xff]
  %v640 = vld [vmem:[%s620 + $0xe0] sm:$0xff]
  %v641 = vld [vmem:[%s620 + $0xf0] sm:$0xff]
  %v642 = vld [vmem:[%s620 + $0xf8] sm:$0xff]
  %v643 = vld [vmem:[%s620 + $0x108] sm:$0xff]
  %v644 = vld [vmem:[%s620 + $0x110] sm:$0xff]
  %v645 = vld [vmem:[%s620 + $0x120] sm:$0xff]
  %v646 = vld [vmem:[%s620 + $0x128] sm:$0xff]
  %v647 = vld [vmem:[%s620 + $0x138] sm:$0xff]
  %v648 = vld [vmem:[%s620 + $0x140] sm:$0xff]
  %v649 = vld [vmem:[%s620 + $0x150] sm:$0xff]
  %v650 = vld [vmem:[%s620 + $0x158] sm:$0xff]
  %v651 = vld [vmem:[%s620 + $0x168] sm:$0xff]
  %v652 = vld [vmem:[%s620 + $0x170] sm:$0xff]
  %v653 = vld [vmem:[%s620 + $0x1b0] sm:$0xff]
  %v654 = vld [vmem:[%s620 + $0x1b8] sm:$0xff]
  %v655 = vld [vmem:[%s620 + $0x1c8] sm:$0xff]
  %v656 = vld [vmem:[%s620 + $0x1d0] sm:$0xff]
  %v657 = vld [vmem:[%s620 + $0x1e0] sm:$0xff]
  %v658 = vld [vmem:[%s620 + $0x1e8] sm:$0xff]
  %v659 = vld [vmem:[%s620 + $0x1f8] sm:$0xff]
  %v660 = vld [vmem:[%s620 + $0x200] sm:$0xff]
  %v661 = vld [vmem:[%s620 + $0x210] sm:$0xff]
  %v662 = vld [vmem:[%s620 + $0x218] sm:$0xff]
  %v663 = vld [vmem:[%s620 + $0x228] sm:$0xff]
  %v664 = vld [vmem:[%s620 + $0x230] sm:$0xff]
  %v665 = vld [vmem:[%s620 + $0x240] sm:$0xff]
  %v666 = vld [vmem:[%s620 + $0x248] sm:$0xff]
  %v667 = vld [vmem:[%s620 + $0x258] sm:$0xff]
  %v668 = vld [vmem:[%s620 + $0x260] sm:$0xff]
  %v669 = vld [vmem:[%s620 + $0x270] sm:$0xff]
  %v670 = vld [vmem:[%s620 + $0x278] sm:$0xff]
  %v671 = vld [vmem:[%s620 + $0x288] sm:$0xff]
  %v672 = vld [vmem:[%s620 + $0x290] sm:$0xff]
  %v673 = vld [vmem:[%s620 + $0x2a0] sm:$0xff]
  %v674 = vld [vmem:[%s620 + $0x2a8] sm:$0xff]
  %v675 = vld [vmem:[%s620 + $0x2b8] sm:$0xff]
  %v676 = vld [vmem:[%s620 + $0x2c0] sm:$0xff]
  %v677 = vld [vmem:[%s620 + $0x2d0] sm:$0xff]
  %v678 = vld [vmem:[%s620 + $0x2d8] sm:$0xff]
  %v679 = vld [vmem:[%s620 + $0x2e8] sm:$0xff]
  %v680 = vld [vmem:[%s620 + $0x2f0] sm:$0xff]
  %v681 = vld [vmem:[%s620 + $0x300] sm:$0xff]
  %v682 = vld [vmem:[%s620 + $0x308] sm:$0xff]
  %v683 = vld [vmem:[%s620 + $0x318] sm:$0xff]
  %v684 = vld [vmem:[%s620 + $0x320] sm:$0xff]
  %v685 = vld [vmem:[%s620 + $0x1] sm:$0xff]
  %v686 = vld [vmem:[%s620 + $0x9] sm:$0xff]
  %v687 = vld [vmem:[%s620 + $0x19] sm:$0xff]
  %v688 = vld [vmem:[%s620 + $0x21] sm:$0xff]
  %v689 = vld [vmem:[%s620 + $0x31] sm:$0xff]
  %v690 = vld [vmem:[%s620 + $0x39] sm:$0xff]
  %v691 = vld [vmem:[%s620 + $0x49] sm:$0xff]
  %v692 = vld [vmem:[%s620 + $0x51] sm:$0xff]
  %v693 = vld [vmem:[%s620 + $0x61] sm:$0xff]
  %v694 = vld [vmem:[%s620 + $0x69] sm:$0xff]
  %v695 = vld [vmem:[%s620 + $0x79] sm:$0xff]
  %v696 = vld [vmem:[%s620 + $0x81] sm:$0xff]
  %v697 = vld [vmem:[%s620 + $0x91] sm:$0xff]
  %v698 = vld [vmem:[%s620 + $0x99] sm:$0xff]
  %v699 = vld [vmem:[%s620 + $0xa9] sm:$0xff]
  %v700 = vld [vmem:[%s620 + $0xb1] sm:$0xff]
  %v701 = vld [vmem:[%s620 + $0xc1] sm:$0xff]
  %v702 = vld [vmem:[%s620 + $0xc9] sm:$0xff]
  %v703 = vld [vmem:[%s620 + $0xd9] sm:$0xff]
  %v704 = vld [vmem:[%s620 + $0xe1] sm:$0xff]
  %v705 = vld [vmem:[%s620 + $0xf1] sm:$0xff]
  %v706 = vld [vmem:[%s620 + $0xf9] sm:$0xff]
  %v707 = vld [vmem:[%s620 + $0x109] sm:$0xff]
  %v708 = vld [vmem:[%s620 + $0x111] sm:$0xff]
  %v709 = vld [vmem:[%s620 + $0x121] sm:$0xff]
  %v710 = vld [vmem:[%s620 + $0x129] sm:$0xff]
  %v711 = vld [vmem:[%s620 + $0x139] sm:$0xff]
  %v712 = vld [vmem:[%s620 + $0x141] sm:$0xff]
  %v713 = vld [vmem:[%s620 + $0x151] sm:$0xff]
  %v714 = vld [vmem:[%s620 + $0x159] sm:$0xff]
  %v715 = vld [vmem:[%s620 + $0x169] sm:$0xff]
  %v716 = vld [vmem:[%s620 + $0x171] sm:$0xff]
  %v717 = vld [vmem:[%s620 + $0x1b1] sm:$0xff]
  %v718 = vld [vmem:[%s620 + $0x1b9] sm:$0xff]
  %v719 = vld [vmem:[%s620 + $0x1c9] sm:$0xff]
  %v720 = vld [vmem:[%s620 + $0x1d1] sm:$0xff]
  %v721 = vld [vmem:[%s620 + $0x1e1] sm:$0xff]
  %v722 = vld [vmem:[%s620 + $0x1e9] sm:$0xff]
  %v723 = vld [vmem:[%s620 + $0x1f9] sm:$0xff]
  %v724 = vld [vmem:[%s620 + $0x201] sm:$0xff]
  %v725 = vld [vmem:[%s620 + $0x211] sm:$0xff]
  %v726 = vld [vmem:[%s620 + $0x219] sm:$0xff]
  %v727 = vld [vmem:[%s620 + $0x229] sm:$0xff]
  %v728 = vld [vmem:[%s620 + $0x231] sm:$0xff]
  %v729 = vld [vmem:[%s620 + $0x241] sm:$0xff]
  %v730 = vld [vmem:[%s620 + $0x249] sm:$0xff]
  %v731 = vld [vmem:[%s620 + $0x259] sm:$0xff]
  %v732 = vld [vmem:[%s620 + $0x261] sm:$0xff]
  %v733 = vld [vmem:[%s620 + $0x271] sm:$0xff]
  %v734 = vld [vmem:[%s620 + $0x279] sm:$0xff]
  %v735 = vld [vmem:[%s620 + $0x289] sm:$0xff]
  %v736 = vld [vmem:[%s620 + $0x291] sm:$0xff]
  %v737 = vld [vmem:[%s620 + $0x2a1] sm:$0xff]
  %v738 = vld [vmem:[%s620 + $0x2a9] sm:$0xff]
  %v739 = vld [vmem:[%s620 + $0x2b9] sm:$0xff]
  %v740 = vld [vmem:[%s620 + $0x2c1] sm:$0xff]
  %v741 = vld [vmem:[%s620 + $0x2d1] sm:$0xff]
  %v742 = vld [vmem:[%s620 + $0x2d9] sm:$0xff]
  %v743 = vld [vmem:[%s620 + $0x2e9] sm:$0xff]
  %v744 = vld [vmem:[%s620 + $0x2f1] sm:$0xff]
  %v745 = vld [vmem:[%s620 + $0x301] sm:$0xff]
  %v746 = vld [vmem:[%s620 + $0x309] sm:$0xff]
  %v747 = vld [vmem:[%s620 + $0x319] sm:$0xff]
  %v748 = vld [vmem:[%s620 + $0x321] sm:$0xff]
  %v749 = vld [vmem:[%s620 + $0x2] sm:$0xff]
  %v750 = vld [vmem:[%s620 + $0xa] sm:$0xff]
  %v751 = vld [vmem:[%s620 + $0x1a] sm:$0xff]
  %v752 = vld [vmem:[%s620 + $0x22] sm:$0xff]
  %v753 = vld [vmem:[%s620 + $0x32] sm:$0xff]
  %v754 = vld [vmem:[%s620 + $0x3a] sm:$0xff]
  %v755 = vld [vmem:[%s620 + $0x4a] sm:$0xff]
  %v756 = vld [vmem:[%s620 + $0x52] sm:$0xff]
  %v757 = vld [vmem:[%s620 + $0x62] sm:$0xff]
  %v758 = vld [vmem:[%s620 + $0x6a] sm:$0xff]
  %v759 = vld [vmem:[%s620 + $0x7a] sm:$0xff]
  %v760 = vld [vmem:[%s620 + $0x82] sm:$0xff]
  %v761 = vld [vmem:[%s620 + $0x92] sm:$0xff]
  %v762 = vld [vmem:[%s620 + $0x9a] sm:$0xff]
  %v763 = vld [vmem:[%s620 + $0xaa] sm:$0xff]
  %v764 = vld [vmem:[%s620 + $0xb2] sm:$0xff]
  %v765 = vld [vmem:[%s620 + $0xc2] sm:$0xff]
  %v766 = vld [vmem:[%s620 + $0xca] sm:$0xff]
  %v767 = vld [vmem:[%s620 + $0xda] sm:$0xff]
  %v768 = vld [vmem:[%s620 + $0xe2] sm:$0xff]
  %v769 = vld [vmem:[%s620 + $0xf2] sm:$0xff]
  %v770 = vld [vmem:[%s620 + $0xfa] sm:$0xff]
  %v771 = vld [vmem:[%s620 + $0x10a] sm:$0xff]
  %v772 = vld [vmem:[%s620 + $0x112] sm:$0xff]
  %v773 = vld [vmem:[%s620 + $0x122] sm:$0xff]
  %v774 = vld [vmem:[%s620 + $0x12a] sm:$0xff]
  %v775 = vld [vmem:[%s620 + $0x13a] sm:$0xff]
  %v776 = vld [vmem:[%s620 + $0x142] sm:$0xff]
  %v777 = vld [vmem:[%s620 + $0x152] sm:$0xff]
  %v778 = vld [vmem:[%s620 + $0x15a] sm:$0xff]
  %v779 = vld [vmem:[%s620 + $0x16a] sm:$0xff]
  %v780 = vld [vmem:[%s620 + $0x172] sm:$0xff]
  %v781 = vld [vmem:[%s620 + $0x1b2] sm:$0xff]
  %v782 = vld [vmem:[%s620 + $0x1ba] sm:$0xff]
  %v783 = vld [vmem:[%s620 + $0x1ca] sm:$0xff]
  %v784 = vld [vmem:[%s620 + $0x1d2] sm:$0xff]
  %v785 = vld [vmem:[%s620 + $0x1e2] sm:$0xff]
  %v786 = vld [vmem:[%s620 + $0x1ea] sm:$0xff]
  %v787 = vld [vmem:[%s620 + $0x1fa] sm:$0xff]
  %v788 = vld [vmem:[%s620 + $0x202] sm:$0xff]
  %v789 = vld [vmem:[%s620 + $0x212] sm:$0xff]
  %v790 = vld [vmem:[%s620 + $0x21a] sm:$0xff]
  %v791 = vld [vmem:[%s620 + $0x22a] sm:$0xff]
  %v792 = vld [vmem:[%s620 + $0x232] sm:$0xff]
  %v793 = vld [vmem:[%s620 + $0x242] sm:$0xff]
  %v794 = vld [vmem:[%s620 + $0x24a] sm:$0xff]
  %v795 = vld [vmem:[%s620 + $0x25a] sm:$0xff]
  %v796 = vld [vmem:[%s620 + $0x262] sm:$0xff]
  %v797 = vld [vmem:[%s620 + $0x272] sm:$0xff]
  %v798 = vld [vmem:[%s620 + $0x27a] sm:$0xff]
  %v799 = vld [vmem:[%s620 + $0x28a] sm:$0xff]
  %v800 = vld [vmem:[%s620 + $0x292] sm:$0xff]
  %v801 = vld [vmem:[%s620 + $0x2a2] sm:$0xff]
  %v802 = vld [vmem:[%s620 + $0x2aa] sm:$0xff]
  %v803 = vld [vmem:[%s620 + $0x2ba] sm:$0xff]
  %v804 = vld [vmem:[%s620 + $0x2c2] sm:$0xff]
  %v805 = vld [vmem:[%s620 + $0x2d2] sm:$0xff]
  %v806 = vld [vmem:[%s620 + $0x2da] sm:$0xff]
  %v807 = vld [vmem:[%s620 + $0x2ea] sm:$0xff]
  %v808 = vld [vmem:[%s620 + $0x2f2] sm:$0xff]
  %v809 = vld [vmem:[%s620 + $0x302] sm:$0xff]
  %v810 = vld [vmem:[%s620 + $0x30a] sm:$0xff]
  %v811 = vld [vmem:[%s620 + $0x31a] sm:$0xff]
  %v812 = vld [vmem:[%s620 + $0x322] sm:$0xff]
  %877 = vrot.lane.b32.xlu0 %v300, 4
  %v878 = vpop.permute.xlu0 %877
  %879 = vrot.lane.b32.xlu0 %v301, 4
  %v880 = vpop.permute.xlu0 %879
  %881 = vrot.lane.b32.xlu0 %v302, 4
  %v882 = vpop.permute.xlu0 %881
  %883 = vrot.lane.b32.xlu0 %v303, 4
  %v884 = vpop.permute.xlu0 %883
  %885 = vrot.lane.b32.xlu0 %v304, 4
  %v886 = vpop.permute.xlu0 %885
  %887 = vrot.lane.b32.xlu0 %v305, 4
  %v888 = vpop.permute.xlu0 %887
  %889 = vrot.lane.b32.xlu0 %v306, 4
  %v890 = vpop.permute.xlu0 %889
  %891 = vrot.lane.b32.xlu0 %v307, 4
  %v892 = vpop.permute.xlu0 %891
  %893 = vrot.lane.b32.xlu0 %v308, 4
  %v894 = vpop.permute.xlu0 %893
  %895 = vrot.lane.b32.xlu0 %v309, 4
  %v896 = vpop.permute.xlu0 %895
  %897 = vrot.lane.b32.xlu0 %v310, 4
  %v898 = vpop.permute.xlu0 %897
  %899 = vrot.lane.b32.xlu0 %v311, 4
  %v900 = vpop.permute.xlu0 %899
  %901 = vrot.lane.b32.xlu0 %v312, 4
  %v902 = vpop.permute.xlu0 %901
  %903 = vrot.lane.b32.xlu0 %v313, 4
  %v904 = vpop.permute.xlu0 %903
  %905 = vrot.lane.b32.xlu0 %v314, 4
  %v906 = vpop.permute.xlu0 %905
  %907 = vrot.lane.b32.xlu0 %v315, 4
  %v908 = vpop.permute.xlu0 %907
  %909 = vrot.lane.b32.xlu0 %v316, 4
  %v910 = vpop.permute.xlu0 %909
  %911 = vrot.lane.b32.xlu0 %v317, 4
  %v912 = vpop.permute.xlu0 %911
  %913 = vrot.lane.b32.xlu0 %v318, 4
  %v914 = vpop.permute.xlu0 %913
  %915 = vrot.lane.b32.xlu0 %v319, 4
  %v916 = vpop.permute.xlu0 %915
  %917 = vrot.lane.b32.xlu0 %v320, 4
  %v918 = vpop.permute.xlu0 %917
  %919 = vrot.lane.b32.xlu0 %v321, 4
  %v920 = vpop.permute.xlu0 %919
  %921 = vrot.lane.b32.xlu0 %v322, 4
  %v922 = vpop.permute.xlu0 %921
  %923 = vrot.lane.b32.xlu0 %v323, 4
  %v924 = vpop.permute.xlu0 %923
  %925 = vrot.lane.b32.xlu0 %v324, 4
  %v926 = vpop.permute.xlu0 %925
  %927 = vrot.lane.b32.xlu0 %v325, 4
  %v928 = vpop.permute.xlu0 %927
  %929 = vrot.lane.b32.xlu0 %v326, 4
  %v930 = vpop.permute.xlu0 %929
  %931 = vrot.lane.b32.xlu0 %v327, 4
  %v932 = vpop.permute.xlu0 %931
  %933 = vrot.lane.b32.xlu0 %v328, 4
  %v934 = vpop.permute.xlu0 %933
  %935 = vrot.lane.b32.xlu0 %v329, 4
  %v936 = vpop.permute.xlu0 %935
  %937 = vrot.lane.b32.xlu0 %v330, 4
  %v938 = vpop.permute.xlu0 %937
  %939 = vrot.lane.b32.xlu0 %v331, 4
  %v940 = vpop.permute.xlu0 %939
  %941 = vrot.lane.b32.xlu0 %v332, 4
  %v942 = vpop.permute.xlu0 %941
  %943 = vrot.lane.b32.xlu0 %v333, 4
  %v944 = vpop.permute.xlu0 %943
  %945 = vrot.lane.b32.xlu0 %v334, 4
  %v946 = vpop.permute.xlu0 %945
  %947 = vrot.lane.b32.xlu0 %v335, 4
  %v948 = vpop.permute.xlu0 %947
  %949 = vrot.lane.b32.xlu0 %v336, 4
  %v950 = vpop.permute.xlu0 %949
  %951 = vrot.lane.b32.xlu0 %v337, 4
  %v952 = vpop.permute.xlu0 %951
  %953 = vrot.lane.b32.xlu0 %v338, 4
  %v954 = vpop.permute.xlu0 %953
  %955 = vrot.lane.b32.xlu0 %v339, 4
  %v956 = vpop.permute.xlu0 %955
  %957 = vrot.lane.b32.xlu0 %v340, 4
  %v958 = vpop.permute.xlu0 %957
  %959 = vrot.lane.b32.xlu0 %v341, 4
  %v960 = vpop.permute.xlu0 %959
  %961 = vrot.lane.b32.xlu0 %v342, 4
  %v962 = vpop.permute.xlu0 %961
  %963 = vrot.lane.b32.xlu0 %v343, 4
  %v964 = vpop.permute.xlu0 %963
  %965 = vrot.lane.b32.xlu0 %v344, 4
  %v966 = vpop.permute.xlu0 %965
  %967 = vrot.lane.b32.xlu0 %v345, 4
  %v968 = vpop.permute.xlu0 %967
  %969 = vrot.lane.b32.xlu0 %v346, 4
  %v970 = vpop.permute.xlu0 %969
  %971 = vrot.lane.b32.xlu0 %v347, 4
  %v972 = vpop.permute.xlu0 %971
  %973 = vrot.lane.b32.xlu0 %v348, 4
  %v974 = vpop.permute.xlu0 %973
  %975 = vrot.lane.b32.xlu0 %v349, 4
  %v976 = vpop.permute.xlu0 %975
  %977 = vrot.lane.b32.xlu0 %v350, 4
  %v978 = vpop.permute.xlu0 %977
  %979 = vrot.lane.b32.xlu0 %v351, 4
  %v980 = vpop.permute.xlu0 %979
  %981 = vrot.lane.b32.xlu0 %v352, 4
  %v982 = vpop.permute.xlu0 %981
  %983 = vrot.lane.b32.xlu0 %v353, 4
  %v984 = vpop.permute.xlu0 %983
  %985 = vrot.lane.b32.xlu0 %v354, 4
  %v986 = vpop.permute.xlu0 %985
  %987 = vrot.lane.b32.xlu0 %v355, 4
  %v988 = vpop.permute.xlu0 %987
  %989 = vrot.lane.b32.xlu0 %v356, 4
  %v990 = vpop.permute.xlu0 %989
  %991 = vrot.lane.b32.xlu0 %v357, 4
  %v992 = vpop.permute.xlu0 %991
  %993 = vrot.lane.b32.xlu0 %v358, 4
  %v994 = vpop.permute.xlu0 %993
  %995 = vrot.lane.b32.xlu0 %v359, 4
  %v996 = vpop.permute.xlu0 %995
  %997 = vrot.lane.b32.xlu0 %v360, 4
  %v998 = vpop.permute.xlu0 %997
  %999 = vrot.lane.b32.xlu0 %v361, 4
  %v1000 = vpop.permute.xlu0 %999
  %1001 = vrot.lane.b32.xlu0 %v362, 4
  %v1002 = vpop.permute.xlu0 %1001
  %1003 = vrot.lane.b32.xlu0 %v363, 4
  %v1004 = vpop.permute.xlu0 %1003
  %1133 = vrot.lane.b32.xlu0 %v364, 8
  %v1134 = vpop.permute.xlu0 %1133
  %1135 = vrot.lane.b32.xlu0 %v365, 8
  %v1136 = vpop.permute.xlu0 %1135
  %1137 = vrot.lane.b32.xlu0 %v366, 8
  %v1138 = vpop.permute.xlu0 %1137
  %1139 = vrot.lane.b32.xlu0 %v367, 8
  %v1140 = vpop.permute.xlu0 %1139
  %1141 = vrot.lane.b32.xlu0 %v368, 8
  %v1142 = vpop.permute.xlu0 %1141
  %1143 = vrot.lane.b32.xlu0 %v369, 8
  %v1144 = vpop.permute.xlu0 %1143
  %1145 = vrot.lane.b32.xlu0 %v370, 8
  %v1146 = vpop.permute.xlu0 %1145
  %1147 = vrot.lane.b32.xlu0 %v371, 8
  %v1148 = vpop.permute.xlu0 %1147
  %1149 = vrot.lane.b32.xlu0 %v372, 8
  %v1150 = vpop.permute.xlu0 %1149
  %1151 = vrot.lane.b32.xlu0 %v373, 8
  %v1152 = vpop.permute.xlu0 %1151
  %1153 = vrot.lane.b32.xlu0 %v374, 8
  %v1154 = vpop.permute.xlu0 %1153
  %1155 = vrot.lane.b32.xlu0 %v375, 8
  %v1156 = vpop.permute.xlu0 %1155
  %1157 = vrot.lane.b32.xlu0 %v376, 8
  %v1158 = vpop.permute.xlu0 %1157
  %1159 = vrot.lane.b32.xlu0 %v377, 8
  %v1160 = vpop.permute.xlu0 %1159
  %1161 = vrot.lane.b32.xlu0 %v378, 8
  %v1162 = vpop.permute.xlu0 %1161
  %1163 = vrot.lane.b32.xlu0 %v379, 8
  %v1164 = vpop.permute.xlu0 %1163
  %1165 = vrot.lane.b32.xlu0 %v380, 8
  %v1166 = vpop.permute.xlu0 %1165
  %1167 = vrot.lane.b32.xlu0 %v381, 8
  %v1168 = vpop.permute.xlu0 %1167
  %1169 = vrot.lane.b32.xlu0 %v382, 8
  %v1170 = vpop.permute.xlu0 %1169
  %1171 = vrot.lane.b32.xlu0 %v383, 8
  %v1172 = vpop.permute.xlu0 %1171
  %1173 = vrot.lane.b32.xlu0 %v384, 8
  %v1174 = vpop.permute.xlu0 %1173
  %1175 = vrot.lane.b32.xlu0 %v385, 8
  %v1176 = vpop.permute.xlu0 %1175
  %1177 = vrot.lane.b32.xlu0 %v386, 8
  %v1178 = vpop.permute.xlu0 %1177
  %1179 = vrot.lane.b32.xlu0 %v387, 8
  %v1180 = vpop.permute.xlu0 %1179
  %1181 = vrot.lane.b32.xlu0 %v388, 8
  %v1182 = vpop.permute.xlu0 %1181
  %1183 = vrot.lane.b32.xlu0 %v389, 8
  %v1184 = vpop.permute.xlu0 %1183
  %1185 = vrot.lane.b32.xlu0 %v390, 8
  %v1186 = vpop.permute.xlu0 %1185
  %1187 = vrot.lane.b32.xlu0 %v391, 8
  %v1188 = vpop.permute.xlu0 %1187
  %1189 = vrot.lane.b32.xlu0 %v392, 8
  %v1190 = vpop.permute.xlu0 %1189
  %1191 = vrot.lane.b32.xlu0 %v393, 8
  %v1192 = vpop.permute.xlu0 %1191
  %1193 = vrot.lane.b32.xlu0 %v394, 8
  %v1194 = vpop.permute.xlu0 %1193
  %1195 = vrot.lane.b32.xlu0 %v395, 8
  %v1196 = vpop.permute.xlu0 %1195
  %1197 = vrot.lane.b32.xlu0 %v396, 8
  %v1198 = vpop.permute.xlu0 %1197
  %1199 = vrot.lane.b32.xlu0 %v397, 8
  %v1200 = vpop.permute.xlu0 %1199
  %1201 = vrot.lane.b32.xlu0 %v398, 8
  %v1202 = vpop.permute.xlu0 %1201
  %1203 = vrot.lane.b32.xlu0 %v399, 8
  %v1204 = vpop.permute.xlu0 %1203
  %1205 = vrot.lane.b32.xlu0 %v400, 8
  %v1206 = vpop.permute.xlu0 %1205
  %1207 = vrot.lane.b32.xlu0 %v401, 8
  %v1208 = vpop.permute.xlu0 %1207
  %1209 = vrot.lane.b32.xlu0 %v402, 8
  %v1210 = vpop.permute.xlu0 %1209
  %1211 = vrot.lane.b32.xlu0 %v403, 8
  %v1212 = vpop.permute.xlu0 %1211
  %1213 = vrot.lane.b32.xlu0 %v404, 8
  %v1214 = vpop.permute.xlu0 %1213
  %1215 = vrot.lane.b32.xlu0 %v405, 8
  %v1216 = vpop.permute.xlu0 %1215
  %1217 = vrot.lane.b32.xlu0 %v406, 8
  %v1218 = vpop.permute.xlu0 %1217
  %1219 = vrot.lane.b32.xlu0 %v407, 8
  %v1220 = vpop.permute.xlu0 %1219
  %1221 = vrot.lane.b32.xlu0 %v408, 8
  %v1222 = vpop.permute.xlu0 %1221
  %1223 = vrot.lane.b32.xlu0 %v409, 8
  %v1224 = vpop.permute.xlu0 %1223
  %1225 = vrot.lane.b32.xlu0 %v410, 8
  %v1226 = vpop.permute.xlu0 %1225
  %1227 = vrot.lane.b32.xlu0 %v411, 8
  %v1228 = vpop.permute.xlu0 %1227
  %1229 = vrot.lane.b32.xlu0 %v412, 8
  %v1230 = vpop.permute.xlu0 %1229
  %1231 = vrot.lane.b32.xlu0 %v413, 8
  %v1232 = vpop.permute.xlu0 %1231
  %1233 = vrot.lane.b32.xlu0 %v414, 8
  %v1234 = vpop.permute.xlu0 %1233
  %1235 = vrot.lane.b32.xlu0 %v415, 8
  %v1236 = vpop.permute.xlu0 %1235
  %1237 = vrot.lane.b32.xlu0 %v416, 8
  %v1238 = vpop.permute.xlu0 %1237
  %1239 = vrot.lane.b32.xlu0 %v417, 8
  %v1240 = vpop.permute.xlu0 %1239
  %1241 = vrot.lane.b32.xlu0 %v418, 8
  %v1242 = vpop.permute.xlu0 %1241
  %1243 = vrot.lane.b32.xlu0 %v419, 8
  %v1244 = vpop.permute.xlu0 %1243
  %1245 = vrot.lane.b32.xlu0 %v420, 8
  %v1246 = vpop.permute.xlu0 %1245
  %1247 = vrot.lane.b32.xlu0 %v421, 8
  %v1248 = vpop.permute.xlu0 %1247
  %1249 = vrot.lane.b32.xlu0 %v422, 8
  %v1250 = vpop.permute.xlu0 %1249
  %1251 = vrot.lane.b32.xlu0 %v423, 8
  %v1252 = vpop.permute.xlu0 %1251
  %1253 = vrot.lane.b32.xlu0 %v424, 8
  %v1254 = vpop.permute.xlu0 %1253
  %1255 = vrot.lane.b32.xlu0 %v425, 8
  %v1256 = vpop.permute.xlu0 %1255
  %1257 = vrot.lane.b32.xlu0 %v426, 8
  %v1258 = vpop.permute.xlu0 %1257
  %1259 = vrot.lane.b32.xlu0 %v427, 8
  %v1260 = vpop.permute.xlu0 %1259
  %1389 = vrot.lane.b32.xlu0 %v428, 12
  %v1390 = vpop.permute.xlu0 %1389
  %1391 = vrot.lane.b32.xlu0 %v429, 12
  %v1392 = vpop.permute.xlu0 %1391
  %1393 = vrot.lane.b32.xlu0 %v430, 12
  %v1394 = vpop.permute.xlu0 %1393
  %1395 = vrot.lane.b32.xlu0 %v431, 12
  %v1396 = vpop.permute.xlu0 %1395
  %1397 = vrot.lane.b32.xlu0 %v432, 12
  %v1398 = vpop.permute.xlu0 %1397
  %1399 = vrot.lane.b32.xlu0 %v433, 12
  %v1400 = vpop.permute.xlu0 %1399
  %1401 = vrot.lane.b32.xlu0 %v434, 12
  %v1402 = vpop.permute.xlu0 %1401
  %1403 = vrot.lane.b32.xlu0 %v435, 12
  %v1404 = vpop.permute.xlu0 %1403
  %1405 = vrot.lane.b32.xlu0 %v436, 12
  %v1406 = vpop.permute.xlu0 %1405
  %1407 = vrot.lane.b32.xlu0 %v437, 12
  %v1408 = vpop.permute.xlu0 %1407
  %1409 = vrot.lane.b32.xlu0 %v438, 12
  %v1410 = vpop.permute.xlu0 %1409
  %1411 = vrot.lane.b32.xlu0 %v439, 12
  %v1412 = vpop.permute.xlu0 %1411
  %1413 = vrot.lane.b32.xlu0 %v440, 12
  %v1414 = vpop.permute.xlu0 %1413
  %1415 = vrot.lane.b32.xlu0 %v441, 12
  %v1416 = vpop.permute.xlu0 %1415
  %1417 = vrot.lane.b32.xlu0 %v442, 12
  %v1418 = vpop.permute.xlu0 %1417
  %1419 = vrot.lane.b32.xlu0 %v443, 12
  %v1420 = vpop.permute.xlu0 %1419
  %1421 = vrot.lane.b32.xlu0 %v444, 12
  %v1422 = vpop.permute.xlu0 %1421
  %1423 = vrot.lane.b32.xlu0 %v445, 12
  %v1424 = vpop.permute.xlu0 %1423
  %1425 = vrot.lane.b32.xlu0 %v446, 12
  %v1426 = vpop.permute.xlu0 %1425
  %1427 = vrot.lane.b32.xlu0 %v447, 12
  %v1428 = vpop.permute.xlu0 %1427
  %1429 = vrot.lane.b32.xlu0 %v448, 12
  %v1430 = vpop.permute.xlu0 %1429
  %1431 = vrot.lane.b32.xlu0 %v449, 12
  %v1432 = vpop.permute.xlu0 %1431
  %1433 = vrot.lane.b32.xlu0 %v450, 12
  %v1434 = vpop.permute.xlu0 %1433
  %1435 = vrot.lane.b32.xlu0 %v451, 12
  %v1436 = vpop.permute.xlu0 %1435
  %1437 = vrot.lane.b32.xlu0 %v452, 12
  %v1438 = vpop.permute.xlu0 %1437
  %1439 = vrot.lane.b32.xlu0 %v453, 12
  %v1440 = vpop.permute.xlu0 %1439
  %1441 = vrot.lane.b32.xlu0 %v454, 12
  %v1442 = vpop.permute.xlu0 %1441
  %1443 = vrot.lane.b32.xlu0 %v455, 12
  %v1444 = vpop.permute.xlu0 %1443
  %1445 = vrot.lane.b32.xlu0 %v456, 12
  %v1446 = vpop.permute.xlu0 %1445
  %1447 = vrot.lane.b32.xlu0 %v457, 12
  %v1448 = vpop.permute.xlu0 %1447
  %1449 = vrot.lane.b32.xlu0 %v458, 12
  %v1450 = vpop.permute.xlu0 %1449
  %1451 = vrot.lane.b32.xlu0 %v459, 12
  %v1452 = vpop.permute.xlu0 %1451
  %1453 = vrot.lane.b32.xlu0 %v460, 12
  %v1454 = vpop.permute.xlu0 %1453
  %1455 = vrot.lane.b32.xlu0 %v461, 12
  %v1456 = vpop.permute.xlu0 %1455
  %1457 = vrot.lane.b32.xlu0 %v462, 12
  %v1458 = vpop.permute.xlu0 %1457
  %1459 = vrot.lane.b32.xlu0 %v463, 12
  %v1460 = vpop.permute.xlu0 %1459
  %1461 = vrot.lane.b32.xlu0 %v464, 12
  %v1462 = vpop.permute.xlu0 %1461
  %1463 = vrot.lane.b32.xlu0 %v465, 12
  %v1464 = vpop.permute.xlu0 %1463
  %1465 = vrot.lane.b32.xlu0 %v466, 12
  %v1466 = vpop.permute.xlu0 %1465
  %1467 = vrot.lane.b32.xlu0 %v467, 12
  %v1468 = vpop.permute.xlu0 %1467
  %1469 = vrot.lane.b32.xlu0 %v468, 12
  %v1470 = vpop.permute.xlu0 %1469
  %1471 = vrot.lane.b32.xlu0 %v469, 12
  %v1472 = vpop.permute.xlu0 %1471
  %1473 = vrot.lane.b32.xlu0 %v470, 12
  %v1474 = vpop.permute.xlu0 %1473
  %1475 = vrot.lane.b32.xlu0 %v471, 12
  %v1476 = vpop.permute.xlu0 %1475
  %1477 = vrot.lane.b32.xlu0 %v472, 12
  %v1478 = vpop.permute.xlu0 %1477
  %1479 = vrot.lane.b32.xlu0 %v473, 12
  %v1480 = vpop.permute.xlu0 %1479
  %1481 = vrot.lane.b32.xlu0 %v474, 12
  %v1482 = vpop.permute.xlu0 %1481
  %1483 = vrot.lane.b32.xlu0 %v475, 12
  %v1484 = vpop.permute.xlu0 %1483
  %1485 = vrot.lane.b32.xlu0 %v476, 12
  %v1486 = vpop.permute.xlu0 %1485
  %1487 = vrot.lane.b32.xlu0 %v477, 12
  %v1488 = vpop.permute.xlu0 %1487
  %1489 = vrot.lane.b32.xlu0 %v478, 12
  %v1490 = vpop.permute.xlu0 %1489
  %1491 = vrot.lane.b32.xlu0 %v479, 12
  %v1492 = vpop.permute.xlu0 %1491
  %1493 = vrot.lane.b32.xlu0 %v480, 12
  %v1494 = vpop.permute.xlu0 %1493
  %1495 = vrot.lane.b32.xlu0 %v481, 12
  %v1496 = vpop.permute.xlu0 %1495
  %1497 = vrot.lane.b32.xlu0 %v482, 12
  %v1498 = vpop.permute.xlu0 %1497
  %1499 = vrot.lane.b32.xlu0 %v483, 12
  %v1500 = vpop.permute.xlu0 %1499
  %1501 = vrot.lane.b32.xlu0 %v484, 12
  %v1502 = vpop.permute.xlu0 %1501
  %1503 = vrot.lane.b32.xlu0 %v485, 12
  %v1504 = vpop.permute.xlu0 %1503
  %1505 = vrot.lane.b32.xlu0 %v486, 12
  %v1506 = vpop.permute.xlu0 %1505
  %1507 = vrot.lane.b32.xlu0 %v487, 12
  %v1508 = vpop.permute.xlu0 %1507
  %1509 = vrot.lane.b32.xlu0 %v488, 12
  %v1510 = vpop.permute.xlu0 %1509
  %1511 = vrot.lane.b32.xlu0 %v489, 12
  %v1512 = vpop.permute.xlu0 %1511
  %1513 = vrot.lane.b32.xlu0 %v490, 12
  %v1514 = vpop.permute.xlu0 %1513
  %1515 = vrot.lane.b32.xlu0 %v491, 12
  %v1516 = vpop.permute.xlu0 %1515
  %1645 = vrot.lane.b32.xlu0 %v492, 16
  %v1646 = vpop.permute.xlu0 %1645
  %1647 = vrot.lane.b32.xlu0 %v493, 16
  %v1648 = vpop.permute.xlu0 %1647
  %1649 = vrot.lane.b32.xlu0 %v494, 16
  %v1650 = vpop.permute.xlu0 %1649
  %1651 = vrot.lane.b32.xlu0 %v495, 16
  %v1652 = vpop.permute.xlu0 %1651
  %1653 = vrot.lane.b32.xlu0 %v496, 16
  %v1654 = vpop.permute.xlu0 %1653
  %1655 = vrot.lane.b32.xlu0 %v497, 16
  %v1656 = vpop.permute.xlu0 %1655
  %1657 = vrot.lane.b32.xlu0 %v498, 16
  %v1658 = vpop.permute.xlu0 %1657
  %1659 = vrot.lane.b32.xlu0 %v499, 16
  %v1660 = vpop.permute.xlu0 %1659
  %1661 = vrot.lane.b32.xlu0 %v500, 16
  %v1662 = vpop.permute.xlu0 %1661
  %1663 = vrot.lane.b32.xlu0 %v501, 16
  %v1664 = vpop.permute.xlu0 %1663
  %1665 = vrot.lane.b32.xlu0 %v502, 16
  %v1666 = vpop.permute.xlu0 %1665
  %1667 = vrot.lane.b32.xlu0 %v503, 16
  %v1668 = vpop.permute.xlu0 %1667
  %1669 = vrot.lane.b32.xlu0 %v504, 16
  %v1670 = vpop.permute.xlu0 %1669
  %1671 = vrot.lane.b32.xlu0 %v505, 16
  %v1672 = vpop.permute.xlu0 %1671
  %1673 = vrot.lane.b32.xlu0 %v506, 16
  %v1674 = vpop.permute.xlu0 %1673
  %1675 = vrot.lane.b32.xlu0 %v507, 16
  %v1676 = vpop.permute.xlu0 %1675
  %1677 = vrot.lane.b32.xlu0 %v508, 16
  %v1678 = vpop.permute.xlu0 %1677
  %1679 = vrot.lane.b32.xlu0 %v509, 16
  %v1680 = vpop.permute.xlu0 %1679
  %1681 = vrot.lane.b32.xlu0 %v510, 16
  %v1682 = vpop.permute.xlu0 %1681
  %1683 = vrot.lane.b32.xlu0 %v511, 16
  %v1684 = vpop.permute.xlu0 %1683
  %1685 = vrot.lane.b32.xlu0 %v512, 16
  %v1686 = vpop.permute.xlu0 %1685
  %1687 = vrot.lane.b32.xlu0 %v513, 16
  %v1688 = vpop.permute.xlu0 %1687
  %1689 = vrot.lane.b32.xlu0 %v514, 16
  %v1690 = vpop.permute.xlu0 %1689
  %1691 = vrot.lane.b32.xlu0 %v515, 16
  %v1692 = vpop.permute.xlu0 %1691
  %1693 = vrot.lane.b32.xlu0 %v516, 16
  %v1694 = vpop.permute.xlu0 %1693
  %1695 = vrot.lane.b32.xlu0 %v517, 16
  %v1696 = vpop.permute.xlu0 %1695
  %1697 = vrot.lane.b32.xlu0 %v518, 16
  %v1698 = vpop.permute.xlu0 %1697
  %1699 = vrot.lane.b32.xlu0 %v519, 16
  %v1700 = vpop.permute.xlu0 %1699
  %1701 = vrot.lane.b32.xlu0 %v520, 16
  %v1702 = vpop.permute.xlu0 %1701
  %1703 = vrot.lane.b32.xlu0 %v521, 16
  %v1704 = vpop.permute.xlu0 %1703
  %1705 = vrot.lane.b32.xlu0 %v522, 16
  %v1706 = vpop.permute.xlu0 %1705
  %1707 = vrot.lane.b32.xlu0 %v523, 16
  %v1708 = vpop.permute.xlu0 %1707
  %1709 = vrot.lane.b32.xlu0 %v524, 16
  %v1710 = vpop.permute.xlu0 %1709
  %1711 = vrot.lane.b32.xlu0 %v525, 16
  %v1712 = vpop.permute.xlu0 %1711
  %1713 = vrot.lane.b32.xlu0 %v526, 16
  %v1714 = vpop.permute.xlu0 %1713
  %1715 = vrot.lane.b32.xlu0 %v527, 16
  %v1716 = vpop.permute.xlu0 %1715
  %1717 = vrot.lane.b32.xlu0 %v528, 16
  %v1718 = vpop.permute.xlu0 %1717
  %1719 = vrot.lane.b32.xlu0 %v529, 16
  %v1720 = vpop.permute.xlu0 %1719
  %1721 = vrot.lane.b32.xlu0 %v530, 16
  %v1722 = vpop.permute.xlu0 %1721
  %1723 = vrot.lane.b32.xlu0 %v531, 16
  %v1724 = vpop.permute.xlu0 %1723
  %1725 = vrot.lane.b32.xlu0 %v532, 16
  %v1726 = vpop.permute.xlu0 %1725
  %1727 = vrot.lane.b32.xlu0 %v533, 16
  %v1728 = vpop.permute.xlu0 %1727
  %1729 = vrot.lane.b32.xlu0 %v534, 16
  %v1730 = vpop.permute.xlu0 %1729
  %1731 = vrot.lane.b32.xlu0 %v535, 16
  %v1732 = vpop.permute.xlu0 %1731
  %1733 = vrot.lane.b32.xlu0 %v536, 16
  %v1734 = vpop.permute.xlu0 %1733
  %1735 = vrot.lane.b32.xlu0 %v537, 16
  %v1736 = vpop.permute.xlu0 %1735
  %1737 = vrot.lane.b32.xlu0 %v538, 16
  %v1738 = vpop.permute.xlu0 %1737
  %1739 = vrot.lane.b32.xlu0 %v539, 16
  %v1740 = vpop.permute.xlu0 %1739
  %1741 = vrot.lane.b32.xlu0 %v540, 16
  %v1742 = vpop.permute.xlu0 %1741
  %1743 = vrot.lane.b32.xlu0 %v541, 16
  %v1744 = vpop.permute.xlu0 %1743
  %1745 = vrot.lane.b32.xlu0 %v542, 16
  %v1746 = vpop.permute.xlu0 %1745
  %1747 = vrot.lane.b32.xlu0 %v543, 16
  %v1748 = vpop.permute.xlu0 %1747
  %1749 = vrot.lane.b32.xlu0 %v544, 16
  %v1750 = vpop.permute.xlu0 %1749
  %1751 = vrot.lane.b32.xlu0 %v545, 16
  %v1752 = vpop.permute.xlu0 %1751
  %1753 = vrot.lane.b32.xlu0 %v546, 16
  %v1754 = vpop.permute.xlu0 %1753
  %1755 = vrot.lane.b32.xlu0 %v547, 16
  %v1756 = vpop.permute.xlu0 %1755
  %1757 = vrot.lane.b32.xlu0 %v548, 16
  %v1758 = vpop.permute.xlu0 %1757
  %1759 = vrot.lane.b32.xlu0 %v549, 16
  %v1760 = vpop.permute.xlu0 %1759
  %1761 = vrot.lane.b32.xlu0 %v550, 16
  %v1762 = vpop.permute.xlu0 %1761
  %1763 = vrot.lane.b32.xlu0 %v551, 16
  %v1764 = vpop.permute.xlu0 %1763
  %1765 = vrot.lane.b32.xlu0 %v552, 16
  %v1766 = vpop.permute.xlu0 %1765
  %1767 = vrot.lane.b32.xlu0 %v553, 16
  %v1768 = vpop.permute.xlu0 %1767
  %1769 = vrot.lane.b32.xlu0 %v554, 16
  %v1770 = vpop.permute.xlu0 %1769
  %1771 = vrot.lane.b32.xlu0 %v555, 16
  %v1772 = vpop.permute.xlu0 %1771
  %1901 = vrot.lane.b32.xlu0 %v556, 20
  %v1902 = vpop.permute.xlu0 %1901
  %1903 = vrot.lane.b32.xlu0 %v557, 20
  %v1904 = vpop.permute.xlu0 %1903
  %1905 = vrot.lane.b32.xlu0 %v558, 20
  %v1906 = vpop.permute.xlu0 %1905
  %1907 = vrot.lane.b32.xlu0 %v559, 20
  %v1908 = vpop.permute.xlu0 %1907
  %1909 = vrot.lane.b32.xlu0 %v560, 20
  %v1910 = vpop.permute.xlu0 %1909
  %1911 = vrot.lane.b32.xlu0 %v561, 20
  %v1912 = vpop.permute.xlu0 %1911
  %1913 = vrot.lane.b32.xlu0 %v562, 20
  %v1914 = vpop.permute.xlu0 %1913
  %1915 = vrot.lane.b32.xlu0 %v563, 20
  %v1916 = vpop.permute.xlu0 %1915
  %1917 = vrot.lane.b32.xlu0 %v564, 20
  %v1918 = vpop.permute.xlu0 %1917
  %1919 = vrot.lane.b32.xlu0 %v565, 20
  %v1920 = vpop.permute.xlu0 %1919
  %1921 = vrot.lane.b32.xlu0 %v566, 20
  %v1922 = vpop.permute.xlu0 %1921
  %1923 = vrot.lane.b32.xlu0 %v567, 20
  %v1924 = vpop.permute.xlu0 %1923
  %1925 = vrot.lane.b32.xlu0 %v568, 20
  %v1926 = vpop.permute.xlu0 %1925
  %1927 = vrot.lane.b32.xlu0 %v569, 20
  %v1928 = vpop.permute.xlu0 %1927
  %1929 = vrot.lane.b32.xlu0 %v570, 20
  %v1930 = vpop.permute.xlu0 %1929
  %1931 = vrot.lane.b32.xlu0 %v571, 20
  %v1932 = vpop.permute.xlu0 %1931
  %1933 = vrot.lane.b32.xlu0 %v572, 20
  %v1934 = vpop.permute.xlu0 %1933
  %1935 = vrot.lane.b32.xlu0 %v573, 20
  %v1936 = vpop.permute.xlu0 %1935
  %1937 = vrot.lane.b32.xlu0 %v574, 20
  %v1938 = vpop.permute.xlu0 %1937
  %1939 = vrot.lane.b32.xlu0 %v575, 20
  %v1940 = vpop.permute.xlu0 %1939
  %1941 = vrot.lane.b32.xlu0 %v576, 20
  %v1942 = vpop.permute.xlu0 %1941
  %1943 = vrot.lane.b32.xlu0 %v577, 20
  %v1944 = vpop.permute.xlu0 %1943
  %1945 = vrot.lane.b32.xlu0 %v578, 20
  %v1946 = vpop.permute.xlu0 %1945
  %1947 = vrot.lane.b32.xlu0 %v579, 20
  %v1948 = vpop.permute.xlu0 %1947
  %1949 = vrot.lane.b32.xlu0 %v580, 20
  %v1950 = vpop.permute.xlu0 %1949
  %1951 = vrot.lane.b32.xlu0 %v581, 20
  %v1952 = vpop.permute.xlu0 %1951
  %1953 = vrot.lane.b32.xlu0 %v582, 20
  %v1954 = vpop.permute.xlu0 %1953
  %1955 = vrot.lane.b32.xlu0 %v583, 20
  %v1956 = vpop.permute.xlu0 %1955
  %1957 = vrot.lane.b32.xlu0 %v584, 20
  %v1958 = vpop.permute.xlu0 %1957
  %1959 = vrot.lane.b32.xlu0 %v585, 20
  %v1960 = vpop.permute.xlu0 %1959
  %1961 = vrot.lane.b32.xlu0 %v586, 20
  %v1962 = vpop.permute.xlu0 %1961
  %1963 = vrot.lane.b32.xlu0 %v587, 20
  %v1964 = vpop.permute.xlu0 %1963
  %1965 = vrot.lane.b32.xlu0 %v588, 20
  %v1966 = vpop.permute.xlu0 %1965
  %1967 = vrot.lane.b32.xlu0 %v589, 20
  %v1968 = vpop.permute.xlu0 %1967
  %1969 = vrot.lane.b32.xlu0 %v590, 20
  %v1970 = vpop.permute.xlu0 %1969
  %1971 = vrot.lane.b32.xlu0 %v591, 20
  %v1972 = vpop.permute.xlu0 %1971
  %1973 = vrot.lane.b32.xlu0 %v592, 20
  %v1974 = vpop.permute.xlu0 %1973
  %1975 = vrot.lane.b32.xlu0 %v593, 20
  %v1976 = vpop.permute.xlu0 %1975
  %1977 = vrot.lane.b32.xlu0 %v594, 20
  %v1978 = vpop.permute.xlu0 %1977
  %1979 = vrot.lane.b32.xlu0 %v595, 20
  %v1980 = vpop.permute.xlu0 %1979
  %1981 = vrot.lane.b32.xlu0 %v596, 20
  %v1982 = vpop.permute.xlu0 %1981
  %1983 = vrot.lane.b32.xlu0 %v597, 20
  %v1984 = vpop.permute.xlu0 %1983
  %1985 = vrot.lane.b32.xlu0 %v598, 20
  %v1986 = vpop.permute.xlu0 %1985
  %1987 = vrot.lane.b32.xlu0 %v599, 20
  %v1988 = vpop.permute.xlu0 %1987
  %1989 = vrot.lane.b32.xlu0 %v600, 20
  %v1990 = vpop.permute.xlu0 %1989
  %1991 = vrot.lane.b32.xlu0 %v601, 20
  %v1992 = vpop.permute.xlu0 %1991
  %1993 = vrot.lane.b32.xlu0 %v602, 20
  %v1994 = vpop.permute.xlu0 %1993
  %1995 = vrot.lane.b32.xlu0 %v603, 20
  %v1996 = vpop.permute.xlu0 %1995
  %1997 = vrot.lane.b32.xlu0 %v604, 20
  %v1998 = vpop.permute.xlu0 %1997
  %1999 = vrot.lane.b32.xlu0 %v605, 20
  %v2000 = vpop.permute.xlu0 %1999
  %2001 = vrot.lane.b32.xlu0 %v606, 20
  %v2002 = vpop.permute.xlu0 %2001
  %2003 = vrot.lane.b32.xlu0 %v607, 20
  %v2004 = vpop.permute.xlu0 %2003
  %2005 = vrot.lane.b32.xlu0 %v608, 20
  %v2006 = vpop.permute.xlu0 %2005
  %2007 = vrot.lane.b32.xlu0 %v609, 20
  %v2008 = vpop.permute.xlu0 %2007
  %2009 = vrot.lane.b32.xlu0 %v610, 20
  %v2010 = vpop.permute.xlu0 %2009
  %2011 = vrot.lane.b32.xlu0 %v611, 20
  %v2012 = vpop.permute.xlu0 %2011
  %2013 = vrot.lane.b32.xlu0 %v612, 20
  %v2014 = vpop.permute.xlu0 %2013
  %2015 = vrot.lane.b32.xlu0 %v613, 20
  %v2016 = vpop.permute.xlu0 %2015
  %2017 = vrot.lane.b32.xlu0 %v614, 20
  %v2018 = vpop.permute.xlu0 %2017
  %2019 = vrot.lane.b32.xlu0 %v615, 20
  %v2020 = vpop.permute.xlu0 %2019
  %2021 = vrot.lane.b32.xlu0 %v616, 20
  %v2022 = vpop.permute.xlu0 %2021
  %2023 = vrot.lane.b32.xlu0 %v617, 20
  %v2024 = vpop.permute.xlu0 %2023
  %2025 = vrot.lane.b32.xlu0 %v618, 20
  %v2026 = vpop.permute.xlu0 %2025
  %2027 = vrot.lane.b32.xlu0 %v619, 20
  %v2028 = vpop.permute.xlu0 %2027
  %2157 = vrot.lane.b32.xlu0 %v621, 24
  %v2158 = vpop.permute.xlu0 %2157
  %2159 = vrot.lane.b32.xlu0 %v622, 24
  %v2160 = vpop.permute.xlu0 %2159
  %2161 = vrot.lane.b32.xlu0 %v623, 24
  %v2162 = vpop.permute.xlu0 %2161
  %2163 = vrot.lane.b32.xlu0 %v624, 24
  %v2164 = vpop.permute.xlu0 %2163
  %2165 = vrot.lane.b32.xlu0 %v625, 24
  %v2166 = vpop.permute.xlu0 %2165
  %2167 = vrot.lane.b32.xlu0 %v626, 24
  %v2168 = vpop.permute.xlu0 %2167
  %2169 = vrot.lane.b32.xlu0 %v627, 24
  %v2170 = vpop.permute.xlu0 %2169
  %2171 = vrot.lane.b32.xlu0 %v628, 24
  %v2172 = vpop.permute.xlu0 %2171
  %2173 = vrot.lane.b32.xlu0 %v629, 24
  %v2174 = vpop.permute.xlu0 %2173
  %2175 = vrot.lane.b32.xlu0 %v630, 24
  %v2176 = vpop.permute.xlu0 %2175
  %2177 = vrot.lane.b32.xlu0 %v631, 24
  %v2178 = vpop.permute.xlu0 %2177
  %2179 = vrot.lane.b32.xlu0 %v632, 24
  %v2180 = vpop.permute.xlu0 %2179
  %2181 = vrot.lane.b32.xlu0 %v633, 24
  %v2182 = vpop.permute.xlu0 %2181
  %2183 = vrot.lane.b32.xlu0 %v634, 24
  %v2184 = vpop.permute.xlu0 %2183
  %2185 = vrot.lane.b32.xlu0 %v635, 24
  %v2186 = vpop.permute.xlu0 %2185
  %2187 = vrot.lane.b32.xlu0 %v636, 24
  %v2188 = vpop.permute.xlu0 %2187
  %2189 = vrot.lane.b32.xlu0 %v637, 24
  %v2190 = vpop.permute.xlu0 %2189
  %2191 = vrot.lane.b32.xlu0 %v638, 24
  %v2192 = vpop.permute.xlu0 %2191
  %2193 = vrot.lane.b32.xlu0 %v639, 24
  %v2194 = vpop.permute.xlu0 %2193
  %2195 = vrot.lane.b32.xlu0 %v640, 24
  %v2196 = vpop.permute.xlu0 %2195
  %2197 = vrot.lane.b32.xlu0 %v641, 24
  %v2198 = vpop.permute.xlu0 %2197
  %2199 = vrot.lane.b32.xlu0 %v642, 24
  %v2200 = vpop.permute.xlu0 %2199
  %2201 = vrot.lane.b32.xlu0 %v643, 24
  %v2202 = vpop.permute.xlu0 %2201
  %2203 = vrot.lane.b32.xlu0 %v644, 24
  %v2204 = vpop.permute.xlu0 %2203
  %2205 = vrot.lane.b32.xlu0 %v645, 24
  %v2206 = vpop.permute.xlu0 %2205
  %2207 = vrot.lane.b32.xlu0 %v646, 24
  %v2208 = vpop.permute.xlu0 %2207
  %2209 = vrot.lane.b32.xlu0 %v647, 24
  %v2210 = vpop.permute.xlu0 %2209
  %2211 = vrot.lane.b32.xlu0 %v648, 24
  %v2212 = vpop.permute.xlu0 %2211
  %2213 = vrot.lane.b32.xlu0 %v649, 24
  %v2214 = vpop.permute.xlu0 %2213
  %2215 = vrot.lane.b32.xlu0 %v650, 24
  %v2216 = vpop.permute.xlu0 %2215
  %2217 = vrot.lane.b32.xlu0 %v651, 24
  %v2218 = vpop.permute.xlu0 %2217
  %2219 = vrot.lane.b32.xlu0 %v652, 24
  %v2220 = vpop.permute.xlu0 %2219
  %2221 = vrot.lane.b32.xlu0 %v653, 24
  %v2222 = vpop.permute.xlu0 %2221
  %2223 = vrot.lane.b32.xlu0 %v654, 24
  %v2224 = vpop.permute.xlu0 %2223
  %2225 = vrot.lane.b32.xlu0 %v655, 24
  %v2226 = vpop.permute.xlu0 %2225
  %2227 = vrot.lane.b32.xlu0 %v656, 24
  %v2228 = vpop.permute.xlu0 %2227
  %2229 = vrot.lane.b32.xlu0 %v657, 24
  %v2230 = vpop.permute.xlu0 %2229
  %2231 = vrot.lane.b32.xlu0 %v658, 24
  %v2232 = vpop.permute.xlu0 %2231
  %2233 = vrot.lane.b32.xlu0 %v659, 24
  %v2234 = vpop.permute.xlu0 %2233
  %2235 = vrot.lane.b32.xlu0 %v660, 24
  %v2236 = vpop.permute.xlu0 %2235
  %2237 = vrot.lane.b32.xlu0 %v661, 24
  %v2238 = vpop.permute.xlu0 %2237
  %2239 = vrot.lane.b32.xlu0 %v662, 24
  %v2240 = vpop.permute.xlu0 %2239
  %2241 = vrot.lane.b32.xlu0 %v663, 24
  %v2242 = vpop.permute.xlu0 %2241
  %2243 = vrot.lane.b32.xlu0 %v664, 24
  %v2244 = vpop.permute.xlu0 %2243
  %2245 = vrot.lane.b32.xlu0 %v665, 24
  %v2246 = vpop.permute.xlu0 %2245
  %2247 = vrot.lane.b32.xlu0 %v666, 24
  %v2248 = vpop.permute.xlu0 %2247
  %2249 = vrot.lane.b32.xlu0 %v667, 24
  %v2250 = vpop.permute.xlu0 %2249
  %2251 = vrot.lane.b32.xlu0 %v668, 24
  %v2252 = vpop.permute.xlu0 %2251
  %2253 = vrot.lane.b32.xlu0 %v669, 24
  %v2254 = vpop.permute.xlu0 %2253
  %2255 = vrot.lane.b32.xlu0 %v670, 24
  %v2256 = vpop.permute.xlu0 %2255
  %2257 = vrot.lane.b32.xlu0 %v671, 24
  %v2258 = vpop.permute.xlu0 %2257
  %2259 = vrot.lane.b32.xlu0 %v672, 24
  %v2260 = vpop.permute.xlu0 %2259
  %2261 = vrot.lane.b32.xlu0 %v673, 24
  %v2262 = vpop.permute.xlu0 %2261
  %2263 = vrot.lane.b32.xlu0 %v674, 24
  %v2264 = vpop.permute.xlu0 %2263
  %2265 = vrot.lane.b32.xlu0 %v675, 24
  %v2266 = vpop.permute.xlu0 %2265
  %2267 = vrot.lane.b32.xlu0 %v676, 24
  %v2268 = vpop.permute.xlu0 %2267
  %2269 = vrot.lane.b32.xlu0 %v677, 24
  %v2270 = vpop.permute.xlu0 %2269
  %2271 = vrot.lane.b32.xlu0 %v678, 24
  %v2272 = vpop.permute.xlu0 %2271
  %2273 = vrot.lane.b32.xlu0 %v679, 24
  %v2274 = vpop.permute.xlu0 %2273
  %2275 = vrot.lane.b32.xlu0 %v680, 24
  %v2276 = vpop.permute.xlu0 %2275
  %2277 = vrot.lane.b32.xlu0 %v681, 24
  %v2278 = vpop.permute.xlu0 %2277
  %2279 = vrot.lane.b32.xlu0 %v682, 24
  %v2280 = vpop.permute.xlu0 %2279
  %2281 = vrot.lane.b32.xlu0 %v683, 24
  %v2282 = vpop.permute.xlu0 %2281
  %2283 = vrot.lane.b32.xlu0 %v684, 24
  %v2284 = vpop.permute.xlu0 %2283
  %2413 = vrot.lane.b32.xlu0 %v685, 28
  %v2414 = vpop.permute.xlu0 %2413
  %2415 = vrot.lane.b32.xlu0 %v686, 28
  %v2416 = vpop.permute.xlu0 %2415
  %2417 = vrot.lane.b32.xlu0 %v687, 28
  %v2418 = vpop.permute.xlu0 %2417
  %2419 = vrot.lane.b32.xlu0 %v688, 28
  %v2420 = vpop.permute.xlu0 %2419
  %2421 = vrot.lane.b32.xlu0 %v689, 28
  %v2422 = vpop.permute.xlu0 %2421
  %2423 = vrot.lane.b32.xlu0 %v690, 28
  %v2424 = vpop.permute.xlu0 %2423
  %2425 = vrot.lane.b32.xlu0 %v691, 28
  %v2426 = vpop.permute.xlu0 %2425
  %2427 = vrot.lane.b32.xlu0 %v692, 28
  %v2428 = vpop.permute.xlu0 %2427
  %2429 = vrot.lane.b32.xlu0 %v693, 28
  %v2430 = vpop.permute.xlu0 %2429
  %2431 = vrot.lane.b32.xlu0 %v694, 28
  %v2432 = vpop.permute.xlu0 %2431
  %2433 = vrot.lane.b32.xlu0 %v695, 28
  %v2434 = vpop.permute.xlu0 %2433
  %2435 = vrot.lane.b32.xlu0 %v696, 28
  %v2436 = vpop.permute.xlu0 %2435
  %2437 = vrot.lane.b32.xlu0 %v697, 28
  %v2438 = vpop.permute.xlu0 %2437
  %2439 = vrot.lane.b32.xlu0 %v698, 28
  %v2440 = vpop.permute.xlu0 %2439
  %2441 = vrot.lane.b32.xlu0 %v699, 28
  %v2442 = vpop.permute.xlu0 %2441
  %2443 = vrot.lane.b32.xlu0 %v700, 28
  %v2444 = vpop.permute.xlu0 %2443
  %2445 = vrot.lane.b32.xlu0 %v701, 28
  %v2446 = vpop.permute.xlu0 %2445
  %2447 = vrot.lane.b32.xlu0 %v702, 28
  %v2448 = vpop.permute.xlu0 %2447
  %2449 = vrot.lane.b32.xlu0 %v703, 28
  %v2450 = vpop.permute.xlu0 %2449
  %2451 = vrot.lane.b32.xlu0 %v704, 28
  %v2452 = vpop.permute.xlu0 %2451
  %2453 = vrot.lane.b32.xlu0 %v705, 28
  %v2454 = vpop.permute.xlu0 %2453
  %2455 = vrot.lane.b32.xlu0 %v706, 28
  %v2456 = vpop.permute.xlu0 %2455
  %2457 = vrot.lane.b32.xlu0 %v707, 28
  %v2458 = vpop.permute.xlu0 %2457
  %2459 = vrot.lane.b32.xlu0 %v708, 28
  %v2460 = vpop.permute.xlu0 %2459
  %2461 = vrot.lane.b32.xlu0 %v709, 28
  %v2462 = vpop.permute.xlu0 %2461
  %2463 = vrot.lane.b32.xlu0 %v710, 28
  %v2464 = vpop.permute.xlu0 %2463
  %2465 = vrot.lane.b32.xlu0 %v711, 28
  %v2466 = vpop.permute.xlu0 %2465
  %2467 = vrot.lane.b32.xlu0 %v712, 28
  %v2468 = vpop.permute.xlu0 %2467
  %2469 = vrot.lane.b32.xlu0 %v713, 28
  %v2470 = vpop.permute.xlu0 %2469
  %2471 = vrot.lane.b32.xlu0 %v714, 28
  %v2472 = vpop.permute.xlu0 %2471
  %2473 = vrot.lane.b32.xlu0 %v715, 28
  %v2474 = vpop.permute.xlu0 %2473
  %2475 = vrot.lane.b32.xlu0 %v716, 28
  %v2476 = vpop.permute.xlu0 %2475
  %2477 = vrot.lane.b32.xlu0 %v717, 28
  %v2478 = vpop.permute.xlu0 %2477
  %2479 = vrot.lane.b32.xlu0 %v718, 28
  %v2480 = vpop.permute.xlu0 %2479
  %2481 = vrot.lane.b32.xlu0 %v719, 28
  %v2482 = vpop.permute.xlu0 %2481
  %2483 = vrot.lane.b32.xlu0 %v720, 28
  %v2484 = vpop.permute.xlu0 %2483
  %2485 = vrot.lane.b32.xlu0 %v721, 28
  %v2486 = vpop.permute.xlu0 %2485
  %2487 = vrot.lane.b32.xlu0 %v722, 28
  %v2488 = vpop.permute.xlu0 %2487
  %2489 = vrot.lane.b32.xlu0 %v723, 28
  %v2490 = vpop.permute.xlu0 %2489
  %2491 = vrot.lane.b32.xlu0 %v724, 28
  %v2492 = vpop.permute.xlu0 %2491
  %2493 = vrot.lane.b32.xlu0 %v725, 28
  %v2494 = vpop.permute.xlu0 %2493
  %2495 = vrot.lane.b32.xlu0 %v726, 28
  %v2496 = vpop.permute.xlu0 %2495
  %2497 = vrot.lane.b32.xlu0 %v727, 28
  %v2498 = vpop.permute.xlu0 %2497
  %2499 = vrot.lane.b32.xlu0 %v728, 28
  %v2500 = vpop.permute.xlu0 %2499
  %2501 = vrot.lane.b32.xlu0 %v729, 28
  %v2502 = vpop.permute.xlu0 %2501
  %2503 = vrot.lane.b32.xlu0 %v730, 28
  %v2504 = vpop.permute.xlu0 %2503
  %2505 = vrot.lane.b32.xlu0 %v731, 28
  %v2506 = vpop.permute.xlu0 %2505
  %2507 = vrot.lane.b32.xlu0 %v732, 28
  %v2508 = vpop.permute.xlu0 %2507
  %2509 = vrot.lane.b32.xlu0 %v733, 28
  %v2510 = vpop.permute.xlu0 %2509
  %2511 = vrot.lane.b32.xlu0 %v734, 28
  %v2512 = vpop.permute.xlu0 %2511
  %2513 = vrot.lane.b32.xlu0 %v735, 28
  %v2514 = vpop.permute.xlu0 %2513
  %2515 = vrot.lane.b32.xlu0 %v736, 28
  %v2516 = vpop.permute.xlu0 %2515
  %2517 = vrot.lane.b32.xlu0 %v737, 28
  %v2518 = vpop.permute.xlu0 %2517
  %2519 = vrot.lane.b32.xlu0 %v738, 28
  %v2520 = vpop.permute.xlu0 %2519
  %2521 = vrot.lane.b32.xlu0 %v739, 28
  %v2522 = vpop.permute.xlu0 %2521
  %2523 = vrot.lane.b32.xlu0 %v740, 28
  %v2524 = vpop.permute.xlu0 %2523
  %2525 = vrot.lane.b32.xlu0 %v741, 28
  %v2526 = vpop.permute.xlu0 %2525
  %2527 = vrot.lane.b32.xlu0 %v742, 28
  %v2528 = vpop.permute.xlu0 %2527
  %2529 = vrot.lane.b32.xlu0 %v743, 28
  %v2530 = vpop.permute.xlu0 %2529
  %2531 = vrot.lane.b32.xlu0 %v744, 28
  %v2532 = vpop.permute.xlu0 %2531
  %2533 = vrot.lane.b32.xlu0 %v745, 28
  %v2534 = vpop.permute.xlu0 %2533
  %2535 = vrot.lane.b32.xlu0 %v746, 28
  %v2536 = vpop.permute.xlu0 %2535
  %2537 = vrot.lane.b32.xlu0 %v747, 28
  %v2538 = vpop.permute.xlu0 %2537
  %2539 = vrot.lane.b32.xlu0 %v748, 28
  %v2540 = vpop.permute.xlu0 %2539
  %2669 = vrot.lane.b32.xlu0 %v749, 32
  %v2670 = vpop.permute.xlu0 %2669
  %2671 = vrot.lane.b32.xlu0 %v750, 32
  %v2672 = vpop.permute.xlu0 %2671
  %2673 = vrot.lane.b32.xlu0 %v751, 32
  %v2674 = vpop.permute.xlu0 %2673
  %2675 = vrot.lane.b32.xlu0 %v752, 32
  %v2676 = vpop.permute.xlu0 %2675
  %2677 = vrot.lane.b32.xlu0 %v753, 32
  %v2678 = vpop.permute.xlu0 %2677
  %2679 = vrot.lane.b32.xlu0 %v754, 32
  %v2680 = vpop.permute.xlu0 %2679
  %2681 = vrot.lane.b32.xlu0 %v755, 32
  %v2682 = vpop.permute.xlu0 %2681
  %2683 = vrot.lane.b32.xlu0 %v756, 32
  %v2684 = vpop.permute.xlu0 %2683
  %2685 = vrot.lane.b32.xlu0 %v757, 32
  %v2686 = vpop.permute.xlu0 %2685
  %2687 = vrot.lane.b32.xlu0 %v758, 32
  %v2688 = vpop.permute.xlu0 %2687
  %2689 = vrot.lane.b32.xlu0 %v759, 32
  %v2690 = vpop.permute.xlu0 %2689
  %2691 = vrot.lane.b32.xlu0 %v760, 32
  %v2692 = vpop.permute.xlu0 %2691
  %2693 = vrot.lane.b32.xlu0 %v761, 32
  %v2694 = vpop.permute.xlu0 %2693
  %2695 = vrot.lane.b32.xlu0 %v762, 32
  %v2696 = vpop.permute.xlu0 %2695
  %2697 = vrot.lane.b32.xlu0 %v763, 32
  %v2698 = vpop.permute.xlu0 %2697
  %2699 = vrot.lane.b32.xlu0 %v764, 32
  %v2700 = vpop.permute.xlu0 %2699
  %2701 = vrot.lane.b32.xlu0 %v765, 32
  %v2702 = vpop.permute.xlu0 %2701
  %2703 = vrot.lane.b32.xlu0 %v766, 32
  %v2704 = vpop.permute.xlu0 %2703
  %2705 = vrot.lane.b32.xlu0 %v767, 32
  %v2706 = vpop.permute.xlu0 %2705
  %2707 = vrot.lane.b32.xlu0 %v768, 32
  %v2708 = vpop.permute.xlu0 %2707
  %2709 = vrot.lane.b32.xlu0 %v769, 32
  %v2710 = vpop.permute.xlu0 %2709
  %2711 = vrot.lane.b32.xlu0 %v770, 32
  %v2712 = vpop.permute.xlu0 %2711
  %2713 = vrot.lane.b32.xlu0 %v771, 32
  %v2714 = vpop.permute.xlu0 %2713
  %2715 = vrot.lane.b32.xlu0 %v772, 32
  %v2716 = vpop.permute.xlu0 %2715
  %2717 = vrot.lane.b32.xlu0 %v773, 32
  %v2718 = vpop.permute.xlu0 %2717
  %2719 = vrot.lane.b32.xlu0 %v774, 32
  %v2720 = vpop.permute.xlu0 %2719
  %2721 = vrot.lane.b32.xlu0 %v775, 32
  %v2722 = vpop.permute.xlu0 %2721
  %2723 = vrot.lane.b32.xlu0 %v776, 32
  %v2724 = vpop.permute.xlu0 %2723
  %2725 = vrot.lane.b32.xlu0 %v777, 32
  %v2726 = vpop.permute.xlu0 %2725
  %2727 = vrot.lane.b32.xlu0 %v778, 32
  %v2728 = vpop.permute.xlu0 %2727
  %2729 = vrot.lane.b32.xlu0 %v779, 32
  %v2730 = vpop.permute.xlu0 %2729
  %2731 = vrot.lane.b32.xlu0 %v780, 32
  %v2732 = vpop.permute.xlu0 %2731
  %2733 = vrot.lane.b32.xlu0 %v781, 32
  %v2734 = vpop.permute.xlu0 %2733
  %2735 = vrot.lane.b32.xlu0 %v782, 32
  %v2736 = vpop.permute.xlu0 %2735
  %2737 = vrot.lane.b32.xlu0 %v783, 32
  %v2738 = vpop.permute.xlu0 %2737
  %2739 = vrot.lane.b32.xlu0 %v784, 32
  %v2740 = vpop.permute.xlu0 %2739
  %2741 = vrot.lane.b32.xlu0 %v785, 32
  %v2742 = vpop.permute.xlu0 %2741
  %2743 = vrot.lane.b32.xlu0 %v786, 32
  %v2744 = vpop.permute.xlu0 %2743
  %2745 = vrot.lane.b32.xlu0 %v787, 32
  %v2746 = vpop.permute.xlu0 %2745
  %2747 = vrot.lane.b32.xlu0 %v788, 32
  %v2748 = vpop.permute.xlu0 %2747
  %2749 = vrot.lane.b32.xlu0 %v789, 32
  %v2750 = vpop.permute.xlu0 %2749
  %2751 = vrot.lane.b32.xlu0 %v790, 32
  %v2752 = vpop.permute.xlu0 %2751
  %2753 = vrot.lane.b32.xlu0 %v791, 32
  %v2754 = vpop.permute.xlu0 %2753
  %2755 = vrot.lane.b32.xlu0 %v792, 32
  %v2756 = vpop.permute.xlu0 %2755
  %2757 = vrot.lane.b32.xlu0 %v793, 32
  %v2758 = vpop.permute.xlu0 %2757
  %2759 = vrot.lane.b32.xlu0 %v794, 32
  %v2760 = vpop.permute.xlu0 %2759
  %2761 = vrot.lane.b32.xlu0 %v795, 32
  %v2762 = vpop.permute.xlu0 %2761
  %2763 = vrot.lane.b32.xlu0 %v796, 32
  %v2764 = vpop.permute.xlu0 %2763
  %2765 = vrot.lane.b32.xlu0 %v797, 32
  %v2766 = vpop.permute.xlu0 %2765
  %2767 = vrot.lane.b32.xlu0 %v798, 32
  %v2768 = vpop.permute.xlu0 %2767
  %2769 = vrot.lane.b32.xlu0 %v799, 32
  %v2770 = vpop.permute.xlu0 %2769
  %2771 = vrot.lane.b32.xlu0 %v800, 32
  %v2772 = vpop.permute.xlu0 %2771
  %2773 = vrot.lane.b32.xlu0 %v801, 32
  %v2774 = vpop.permute.xlu0 %2773
  %2775 = vrot.lane.b32.xlu0 %v802, 32
  %v2776 = vpop.permute.xlu0 %2775
  %2777 = vrot.lane.b32.xlu0 %v803, 32
  %v2778 = vpop.permute.xlu0 %2777
  %2779 = vrot.lane.b32.xlu0 %v804, 32
  %v2780 = vpop.permute.xlu0 %2779
  %2781 = vrot.lane.b32.xlu0 %v805, 32
  %v2782 = vpop.permute.xlu0 %2781
  %2783 = vrot.lane.b32.xlu0 %v806, 32
  %v2784 = vpop.permute.xlu0 %2783
  %2785 = vrot.lane.b32.xlu0 %v807, 32
  %v2786 = vpop.permute.xlu0 %2785
  %2787 = vrot.lane.b32.xlu0 %v808, 32
  %v2788 = vpop.permute.xlu0 %2787
  %2789 = vrot.lane.b32.xlu0 %v809, 32
  %v2790 = vpop.permute.xlu0 %2789
  %2791 = vrot.lane.b32.xlu0 %v810, 32
  %v2792 = vpop.permute.xlu0 %2791
  %2793 = vrot.lane.b32.xlu0 %v811, 32
  %v2794 = vpop.permute.xlu0 %2793
  %2795 = vrot.lane.b32.xlu0 %v812, 32
  %v2796 = vpop.permute.xlu0 %2795
  %v2861 = vsel %vm91, %v236, %v878
  %v2862 = vsel %vm91, %v237, %v880
  %v2863 = vsel %vm91, %v238, %v882
  %v2864 = vsel %vm91, %v239, %v884
  %v2865 = vsel %vm91, %v240, %v886
  %v2866 = vsel %vm91, %v241, %v888
  %v2867 = vsel %vm91, %v242, %v890
  %v2868 = vsel %vm91, %v243, %v892
  %v2869 = vsel %vm91, %v244, %v894
  %v2870 = vsel %vm91, %v245, %v896
  %v2871 = vsel %vm91, %v246, %v898
  %v2872 = vsel %vm91, %v247, %v900
  %v2873 = vsel %vm91, %v248, %v902
  %v2874 = vsel %vm91, %v249, %v904
  %v2875 = vsel %vm91, %v250, %v906
  %v2876 = vsel %vm91, %v251, %v908
  %v2877 = vsel %vm91, %v252, %v910
  %v2878 = vsel %vm91, %v253, %v912
  %v2879 = vsel %vm91, %v254, %v914
  %v2880 = vsel %vm91, %v255, %v916
  %v2881 = vsel %vm91, %v256, %v918
  %v2882 = vsel %vm91, %v257, %v920
  %v2883 = vsel %vm91, %v258, %v922
  %v2884 = vsel %vm91, %v259, %v924
  %v2885 = vsel %vm91, %v260, %v926
  %v2886 = vsel %vm91, %v261, %v928
  %v2887 = vsel %vm91, %v262, %v930
  %v2888 = vsel %vm91, %v263, %v932
  %v2889 = vsel %vm91, %v264, %v934
  %v2890 = vsel %vm91, %v265, %v936
  %v2891 = vsel %vm91, %v266, %v938
  %v2892 = vsel %vm91, %v267, %v940
  %v2893 = vsel %vm91, %v268, %v942
  %v2894 = vsel %vm91, %v269, %v944
  %v2895 = vsel %vm91, %v270, %v946
  %v2896 = vsel %vm91, %v271, %v948
  %v2897 = vsel %vm91, %v272, %v950
  %v2898 = vsel %vm91, %v273, %v952
  %v2899 = vsel %vm91, %v274, %v954
  %v2900 = vsel %vm91, %v275, %v956
  %v2901 = vsel %vm91, %v276, %v958
  %v2902 = vsel %vm91, %v277, %v960
  %v2903 = vsel %vm91, %v278, %v962
  %v2904 = vsel %vm91, %v279, %v964
  %v2905 = vsel %vm91, %v280, %v966
  %v2906 = vsel %vm91, %v281, %v968
  %v2907 = vsel %vm91, %v282, %v970
  %v2908 = vsel %vm91, %v283, %v972
  %v2909 = vsel %vm91, %v284, %v974
  %v2910 = vsel %vm91, %v285, %v976
  %v2911 = vsel %vm91, %v286, %v978
  %v2912 = vsel %vm91, %v287, %v980
  %v2913 = vsel %vm91, %v288, %v982
  %v2914 = vsel %vm91, %v289, %v984
  %v2915 = vsel %vm91, %v290, %v986
  %v2916 = vsel %vm91, %v291, %v988
  %v2917 = vsel %vm91, %v292, %v990
  %v2918 = vsel %vm91, %v293, %v992
  %v2919 = vsel %vm91, %v294, %v994
  %v2920 = vsel %vm91, %v295, %v996
  %v2921 = vsel %vm91, %v296, %v998
  %v2922 = vsel %vm91, %v297, %v1000
  %v2923 = vsel %vm91, %v298, %v1002
  %v2924 = vsel %vm91, %v299, %v1004
  %vm2925 = vcmask 64512
  %v2926 = vsel %vm2925, %v2861, %v1134
  %v2927 = vsel %vm2925, %v2862, %v1136
  %v2928 = vsel %vm2925, %v2863, %v1138
  %v2929 = vsel %vm2925, %v2864, %v1140
  %v2930 = vsel %vm2925, %v2865, %v1142
  %v2931 = vsel %vm2925, %v2866, %v1144
  %v2932 = vsel %vm2925, %v2867, %v1146
  %v2933 = vsel %vm2925, %v2868, %v1148
  %v2934 = vsel %vm2925, %v2869, %v1150
  %v2935 = vsel %vm2925, %v2870, %v1152
  %v2936 = vsel %vm2925, %v2871, %v1154
  %v2937 = vsel %vm2925, %v2872, %v1156
  %v2938 = vsel %vm2925, %v2873, %v1158
  %v2939 = vsel %vm2925, %v2874, %v1160
  %v2940 = vsel %vm2925, %v2875, %v1162
  %v2941 = vsel %vm2925, %v2876, %v1164
  %v2942 = vsel %vm2925, %v2877, %v1166
  %v2943 = vsel %vm2925, %v2878, %v1168
  %v2944 = vsel %vm2925, %v2879, %v1170
  %v2945 = vsel %vm2925, %v2880, %v1172
  %v2946 = vsel %vm2925, %v2881, %v1174
  %v2947 = vsel %vm2925, %v2882, %v1176
  %v2948 = vsel %vm2925, %v2883, %v1178
  %v2949 = vsel %vm2925, %v2884, %v1180
  %v2950 = vsel %vm2925, %v2885, %v1182
  %v2951 = vsel %vm2925, %v2886, %v1184
  %v2952 = vsel %vm2925, %v2887, %v1186
  %v2953 = vsel %vm2925, %v2888, %v1188
  %v2954 = vsel %vm2925, %v2889, %v1190
  %v2955 = vsel %vm2925, %v2890, %v1192
  %v2956 = vsel %vm2925, %v2891, %v1194
  %v2957 = vsel %vm2925, %v2892, %v1196
  %v2958 = vsel %vm2925, %v2893, %v1198
  %v2959 = vsel %vm2925, %v2894, %v1200
  %v2960 = vsel %vm2925, %v2895, %v1202
  %v2961 = vsel %vm2925, %v2896, %v1204
  %v2962 = vsel %vm2925, %v2897, %v1206
  %v2963 = vsel %vm2925, %v2898, %v1208
  %v2964 = vsel %vm2925, %v2899, %v1210
  %v2965 = vsel %vm2925, %v2900, %v1212
  %v2966 = vsel %vm2925, %v2901, %v1214
  %v2967 = vsel %vm2925, %v2902, %v1216
  %v2968 = vsel %vm2925, %v2903, %v1218
  %v2969 = vsel %vm2925, %v2904, %v1220
  %v2970 = vsel %vm2925, %v2905, %v1222
  %v2971 = vsel %vm2925, %v2906, %v1224
  %v2972 = vsel %vm2925, %v2907, %v1226
  %v2973 = vsel %vm2925, %v2908, %v1228
  %v2974 = vsel %vm2925, %v2909, %v1230
  %v2975 = vsel %vm2925, %v2910, %v1232
  %v2976 = vsel %vm2925, %v2911, %v1234
  %v2977 = vsel %vm2925, %v2912, %v1236
  %v2978 = vsel %vm2925, %v2913, %v1238
  %v2979 = vsel %vm2925, %v2914, %v1240
  %v2980 = vsel %vm2925, %v2915, %v1242
  %v2981 = vsel %vm2925, %v2916, %v1244
  %v2982 = vsel %vm2925, %v2917, %v1246
  %v2983 = vsel %vm2925, %v2918, %v1248
  %v2984 = vsel %vm2925, %v2919, %v1250
  %v2985 = vsel %vm2925, %v2920, %v1252
  %v2986 = vsel %vm2925, %v2921, %v1254
  %v2987 = vsel %vm2925, %v2922, %v1256
  %v2988 = vsel %vm2925, %v2923, %v1258
  %v2989 = vsel %vm2925, %v2924, %v1260
  %vm2990 = vcmask 97280
  %v2991 = vsel %vm2990, %v2926, %v1390
  %v2992 = vsel %vm2990, %v2927, %v1392
  %v2993 = vsel %vm2990, %v2928, %v1394
  %v2994 = vsel %vm2990, %v2929, %v1396
  %v2995 = vsel %vm2990, %v2930, %v1398
  %v2996 = vsel %vm2990, %v2931, %v1400
  %v2997 = vsel %vm2990, %v2932, %v1402
  %v2998 = vsel %vm2990, %v2933, %v1404
  %v2999 = vsel %vm2990, %v2934, %v1406
  %v3000 = vsel %vm2990, %v2935, %v1408
  %v3001 = vsel %vm2990, %v2936, %v1410
  %v3002 = vsel %vm2990, %v2937, %v1412
  %v3003 = vsel %vm2990, %v2938, %v1414
  %v3004 = vsel %vm2990, %v2939, %v1416
  %v3005 = vsel %vm2990, %v2940, %v1418
  %v3006 = vsel %vm2990, %v2941, %v1420
  %v3007 = vsel %vm2990, %v2942, %v1422
  %v3008 = vsel %vm2990, %v2943, %v1424
  %v3009 = vsel %vm2990, %v2944, %v1426
  %v3010 = vsel %vm2990, %v2945, %v1428
  %v3011 = vsel %vm2990, %v2946, %v1430
  %v3012 = vsel %vm2990, %v2947, %v1432
  %v3013 = vsel %vm2990, %v2948, %v1434
  %v3014 = vsel %vm2990, %v2949, %v1436
  %v3015 = vsel %vm2990, %v2950, %v1438
  %v3016 = vsel %vm2990, %v2951, %v1440
  %v3017 = vsel %vm2990, %v2952, %v1442
  %v3018 = vsel %vm2990, %v2953, %v1444
  %v3019 = vsel %vm2990, %v2954, %v1446
  %v3020 = vsel %vm2990, %v2955, %v1448
  %v3021 = vsel %vm2990, %v2956, %v1450
  %v3022 = vsel %vm2990, %v2957, %v1452
  %v3023 = vsel %vm2990, %v2958, %v1454
  %v3024 = vsel %vm2990, %v2959, %v1456
  %v3025 = vsel %vm2990, %v2960, %v1458
  %v3026 = vsel %vm2990, %v2961, %v1460
  %v3027 = vsel %vm2990, %v2962, %v1462
  %v3028 = vsel %vm2990, %v2963, %v1464
  %v3029 = vsel %vm2990, %v2964, %v1466
  %v3030 = vsel %vm2990, %v2965, %v1468
  %v3031 = vsel %vm2990, %v2966, %v1470
  %v3032 = vsel %vm2990, %v2967, %v1472
  %v3033 = vsel %vm2990, %v2968, %v1474
  %v3034 = vsel %vm2990, %v2969, %v1476
  %v3035 = vsel %vm2990, %v2970, %v1478
  %v3036 = vsel %vm2990, %v2971, %v1480
  %v3037 = vsel %vm2990, %v2972, %v1482
  %v3038 = vsel %vm2990, %v2973, %v1484
  %v3039 = vsel %vm2990, %v2974, %v1486
  %v3040 = vsel %vm2990, %v2975, %v1488
  %v3041 = vsel %vm2990, %v2976, %v1490
  %v3042 = vsel %vm2990, %v2977, %v1492
  %v3043 = vsel %vm2990, %v2978, %v1494
  %v3044 = vsel %vm2990, %v2979, %v1496
  %v3045 = vsel %vm2990, %v2980, %v1498
  %v3046 = vsel %vm2990, %v2981, %v1500
  %v3047 = vsel %vm2990, %v2982, %v1502
  %v3048 = vsel %vm2990, %v2983, %v1504
  %v3049 = vsel %vm2990, %v2984, %v1506
  %v3050 = vsel %vm2990, %v2985, %v1508
  %v3051 = vsel %vm2990, %v2986, %v1510
  %v3052 = vsel %vm2990, %v2987, %v1512
  %v3053 = vsel %vm2990, %v2988, %v1514
  %v3054 = vsel %vm2990, %v2989, %v1516
  %vm3055 = vcmask 130048
  %v3056 = vsel %vm3055, %v2991, %v1646
  %v3057 = vsel %vm3055, %v2992, %v1648
  %v3058 = vsel %vm3055, %v2993, %v1650
  %v3059 = vsel %vm3055, %v2994, %v1652
  %v3060 = vsel %vm3055, %v2995, %v1654
  %v3061 = vsel %vm3055, %v2996, %v1656
  %v3062 = vsel %vm3055, %v2997, %v1658
  %v3063 = vsel %vm3055, %v2998, %v1660
  %v3064 = vsel %vm3055, %v2999, %v1662
  %v3065 = vsel %vm3055, %v3000, %v1664
  %v3066 = vsel %vm3055, %v3001, %v1666
  %v3067 = vsel %vm3055, %v3002, %v1668
  %v3068 = vsel %vm3055, %v3003, %v1670
  %v3069 = vsel %vm3055, %v3004, %v1672
  %v3070 = vsel %vm3055, %v3005, %v1674
  %v3071 = vsel %vm3055, %v3006, %v1676
  %v3072 = vsel %vm3055, %v3007, %v1678
  %v3073 = vsel %vm3055, %v3008, %v1680
  %v3074 = vsel %vm3055, %v3009, %v1682
  %v3075 = vsel %vm3055, %v3010, %v1684
  %v3076 = vsel %vm3055, %v3011, %v1686
  %v3077 = vsel %vm3055, %v3012, %v1688
  %v3078 = vsel %vm3055, %v3013, %v1690
  %v3079 = vsel %vm3055, %v3014, %v1692
  %v3080 = vsel %vm3055, %v3015, %v1694
  %v3081 = vsel %vm3055, %v3016, %v1696
  %v3082 = vsel %vm3055, %v3017, %v1698
  %v3083 = vsel %vm3055, %v3018, %v1700
  %v3084 = vsel %vm3055, %v3019, %v1702
  %v3085 = vsel %vm3055, %v3020, %v1704
  %v3086 = vsel %vm3055, %v3021, %v1706
  %v3087 = vsel %vm3055, %v3022, %v1708
  %v3088 = vsel %vm3055, %v3023, %v1710
  %v3089 = vsel %vm3055, %v3024, %v1712
  %v3090 = vsel %vm3055, %v3025, %v1714
  %v3091 = vsel %vm3055, %v3026, %v1716
  %v3092 = vsel %vm3055, %v3027, %v1718
  %v3093 = vsel %vm3055, %v3028, %v1720
  %v3094 = vsel %vm3055, %v3029, %v1722
  %v3095 = vsel %vm3055, %v3030, %v1724
  %v3096 = vsel %vm3055, %v3031, %v1726
  %v3097 = vsel %vm3055, %v3032, %v1728
  %v3098 = vsel %vm3055, %v3033, %v1730
  %v3099 = vsel %vm3055, %v3034, %v1732
  %v3100 = vsel %vm3055, %v3035, %v1734
  %v3101 = vsel %vm3055, %v3036, %v1736
  %v3102 = vsel %vm3055, %v3037, %v1738
  %v3103 = vsel %vm3055, %v3038, %v1740
  %v3104 = vsel %vm3055, %v3039, %v1742
  %v3105 = vsel %vm3055, %v3040, %v1744
  %v3106 = vsel %vm3055, %v3041, %v1746
  %v3107 = vsel %vm3055, %v3042, %v1748
  %v3108 = vsel %vm3055, %v3043, %v1750
  %v3109 = vsel %vm3055, %v3044, %v1752
  %v3110 = vsel %vm3055, %v3045, %v1754
  %v3111 = vsel %vm3055, %v3046, %v1756
  %v3112 = vsel %vm3055, %v3047, %v1758
  %v3113 = vsel %vm3055, %v3048, %v1760
  %v3114 = vsel %vm3055, %v3049, %v1762
  %v3115 = vsel %vm3055, %v3050, %v1764
  %v3116 = vsel %vm3055, %v3051, %v1766
  %v3117 = vsel %vm3055, %v3052, %v1768
  %v3118 = vsel %vm3055, %v3053, %v1770
  %v3119 = vsel %vm3055, %v3054, %v1772
  %vm3120 = vcmask 162816
  %v3121 = vsel %vm3120, %v3056, %v1902
  %v3122 = vsel %vm3120, %v3057, %v1904
  %v3123 = vsel %vm3120, %v3058, %v1906
  %v3124 = vsel %vm3120, %v3059, %v1908
  %v3125 = vsel %vm3120, %v3060, %v1910
  %v3126 = vsel %vm3120, %v3061, %v1912
  %v3127 = vsel %vm3120, %v3062, %v1914
  %v3128 = vsel %vm3120, %v3063, %v1916
  %v3129 = vsel %vm3120, %v3064, %v1918
  %v3130 = vsel %vm3120, %v3065, %v1920
  %v3131 = vsel %vm3120, %v3066, %v1922
  %v3132 = vsel %vm3120, %v3067, %v1924
  %v3133 = vsel %vm3120, %v3068, %v1926
  %v3134 = vsel %vm3120, %v3069, %v1928
  %v3135 = vsel %vm3120, %v3070, %v1930
  %v3136 = vsel %vm3120, %v3071, %v1932
  %v3137 = vsel %vm3120, %v3072, %v1934
  %v3138 = vsel %vm3120, %v3073, %v1936
  %v3139 = vsel %vm3120, %v3074, %v1938
  %v3140 = vsel %vm3120, %v3075, %v1940
  %v3141 = vsel %vm3120, %v3076, %v1942
  %v3142 = vsel %vm3120, %v3077, %v1944
  %v3143 = vsel %vm3120, %v3078, %v1946
  %v3144 = vsel %vm3120, %v3079, %v1948
  %v3145 = vsel %vm3120, %v3080, %v1950
  %v3146 = vsel %vm3120, %v3081, %v1952
  %v3147 = vsel %vm3120, %v3082, %v1954
  %v3148 = vsel %vm3120, %v3083, %v1956
  %v3149 = vsel %vm3120, %v3084, %v1958
  %v3150 = vsel %vm3120, %v3085, %v1960
  %v3151 = vsel %vm3120, %v3086, %v1962
  %v3152 = vsel %vm3120, %v3087, %v1964
  %v3153 = vsel %vm3120, %v3088, %v1966
  %v3154 = vsel %vm3120, %v3089, %v1968
  %v3155 = vsel %vm3120, %v3090, %v1970
  %v3156 = vsel %vm3120, %v3091, %v1972
  %v3157 = vsel %vm3120, %v3092, %v1974
  %v3158 = vsel %vm3120, %v3093, %v1976
  %v3159 = vsel %vm3120, %v3094, %v1978
  %v3160 = vsel %vm3120, %v3095, %v1980
  %v3161 = vsel %vm3120, %v3096, %v1982
  %v3162 = vsel %vm3120, %v3097, %v1984
  %v3163 = vsel %vm3120, %v3098, %v1986
  %v3164 = vsel %vm3120, %v3099, %v1988
  %v3165 = vsel %vm3120, %v3100, %v1990
  %v3166 = vsel %vm3120, %v3101, %v1992
  %v3167 = vsel %vm3120, %v3102, %v1994
  %v3168 = vsel %vm3120, %v3103, %v1996
  %v3169 = vsel %vm3120, %v3104, %v1998
  %v3170 = vsel %vm3120, %v3105, %v2000
  %v3171 = vsel %vm3120, %v3106, %v2002
  %v3172 = vsel %vm3120, %v3107, %v2004
  %v3173 = vsel %vm3120, %v3108, %v2006
  %v3174 = vsel %vm3120, %v3109, %v2008
  %v3175 = vsel %vm3120, %v3110, %v2010
  %v3176 = vsel %vm3120, %v3111, %v2012
  %v3177 = vsel %vm3120, %v3112, %v2014
  %v3178 = vsel %vm3120, %v3113, %v2016
  %v3179 = vsel %vm3120, %v3114, %v2018
  %v3180 = vsel %vm3120, %v3115, %v2020
  %v3181 = vsel %vm3120, %v3116, %v2022
  %v3182 = vsel %vm3120, %v3117, %v2024
  %v3183 = vsel %vm3120, %v3118, %v2026
  %v3184 = vsel %vm3120, %v3119, %v2028
  %vm3185 = vcmask 195584
  %v3186 = vsel %vm3185, %v3121, %v2158
  %v3187 = vsel %vm3185, %v3122, %v2160
  %v3188 = vsel %vm3185, %v3123, %v2162
  %v3189 = vsel %vm3185, %v3124, %v2164
  %v3190 = vsel %vm3185, %v3125, %v2166
  %v3191 = vsel %vm3185, %v3126, %v2168
  %v3192 = vsel %vm3185, %v3127, %v2170
  %v3193 = vsel %vm3185, %v3128, %v2172
  %v3194 = vsel %vm3185, %v3129, %v2174
  %v3195 = vsel %vm3185, %v3130, %v2176
  %v3196 = vsel %vm3185, %v3131, %v2178
  %v3197 = vsel %vm3185, %v3132, %v2180
  %v3198 = vsel %vm3185, %v3133, %v2182
  %v3199 = vsel %vm3185, %v3134, %v2184
  %v3200 = vsel %vm3185, %v3135, %v2186
  %v3201 = vsel %vm3185, %v3136, %v2188
  %v3202 = vsel %vm3185, %v3137, %v2190
  %v3203 = vsel %vm3185, %v3138, %v2192
  %v3204 = vsel %vm3185, %v3139, %v2194
  %v3205 = vsel %vm3185, %v3140, %v2196
  %v3206 = vsel %vm3185, %v3141, %v2198
  %v3207 = vsel %vm3185, %v3142, %v2200
  %v3208 = vsel %vm3185, %v3143, %v2202
  %v3209 = vsel %vm3185, %v3144, %v2204
  %v3210 = vsel %vm3185, %v3145, %v2206
  %v3211 = vsel %vm3185, %v3146, %v2208
  %v3212 = vsel %vm3185, %v3147, %v2210
  %v3213 = vsel %vm3185, %v3148, %v2212
  %v3214 = vsel %vm3185, %v3149, %v2214
  %v3215 = vsel %vm3185, %v3150, %v2216
  %v3216 = vsel %vm3185, %v3151, %v2218
  %v3217 = vsel %vm3185, %v3152, %v2220
  %v3218 = vsel %vm3185, %v3153, %v2222
  %v3219 = vsel %vm3185, %v3154, %v2224
  %v3220 = vsel %vm3185, %v3155, %v2226
  %v3221 = vsel %vm3185, %v3156, %v2228
  %v3222 = vsel %vm3185, %v3157, %v2230
  %v3223 = vsel %vm3185, %v3158, %v2232
  %v3224 = vsel %vm3185, %v3159, %v2234
  %v3225 = vsel %vm3185, %v3160, %v2236
  %v3226 = vsel %vm3185, %v3161, %v2238
  %v3227 = vsel %vm3185, %v3162, %v2240
  %v3228 = vsel %vm3185, %v3163, %v2242
  %v3229 = vsel %vm3185, %v3164, %v2244
  %v3230 = vsel %vm3185, %v3165, %v2246
  %v3231 = vsel %vm3185, %v3166, %v2248
  %v3232 = vsel %vm3185, %v3167, %v2250
  %v3233 = vsel %vm3185, %v3168, %v2252
  %v3234 = vsel %vm3185, %v3169, %v2254
  %v3235 = vsel %vm3185, %v3170, %v2256
  %v3236 = vsel %vm3185, %v3171, %v2258
  %v3237 = vsel %vm3185, %v3172, %v2260
  %v3238 = vsel %vm3185, %v3173, %v2262
  %v3239 = vsel %vm3185, %v3174, %v2264
  %v3240 = vsel %vm3185, %v3175, %v2266
  %v3241 = vsel %vm3185, %v3176, %v2268
  %v3242 = vsel %vm3185, %v3177, %v2270
  %v3243 = vsel %vm3185, %v3178, %v2272
  %v3244 = vsel %vm3185, %v3179, %v2274
  %v3245 = vsel %vm3185, %v3180, %v2276
  %v3246 = vsel %vm3185, %v3181, %v2278
  %v3247 = vsel %vm3185, %v3182, %v2280
  %v3248 = vsel %vm3185, %v3183, %v2282
  %v3249 = vsel %vm3185, %v3184, %v2284
  %vm3250 = vcmask 228352
  %v3251 = vsel %vm3250, %v3186, %v2414
  %v3252 = vsel %vm3250, %v3187, %v2416
  %v3253 = vsel %vm3250, %v3188, %v2418
  %v3254 = vsel %vm3250, %v3189, %v2420
  %v3255 = vsel %vm3250, %v3190, %v2422
  %v3256 = vsel %vm3250, %v3191, %v2424
  %v3257 = vsel %vm3250, %v3192, %v2426
  %v3258 = vsel %vm3250, %v3193, %v2428
  %v3259 = vsel %vm3250, %v3194, %v2430
  %v3260 = vsel %vm3250, %v3195, %v2432
  %v3261 = vsel %vm3250, %v3196, %v2434
  %v3262 = vsel %vm3250, %v3197, %v2436
  %v3263 = vsel %vm3250, %v3198, %v2438
  %v3264 = vsel %vm3250, %v3199, %v2440
  %v3265 = vsel %vm3250, %v3200, %v2442
  %v3266 = vsel %vm3250, %v3201, %v2444
  %v3267 = vsel %vm3250, %v3202, %v2446
  %v3268 = vsel %vm3250, %v3203, %v2448
  %v3269 = vsel %vm3250, %v3204, %v2450
  %v3270 = vsel %vm3250, %v3205, %v2452
  %v3271 = vsel %vm3250, %v3206, %v2454
  %v3272 = vsel %vm3250, %v3207, %v2456
  %v3273 = vsel %vm3250, %v3208, %v2458
  %v3274 = vsel %vm3250, %v3209, %v2460
  %v3275 = vsel %vm3250, %v3210, %v2462
  %v3276 = vsel %vm3250, %v3211, %v2464
  %v3277 = vsel %vm3250, %v3212, %v2466
  %v3278 = vsel %vm3250, %v3213, %v2468
  %v3279 = vsel %vm3250, %v3214, %v2470
  %v3280 = vsel %vm3250, %v3215, %v2472
  %v3281 = vsel %vm3250, %v3216, %v2474
  %v3282 = vsel %vm3250, %v3217, %v2476
  %v3283 = vsel %vm3250, %v3218, %v2478
  %v3284 = vsel %vm3250, %v3219, %v2480
  %v3285 = vsel %vm3250, %v3220, %v2482
  %v3286 = vsel %vm3250, %v3221, %v2484
  %v3287 = vsel %vm3250, %v3222, %v2486
  %v3288 = vsel %vm3250, %v3223, %v2488
  %v3289 = vsel %vm3250, %v3224, %v2490
  %v3290 = vsel %vm3250, %v3225, %v2492
  %v3291 = vsel %vm3250, %v3226, %v2494
  %v3292 = vsel %vm3250, %v3227, %v2496
  %v3293 = vsel %vm3250, %v3228, %v2498
  %v3294 = vsel %vm3250, %v3229, %v2500
  %v3295 = vsel %vm3250, %v3230, %v2502
  %v3296 = vsel %vm3250, %v3231, %v2504
  %v3297 = vsel %vm3250, %v3232, %v2506
  %v3298 = vsel %vm3250, %v3233, %v2508
  %v3299 = vsel %vm3250, %v3234, %v2510
  %v3300 = vsel %vm3250, %v3235, %v2512
  %v3301 = vsel %vm3250, %v3236, %v2514
  %v3302 = vsel %vm3250, %v3237, %v2516
  %v3303 = vsel %vm3250, %v3238, %v2518
  %v3304 = vsel %vm3250, %v3239, %v2520
  %v3305 = vsel %vm3250, %v3240, %v2522
  %v3306 = vsel %vm3250, %v3241, %v2524
  %v3307 = vsel %vm3250, %v3242, %v2526
  %v3308 = vsel %vm3250, %v3243, %v2528
  %v3309 = vsel %vm3250, %v3244, %v2530
  %v3310 = vsel %vm3250, %v3245, %v2532
  %v3311 = vsel %vm3250, %v3246, %v2534
  %v3312 = vsel %vm3250, %v3247, %v2536
  %v3313 = vsel %vm3250, %v3248, %v2538
  %v3314 = vsel %vm3250, %v3249, %v2540
  %vm3315 = vcmask 261120
  %v3316 = vsel %vm3315, %v3251, %v2670
  %v3317 = vsel %vm3315, %v3252, %v2672
  %v3318 = vsel %vm3315, %v3253, %v2674
  %v3319 = vsel %vm3315, %v3254, %v2676
  %v3320 = vsel %vm3315, %v3255, %v2678
  %v3321 = vsel %vm3315, %v3256, %v2680
  %v3322 = vsel %vm3315, %v3257, %v2682
  %v3323 = vsel %vm3315, %v3258, %v2684
  %v3324 = vsel %vm3315, %v3259, %v2686
  %v3325 = vsel %vm3315, %v3260, %v2688
  %v3326 = vsel %vm3315, %v3261, %v2690
  %v3327 = vsel %vm3315, %v3262, %v2692
  %v3328 = vsel %vm3315, %v3263, %v2694
  %v3329 = vsel %vm3315, %v3264, %v2696
  %v3330 = vsel %vm3315, %v3265, %v2698
  %v3331 = vsel %vm3315, %v3266, %v2700
  %v3332 = vsel %vm3315, %v3267, %v2702
  %v3333 = vsel %vm3315, %v3268, %v2704
  %v3334 = vsel %vm3315, %v3269, %v2706
  %v3335 = vsel %vm3315, %v3270, %v2708
  %v3336 = vsel %vm3315, %v3271, %v2710
  %v3337 = vsel %vm3315, %v3272, %v2712
  %v3338 = vsel %vm3315, %v3273, %v2714
  %v3339 = vsel %vm3315, %v3274, %v2716
  %v3340 = vsel %vm3315, %v3275, %v2718
  %v3341 = vsel %vm3315, %v3276, %v2720
  %v3342 = vsel %vm3315, %v3277, %v2722
  %v3343 = vsel %vm3315, %v3278, %v2724
  %v3344 = vsel %vm3315, %v3279, %v2726
  %v3345 = vsel %vm3315, %v3280, %v2728
  %v3346 = vsel %vm3315, %v3281, %v2730
  %v3347 = vsel %vm3315, %v3282, %v2732
  %v3348 = vsel %vm3315, %v3283, %v2734
  %v3349 = vsel %vm3315, %v3284, %v2736
  %v3350 = vsel %vm3315, %v3285, %v2738
  %v3351 = vsel %vm3315, %v3286, %v2740
  %v3352 = vsel %vm3315, %v3287, %v2742
  %v3353 = vsel %vm3315, %v3288, %v2744
  %v3354 = vsel %vm3315, %v3289, %v2746
  %v3355 = vsel %vm3315, %v3290, %v2748
  %v3356 = vsel %vm3315, %v3291, %v2750
  %v3357 = vsel %vm3315, %v3292, %v2752
  %v3358 = vsel %vm3315, %v3293, %v2754
  %v3359 = vsel %vm3315, %v3294, %v2756
  %v3360 = vsel %vm3315, %v3295, %v2758
  %v3361 = vsel %vm3315, %v3296, %v2760
  %v3362 = vsel %vm3315, %v3297, %v2762
  %v3363 = vsel %vm3315, %v3298, %v2764
  %v3364 = vsel %vm3315, %v3299, %v2766
  %v3365 = vsel %vm3315, %v3300, %v2768
  %v3366 = vsel %vm3315, %v3301, %v2770
  %v3367 = vsel %vm3315, %v3302, %v2772
  %v3368 = vsel %vm3315, %v3303, %v2774
  %v3369 = vsel %vm3315, %v3304, %v2776
  %v3370 = vsel %vm3315, %v3305, %v2778
  %v3371 = vsel %vm3315, %v3306, %v2780
  %v3372 = vsel %vm3315, %v3307, %v2782
  %v3373 = vsel %vm3315, %v3308, %v2784
  %v3374 = vsel %vm3315, %v3309, %v2786
  %v3375 = vsel %vm3315, %v3310, %v2788
  %v3376 = vsel %vm3315, %v3311, %v2790
  %v3377 = vsel %vm3315, %v3312, %v2792
  %v3378 = vsel %vm3315, %v3313, %v2794
  %v3379 = vsel %vm3315, %v3314, %v2796
  %v3380 = vpack.c.bf16 %v3317, %v3316
  %v3381 = vpack.c.bf16 %v3319, %v3318
  %v3382 = vpack.c.bf16 %v3321, %v3320
  %v3383 = vpack.c.bf16 %v3323, %v3322
  %v3384 = vpack.c.bf16 %v3325, %v3324
  %v3385 = vpack.c.bf16 %v3327, %v3326
  %v3386 = vpack.c.bf16 %v3329, %v3328
  %v3387 = vpack.c.bf16 %v3331, %v3330
  %v3388 = vpack.c.bf16 %v3333, %v3332
  %v3389 = vpack.c.bf16 %v3335, %v3334
  %v3390 = vpack.c.bf16 %v3337, %v3336
  %v3391 = vpack.c.bf16 %v3339, %v3338
  %v3392 = vpack.c.bf16 %v3341, %v3340
  %v3393 = vpack.c.bf16 %v3343, %v3342
  %v3394 = vpack.c.bf16 %v3345, %v3344
  %v3395 = vpack.c.bf16 %v3347, %v3346
  %v3396 = vpack.c.bf16 %v3349, %v3348
  %v3397 = vpack.c.bf16 %v3351, %v3350
  %v3398 = vpack.c.bf16 %v3353, %v3352
  %v3399 = vpack.c.bf16 %v3355, %v3354
  %v3400 = vpack.c.bf16 %v3357, %v3356
  %v3401 = vpack.c.bf16 %v3359, %v3358
  %v3402 = vpack.c.bf16 %v3361, %v3360
  %v3403 = vpack.c.bf16 %v3363, %v3362
  %v3404 = vpack.c.bf16 %v3365, %v3364
  %v3405 = vpack.c.bf16 %v3367, %v3366
  %v3406 = vpack.c.bf16 %v3369, %v3368
  %v3407 = vpack.c.bf16 %v3371, %v3370
  %v3408 = vpack.c.bf16 %v3373, %v3372
  %v3409 = vpack.c.bf16 %v3375, %v3374
  %v3410 = vpack.c.bf16 %v3377, %v3376
  %v3411 = vpack.c.bf16 %v3379, %v3378
  %v3412 = vld [vmem:[%s1] sm:$0xf]
  %v3413 = vld [vmem:[%s1 + $0x4] sm:$0xf]
  %v3414 = vld [vmem:[%s1 + $0x8] sm:$0xf]
  %v3415 = vld [vmem:[%s1 + $0xc] sm:$0xf]
  %v3416 = vld [vmem:[%s1 + $0x10] sm:$0x3]
  %v3422 = vunpack.c.l.b16 %v3412
  %v3423 = vunpack.c.l.b16 %v3413
  %v3424 = vunpack.c.l.b16 %v3414
  %v3425 = vunpack.c.l.b16 %v3415
  %v3426 = vunpack.c.l.b16 %v3416
  %v3427 = vpack.c.b16 %v3423, %v3422
  %v3428 = vpack.c.b16 %v3425, %v3424
  %v3429 = vpack.c.b16 %v3426, %v3426
  %vm3432 = vcmask 293888
  %v3434 = vsel %vm3432, %v3380, 0
  %v3437 = vsel %vm3432, %v3381, 0
  %v3440 = vsel %vm3432, %v3382, 0
  %v3443 = vsel %vm3432, %v3383, 0
  %v3446 = vsel %vm3432, %v3384, 0
  %v3449 = vsel %vm3432, %v3385, 0
  %v3452 = vsel %vm3432, %v3386, 0
  %v3455 = vsel %vm3432, %v3387, 0
  %v3458 = vsel %vm3432, %v3388, 0
  %v3461 = vsel %vm3432, %v3389, 0
  %v3464 = vsel %vm3432, %v3390, 0
  %v3467 = vsel %vm3432, %v3391, 0
  %v3470 = vsel %vm3432, %v3392, 0
  %v3473 = vsel %vm3432, %v3393, 0
  %v3476 = vsel %vm3432, %v3394, 0
  %v3479 = vsel %vm3432, %v3395, 0
  %v3482 = vsel %vm3432, %v3396, 0
  %v3485 = vsel %vm3432, %v3397, 0
  %v3488 = vsel %vm3432, %v3398, 0
  %v3491 = vsel %vm3432, %v3399, 0
  %v3494 = vsel %vm3432, %v3400, 0
  %v3497 = vsel %vm3432, %v3401, 0
  %v3500 = vsel %vm3432, %v3402, 0
  %v3503 = vsel %vm3432, %v3403, 0
  %v3506 = vsel %vm3432, %v3404, 0
  %v3509 = vsel %vm3432, %v3405, 0
  %v3512 = vsel %vm3432, %v3406, 0
  %v3515 = vsel %vm3432, %v3407, 0
  %v3518 = vsel %vm3432, %v3408, 0
  %v3521 = vsel %vm3432, %v3409, 0
  %v3524 = vsel %vm3432, %v3410, 0
  %v3527 = vsel %vm3432, %v3411, 0
  %vm3529 = vcmask 1041408
  %v3531 = vsel %vm3529, %v3429, 0
  %3533 = vmatpush.bf16.msra.mxu0 0
  %3534 = vmatpush.bf16.msra.mxu0 0
  %3535 = vmatpush.bf16.msra.mxu0 0
  %3536 = vmatpush.bf16.msra.mxu0 0
  %3537 = vmatpush.bf16.msra.mxu0 0
  %3538 = vmatpush.bf16.msra.mxu0 %v3531
  %3539 = vmatpush.bf16.msra.mxu0 %v3428
  %3540 = vmatpush.bf16.msra.mxu0 %v3427
  %3541 = vmatmul.bf16.gmra.mxu0 %v3434
  %v3542 = vpop.f32.mrf.mxu0
  %v3543 = vadd.f32 0.0, %v3542
  %v3544 = vpop.f32.mrf.mxu0
  %v3545 = vadd.f32 0.0, %v3544
  %3546 = vmatmul.bf16.gmra.mxu0 %v3437
  %v3547 = vpop.f32.mrf.mxu0
  %v3548 = vadd.f32 0.0, %v3547
  %v3549 = vpop.f32.mrf.mxu0
  %v3550 = vadd.f32 0.0, %v3549
  %3551 = vmatmul.bf16.gmra.mxu0 %v3440
  %v3552 = vpop.f32.mrf.mxu0
  %v3553 = vadd.f32 0.0, %v3552
  %v3554 = vpop.f32.mrf.mxu0
  %v3555 = vadd.f32 0.0, %v3554
  %3556 = vmatmul.bf16.gmra.mxu0 %v3443
  %v3557 = vpop.f32.mrf.mxu0
  %v3558 = vadd.f32 0.0, %v3557
  %v3559 = vpop.f32.mrf.mxu0
  %v3560 = vadd.f32 0.0, %v3559
  %3561 = vmatmul.bf16.gmra.mxu0 %v3446
  %v3562 = vpop.f32.mrf.mxu0
  %v3563 = vadd.f32 0.0, %v3562
  %v3564 = vpop.f32.mrf.mxu0
  %v3565 = vadd.f32 0.0, %v3564
  %3566 = vmatmul.bf16.gmra.mxu0 %v3449
  %v3567 = vpop.f32.mrf.mxu0
  %v3568 = vadd.f32 0.0, %v3567
  %v3569 = vpop.f32.mrf.mxu0
  %v3570 = vadd.f32 0.0, %v3569
  %3571 = vmatmul.bf16.gmra.mxu0 %v3452
  %v3572 = vpop.f32.mrf.mxu0
  %v3573 = vadd.f32 0.0, %v3572
  %v3574 = vpop.f32.mrf.mxu0
  %v3575 = vadd.f32 0.0, %v3574
  %3576 = vmatmul.bf16.gmra.mxu0 %v3455
  %v3577 = vpop.f32.mrf.mxu0
  %v3578 = vadd.f32 0.0, %v3577
  %v3579 = vpop.f32.mrf.mxu0
  %v3580 = vadd.f32 0.0, %v3579
  %3581 = vmatmul.bf16.gmra.mxu0 %v3458
  %v3582 = vpop.f32.mrf.mxu0
  %v3583 = vadd.f32 0.0, %v3582
  %v3584 = vpop.f32.mrf.mxu0
  %v3585 = vadd.f32 0.0, %v3584
  %3586 = vmatmul.bf16.gmra.mxu0 %v3461
  %v3587 = vpop.f32.mrf.mxu0
  %v3588 = vadd.f32 0.0, %v3587
  %v3589 = vpop.f32.mrf.mxu0
  %v3590 = vadd.f32 0.0, %v3589
  %3591 = vmatmul.bf16.gmra.mxu0 %v3464
  %v3592 = vpop.f32.mrf.mxu0
  %v3593 = vadd.f32 0.0, %v3592
  %v3594 = vpop.f32.mrf.mxu0
  %v3595 = vadd.f32 0.0, %v3594
  %3596 = vmatmul.bf16.gmra.mxu0 %v3467
  %v3597 = vpop.f32.mrf.mxu0
  %v3598 = vadd.f32 0.0, %v3597
  %v3599 = vpop.f32.mrf.mxu0
  %v3600 = vadd.f32 0.0, %v3599
  %3601 = vmatmul.bf16.gmra.mxu0 %v3470
  %v3602 = vpop.f32.mrf.mxu0
  %v3603 = vadd.f32 0.0, %v3602
  %v3604 = vpop.f32.mrf.mxu0
  %v3605 = vadd.f32 0.0, %v3604
  %3606 = vmatmul.bf16.gmra.mxu0 %v3473
  %v3607 = vpop.f32.mrf.mxu0
  %v3608 = vadd.f32 0.0, %v3607
  %v3609 = vpop.f32.mrf.mxu0
  %v3610 = vadd.f32 0.0, %v3609
  %3611 = vmatmul.bf16.gmra.mxu0 %v3476
  %v3612 = vpop.f32.mrf.mxu0
  %v3613 = vadd.f32 0.0, %v3612
  %v3614 = vpop.f32.mrf.mxu0
  %v3615 = vadd.f32 0.0, %v3614
  %3616 = vmatmul.bf16.gmra.mxu0 %v3479
  %v3617 = vpop.f32.mrf.mxu0
  %v3618 = vadd.f32 0.0, %v3617
  %v3619 = vpop.f32.mrf.mxu0
  %v3620 = vadd.f32 0.0, %v3619
  %3621 = vmatmul.bf16.gmra.mxu0 %v3482
  %v3622 = vpop.f32.mrf.mxu0
  %v3623 = vadd.f32 0.0, %v3622
  %v3624 = vpop.f32.mrf.mxu0
  %v3625 = vadd.f32 0.0, %v3624
  %3626 = vmatmul.bf16.gmra.mxu0 %v3485
  %v3627 = vpop.f32.mrf.mxu0
  %v3628 = vadd.f32 0.0, %v3627
  %v3629 = vpop.f32.mrf.mxu0
  %v3630 = vadd.f32 0.0, %v3629
  %3631 = vmatmul.bf16.gmra.mxu0 %v3488
  %v3632 = vpop.f32.mrf.mxu0
  %v3633 = vadd.f32 0.0, %v3632
  %v3634 = vpop.f32.mrf.mxu0
  %v3635 = vadd.f32 0.0, %v3634
  %3636 = vmatmul.bf16.gmra.mxu0 %v3491
  %v3637 = vpop.f32.mrf.mxu0
  %v3638 = vadd.f32 0.0, %v3637
  %v3639 = vpop.f32.mrf.mxu0
  %v3640 = vadd.f32 0.0, %v3639
  %3641 = vmatmul.bf16.gmra.mxu0 %v3494
  %v3642 = vpop.f32.mrf.mxu0
  %v3643 = vadd.f32 0.0, %v3642
  %v3644 = vpop.f32.mrf.mxu0
  %v3645 = vadd.f32 0.0, %v3644
  %3646 = vmatmul.bf16.gmra.mxu0 %v3497
  %v3647 = vpop.f32.mrf.mxu0
  %v3648 = vadd.f32 0.0, %v3647
  %v3649 = vpop.f32.mrf.mxu0
  %v3650 = vadd.f32 0.0, %v3649
  %3651 = vmatmul.bf16.gmra.mxu0 %v3500
  %v3652 = vpop.f32.mrf.mxu0
  %v3653 = vadd.f32 0.0, %v3652
  %v3654 = vpop.f32.mrf.mxu0
  %v3655 = vadd.f32 0.0, %v3654
  %3656 = vmatmul.bf16.gmra.mxu0 %v3503
  %v3657 = vpop.f32.mrf.mxu0
  %v3658 = vadd.f32 0.0, %v3657
  %v3659 = vpop.f32.mrf.mxu0
  %v3660 = vadd.f32 0.0, %v3659
  %3661 = vmatmul.bf16.gmra.mxu0 %v3506
  %v3662 = vpop.f32.mrf.mxu0
  %v3663 = vadd.f32 0.0, %v3662
  %v3664 = vpop.f32.mrf.mxu0
  %v3665 = vadd.f32 0.0, %v3664
  %3666 = vmatmul.bf16.gmra.mxu0 %v3509
  %v3667 = vpop.f32.mrf.mxu0
  %v3668 = vadd.f32 0.0, %v3667
  %v3669 = vpop.f32.mrf.mxu0
  %v3670 = vadd.f32 0.0, %v3669
  %3671 = vmatmul.bf16.gmra.mxu0 %v3512
  %v3672 = vpop.f32.mrf.mxu0
  %v3673 = vadd.f32 0.0, %v3672
  %v3674 = vpop.f32.mrf.mxu0
  %v3675 = vadd.f32 0.0, %v3674
  %3676 = vmatmul.bf16.gmra.mxu0 %v3515
  %v3677 = vpop.f32.mrf.mxu0
  %v3678 = vadd.f32 0.0, %v3677
  %v3679 = vpop.f32.mrf.mxu0
  %v3680 = vadd.f32 0.0, %v3679
  %3681 = vmatmul.bf16.gmra.mxu0 %v3518
  %v3682 = vpop.f32.mrf.mxu0
  %v3683 = vadd.f32 0.0, %v3682
  %v3684 = vpop.f32.mrf.mxu0
  %v3685 = vadd.f32 0.0, %v3684
  %3686 = vmatmul.bf16.gmra.mxu0 %v3521
  %v3687 = vpop.f32.mrf.mxu0
  %v3688 = vadd.f32 0.0, %v3687
  %v3689 = vpop.f32.mrf.mxu0
  %v3690 = vadd.f32 0.0, %v3689
  %3691 = vmatmul.bf16.gmra.mxu0 %v3524
  %v3692 = vpop.f32.mrf.mxu0
  %v3693 = vadd.f32 0.0, %v3692
  %v3694 = vpop.f32.mrf.mxu0
  %v3695 = vadd.f32 0.0, %v3694
  %3696 = vmatmul.bf16.gmra.mxu0 %v3527
  %v3697 = vpop.f32.mrf.mxu0
  %v3698 = vadd.f32 0.0, %v3697
  %v3699 = vpop.f32.mrf.mxu0
  %v3700 = vadd.f32 0.0, %v3699
  %3701 = vdwg.mxu0
  %3702 = vst.msk [vmem:[#allocation4] sm:$0xff] %vm3315, %v3543
  %3703 = vst.msk [vmem:[#allocation4 + $0x8] sm:$0xff] %vm3315, %v3545
  %3704 = vst.msk [vmem:[#allocation4 + $0x10] sm:$0xff] %vm3315, %v3548
  %3705 = vst.msk [vmem:[#allocation4 + $0x18] sm:$0xff] %vm3315, %v3550
  %3706 = vst.msk [vmem:[#allocation4 + $0x20] sm:$0xff] %vm3315, %v3553
  %3707 = vst.msk [vmem:[#allocation4 + $0x28] sm:$0xff] %vm3315, %v3555
  %3708 = vst.msk [vmem:[#allocation4 + $0x30] sm:$0xff] %vm3315, %v3558
  %3709 = vst.msk [vmem:[#allocation4 + $0x38] sm:$0xff] %vm3315, %v3560
  %3710 = vst.msk [vmem:[#allocation4 + $0x40] sm:$0xff] %vm3315, %v3563
  %3711 = vst.msk [vmem:[#allocation4 + $0x48] sm:$0xff] %vm3315, %v3565
  %3712 = vst.msk [vmem:[#allocation4 + $0x50] sm:$0xff] %vm3315, %v3568
  %3713 = vst.msk [vmem:[#allocation4 + $0x58] sm:$0xff] %vm3315, %v3570
  %3714 = vst.msk [vmem:[#allocation4 + $0x60] sm:$0xff] %vm3315, %v3573
  %3715 = vst.msk [vmem:[#allocation4 + $0x68] sm:$0xff] %vm3315, %v3575
  %3716 = vst.msk [vmem:[#allocation4 + $0x70] sm:$0xff] %vm3315, %v3578
  %3717 = vst.msk [vmem:[#allocation4 + $0x78] sm:$0xff] %vm3315, %v3580
  %3718 = vst.msk [vmem:[#allocation4 + $0x80] sm:$0xff] %vm3315, %v3583
  %3719 = vst.msk [vmem:[#allocation4 + $0x88] sm:$0xff] %vm3315, %v3585
  %3720 = vst.msk [vmem:[#allocation4 + $0x90] sm:$0xff] %vm3315, %v3588
  %3721 = vst.msk [vmem:[#allocation4 + $0x98] sm:$0xff] %vm3315, %v3590
  %3722 = vst.msk [vmem:[#allocation4 + $0xa0] sm:$0xff] %vm3315, %v3593
  %3723 = vst.msk [vmem:[#allocation4 + $0xa8] sm:$0xff] %vm3315, %v3595
  %3724 = vst.msk [vmem:[#allocation4 + $0xb0] sm:$0xff] %vm3315, %v3598
  %3725 = vst.msk [vmem:[#allocation4 + $0xb8] sm:$0xff] %vm3315, %v3600
  %3726 = vst.msk [vmem:[#allocation4 + $0xc0] sm:$0xff] %vm3315, %v3603
  %3727 = vst.msk [vmem:[#allocation4 + $0xc8] sm:$0xff] %vm3315, %v3605
  %3728 = vst.msk [vmem:[#allocation4 + $0xd0] sm:$0xff] %vm3315, %v3608
  %3729 = vst.msk [vmem:[#allocation4 + $0xd8] sm:$0xff] %vm3315, %v3610
  %3730 = vst.msk [vmem:[#allocation4 + $0xe0] sm:$0xff] %vm3315, %v3613
  %3731 = vst.msk [vmem:[#allocation4 + $0xe8] sm:$0xff] %vm3315, %v3615
  %3732 = vst.msk [vmem:[#allocation4 + $0xf0] sm:$0xff] %vm3315, %v3618
  %3733 = vst.msk [vmem:[#allocation4 + $0xf8] sm:$0xff] %vm3315, %v3620
  %3734 = vst.msk [vmem:[#allocation4 + $0x100] sm:$0xff] %vm3315, %v3623
  %3735 = vst.msk [vmem:[#allocation4 + $0x108] sm:$0xff] %vm3315, %v3625
  %3736 = vst.msk [vmem:[#allocation4 + $0x110] sm:$0xff] %vm3315, %v3628
  %3737 = vst.msk [vmem:[#allocation4 + $0x118] sm:$0xff] %vm3315, %v3630
  %3738 = vst.msk [vmem:[#allocation4 + $0x120] sm:$0xff] %vm3315, %v3633
  %3739 = vst.msk [vmem:[#allocation4 + $0x128] sm:$0xff] %vm3315, %v3635
  %3740 = vst.msk [vmem:[#allocation4 + $0x130] sm:$0xff] %vm3315, %v3638
  %3741 = vst.msk [vmem:[#allocation4 + $0x138] sm:$0xff] %vm3315, %v3640
  %3742 = vst.msk [vmem:[#allocation4 + $0x140] sm:$0xff] %vm3315, %v3643
  %3743 = vst.msk [vmem:[#allocation4 + $0x148] sm:$0xff] %vm3315, %v3645
  %3744 = vst.msk [vmem:[#allocation4 + $0x150] sm:$0xff] %vm3315, %v3648
  %3745 = vst.msk [vmem:[#allocation4 + $0x158] sm:$0xff] %vm3315, %v3650
  %3746 = vst.msk [vmem:[#allocation4 + $0x160] sm:$0xff] %vm3315, %v3653
  %3747 = vst.msk [vmem:[#allocation4 + $0x168] sm:$0xff] %vm3315, %v3655
  %3748 = vst.msk [vmem:[#allocation4 + $0x170] sm:$0xff] %vm3315, %v3658
  %3749 = vst.msk [vmem:[#allocation4 + $0x178] sm:$0xff] %vm3315, %v3660
  %3750 = vst.msk [vmem:[#allocation4 + $0x180] sm:$0xff] %vm3315, %v3663
  %3751 = vst.msk [vmem:[#allocation4 + $0x188] sm:$0xff] %vm3315, %v3665
  %3752 = vst.msk [vmem:[#allocation4 + $0x190] sm:$0xff] %vm3315, %v3668
  %3753 = vst.msk [vmem:[#allocation4 + $0x198] sm:$0xff] %vm3315, %v3670
  %3754 = vst.msk [vmem:[#allocation4 + $0x1a0] sm:$0xff] %vm3315, %v3673
  %3755 = vst.msk [vmem:[#allocation4 + $0x1a8] sm:$0xff] %vm3315, %v3675
  %3756 = vst.msk [vmem:[#allocation4 + $0x1b0] sm:$0xff] %vm3315, %v3678
  %3757 = vst.msk [vmem:[#allocation4 + $0x1b8] sm:$0xff] %vm3315, %v3680
  %3758 = vst.msk [vmem:[#allocation4 + $0x1c0] sm:$0xff] %vm3315, %v3683
  %3759 = vst.msk [vmem:[#allocation4 + $0x1c8] sm:$0xff] %vm3315, %v3685
  %3760 = vst.msk [vmem:[#allocation4 + $0x1d0] sm:$0xff] %vm3315, %v3688
  %3761 = vst.msk [vmem:[#allocation4 + $0x1d8] sm:$0xff] %vm3315, %v3690
  %3762 = vst.msk [vmem:[#allocation4 + $0x1e0] sm:$0xff] %vm3315, %v3693
  %3763 = vst.msk [vmem:[#allocation4 + $0x1e8] sm:$0xff] %vm3315, %v3695
  %3764 = vst.msk [vmem:[#allocation4 + $0x1f0] sm:$0xff] %vm3315, %v3698
  %3765 = vst.msk [vmem:[#allocation4 + $0x1f8] sm:$0xff] %vm3315, %v3700
  %v3766 = vld [vmem:[#allocation4] ss:$2 sm:$0xff]
  %s3767 = scalar_lea.vmem [#allocation4], 16
  %v3768 = vld [vmem:[%s3767] ss:$2 sm:$0xff]
  %s3769 = scalar_lea.vmem [#allocation4], 32
  %v3770 = vld [vmem:[%s3769] ss:$2 sm:$0xff]
  %s3771 = scalar_lea.vmem [#allocation4], 48
  %v3772 = vld [vmem:[%s3771] ss:$2 sm:$0xff]
  %s3773 = scalar_lea.vmem [#allocation4], 64
  %v3774 = vld [vmem:[%s3773] ss:$2 sm:$0xff]
  %s3775 = scalar_lea.vmem [#allocation4], 80
  %v3776 = vld [vmem:[%s3775] ss:$2 sm:$0xff]
  %s3777 = scalar_lea.vmem [#allocation4], 96
  %v3778 = vld [vmem:[%s3777] ss:$2 sm:$0xff]
  %s3779 = scalar_lea.vmem [#allocation4], 112
  %v3780 = vld [vmem:[%s3779] ss:$2 sm:$0xff]
  %s3781 = scalar_lea.vmem [#allocation4], 128
  %v3782 = vld [vmem:[%s3781] ss:$2 sm:$0xff]
  %s3783 = scalar_lea.vmem [#allocation4], 144
  %v3784 = vld [vmem:[%s3783] ss:$2 sm:$0xff]
  %s3785 = scalar_lea.vmem [#allocation4], 160
  %v3786 = vld [vmem:[%s3785] ss:$2 sm:$0xff]
  %s3787 = scalar_lea.vmem [#allocation4], 176
  %v3788 = vld [vmem:[%s3787] ss:$2 sm:$0xff]
  %s3789 = scalar_lea.vmem [#allocation4], 192
  %v3790 = vld [vmem:[%s3789] ss:$2 sm:$0xff]
  %s3791 = scalar_lea.vmem [#allocation4], 208
  %v3792 = vld [vmem:[%s3791] ss:$2 sm:$0xff]
  %s3793 = scalar_lea.vmem [#allocation4], 224
  %v3794 = vld [vmem:[%s3793] ss:$2 sm:$0xff]
  %s3795 = scalar_lea.vmem [#allocation4], 240
  %v3796 = vld [vmem:[%s3795] ss:$2 sm:$0xff]
  %s3797 = scalar_lea.vmem [#allocation4], 256
  %v3798 = vld [vmem:[%s3797] ss:$2 sm:$0xff]
  %s3799 = scalar_lea.vmem [#allocation4], 272
  %v3800 = vld [vmem:[%s3799] ss:$2 sm:$0xff]
  %s3801 = scalar_lea.vmem [#allocation4], 288
  %v3802 = vld [vmem:[%s3801] ss:$2 sm:$0xff]
  %s3803 = scalar_lea.vmem [#allocation4], 304
  %v3804 = vld [vmem:[%s3803] ss:$2 sm:$0xff]
  %s3805 = scalar_lea.vmem [#allocation4], 320
  %v3806 = vld [vmem:[%s3805] ss:$2 sm:$0xff]
  %s3807 = scalar_lea.vmem [#allocation4], 336
  %v3808 = vld [vmem:[%s3807] ss:$2 sm:$0xff]
  %s3809 = scalar_lea.vmem [#allocation4], 352
  %v3810 = vld [vmem:[%s3809] ss:$2 sm:$0xff]
  %s3811 = scalar_lea.vmem [#allocation4], 368
  %v3812 = vld [vmem:[%s3811] ss:$2 sm:$0xff]
  %s3813 = scalar_lea.vmem [#allocation4], 384
  %v3814 = vld [vmem:[%s3813] ss:$2 sm:$0xff]
  %s3815 = scalar_lea.vmem [#allocation4], 400
  %v3816 = vld [vmem:[%s3815] ss:$2 sm:$0xff]
  %s3817 = scalar_lea.vmem [#allocation4], 416
  %v3818 = vld [vmem:[%s3817] ss:$2 sm:$0xff]
  %s3819 = scalar_lea.vmem [#allocation4], 432
  %v3820 = vld [vmem:[%s3819] ss:$2 sm:$0xff]
  %s3821 = scalar_lea.vmem [#allocation4], 448
  %v3822 = vld [vmem:[%s3821] ss:$2 sm:$0xff]
  %s3823 = scalar_lea.vmem [#allocation4], 464
  %v3824 = vld [vmem:[%s3823] ss:$2 sm:$0xff]
  %s3825 = scalar_lea.vmem [#allocation4], 480
  %v3826 = vld [vmem:[%s3825] ss:$2 sm:$0xff]
  %s3827 = scalar_lea.vmem [#allocation4], 496
  %v3828 = vld [vmem:[%s3827] ss:$2 sm:$0xff]
  %s3829 = scalar_lea.vmem [#allocation4], 1
  %v3830 = vld [vmem:[%s3829] ss:$2 sm:$0xff]
  %s3831 = scalar_lea.vmem [#allocation4], 17
  %v3832 = vld [vmem:[%s3831] ss:$2 sm:$0xff]
  %s3833 = scalar_lea.vmem [#allocation4], 33
  %v3834 = vld [vmem:[%s3833] ss:$2 sm:$0xff]
  %s3835 = scalar_lea.vmem [#allocation4], 49
  %v3836 = vld [vmem:[%s3835] ss:$2 sm:$0xff]
  %s3837 = scalar_lea.vmem [#allocation4], 65
  %v3838 = vld [vmem:[%s3837] ss:$2 sm:$0xff]
  %s3839 = scalar_lea.vmem [#allocation4], 81
  %v3840 = vld [vmem:[%s3839] ss:$2 sm:$0xff]
  %s3841 = scalar_lea.vmem [#allocation4], 97
  %v3842 = vld [vmem:[%s3841] ss:$2 sm:$0xff]
  %s3843 = scalar_lea.vmem [#allocation4], 113
  %v3844 = vld [vmem:[%s3843] ss:$2 sm:$0xff]
  %s3845 = scalar_lea.vmem [#allocation4], 129
  %v3846 = vld [vmem:[%s3845] ss:$2 sm:$0xff]
  %s3847 = scalar_lea.vmem [#allocation4], 145
  %v3848 = vld [vmem:[%s3847] ss:$2 sm:$0xff]
  %s3849 = scalar_lea.vmem [#allocation4], 161
  %v3850 = vld [vmem:[%s3849] ss:$2 sm:$0xff]
  %s3851 = scalar_lea.vmem [#allocation4], 177
  %v3852 = vld [vmem:[%s3851] ss:$2 sm:$0xff]
  %s3853 = scalar_lea.vmem [#allocation4], 193
  %v3854 = vld [vmem:[%s3853] ss:$2 sm:$0xff]
  %s3855 = scalar_lea.vmem [#allocation4], 209
  %v3856 = vld [vmem:[%s3855] ss:$2 sm:$0xff]
  %s3857 = scalar_lea.vmem [#allocation4], 225
  %v3858 = vld [vmem:[%s3857] ss:$2 sm:$0xff]
  %s3859 = scalar_lea.vmem [#allocation4], 241
  %v3860 = vld [vmem:[%s3859] ss:$2 sm:$0xff]
  %s3861 = scalar_lea.vmem [#allocation4], 257
  %v3862 = vld [vmem:[%s3861] ss:$2 sm:$0xff]
  %s3863 = scalar_lea.vmem [#allocation4], 273
  %v3864 = vld [vmem:[%s3863] ss:$2 sm:$0xff]
  %s3865 = scalar_lea.vmem [#allocation4], 289
  %v3866 = vld [vmem:[%s3865] ss:$2 sm:$0xff]
  %s3867 = scalar_lea.vmem [#allocation4], 305
  %v3868 = vld [vmem:[%s3867] ss:$2 sm:$0xff]
  %s3869 = scalar_lea.vmem [#allocation4], 321
  %v3870 = vld [vmem:[%s3869] ss:$2 sm:$0xff]
  %s3871 = scalar_lea.vmem [#allocation4], 337
  %v3872 = vld [vmem:[%s3871] ss:$2 sm:$0xff]
  %s3873 = scalar_lea.vmem [#allocation4], 353
  %v3874 = vld [vmem:[%s3873] ss:$2 sm:$0xff]
  %s3875 = scalar_lea.vmem [#allocation4], 369
  %v3876 = vld [vmem:[%s3875] ss:$2 sm:$0xff]
  %s3877 = scalar_lea.vmem [#allocation4], 385
  %v3878 = vld [vmem:[%s3877] ss:$2 sm:$0xff]
  %s3879 = scalar_lea.vmem [#allocation4], 401
  %v3880 = vld [vmem:[%s3879] ss:$2 sm:$0xff]
  %s3881 = scalar_lea.vmem [#allocation4], 417
  %v3882 = vld [vmem:[%s3881] ss:$2 sm:$0xff]
  %s3883 = scalar_lea.vmem [#allocation4], 433
  %v3884 = vld [vmem:[%s3883] ss:$2 sm:$0xff]
  %s3885 = scalar_lea.vmem [#allocation4], 449
  %v3886 = vld [vmem:[%s3885] ss:$2 sm:$0xff]
  %s3887 = scalar_lea.vmem [#allocation4], 465
  %v3888 = vld [vmem:[%s3887] ss:$2 sm:$0xff]
  %s3889 = scalar_lea.vmem [#allocation4], 481
  %v3890 = vld [vmem:[%s3889] ss:$2 sm:$0xff]
  %s3891 = scalar_lea.vmem [#allocation4], 497
  %v3892 = vld [vmem:[%s3891] ss:$2 sm:$0xff]
  %v3893 = vmax.f32 %v3766, %v3830
  %v3894 = vmax.f32 %v3768, %v3832
  %v3895 = vmax.f32 %v3770, %v3834
  %v3896 = vmax.f32 %v3772, %v3836
  %v3897 = vmax.f32 %v3774, %v3838
  %v3898 = vmax.f32 %v3776, %v3840
  %v3899 = vmax.f32 %v3778, %v3842
  %v3900 = vmax.f32 %v3780, %v3844
  %v3901 = vmax.f32 %v3782, %v3846
  %v3902 = vmax.f32 %v3784, %v3848
  %v3903 = vmax.f32 %v3786, %v3850
  %v3904 = vmax.f32 %v3788, %v3852
  %v3905 = vmax.f32 %v3790, %v3854
  %v3906 = vmax.f32 %v3792, %v3856
  %v3907 = vmax.f32 %v3794, %v3858
  %v3908 = vmax.f32 %v3796, %v3860
  %v3909 = vmax.f32 %v3798, %v3862
  %v3910 = vmax.f32 %v3800, %v3864
  %v3911 = vmax.f32 %v3802, %v3866
  %v3912 = vmax.f32 %v3804, %v3868
  %v3913 = vmax.f32 %v3806, %v3870
  %v3914 = vmax.f32 %v3808, %v3872
  %v3915 = vmax.f32 %v3810, %v3874
  %v3916 = vmax.f32 %v3812, %v3876
  %v3917 = vmax.f32 %v3814, %v3878
  %v3918 = vmax.f32 %v3816, %v3880
  %v3919 = vmax.f32 %v3818, %v3882
  %v3920 = vmax.f32 %v3820, %v3884
  %v3921 = vmax.f32 %v3822, %v3886
  %v3922 = vmax.f32 %v3824, %v3888
  %v3923 = vmax.f32 %v3826, %v3890
  %v3924 = vmax.f32 %v3828, %v3892
  %v3925 = vmax.f32 %v3893, %v3894
  %v3926 = vmax.f32 %v3895, %v3896
  %v3927 = vmax.f32 %v3897, %v3898
  %v3928 = vmax.f32 %v3899, %v3900
  %v3929 = vmax.f32 %v3901, %v3902
  %v3930 = vmax.f32 %v3903, %v3904
  %v3931 = vmax.f32 %v3905, %v3906
  %v3932 = vmax.f32 %v3907, %v3908
  %v3933 = vmax.f32 %v3909, %v3910
  %v3934 = vmax.f32 %v3911, %v3912
  %v3935 = vmax.f32 %v3913, %v3914
  %v3936 = vmax.f32 %v3915, %v3916
  %v3937 = vmax.f32 %v3917, %v3918
  %v3938 = vmax.f32 %v3919, %v3920
  %v3939 = vmax.f32 %v3921, %v3922
  %v3940 = vmax.f32 %v3923, %v3924
  %v3941 = vld [vmem:[%s3] sm:$0x1]
  %v3942 = vld [vmem:[%s4] sm:$0x1]
  %v3943 = vsel %vm3315, %v3925, 0.0
  %v3944 = vsel %vm3315, %v3926, 0.0
  %v3945 = vadd.f32 %v3943, %v3944
  %v3946 = vsel %vm3315, %v3927, 0.0
  %v3947 = vadd.f32 %v3945, %v3946
  %v3948 = vsel %vm3315, %v3928, 0.0
  %v3949 = vadd.f32 %v3947, %v3948
  %v3950 = vsel %vm3315, %v3929, 0.0
  %v3951 = vadd.f32 %v3949, %v3950
  %v3952 = vsel %vm3315, %v3930, 0.0
  %v3953 = vadd.f32 %v3951, %v3952
  %v3954 = vsel %vm3315, %v3931, 0.0
  %v3955 = vadd.f32 %v3953, %v3954
  %v3956 = vsel %vm3315, %v3932, 0.0
  %v3957 = vadd.f32 %v3955, %v3956
  %v3958 = vsel %vm3315, %v3933, 0.0
  %v3959 = vadd.f32 %v3957, %v3958
  %v3960 = vsel %vm3315, %v3934, 0.0
  %v3961 = vadd.f32 %v3959, %v3960
  %v3962 = vsel %vm3315, %v3935, 0.0
  %v3963 = vadd.f32 %v3961, %v3962
  %v3964 = vsel %vm3315, %v3936, 0.0
  %v3965 = vadd.f32 %v3963, %v3964
  %v3966 = vsel %vm3315, %v3937, 0.0
  %v3967 = vadd.f32 %v3965, %v3966
  %v3968 = vsel %vm3315, %v3938, 0.0
  %v3969 = vadd.f32 %v3967, %v3968
  %v3970 = vsel %vm3315, %v3939, 0.0
  %v3971 = vadd.f32 %v3969, %v3970
  %v3972 = vsel %vm3315, %v3940, 0.0
  %v3973 = vadd.f32 %v3971, %v3972
  %v3974 = vrot.slane %v3973, 4
  %v3975 = vadd.f32 %v3973, %v3974
  %v3976 = vrot.slane %v3975, 2
  %v3977 = vadd.f32 %v3975, %v3976
  %v3978 = vrot.slane %v3977, 1
  %v3979 = vadd.f32 %v3977, %v3978
  %v3980 = vrcp.pop 128.0
  %v3981 = vmul.f32 128.0, %v3980
  %v3982 = vsub.f32 1.0, %v3981
  %v3983 = vmul.f32 %v3980, %v3982
  %v3984 = vadd.f32 %v3980, %v3983
  %vm3985 = vweird.f32 %v3980
  %v3986 = vsel %vm3985, %v3980, %v3984
  %v3987 = vmul.f32 %v3979, %v3986
  %v3988 = vsub.f32 %v3925, %v3987
  %v3989 = vsub.f32 %v3926, %v3987
  %v3990 = vsub.f32 %v3927, %v3987
  %v3991 = vsub.f32 %v3928, %v3987
  %v3992 = vsub.f32 %v3929, %v3987
  %v3993 = vsub.f32 %v3930, %v3987
  %v3994 = vsub.f32 %v3931, %v3987
  %v3995 = vsub.f32 %v3932, %v3987
  %v3996 = vsub.f32 %v3933, %v3987
  %v3997 = vsub.f32 %v3934, %v3987
  %v3998 = vsub.f32 %v3935, %v3987
  %v3999 = vsub.f32 %v3936, %v3987
  %v4000 = vsub.f32 %v3937, %v3987
  %v4001 = vsub.f32 %v3938, %v3987
  %v4002 = vsub.f32 %v3939, %v3987
  %v4003 = vsub.f32 %v3940, %v3987
  %v4004 = vmul.f32 %v3988, %v3988
  %v4005 = vmul.f32 %v3989, %v3989
  %v4006 = vmul.f32 %v3990, %v3990
  %v4007 = vmul.f32 %v3991, %v3991
  %v4008 = vmul.f32 %v3992, %v3992
  %v4009 = vmul.f32 %v3993, %v3993
  %v4010 = vmul.f32 %v3994, %v3994
  %v4011 = vmul.f32 %v3995, %v3995
  %v4012 = vmul.f32 %v3996, %v3996
  %v4013 = vmul.f32 %v3997, %v3997
  %v4014 = vmul.f32 %v3998, %v3998
  %v4015 = vmul.f32 %v3999, %v3999
  %v4016 = vmul.f32 %v4000, %v4000
  %v4017 = vmul.f32 %v4001, %v4001
  %v4018 = vmul.f32 %v4002, %v4002
  %v4019 = vmul.f32 %v4003, %v4003
  %v4020 = vsel %vm3315, %v4004, 0.0
  %v4021 = vsel %vm3315, %v4005, 0.0
  %v4022 = vadd.f32 %v4020, %v4021
  %v4023 = vsel %vm3315, %v4006, 0.0
  %v4024 = vadd.f32 %v4022, %v4023
  %v4025 = vsel %vm3315, %v4007, 0.0
  %v4026 = vadd.f32 %v4024, %v4025
  %v4027 = vsel %vm3315, %v4008, 0.0
  %v4028 = vadd.f32 %v4026, %v4027
  %v4029 = vsel %vm3315, %v4009, 0.0
  %v4030 = vadd.f32 %v4028, %v4029
  %v4031 = vsel %vm3315, %v4010, 0.0
  %v4032 = vadd.f32 %v4030, %v4031
  %v4033 = vsel %vm3315, %v4011, 0.0
  %v4034 = vadd.f32 %v4032, %v4033
  %v4035 = vsel %vm3315, %v4012, 0.0
  %v4036 = vadd.f32 %v4034, %v4035
  %v4037 = vsel %vm3315, %v4013, 0.0
  %v4038 = vadd.f32 %v4036, %v4037
  %v4039 = vsel %vm3315, %v4014, 0.0
  %v4040 = vadd.f32 %v4038, %v4039
  %v4041 = vsel %vm3315, %v4015, 0.0
  %v4042 = vadd.f32 %v4040, %v4041
  %v4043 = vsel %vm3315, %v4016, 0.0
  %v4044 = vadd.f32 %v4042, %v4043
  %v4045 = vsel %vm3315, %v4017, 0.0
  %v4046 = vadd.f32 %v4044, %v4045
  %v4047 = vsel %vm3315, %v4018, 0.0
  %v4048 = vadd.f32 %v4046, %v4047
  %v4049 = vsel %vm3315, %v4019, 0.0
  %v4050 = vadd.f32 %v4048, %v4049
  %v4051 = vrot.slane %v4050, 4
  %v4052 = vadd.f32 %v4050, %v4051
  %v4053 = vrot.slane %v4052, 2
  %v4054 = vadd.f32 %v4052, %v4053
  %v4055 = vrot.slane %v4054, 1
  %v4056 = vadd.f32 %v4054, %v4055
  %v4057 = vmul.f32 %v4056, %v3986
  %v4058 = vadd.f32 %v4057, 1e-12
  %v4059 = vrsqrt.pop %v4058
  %v4060 = vmul.f32 %v4059, %v4058
  %v4061 = vmul.f32 %v4060, %v4059
  %v4062 = vmul.f32 0.5, %v4061
  %v4063 = vsub.f32 1.5, %v4062
  %v4064 = vmul.f32 %v4059, %v4063
  %vm4065 = vweird.f32 %v4058
  %vm4066 = vweird.f32 %v4059
  %vm4067 = vmor %vm4065, %vm4066
  %v4068 = vsel %vm4067, %v4059, %v4064
  %v4069 = vmul.f32 %v3941, %v4068
  %v4070 = vmul.f32 %v3987, %v4069
  %v4071 = vsub.f32 %v3942, %v4070
  %v4073 = vperm.slane %v4069, 0
  %v4075 = vmul.f32 %v3925, %v4073
  %v4076 = vmul.f32 %v3926, %v4073
  %v4077 = vmul.f32 %v3927, %v4073
  %v4078 = vmul.f32 %v3928, %v4073
  %v4079 = vmul.f32 %v3929, %v4073
  %v4080 = vmul.f32 %v3930, %v4073
  %v4081 = vmul.f32 %v3931, %v4073
  %v4082 = vmul.f32 %v3932, %v4073
  %v4083 = vmul.f32 %v3933, %v4073
  %v4084 = vmul.f32 %v3934, %v4073
  %v4085 = vmul.f32 %v3935, %v4073
  %v4086 = vmul.f32 %v3936, %v4073
  %v4087 = vmul.f32 %v3937, %v4073
  %v4088 = vmul.f32 %v3938, %v4073
  %v4089 = vmul.f32 %v3939, %v4073
  %v4090 = vmul.f32 %v3940, %v4073
  %v4092 = vperm.slane %v4071, 0
  %v4094 = vadd.f32 %v4075, %v4092
  %v4095 = vadd.f32 %v4076, %v4092
  %v4096 = vadd.f32 %v4077, %v4092
  %v4097 = vadd.f32 %v4078, %v4092
  %v4098 = vadd.f32 %v4079, %v4092
  %v4099 = vadd.f32 %v4080, %v4092
  %v4100 = vadd.f32 %v4081, %v4092
  %v4101 = vadd.f32 %v4082, %v4092
  %v4102 = vadd.f32 %v4083, %v4092
  %v4103 = vadd.f32 %v4084, %v4092
  %v4104 = vadd.f32 %v4085, %v4092
  %v4105 = vadd.f32 %v4086, %v4092
  %v4106 = vadd.f32 %v4087, %v4092
  %v4107 = vadd.f32 %v4088, %v4092
  %v4108 = vadd.f32 %v4089, %v4092
  %v4109 = vadd.f32 %v4090, %v4092
  %v4110 = vmul.f32 %v4094, 0.5
  %v4111 = vmul.f32 %v4095, 0.5
  %v4112 = vmul.f32 %v4096, 0.5
  %v4113 = vmul.f32 %v4097, 0.5
  %v4114 = vmul.f32 %v4098, 0.5
  %v4115 = vmul.f32 %v4099, 0.5
  %v4116 = vmul.f32 %v4100, 0.5
  %v4117 = vmul.f32 %v4101, 0.5
  %v4118 = vmul.f32 %v4102, 0.5
  %v4119 = vmul.f32 %v4103, 0.5
  %v4120 = vmul.f32 %v4104, 0.5
  %v4121 = vmul.f32 %v4105, 0.5
  %v4122 = vmul.f32 %v4106, 0.5
  %v4123 = vmul.f32 %v4107, 0.5
  %v4124 = vmul.f32 %v4108, 0.5
  %v4125 = vmul.f32 %v4109, 0.5
  %v4126 = vmul.f32 %v4094, 0.70710677
  %v4127 = vmul.f32 %v4095, 0.70710677
  %v4128 = vmul.f32 %v4096, 0.70710677
  %v4129 = vmul.f32 %v4097, 0.70710677
  %v4130 = vmul.f32 %v4098, 0.70710677
  %v4131 = vmul.f32 %v4099, 0.70710677
  %v4132 = vmul.f32 %v4100, 0.70710677
  %v4133 = vmul.f32 %v4101, 0.70710677
  %v4134 = vmul.f32 %v4102, 0.70710677
  %v4135 = vmul.f32 %v4103, 0.70710677
  %v4136 = vmul.f32 %v4104, 0.70710677
  %v4137 = vmul.f32 %v4105, 0.70710677
  %v4138 = vmul.f32 %v4106, 0.70710677
  %v4139 = vmul.f32 %v4107, 0.70710677
  %v4140 = vmul.f32 %v4108, 0.70710677
  %v4141 = vmul.f32 %v4109, 0.70710677
  %v4142 = vmul.f32 %v4126, %v4126
  %v4143 = vmin.f32 16.0, %v4142
  %v4144 = vmul.f32 %v4143, 2.1237322e-06
  %v4145 = vadd.f32 %v4144, 0.00028619796
  %v4146 = vmul.f32 %v4143, %v4145
  %v4147 = vadd.f32 %v4146, 0.0036580483
  %v4148 = vmul.f32 %v4143, %v4147
  %v4149 = vadd.f32 %v4148, 0.05243302
  %v4150 = vmul.f32 %v4143, %v4149
  %v4151 = vadd.f32 %v4150, 0.18741608
  %v4152 = vmul.f32 %v4143, %v4151
  %v4153 = vadd.f32 %v4152, 1.1283791
  %v4154 = vmul.f32 %v4126, %v4153
  %v4155 = vmul.f32 %v4143, 3.8918573e-05
  %v4156 = vadd.f32 %v4155, 0.001143296
  %v4157 = vmul.f32 %v4143, %v4156
  %v4158 = vadd.f32 %v4157, 0.014752088
  %v4159 = vmul.f32 %v4143, %v4158
  %v4160 = vadd.f32 %v4159, 0.112945676
  %v4161 = vmul.f32 %v4143, %v4160
  %v4162 = vadd.f32 %v4161, 0.4994258
  %v4163 = vmul.f32 %v4143, %v4162
  %v4164 = vadd.f32 %v4163, 1.0
  %v4165 = vrcp.pop %v4164
  %v4166 = vmul.f32 %v4164, %v4165
  %v4167 = vsub.f32 1.0, %v4166
  %v4168 = vmul.f32 %v4165, %v4167
  %v4169 = vadd.f32 %v4165, %v4168
  %vm4170 = vweird.f32 %v4164
  %vm4171 = vweird.f32 %v4165
  %vm4172 = vmor %vm4170, %vm4171
  %v4173 = vsel %vm4172, %v4165, %v4169
  %v4174 = vand.u32 2147483647, %v4164
  %vm4175 = vcmp.eq.f32.partialorder %v4174, 8.507059e+37
  %v4176 = vand.u32 %v4164, 2147483648
  %v4177 = vor.u32 1.1754944e-38, %v4176
  %v4178 = vsel %vm4175, %v4177, %v4173
  %v4179 = vmul.f32 %v4154, %v4178
  %v4180 = vmin.f32 %v4179, 1.0
  %v4181 = vmax.f32 %v4180, -1.0
  %v4182 = vmul.f32 %v4127, %v4127
  %v4183 = vmin.f32 16.0, %v4182
  %v4184 = vmul.f32 %v4183, 2.1237322e-06
  %v4185 = vadd.f32 %v4184, 0.00028619796
  %v4186 = vmul.f32 %v4183, %v4185
  %v4187 = vadd.f32 %v4186, 0.0036580483
  %v4188 = vmul.f32 %v4183, %v4187
  %v4189 = vadd.f32 %v4188, 0.05243302
  %v4190 = vmul.f32 %v4183, %v4189
  %v4191 = vadd.f32 %v4190, 0.18741608
  %v4192 = vmul.f32 %v4183, %v4191
  %v4193 = vadd.f32 %v4192, 1.1283791
  %v4194 = vmul.f32 %v4127, %v4193
  %v4195 = vmul.f32 %v4183, 3.8918573e-05
  %v4196 = vadd.f32 %v4195, 0.001143296
  %v4197 = vmul.f32 %v4183, %v4196
  %v4198 = vadd.f32 %v4197, 0.014752088
  %v4199 = vmul.f32 %v4183, %v4198
  %v4200 = vadd.f32 %v4199, 0.112945676
  %v4201 = vmul.f32 %v4183, %v4200
  %v4202 = vadd.f32 %v4201, 0.4994258
  %v4203 = vmul.f32 %v4183, %v4202
  %v4204 = vadd.f32 %v4203, 1.0
  %v4205 = vrcp.pop %v4204
  %v4206 = vmul.f32 %v4204, %v4205
  %v4207 = vsub.f32 1.0, %v4206
  %v4208 = vmul.f32 %v4205, %v4207
  %v4209 = vadd.f32 %v4205, %v4208
  %vm4210 = vweird.f32 %v4204
  %vm4211 = vweird.f32 %v4205
  %vm4212 = vmor %vm4210, %vm4211
  %v4213 = vsel %vm4212, %v4205, %v4209
  %v4214 = vand.u32 2147483647, %v4204
  %vm4215 = vcmp.eq.f32.partialorder %v4214, 8.507059e+37
  %v4216 = vand.u32 %v4204, 2147483648
  %v4217 = vor.u32 1.1754944e-38, %v4216
  %v4218 = vsel %vm4215, %v4217, %v4213
  %v4219 = vmul.f32 %v4194, %v4218
  %v4220 = vmin.f32 %v4219, 1.0
  %v4221 = vmax.f32 %v4220, -1.0
  %v4222 = vmul.f32 %v4128, %v4128
  %v4223 = vmin.f32 16.0, %v4222
  %v4224 = vmul.f32 %v4223, 2.1237322e-06
  %v4225 = vadd.f32 %v4224, 0.00028619796
  %v4226 = vmul.f32 %v4223, %v4225
  %v4227 = vadd.f32 %v4226, 0.0036580483
  %v4228 = vmul.f32 %v4223, %v4227
  %v4229 = vadd.f32 %v4228, 0.05243302
  %v4230 = vmul.f32 %v4223, %v4229
  %v4231 = vadd.f32 %v4230, 0.18741608
  %v4232 = vmul.f32 %v4223, %v4231
  %v4233 = vadd.f32 %v4232, 1.1283791
  %v4234 = vmul.f32 %v4128, %v4233
  %v4235 = vmul.f32 %v4223, 3.8918573e-05
  %v4236 = vadd.f32 %v4235, 0.001143296
  %v4237 = vmul.f32 %v4223, %v4236
  %v4238 = vadd.f32 %v4237, 0.014752088
  %v4239 = vmul.f32 %v4223, %v4238
  %v4240 = vadd.f32 %v4239, 0.112945676
  %v4241 = vmul.f32 %v4223, %v4240
  %v4242 = vadd.f32 %v4241, 0.4994258
  %v4243 = vmul.f32 %v4223, %v4242
  %v4244 = vadd.f32 %v4243, 1.0
  %v4245 = vrcp.pop %v4244
  %v4246 = vmul.f32 %v4244, %v4245
  %v4247 = vsub.f32 1.0, %v4246
  %v4248 = vmul.f32 %v4245, %v4247
  %v4249 = vadd.f32 %v4245, %v4248
  %vm4250 = vweird.f32 %v4244
  %vm4251 = vweird.f32 %v4245
  %vm4252 = vmor %vm4250, %vm4251
  %v4253 = vsel %vm4252, %v4245, %v4249
  %v4254 = vand.u32 2147483647, %v4244
  %vm4255 = vcmp.eq.f32.partialorder %v4254, 8.507059e+37
  %v4256 = vand.u32 %v4244, 2147483648
  %v4257 = vor.u32 1.1754944e-38, %v4256
  %v4258 = vsel %vm4255, %v4257, %v4253
  %v4259 = vmul.f32 %v4234, %v4258
  %v4260 = vmin.f32 %v4259, 1.0
  %v4261 = vmax.f32 %v4260, -1.0
  %v4262 = vmul.f32 %v4129, %v4129
  %v4263 = vmin.f32 16.0, %v4262
  %v4264 = vmul.f32 %v4263, 2.1237322e-06
  %v4265 = vadd.f32 %v4264, 0.00028619796
  %v4266 = vmul.f32 %v4263, %v4265
  %v4267 = vadd.f32 %v4266, 0.0036580483
  %v4268 = vmul.f32 %v4263, %v4267
  %v4269 = vadd.f32 %v4268, 0.05243302
  %v4270 = vmul.f32 %v4263, %v4269
  %v4271 = vadd.f32 %v4270, 0.18741608
  %v4272 = vmul.f32 %v4263, %v4271
  %v4273 = vadd.f32 %v4272, 1.1283791
  %v4274 = vmul.f32 %v4129, %v4273
  %v4275 = vmul.f32 %v4263, 3.8918573e-05
  %v4276 = vadd.f32 %v4275, 0.001143296
  %v4277 = vmul.f32 %v4263, %v4276
  %v4278 = vadd.f32 %v4277, 0.014752088
  %v4279 = vmul.f32 %v4263, %v4278
  %v4280 = vadd.f32 %v4279, 0.112945676
  %v4281 = vmul.f32 %v4263, %v4280
  %v4282 = vadd.f32 %v4281, 0.4994258
  %v4283 = vmul.f32 %v4263, %v4282
  %v4284 = vadd.f32 %v4283, 1.0
  %v4285 = vrcp.pop %v4284
  %v4286 = vmul.f32 %v4284, %v4285
  %v4287 = vsub.f32 1.0, %v4286
  %v4288 = vmul.f32 %v4285, %v4287
  %v4289 = vadd.f32 %v4285, %v4288
  %vm4290 = vweird.f32 %v4284
  %vm4291 = vweird.f32 %v4285
  %vm4292 = vmor %vm4290, %vm4291
  %v4293 = vsel %vm4292, %v4285, %v4289
  %v4294 = vand.u32 2147483647, %v4284
  %vm4295 = vcmp.eq.f32.partialorder %v4294, 8.507059e+37
  %v4296 = vand.u32 %v4284, 2147483648
  %v4297 = vor.u32 1.1754944e-38, %v4296
  %v4298 = vsel %vm4295, %v4297, %v4293
  %v4299 = vmul.f32 %v4274, %v4298
  %v4300 = vmin.f32 %v4299, 1.0
  %v4301 = vmax.f32 %v4300, -1.0
  %v4302 = vmul.f32 %v4130, %v4130
  %v4303 = vmin.f32 16.0, %v4302
  %v4304 = vmul.f32 %v4303, 2.1237322e-06
  %v4305 = vadd.f32 %v4304, 0.00028619796
  %v4306 = vmul.f32 %v4303, %v4305
  %v4307 = vadd.f32 %v4306, 0.0036580483
  %v4308 = vmul.f32 %v4303, %v4307
  %v4309 = vadd.f32 %v4308, 0.05243302
  %v4310 = vmul.f32 %v4303, %v4309
  %v4311 = vadd.f32 %v4310, 0.18741608
  %v4312 = vmul.f32 %v4303, %v4311
  %v4313 = vadd.f32 %v4312, 1.1283791
  %v4314 = vmul.f32 %v4130, %v4313
  %v4315 = vmul.f32 %v4303, 3.8918573e-05
  %v4316 = vadd.f32 %v4315, 0.001143296
  %v4317 = vmul.f32 %v4303, %v4316
  %v4318 = vadd.f32 %v4317, 0.014752088
  %v4319 = vmul.f32 %v4303, %v4318
  %v4320 = vadd.f32 %v4319, 0.112945676
  %v4321 = vmul.f32 %v4303, %v4320
  %v4322 = vadd.f32 %v4321, 0.4994258
  %v4323 = vmul.f32 %v4303, %v4322
  %v4324 = vadd.f32 %v4323, 1.0
  %v4325 = vrcp.pop %v4324
  %v4326 = vmul.f32 %v4324, %v4325
  %v4327 = vsub.f32 1.0, %v4326
  %v4328 = vmul.f32 %v4325, %v4327
  %v4329 = vadd.f32 %v4325, %v4328
  %vm4330 = vweird.f32 %v4324
  %vm4331 = vweird.f32 %v4325
  %vm4332 = vmor %vm4330, %vm4331
  %v4333 = vsel %vm4332, %v4325, %v4329
  %v4334 = vand.u32 2147483647, %v4324
  %vm4335 = vcmp.eq.f32.partialorder %v4334, 8.507059e+37
  %v4336 = vand.u32 %v4324, 2147483648
  %v4337 = vor.u32 1.1754944e-38, %v4336
  %v4338 = vsel %vm4335, %v4337, %v4333
  %v4339 = vmul.f32 %v4314, %v4338
  %v4340 = vmin.f32 %v4339, 1.0
  %v4341 = vmax.f32 %v4340, -1.0
  %v4342 = vmul.f32 %v4131, %v4131
  %v4343 = vmin.f32 16.0, %v4342
  %v4344 = vmul.f32 %v4343, 2.1237322e-06
  %v4345 = vadd.f32 %v4344, 0.00028619796
  %v4346 = vmul.f32 %v4343, %v4345
  %v4347 = vadd.f32 %v4346, 0.0036580483
  %v4348 = vmul.f32 %v4343, %v4347
  %v4349 = vadd.f32 %v4348, 0.05243302
  %v4350 = vmul.f32 %v4343, %v4349
  %v4351 = vadd.f32 %v4350, 0.18741608
  %v4352 = vmul.f32 %v4343, %v4351
  %v4353 = vadd.f32 %v4352, 1.1283791
  %v4354 = vmul.f32 %v4131, %v4353
  %v4355 = vmul.f32 %v4343, 3.8918573e-05
  %v4356 = vadd.f32 %v4355, 0.001143296
  %v4357 = vmul.f32 %v4343, %v4356
  %v4358 = vadd.f32 %v4357, 0.014752088
  %v4359 = vmul.f32 %v4343, %v4358
  %v4360 = vadd.f32 %v4359, 0.112945676
  %v4361 = vmul.f32 %v4343, %v4360
  %v4362 = vadd.f32 %v4361, 0.4994258
  %v4363 = vmul.f32 %v4343, %v4362
  %v4364 = vadd.f32 %v4363, 1.0
  %v4365 = vrcp.pop %v4364
  %v4366 = vmul.f32 %v4364, %v4365
  %v4367 = vsub.f32 1.0, %v4366
  %v4368 = vmul.f32 %v4365, %v4367
  %v4369 = vadd.f32 %v4365, %v4368
  %vm4370 = vweird.f32 %v4364
  %vm4371 = vweird.f32 %v4365
  %vm4372 = vmor %vm4370, %vm4371
  %v4373 = vsel %vm4372, %v4365, %v4369
  %v4374 = vand.u32 2147483647, %v4364
  %vm4375 = vcmp.eq.f32.partialorder %v4374, 8.507059e+37
  %v4376 = vand.u32 %v4364, 2147483648
  %v4377 = vor.u32 1.1754944e-38, %v4376
  %v4378 = vsel %vm4375, %v4377, %v4373
  %v4379 = vmul.f32 %v4354, %v4378
  %v4380 = vmin.f32 %v4379, 1.0
  %v4381 = vmax.f32 %v4380, -1.0
  %v4382 = vmul.f32 %v4132, %v4132
  %v4383 = vmin.f32 16.0, %v4382
  %v4384 = vmul.f32 %v4383, 2.1237322e-06
  %v4385 = vadd.f32 %v4384, 0.00028619796
  %v4386 = vmul.f32 %v4383, %v4385
  %v4387 = vadd.f32 %v4386, 0.0036580483
  %v4388 = vmul.f32 %v4383, %v4387
  %v4389 = vadd.f32 %v4388, 0.05243302
  %v4390 = vmul.f32 %v4383, %v4389
  %v4391 = vadd.f32 %v4390, 0.18741608
  %v4392 = vmul.f32 %v4383, %v4391
  %v4393 = vadd.f32 %v4392, 1.1283791
  %v4394 = vmul.f32 %v4132, %v4393
  %v4395 = vmul.f32 %v4383, 3.8918573e-05
  %v4396 = vadd.f32 %v4395, 0.001143296
  %v4397 = vmul.f32 %v4383, %v4396
  %v4398 = vadd.f32 %v4397, 0.014752088
  %v4399 = vmul.f32 %v4383, %v4398
  %v4400 = vadd.f32 %v4399, 0.112945676
  %v4401 = vmul.f32 %v4383, %v4400
  %v4402 = vadd.f32 %v4401, 0.4994258
  %v4403 = vmul.f32 %v4383, %v4402
  %v4404 = vadd.f32 %v4403, 1.0
  %v4405 = vrcp.pop %v4404
  %v4406 = vmul.f32 %v4404, %v4405
  %v4407 = vsub.f32 1.0, %v4406
  %v4408 = vmul.f32 %v4405, %v4407
  %v4409 = vadd.f32 %v4405, %v4408
  %vm4410 = vweird.f32 %v4404
  %vm4411 = vweird.f32 %v4405
  %vm4412 = vmor %vm4410, %vm4411
  %v4413 = vsel %vm4412, %v4405, %v4409
  %v4414 = vand.u32 2147483647, %v4404
  %vm4415 = vcmp.eq.f32.partialorder %v4414, 8.507059e+37
  %v4416 = vand.u32 %v4404, 2147483648
  %v4417 = vor.u32 1.1754944e-38, %v4416
  %v4418 = vsel %vm4415, %v4417, %v4413
  %v4419 = vmul.f32 %v4394, %v4418
  %v4420 = vmin.f32 %v4419, 1.0
  %v4421 = vmax.f32 %v4420, -1.0
  %v4422 = vmul.f32 %v4133, %v4133
  %v4423 = vmin.f32 16.0, %v4422
  %v4424 = vmul.f32 %v4423, 2.1237322e-06
  %v4425 = vadd.f32 %v4424, 0.00028619796
  %v4426 = vmul.f32 %v4423, %v4425
  %v4427 = vadd.f32 %v4426, 0.0036580483
  %v4428 = vmul.f32 %v4423, %v4427
  %v4429 = vadd.f32 %v4428, 0.05243302
  %v4430 = vmul.f32 %v4423, %v4429
  %v4431 = vadd.f32 %v4430, 0.18741608
  %v4432 = vmul.f32 %v4423, %v4431
  %v4433 = vadd.f32 %v4432, 1.1283791
  %v4434 = vmul.f32 %v4133, %v4433
  %v4435 = vmul.f32 %v4423, 3.8918573e-05
  %v4436 = vadd.f32 %v4435, 0.001143296
  %v4437 = vmul.f32 %v4423, %v4436
  %v4438 = vadd.f32 %v4437, 0.014752088
  %v4439 = vmul.f32 %v4423, %v4438
  %v4440 = vadd.f32 %v4439, 0.112945676
  %v4441 = vmul.f32 %v4423, %v4440
  %v4442 = vadd.f32 %v4441, 0.4994258
  %v4443 = vmul.f32 %v4423, %v4442
  %v4444 = vadd.f32 %v4443, 1.0
  %v4445 = vrcp.pop %v4444
  %v4446 = vmul.f32 %v4444, %v4445
  %v4447 = vsub.f32 1.0, %v4446
  %v4448 = vmul.f32 %v4445, %v4447
  %v4449 = vadd.f32 %v4445, %v4448
  %vm4450 = vweird.f32 %v4444
  %vm4451 = vweird.f32 %v4445
  %vm4452 = vmor %vm4450, %vm4451
  %v4453 = vsel %vm4452, %v4445, %v4449
  %v4454 = vand.u32 2147483647, %v4444
  %vm4455 = vcmp.eq.f32.partialorder %v4454, 8.507059e+37
  %v4456 = vand.u32 %v4444, 2147483648
  %v4457 = vor.u32 1.1754944e-38, %v4456
  %v4458 = vsel %vm4455, %v4457, %v4453
  %v4459 = vmul.f32 %v4434, %v4458
  %v4460 = vmin.f32 %v4459, 1.0
  %v4461 = vmax.f32 %v4460, -1.0
  %v4462 = vmul.f32 %v4134, %v4134
  %v4463 = vmin.f32 16.0, %v4462
  %v4464 = vmul.f32 %v4463, 2.1237322e-06
  %v4465 = vadd.f32 %v4464, 0.00028619796
  %v4466 = vmul.f32 %v4463, %v4465
  %v4467 = vadd.f32 %v4466, 0.0036580483
  %v4468 = vmul.f32 %v4463, %v4467
  %v4469 = vadd.f32 %v4468, 0.05243302
  %v4470 = vmul.f32 %v4463, %v4469
  %v4471 = vadd.f32 %v4470, 0.18741608
  %v4472 = vmul.f32 %v4463, %v4471
  %v4473 = vadd.f32 %v4472, 1.1283791
  %v4474 = vmul.f32 %v4134, %v4473
  %v4475 = vmul.f32 %v4463, 3.8918573e-05
  %v4476 = vadd.f32 %v4475, 0.001143296
  %v4477 = vmul.f32 %v4463, %v4476
  %v4478 = vadd.f32 %v4477, 0.014752088
  %v4479 = vmul.f32 %v4463, %v4478
  %v4480 = vadd.f32 %v4479, 0.112945676
  %v4481 = vmul.f32 %v4463, %v4480
  %v4482 = vadd.f32 %v4481, 0.4994258
  %v4483 = vmul.f32 %v4463, %v4482
  %v4484 = vadd.f32 %v4483, 1.0
  %v4485 = vrcp.pop %v4484
  %v4486 = vmul.f32 %v4484, %v4485
  %v4487 = vsub.f32 1.0, %v4486
  %v4488 = vmul.f32 %v4485, %v4487
  %v4489 = vadd.f32 %v4485, %v4488
  %vm4490 = vweird.f32 %v4484
  %vm4491 = vweird.f32 %v4485
  %vm4492 = vmor %vm4490, %vm4491
  %v4493 = vsel %vm4492, %v4485, %v4489
  %v4494 = vand.u32 2147483647, %v4484
  %vm4495 = vcmp.eq.f32.partialorder %v4494, 8.507059e+37
  %v4496 = vand.u32 %v4484, 2147483648
  %v4497 = vor.u32 1.1754944e-38, %v4496
  %v4498 = vsel %vm4495, %v4497, %v4493
  %v4499 = vmul.f32 %v4474, %v4498
  %v4500 = vmin.f32 %v4499, 1.0
  %v4501 = vmax.f32 %v4500, -1.0
  %v4502 = vmul.f32 %v4135, %v4135
  %v4503 = vmin.f32 16.0, %v4502
  %v4504 = vmul.f32 %v4503, 2.1237322e-06
  %v4505 = vadd.f32 %v4504, 0.00028619796
  %v4506 = vmul.f32 %v4503, %v4505
  %v4507 = vadd.f32 %v4506, 0.0036580483
  %v4508 = vmul.f32 %v4503, %v4507
  %v4509 = vadd.f32 %v4508, 0.05243302
  %v4510 = vmul.f32 %v4503, %v4509
  %v4511 = vadd.f32 %v4510, 0.18741608
  %v4512 = vmul.f32 %v4503, %v4511
  %v4513 = vadd.f32 %v4512, 1.1283791
  %v4514 = vmul.f32 %v4135, %v4513
  %v4515 = vmul.f32 %v4503, 3.8918573e-05
  %v4516 = vadd.f32 %v4515, 0.001143296
  %v4517 = vmul.f32 %v4503, %v4516
  %v4518 = vadd.f32 %v4517, 0.014752088
  %v4519 = vmul.f32 %v4503, %v4518
  %v4520 = vadd.f32 %v4519, 0.112945676
  %v4521 = vmul.f32 %v4503, %v4520
  %v4522 = vadd.f32 %v4521, 0.4994258
  %v4523 = vmul.f32 %v4503, %v4522
  %v4524 = vadd.f32 %v4523, 1.0
  %v4525 = vrcp.pop %v4524
  %v4526 = vmul.f32 %v4524, %v4525
  %v4527 = vsub.f32 1.0, %v4526
  %v4528 = vmul.f32 %v4525, %v4527
  %v4529 = vadd.f32 %v4525, %v4528
  %vm4530 = vweird.f32 %v4524
  %vm4531 = vweird.f32 %v4525
  %vm4532 = vmor %vm4530, %vm4531
  %v4533 = vsel %vm4532, %v4525, %v4529
  %v4534 = vand.u32 2147483647, %v4524
  %vm4535 = vcmp.eq.f32.partialorder %v4534, 8.507059e+37
  %v4536 = vand.u32 %v4524, 2147483648
  %v4537 = vor.u32 1.1754944e-38, %v4536
  %v4538 = vsel %vm4535, %v4537, %v4533
  %v4539 = vmul.f32 %v4514, %v4538
  %v4540 = vmin.f32 %v4539, 1.0
  %v4541 = vmax.f32 %v4540, -1.0
  %v4542 = vmul.f32 %v4136, %v4136
  %v4543 = vmin.f32 16.0, %v4542
  %v4544 = vmul.f32 %v4543, 2.1237322e-06
  %v4545 = vadd.f32 %v4544, 0.00028619796
  %v4546 = vmul.f32 %v4543, %v4545
  %v4547 = vadd.f32 %v4546, 0.0036580483
  %v4548 = vmul.f32 %v4543, %v4547
  %v4549 = vadd.f32 %v4548, 0.05243302
  %v4550 = vmul.f32 %v4543, %v4549
  %v4551 = vadd.f32 %v4550, 0.18741608
  %v4552 = vmul.f32 %v4543, %v4551
  %v4553 = vadd.f32 %v4552, 1.1283791
  %v4554 = vmul.f32 %v4136, %v4553
  %v4555 = vmul.f32 %v4543, 3.8918573e-05
  %v4556 = vadd.f32 %v4555, 0.001143296
  %v4557 = vmul.f32 %v4543, %v4556
  %v4558 = vadd.f32 %v4557, 0.014752088
  %v4559 = vmul.f32 %v4543, %v4558
  %v4560 = vadd.f32 %v4559, 0.112945676
  %v4561 = vmul.f32 %v4543, %v4560
  %v4562 = vadd.f32 %v4561, 0.4994258
  %v4563 = vmul.f32 %v4543, %v4562
  %v4564 = vadd.f32 %v4563, 1.0
  %v4565 = vrcp.pop %v4564
  %v4566 = vmul.f32 %v4564, %v4565
  %v4567 = vsub.f32 1.0, %v4566
  %v4568 = vmul.f32 %v4565, %v4567
  %v4569 = vadd.f32 %v4565, %v4568
  %vm4570 = vweird.f32 %v4564
  %vm4571 = vweird.f32 %v4565
  %vm4572 = vmor %vm4570, %vm4571
  %v4573 = vsel %vm4572, %v4565, %v4569
  %v4574 = vand.u32 2147483647, %v4564
  %vm4575 = vcmp.eq.f32.partialorder %v4574, 8.507059e+37
  %v4576 = vand.u32 %v4564, 2147483648
  %v4577 = vor.u32 1.1754944e-38, %v4576
  %v4578 = vsel %vm4575, %v4577, %v4573
  %v4579 = vmul.f32 %v4554, %v4578
  %v4580 = vmin.f32 %v4579, 1.0
  %v4581 = vmax.f32 %v4580, -1.0
  %v4582 = vmul.f32 %v4137, %v4137
  %v4583 = vmin.f32 16.0, %v4582
  %v4584 = vmul.f32 %v4583, 2.1237322e-06
  %v4585 = vadd.f32 %v4584, 0.00028619796
  %v4586 = vmul.f32 %v4583, %v4585
  %v4587 = vadd.f32 %v4586, 0.0036580483
  %v4588 = vmul.f32 %v4583, %v4587
  %v4589 = vadd.f32 %v4588, 0.05243302
  %v4590 = vmul.f32 %v4583, %v4589
  %v4591 = vadd.f32 %v4590, 0.18741608
  %v4592 = vmul.f32 %v4583, %v4591
  %v4593 = vadd.f32 %v4592, 1.1283791
  %v4594 = vmul.f32 %v4137, %v4593
  %v4595 = vmul.f32 %v4583, 3.8918573e-05
  %v4596 = vadd.f32 %v4595, 0.001143296
  %v4597 = vmul.f32 %v4583, %v4596
  %v4598 = vadd.f32 %v4597, 0.014752088
  %v4599 = vmul.f32 %v4583, %v4598
  %v4600 = vadd.f32 %v4599, 0.112945676
  %v4601 = vmul.f32 %v4583, %v4600
  %v4602 = vadd.f32 %v4601, 0.4994258
  %v4603 = vmul.f32 %v4583, %v4602
  %v4604 = vadd.f32 %v4603, 1.0
  %v4605 = vrcp.pop %v4604
  %v4606 = vmul.f32 %v4604, %v4605
  %v4607 = vsub.f32 1.0, %v4606
  %v4608 = vmul.f32 %v4605, %v4607
  %v4609 = vadd.f32 %v4605, %v4608
  %vm4610 = vweird.f32 %v4604
  %vm4611 = vweird.f32 %v4605
  %vm4612 = vmor %vm4610, %vm4611
  %v4613 = vsel %vm4612, %v4605, %v4609
  %v4614 = vand.u32 2147483647, %v4604
  %vm4615 = vcmp.eq.f32.partialorder %v4614, 8.507059e+37
  %v4616 = vand.u32 %v4604, 2147483648
  %v4617 = vor.u32 1.1754944e-38, %v4616
  %v4618 = vsel %vm4615, %v4617, %v4613
  %v4619 = vmul.f32 %v4594, %v4618
  %v4620 = vmin.f32 %v4619, 1.0
  %v4621 = vmax.f32 %v4620, -1.0
  %v4622 = vmul.f32 %v4138, %v4138
  %v4623 = vmin.f32 16.0, %v4622
  %v4624 = vmul.f32 %v4623, 2.1237322e-06
  %v4625 = vadd.f32 %v4624, 0.00028619796
  %v4626 = vmul.f32 %v4623, %v4625
  %v4627 = vadd.f32 %v4626, 0.0036580483
  %v4628 = vmul.f32 %v4623, %v4627
  %v4629 = vadd.f32 %v4628, 0.05243302
  %v4630 = vmul.f32 %v4623, %v4629
  %v4631 = vadd.f32 %v4630, 0.18741608
  %v4632 = vmul.f32 %v4623, %v4631
  %v4633 = vadd.f32 %v4632, 1.1283791
  %v4634 = vmul.f32 %v4138, %v4633
  %v4635 = vmul.f32 %v4623, 3.8918573e-05
  %v4636 = vadd.f32 %v4635, 0.001143296
  %v4637 = vmul.f32 %v4623, %v4636
  %v4638 = vadd.f32 %v4637, 0.014752088
  %v4639 = vmul.f32 %v4623, %v4638
  %v4640 = vadd.f32 %v4639, 0.112945676
  %v4641 = vmul.f32 %v4623, %v4640
  %v4642 = vadd.f32 %v4641, 0.4994258
  %v4643 = vmul.f32 %v4623, %v4642
  %v4644 = vadd.f32 %v4643, 1.0
  %v4645 = vrcp.pop %v4644
  %v4646 = vmul.f32 %v4644, %v4645
  %v4647 = vsub.f32 1.0, %v4646
  %v4648 = vmul.f32 %v4645, %v4647
  %v4649 = vadd.f32 %v4645, %v4648
  %vm4650 = vweird.f32 %v4644
  %vm4651 = vweird.f32 %v4645
  %vm4652 = vmor %vm4650, %vm4651
  %v4653 = vsel %vm4652, %v4645, %v4649
  %v4654 = vand.u32 2147483647, %v4644
  %vm4655 = vcmp.eq.f32.partialorder %v4654, 8.507059e+37
  %v4656 = vand.u32 %v4644, 2147483648
  %v4657 = vor.u32 1.1754944e-38, %v4656
  %v4658 = vsel %vm4655, %v4657, %v4653
  %v4659 = vmul.f32 %v4634, %v4658
  %v4660 = vmin.f32 %v4659, 1.0
  %v4661 = vmax.f32 %v4660, -1.0
  %v4662 = vmul.f32 %v4139, %v4139
  %v4663 = vmin.f32 16.0, %v4662
  %v4664 = vmul.f32 %v4663, 2.1237322e-06
  %v4665 = vadd.f32 %v4664, 0.00028619796
  %v4666 = vmul.f32 %v4663, %v4665
  %v4667 = vadd.f32 %v4666, 0.0036580483
  %v4668 = vmul.f32 %v4663, %v4667
  %v4669 = vadd.f32 %v4668, 0.05243302
  %v4670 = vmul.f32 %v4663, %v4669
  %v4671 = vadd.f32 %v4670, 0.18741608
  %v4672 = vmul.f32 %v4663, %v4671
  %v4673 = vadd.f32 %v4672, 1.1283791
  %v4674 = vmul.f32 %v4139, %v4673
  %v4675 = vmul.f32 %v4663, 3.8918573e-05
  %v4676 = vadd.f32 %v4675, 0.001143296
  %v4677 = vmul.f32 %v4663, %v4676
  %v4678 = vadd.f32 %v4677, 0.014752088
  %v4679 = vmul.f32 %v4663, %v4678
  %v4680 = vadd.f32 %v4679, 0.112945676
  %v4681 = vmul.f32 %v4663, %v4680
  %v4682 = vadd.f32 %v4681, 0.4994258
  %v4683 = vmul.f32 %v4663, %v4682
  %v4684 = vadd.f32 %v4683, 1.0
  %v4685 = vrcp.pop %v4684
  %v4686 = vmul.f32 %v4684, %v4685
  %v4687 = vsub.f32 1.0, %v4686
  %v4688 = vmul.f32 %v4685, %v4687
  %v4689 = vadd.f32 %v4685, %v4688
  %vm4690 = vweird.f32 %v4684
  %vm4691 = vweird.f32 %v4685
  %vm4692 = vmor %vm4690, %vm4691
  %v4693 = vsel %vm4692, %v4685, %v4689
  %v4694 = vand.u32 2147483647, %v4684
  %vm4695 = vcmp.eq.f32.partialorder %v4694, 8.507059e+37
  %v4696 = vand.u32 %v4684, 2147483648
  %v4697 = vor.u32 1.1754944e-38, %v4696
  %v4698 = vsel %vm4695, %v4697, %v4693
  %v4699 = vmul.f32 %v4674, %v4698
  %v4700 = vmin.f32 %v4699, 1.0
  %v4701 = vmax.f32 %v4700, -1.0
  %v4702 = vmul.f32 %v4140, %v4140
  %v4703 = vmin.f32 16.0, %v4702
  %v4704 = vmul.f32 %v4703, 2.1237322e-06
  %v4705 = vadd.f32 %v4704, 0.00028619796
  %v4706 = vmul.f32 %v4703, %v4705
  %v4707 = vadd.f32 %v4706, 0.0036580483
  %v4708 = vmul.f32 %v4703, %v4707
  %v4709 = vadd.f32 %v4708, 0.05243302
  %v4710 = vmul.f32 %v4703, %v4709
  %v4711 = vadd.f32 %v4710, 0.18741608
  %v4712 = vmul.f32 %v4703, %v4711
  %v4713 = vadd.f32 %v4712, 1.1283791
  %v4714 = vmul.f32 %v4140, %v4713
  %v4715 = vmul.f32 %v4703, 3.8918573e-05
  %v4716 = vadd.f32 %v4715, 0.001143296
  %v4717 = vmul.f32 %v4703, %v4716
  %v4718 = vadd.f32 %v4717, 0.014752088
  %v4719 = vmul.f32 %v4703, %v4718
  %v4720 = vadd.f32 %v4719, 0.112945676
  %v4721 = vmul.f32 %v4703, %v4720
  %v4722 = vadd.f32 %v4721, 0.4994258
  %v4723 = vmul.f32 %v4703, %v4722
  %v4724 = vadd.f32 %v4723, 1.0
  %v4725 = vrcp.pop %v4724
  %v4726 = vmul.f32 %v4724, %v4725
  %v4727 = vsub.f32 1.0, %v4726
  %v4728 = vmul.f32 %v4725, %v4727
  %v4729 = vadd.f32 %v4725, %v4728
  %vm4730 = vweird.f32 %v4724
  %vm4731 = vweird.f32 %v4725
  %vm4732 = vmor %vm4730, %vm4731
  %v4733 = vsel %vm4732, %v4725, %v4729
  %v4734 = vand.u32 2147483647, %v4724
  %vm4735 = vcmp.eq.f32.partialorder %v4734, 8.507059e+37
  %v4736 = vand.u32 %v4724, 2147483648
  %v4737 = vor.u32 1.1754944e-38, %v4736
  %v4738 = vsel %vm4735, %v4737, %v4733
  %v4739 = vmul.f32 %v4714, %v4738
  %v4740 = vmin.f32 %v4739, 1.0
  %v4741 = vmax.f32 %v4740, -1.0
  %v4742 = vmul.f32 %v4141, %v4141
  %v4743 = vmin.f32 16.0, %v4742
  %v4744 = vmul.f32 %v4743, 2.1237322e-06
  %v4745 = vadd.f32 %v4744, 0.00028619796
  %v4746 = vmul.f32 %v4743, %v4745
  %v4747 = vadd.f32 %v4746, 0.0036580483
  %v4748 = vmul.f32 %v4743, %v4747
  %v4749 = vadd.f32 %v4748, 0.05243302
  %v4750 = vmul.f32 %v4743, %v4749
  %v4751 = vadd.f32 %v4750, 0.18741608
  %v4752 = vmul.f32 %v4743, %v4751
  %v4753 = vadd.f32 %v4752, 1.1283791
  %v4754 = vmul.f32 %v4141, %v4753
  %v4755 = vmul.f32 %v4743, 3.8918573e-05
  %v4756 = vadd.f32 %v4755, 0.001143296
  %v4757 = vmul.f32 %v4743, %v4756
  %v4758 = vadd.f32 %v4757, 0.014752088
  %v4759 = vmul.f32 %v4743, %v4758
  %v4760 = vadd.f32 %v4759, 0.112945676
  %v4761 = vmul.f32 %v4743, %v4760
  %v4762 = vadd.f32 %v4761, 0.4994258
  %v4763 = vmul.f32 %v4743, %v4762
  %v4764 = vadd.f32 %v4763, 1.0
  %v4765 = vrcp.pop %v4764
  %v4766 = vmul.f32 %v4764, %v4765
  %v4767 = vsub.f32 1.0, %v4766
  %v4768 = vmul.f32 %v4765, %v4767
  %v4769 = vadd.f32 %v4765, %v4768
  %vm4770 = vweird.f32 %v4764
  %vm4771 = vweird.f32 %v4765
  %vm4772 = vmor %vm4770, %vm4771
  %v4773 = vsel %vm4772, %v4765, %v4769
  %v4774 = vand.u32 2147483647, %v4764
  %vm4775 = vcmp.eq.f32.partialorder %v4774, 8.507059e+37
  %v4776 = vand.u32 %v4764, 2147483648
  %v4777 = vor.u32 1.1754944e-38, %v4776
  %v4778 = vsel %vm4775, %v4777, %v4773
  %v4779 = vmul.f32 %v4754, %v4778
  %v4780 = vmin.f32 %v4779, 1.0
  %v4781 = vmax.f32 %v4780, -1.0
  %v4782 = vadd.f32 %v4181, 1.0
  %v4783 = vadd.f32 %v4221, 1.0
  %v4784 = vadd.f32 %v4261, 1.0
  %v4785 = vadd.f32 %v4301, 1.0
  %v4786 = vadd.f32 %v4341, 1.0
  %v4787 = vadd.f32 %v4381, 1.0
  %v4788 = vadd.f32 %v4421, 1.0
  %v4789 = vadd.f32 %v4461, 1.0
  %v4790 = vadd.f32 %v4501, 1.0
  %v4791 = vadd.f32 %v4541, 1.0
  %v4792 = vadd.f32 %v4581, 1.0
  %v4793 = vadd.f32 %v4621, 1.0
  %v4794 = vadd.f32 %v4661, 1.0
  %v4795 = vadd.f32 %v4701, 1.0
  %v4796 = vadd.f32 %v4741, 1.0
  %v4797 = vadd.f32 %v4781, 1.0
  %v4798 = vmul.f32 %v4110, %v4782
  %v4799 = vmul.f32 %v4111, %v4783
  %v4800 = vmul.f32 %v4112, %v4784
  %v4801 = vmul.f32 %v4113, %v4785
  %v4802 = vmul.f32 %v4114, %v4786
  %v4803 = vmul.f32 %v4115, %v4787
  %v4804 = vmul.f32 %v4116, %v4788
  %v4805 = vmul.f32 %v4117, %v4789
  %v4806 = vmul.f32 %v4118, %v4790
  %v4807 = vmul.f32 %v4119, %v4791
  %v4808 = vmul.f32 %v4120, %v4792
  %v4809 = vmul.f32 %v4121, %v4793
  %v4810 = vmul.f32 %v4122, %v4794
  %v4811 = vmul.f32 %v4123, %v4795
  %v4812 = vmul.f32 %v4124, %v4796
  %v4813 = vmul.f32 %v4125, %v4797
  %4814 = vst.msk [vmem:[#allocation3] sm:$0xff] %vm3315, 0.0
  %vm4815 = vcmask 254976
  %4816 = vst.msk [vmem:[#allocation3 + $0x8] sm:$0x3] %vm4815, 0.0
  %4817 = vst.msk [vmem:[#allocation3 + $0xa0] sm:$0xff] %vm3315, 0.0
  %4818 = vst.msk [vmem:[#allocation3 + $0xa8] sm:$0x3] %vm4815, 0.0
  %s4819 = scalar_lea.vmem [#allocation3], 144
  %4820 = vst.msk [vmem:[%s4819] sm:$0xff] %vm3315, 0.0
  %4821 = vst.msk [vmem:[%s4819 + $0x8] sm:$0x3] %vm4815, 0.0
  %4822 = vst.msk [vmem:[%s4819 + $0xa0] sm:$0xff] %vm3315, 0.0
  %4823 = vst.msk [vmem:[%s4819 + $0xa8] sm:$0x3] %vm4815, 0.0
  %s4824 = scalar_lea.vmem [#allocation3], 16
  %vm4825 = vcmask 253952
  %4826 = vst.msk [vmem:[%s4824] sm:$0x1] %vm4825, 0.0
  %4827 = vst.msk [vmem:[%s4824 + $0x10] sm:$0x1] %vm4825, 0.0
  %4828 = vst.msk [vmem:[%s4824 + $0x20] sm:$0x1] %vm4825, 0.0
  %4829 = vst.msk [vmem:[%s4824 + $0x30] sm:$0x1] %vm4825, 0.0
  %4830 = vst.msk [vmem:[%s4824 + $0x40] sm:$0x1] %vm4825, 0.0
  %4831 = vst.msk [vmem:[%s4824 + $0x50] sm:$0x1] %vm4825, 0.0
  %4832 = vst.msk [vmem:[%s4824 + $0x60] sm:$0x1] %vm4825, 0.0
  %4833 = vst.msk [vmem:[%s4824 + $0x70] sm:$0x1] %vm4825, 0.0
  %4834 = vst.msk [vmem:[%s4824 + $0xa0] sm:$0x1] %vm4825, 0.0
  %4835 = vst.msk [vmem:[%s4824 + $0xb0] sm:$0x1] %vm4825, 0.0
  %4836 = vst.msk [vmem:[%s4824 + $0xc0] sm:$0x1] %vm4825, 0.0
  %4837 = vst.msk [vmem:[%s4824 + $0xd0] sm:$0x1] %vm4825, 0.0
  %4838 = vst.msk [vmem:[%s4824 + $0xe0] sm:$0x1] %vm4825, 0.0
  %4839 = vst.msk [vmem:[%s4824 + $0xf0] sm:$0x1] %vm4825, 0.0
  %4840 = vst.msk [vmem:[%s4824 + $0x100] sm:$0x1] %vm4825, 0.0
  %4841 = vst.msk [vmem:[%s4824 + $0x110] sm:$0x1] %vm4825, 0.0
  %4842 = vst.msk [vmem:[%s4824 + $0x9] sm:$0x1] %vm4825, 0.0
  %4843 = vst.msk [vmem:[%s4824 + $0x19] sm:$0x1] %vm4825, 0.0
  %4844 = vst.msk [vmem:[%s4824 + $0x29] sm:$0x1] %vm4825, 0.0
  %4845 = vst.msk [vmem:[%s4824 + $0x39] sm:$0x1] %vm4825, 0.0
  %4846 = vst.msk [vmem:[%s4824 + $0x49] sm:$0x1] %vm4825, 0.0
  %4847 = vst.msk [vmem:[%s4824 + $0x59] sm:$0x1] %vm4825, 0.0
  %4848 = vst.msk [vmem:[%s4824 + $0x69] sm:$0x1] %vm4825, 0.0
  %4849 = vst.msk [vmem:[%s4824 + $0x79] sm:$0x1] %vm4825, 0.0
  %4850 = vst.msk [vmem:[%s4824 + $0xa9] sm:$0x1] %vm4825, 0.0
  %4851 = vst.msk [vmem:[%s4824 + $0xb9] sm:$0x1] %vm4825, 0.0
  %4852 = vst.msk [vmem:[%s4824 + $0xc9] sm:$0x1] %vm4825, 0.0
  %4853 = vst.msk [vmem:[%s4824 + $0xd9] sm:$0x1] %vm4825, 0.0
  %4854 = vst.msk [vmem:[%s4824 + $0xe9] sm:$0x1] %vm4825, 0.0
  %4855 = vst.msk [vmem:[%s4824 + $0xf9] sm:$0x1] %vm4825, 0.0
  %4856 = vst.msk [vmem:[%s4824 + $0x109] sm:$0x1] %vm4825, 0.0
  %4857 = vst.msk [vmem:[%s4824 + $0x119] sm:$0x1] %vm4825, 0.0
  %4858 = vst.msk [vmem:[%s4824 + $0x1] sm:$0xff] %vm3315, %v4798
  %4859 = vst.msk [vmem:[%s4824 + $0x11] sm:$0xff] %vm3315, %v4799
  %4860 = vst.msk [vmem:[%s4824 + $0x21] sm:$0xff] %vm3315, %v4800
  %4861 = vst.msk [vmem:[%s4824 + $0x31] sm:$0xff] %vm3315, %v4801
  %4862 = vst.msk [vmem:[%s4824 + $0x41] sm:$0xff] %vm3315, %v4802
  %4863 = vst.msk [vmem:[%s4824 + $0x51] sm:$0xff] %vm3315, %v4803
  %4864 = vst.msk [vmem:[%s4824 + $0x61] sm:$0xff] %vm3315, %v4804
  %4865 = vst.msk [vmem:[%s4824 + $0x71] sm:$0xff] %vm3315, %v4805
  %4866 = vst.msk [vmem:[%s4824 + $0xa1] sm:$0xff] %vm3315, %v4806
  %4867 = vst.msk [vmem:[%s4824 + $0xb1] sm:$0xff] %vm3315, %v4807
  %4868 = vst.msk [vmem:[%s4824 + $0xc1] sm:$0xff] %vm3315, %v4808
  %4869 = vst.msk [vmem:[%s4824 + $0xd1] sm:$0xff] %vm3315, %v4809
  %4870 = vst.msk [vmem:[%s4824 + $0xe1] sm:$0xff] %vm3315, %v4810
  %4871 = vst.msk [vmem:[%s4824 + $0xf1] sm:$0xff] %vm3315, %v4811
  %4872 = vst.msk [vmem:[%s4824 + $0x101] sm:$0xff] %vm3315, %v4812
  %4873 = vst.msk [vmem:[%s4824 + $0x111] sm:$0xff] %vm3315, %v4813
  %v4874 = vld [vmem:[#allocation3] sm:$0xff]
  %v4875 = vld [vmem:[#allocation3 + $0x10] sm:$0xff]
  %v4876 = vld [vmem:[#allocation3 + $0x20] sm:$0xff]
  %v4877 = vld [vmem:[#allocation3 + $0x30] sm:$0xff]
  %v4878 = vld [vmem:[#allocation3 + $0x40] sm:$0xff]
  %v4879 = vld [vmem:[#allocation3 + $0x50] sm:$0xff]
  %v4880 = vld [vmem:[#allocation3 + $0x60] sm:$0xff]
  %v4881 = vld [vmem:[#allocation3 + $0x70] sm:$0xff]
  %v4882 = vld [vmem:[#allocation3 + $0xa0] sm:$0xff]
  %v4883 = vld [vmem:[#allocation3 + $0xb0] sm:$0xff]
  %v4884 = vld [vmem:[#allocation3 + $0xc0] sm:$0xff]
  %v4885 = vld [vmem:[#allocation3 + $0xd0] sm:$0xff]
  %v4886 = vld [vmem:[#allocation3 + $0xe0] sm:$0xff]
  %v4887 = vld [vmem:[#allocation3 + $0xf0] sm:$0xff]
  %v4888 = vld [vmem:[#allocation3 + $0x100] sm:$0xff]
  %v4889 = vld [vmem:[#allocation3 + $0x110] sm:$0xff]
  %v4890 = vld [vmem:[#allocation3 + $0x1] sm:$0xff]
  %v4891 = vld [vmem:[#allocation3 + $0x11] sm:$0xff]
  %v4892 = vld [vmem:[#allocation3 + $0x21] sm:$0xff]
  %v4893 = vld [vmem:[#allocation3 + $0x31] sm:$0xff]
  %v4894 = vld [vmem:[#allocation3 + $0x41] sm:$0xff]
  %v4895 = vld [vmem:[#allocation3 + $0x51] sm:$0xff]
  %v4896 = vld [vmem:[#allocation3 + $0x61] sm:$0xff]
  %v4897 = vld [vmem:[#allocation3 + $0x71] sm:$0xff]
  %v4898 = vld [vmem:[#allocation3 + $0xa1] sm:$0xff]
  %v4899 = vld [vmem:[#allocation3 + $0xb1] sm:$0xff]
  %v4900 = vld [vmem:[#allocation3 + $0xc1] sm:$0xff]
  %v4901 = vld [vmem:[#allocation3 + $0xd1] sm:$0xff]
  %v4902 = vld [vmem:[#allocation3 + $0xe1] sm:$0xff]
  %v4903 = vld [vmem:[#allocation3 + $0xf1] sm:$0xff]
  %v4904 = vld [vmem:[#allocation3 + $0x101] sm:$0xff]
  %v4905 = vld [vmem:[#allocation3 + $0x111] sm:$0xff]
  %v4906 = vld [vmem:[#allocation3 + $0x2] sm:$0xff]
  %v4907 = vld [vmem:[#allocation3 + $0x12] sm:$0xff]
  %v4908 = vld [vmem:[#allocation3 + $0x22] sm:$0xff]
  %v4909 = vld [vmem:[#allocation3 + $0x32] sm:$0xff]
  %v4910 = vld [vmem:[#allocation3 + $0x42] sm:$0xff]
  %v4911 = vld [vmem:[#allocation3 + $0x52] sm:$0xff]
  %v4912 = vld [vmem:[#allocation3 + $0x62] sm:$0xff]
  %v4913 = vld [vmem:[#allocation3 + $0x72] sm:$0xff]
  %v4914 = vld [vmem:[#allocation3 + $0xa2] sm:$0xff]
  %v4915 = vld [vmem:[#allocation3 + $0xb2] sm:$0xff]
  %v4916 = vld [vmem:[#allocation3 + $0xc2] sm:$0xff]
  %v4917 = vld [vmem:[#allocation3 + $0xd2] sm:$0xff]
  %v4918 = vld [vmem:[#allocation3 + $0xe2] sm:$0xff]
  %v4919 = vld [vmem:[#allocation3 + $0xf2] sm:$0xff]
  %v4920 = vld [vmem:[#allocation3 + $0x102] sm:$0xff]
  %v4921 = vld [vmem:[#allocation3 + $0x112] sm:$0xff]
  %v4922 = vld [vmem:[%s4824] sm:$0xff]
  %v4923 = vld [vmem:[%s4824 + $0x10] sm:$0xff]
  %v4924 = vld [vmem:[%s4824 + $0x20] sm:$0xff]
  %v4925 = vld [vmem:[%s4824 + $0x30] sm:$0xff]
  %v4926 = vld [vmem:[%s4824 + $0x40] sm:$0xff]
  %v4927 = vld [vmem:[%s4824 + $0x50] sm:$0xff]
  %v4928 = vld [vmem:[%s4824 + $0x60] sm:$0xff]
  %v4929 = vld [vmem:[%s4824 + $0x70] sm:$0xff]
  %v4930 = vld [vmem:[%s4824 + $0xa0] sm:$0xff]
  %v4931 = vld [vmem:[%s4824 + $0xb0] sm:$0xff]
  %v4932 = vld [vmem:[%s4824 + $0xc0] sm:$0xff]
  %v4933 = vld [vmem:[%s4824 + $0xd0] sm:$0xff]
  %v4934 = vld [vmem:[%s4824 + $0xe0] sm:$0xff]
  %v4935 = vld [vmem:[%s4824 + $0xf0] sm:$0xff]
  %v4936 = vld [vmem:[%s4824 + $0x100] sm:$0xff]
  %v4937 = vld [vmem:[%s4824 + $0x110] sm:$0xff]
  %v4938 = vld [vmem:[%s4824 + $0x1] sm:$0xff]
  %v4939 = vld [vmem:[%s4824 + $0x11] sm:$0xff]
  %v4940 = vld [vmem:[%s4824 + $0x21] sm:$0xff]
  %v4941 = vld [vmem:[%s4824 + $0x31] sm:$0xff]
  %v4942 = vld [vmem:[%s4824 + $0x41] sm:$0xff]
  %v4943 = vld [vmem:[%s4824 + $0x51] sm:$0xff]
  %v4944 = vld [vmem:[%s4824 + $0x61] sm:$0xff]
  %v4945 = vld [vmem:[%s4824 + $0x71] sm:$0xff]
  %v4946 = vld [vmem:[%s4824 + $0xa1] sm:$0xff]
  %v4947 = vld [vmem:[%s4824 + $0xb1] sm:$0xff]
  %v4948 = vld [vmem:[%s4824 + $0xc1] sm:$0xff]
  %v4949 = vld [vmem:[%s4824 + $0xd1] sm:$0xff]
  %v4950 = vld [vmem:[%s4824 + $0xe1] sm:$0xff]
  %v4951 = vld [vmem:[%s4824 + $0xf1] sm:$0xff]
  %v4952 = vld [vmem:[%s4824 + $0x101] sm:$0xff]
  %v4953 = vld [vmem:[%s4824 + $0x111] sm:$0xff]
  %v4954 = vld [vmem:[%s4824 + $0x2] sm:$0xff]
  %v4955 = vld [vmem:[%s4824 + $0x12] sm:$0xff]
  %v4956 = vld [vmem:[%s4824 + $0x22] sm:$0xff]
  %v4957 = vld [vmem:[%s4824 + $0x32] sm:$0xff]
  %v4958 = vld [vmem:[%s4824 + $0x42] sm:$0xff]
  %v4959 = vld [vmem:[%s4824 + $0x52] sm:$0xff]
  %v4960 = vld [vmem:[%s4824 + $0x62] sm:$0xff]
  %v4961 = vld [vmem:[%s4824 + $0x72] sm:$0xff]
  %v4962 = vld [vmem:[%s4824 + $0xa2] sm:$0xff]
  %v4963 = vld [vmem:[%s4824 + $0xb2] sm:$0xff]
  %v4964 = vld [vmem:[%s4824 + $0xc2] sm:$0xff]
  %v4965 = vld [vmem:[%s4824 + $0xd2] sm:$0xff]
  %v4966 = vld [vmem:[%s4824 + $0xe2] sm:$0xff]
  %v4967 = vld [vmem:[%s4824 + $0xf2] sm:$0xff]
  %v4968 = vld [vmem:[%s4824 + $0x102] sm:$0xff]
  %v4969 = vld [vmem:[%s4824 + $0x112] sm:$0xff]
  %s4970 = scalar_lea.vmem [#allocation3], 32
  %v4971 = vld [vmem:[%s4970] sm:$0xff]
  %v4972 = vld [vmem:[%s4970 + $0x10] sm:$0xff]
  %v4973 = vld [vmem:[%s4970 + $0x20] sm:$0xff]
  %v4974 = vld [vmem:[%s4970 + $0x30] sm:$0xff]
  %v4975 = vld [vmem:[%s4970 + $0x40] sm:$0xff]
  %v4976 = vld [vmem:[%s4970 + $0x50] sm:$0xff]
  %v4977 = vld [vmem:[%s4970 + $0x60] sm:$0xff]
  %v4978 = vld [vmem:[%s4970 + $0x70] sm:$0xff]
  %v4979 = vld [vmem:[%s4970 + $0xa0] sm:$0xff]
  %v4980 = vld [vmem:[%s4970 + $0xb0] sm:$0xff]
  %v4981 = vld [vmem:[%s4970 + $0xc0] sm:$0xff]
  %v4982 = vld [vmem:[%s4970 + $0xd0] sm:$0xff]
  %v4983 = vld [vmem:[%s4970 + $0xe0] sm:$0xff]
  %v4984 = vld [vmem:[%s4970 + $0xf0] sm:$0xff]
  %v4985 = vld [vmem:[%s4970 + $0x100] sm:$0xff]
  %v4986 = vld [vmem:[%s4970 + $0x110] sm:$0xff]
  %v4987 = vld [vmem:[%s4970 + $0x1] sm:$0xff]
  %v4988 = vld [vmem:[%s4970 + $0x11] sm:$0xff]
  %v4989 = vld [vmem:[%s4970 + $0x21] sm:$0xff]
  %v4990 = vld [vmem:[%s4970 + $0x31] sm:$0xff]
  %v4991 = vld [vmem:[%s4970 + $0x41] sm:$0xff]
  %v4992 = vld [vmem:[%s4970 + $0x51] sm:$0xff]
  %v4993 = vld [vmem:[%s4970 + $0x61] sm:$0xff]
  %v4994 = vld [vmem:[%s4970 + $0x71] sm:$0xff]
  %v4995 = vld [vmem:[%s4970 + $0xa1] sm:$0xff]
  %v4996 = vld [vmem:[%s4970 + $0xb1] sm:$0xff]
  %v4997 = vld [vmem:[%s4970 + $0xc1] sm:$0xff]
  %v4998 = vld [vmem:[%s4970 + $0xd1] sm:$0xff]
  %v4999 = vld [vmem:[%s4970 + $0xe1] sm:$0xff]
  %v5000 = vld [vmem:[%s4970 + $0xf1] sm:$0xff]
  %v5001 = vld [vmem:[%s4970 + $0x101] sm:$0xff]
  %v5002 = vld [vmem:[%s4970 + $0x111] sm:$0xff]
  %v5003 = vld [vmem:[%s4970 + $0x2] sm:$0xff]
  %v5004 = vld [vmem:[%s4970 + $0x12] sm:$0xff]
  %v5005 = vld [vmem:[%s4970 + $0x22] sm:$0xff]
  %v5006 = vld [vmem:[%s4970 + $0x32] sm:$0xff]
  %v5007 = vld [vmem:[%s4970 + $0x42] sm:$0xff]
  %v5008 = vld [vmem:[%s4970 + $0x52] sm:$0xff]
  %v5009 = vld [vmem:[%s4970 + $0x62] sm:$0xff]
  %v5010 = vld [vmem:[%s4970 + $0x72] sm:$0xff]
  %v5011 = vld [vmem:[%s4970 + $0xa2] sm:$0xff]
  %v5012 = vld [vmem:[%s4970 + $0xb2] sm:$0xff]
  %v5013 = vld [vmem:[%s4970 + $0xc2] sm:$0xff]
  %v5014 = vld [vmem:[%s4970 + $0xd2] sm:$0xff]
  %v5015 = vld [vmem:[%s4970 + $0xe2] sm:$0xff]
  %v5016 = vld [vmem:[%s4970 + $0xf2] sm:$0xff]
  %v5017 = vld [vmem:[%s4970 + $0x102] sm:$0xff]
  %v5018 = vld [vmem:[%s4970 + $0x112] sm:$0xff]
  %5035 = vrot.lane.b32.xlu0 %v4890, 32
  %v5036 = vpop.permute.xlu0 %5035
  %5037 = vrot.lane.b32.xlu0 %v4891, 32
  %v5038 = vpop.permute.xlu0 %5037
  %5039 = vrot.lane.b32.xlu0 %v4892, 32
  %v5040 = vpop.permute.xlu0 %5039
  %5041 = vrot.lane.b32.xlu0 %v4893, 32
  %v5042 = vpop.permute.xlu0 %5041
  %5043 = vrot.lane.b32.xlu0 %v4894, 32
  %v5044 = vpop.permute.xlu0 %5043
  %5045 = vrot.lane.b32.xlu0 %v4895, 32
  %v5046 = vpop.permute.xlu0 %5045
  %5047 = vrot.lane.b32.xlu0 %v4896, 32
  %v5048 = vpop.permute.xlu0 %5047
  %5049 = vrot.lane.b32.xlu0 %v4897, 32
  %v5050 = vpop.permute.xlu0 %5049
  %5051 = vrot.lane.b32.xlu0 %v4898, 32
  %v5052 = vpop.permute.xlu0 %5051
  %5053 = vrot.lane.b32.xlu0 %v4899, 32
  %v5054 = vpop.permute.xlu0 %5053
  %5055 = vrot.lane.b32.xlu0 %v4900, 32
  %v5056 = vpop.permute.xlu0 %5055
  %5057 = vrot.lane.b32.xlu0 %v4901, 32
  %v5058 = vpop.permute.xlu0 %5057
  %5059 = vrot.lane.b32.xlu0 %v4902, 32
  %v5060 = vpop.permute.xlu0 %5059
  %5061 = vrot.lane.b32.xlu0 %v4903, 32
  %v5062 = vpop.permute.xlu0 %5061
  %5063 = vrot.lane.b32.xlu0 %v4904, 32
  %v5064 = vpop.permute.xlu0 %5063
  %5065 = vrot.lane.b32.xlu0 %v4905, 32
  %v5066 = vpop.permute.xlu0 %5065
  %5099 = vrot.lane.b32.xlu0 %v4906, 64
  %v5100 = vpop.permute.xlu0 %5099
  %5101 = vrot.lane.b32.xlu0 %v4907, 64
  %v5102 = vpop.permute.xlu0 %5101
  %5103 = vrot.lane.b32.xlu0 %v4908, 64
  %v5104 = vpop.permute.xlu0 %5103
  %5105 = vrot.lane.b32.xlu0 %v4909, 64
  %v5106 = vpop.permute.xlu0 %5105
  %5107 = vrot.lane.b32.xlu0 %v4910, 64
  %v5108 = vpop.permute.xlu0 %5107
  %5109 = vrot.lane.b32.xlu0 %v4911, 64
  %v5110 = vpop.permute.xlu0 %5109
  %5111 = vrot.lane.b32.xlu0 %v4912, 64
  %v5112 = vpop.permute.xlu0 %5111
  %5113 = vrot.lane.b32.xlu0 %v4913, 64
  %v5114 = vpop.permute.xlu0 %5113
  %5115 = vrot.lane.b32.xlu0 %v4914, 64
  %v5116 = vpop.permute.xlu0 %5115
  %5117 = vrot.lane.b32.xlu0 %v4915, 64
  %v5118 = vpop.permute.xlu0 %5117
  %5119 = vrot.lane.b32.xlu0 %v4916, 64
  %v5120 = vpop.permute.xlu0 %5119
  %5121 = vrot.lane.b32.xlu0 %v4917, 64
  %v5122 = vpop.permute.xlu0 %5121
  %5123 = vrot.lane.b32.xlu0 %v4918, 64
  %v5124 = vpop.permute.xlu0 %5123
  %5125 = vrot.lane.b32.xlu0 %v4919, 64
  %v5126 = vpop.permute.xlu0 %5125
  %5127 = vrot.lane.b32.xlu0 %v4920, 64
  %v5128 = vpop.permute.xlu0 %5127
  %5129 = vrot.lane.b32.xlu0 %v4921, 64
  %v5130 = vpop.permute.xlu0 %5129
  %5163 = vrot.lane.b32.xlu0 %v4922, 96
  %v5164 = vpop.permute.xlu0 %5163
  %5165 = vrot.lane.b32.xlu0 %v4923, 96
  %v5166 = vpop.permute.xlu0 %5165
  %5167 = vrot.lane.b32.xlu0 %v4924, 96
  %v5168 = vpop.permute.xlu0 %5167
  %5169 = vrot.lane.b32.xlu0 %v4925, 96
  %v5170 = vpop.permute.xlu0 %5169
  %5171 = vrot.lane.b32.xlu0 %v4926, 96
  %v5172 = vpop.permute.xlu0 %5171
  %5173 = vrot.lane.b32.xlu0 %v4927, 96
  %v5174 = vpop.permute.xlu0 %5173
  %5175 = vrot.lane.b32.xlu0 %v4928, 96
  %v5176 = vpop.permute.xlu0 %5175
  %5177 = vrot.lane.b32.xlu0 %v4929, 96
  %v5178 = vpop.permute.xlu0 %5177
  %5179 = vrot.lane.b32.xlu0 %v4930, 96
  %v5180 = vpop.permute.xlu0 %5179
  %5181 = vrot.lane.b32.xlu0 %v4931, 96
  %v5182 = vpop.permute.xlu0 %5181
  %5183 = vrot.lane.b32.xlu0 %v4932, 96
  %v5184 = vpop.permute.xlu0 %5183
  %5185 = vrot.lane.b32.xlu0 %v4933, 96
  %v5186 = vpop.permute.xlu0 %5185
  %5187 = vrot.lane.b32.xlu0 %v4934, 96
  %v5188 = vpop.permute.xlu0 %5187
  %5189 = vrot.lane.b32.xlu0 %v4935, 96
  %v5190 = vpop.permute.xlu0 %5189
  %5191 = vrot.lane.b32.xlu0 %v4936, 96
  %v5192 = vpop.permute.xlu0 %5191
  %5193 = vrot.lane.b32.xlu0 %v4937, 96
  %v5194 = vpop.permute.xlu0 %5193
  %5227 = vrot.lane.b32.xlu0 %v4954, 32
  %v5228 = vpop.permute.xlu0 %5227
  %5229 = vrot.lane.b32.xlu0 %v4955, 32
  %v5230 = vpop.permute.xlu0 %5229
  %5231 = vrot.lane.b32.xlu0 %v4956, 32
  %v5232 = vpop.permute.xlu0 %5231
  %5233 = vrot.lane.b32.xlu0 %v4957, 32
  %v5234 = vpop.permute.xlu0 %5233
  %5235 = vrot.lane.b32.xlu0 %v4958, 32
  %v5236 = vpop.permute.xlu0 %5235
  %5237 = vrot.lane.b32.xlu0 %v4959, 32
  %v5238 = vpop.permute.xlu0 %5237
  %5239 = vrot.lane.b32.xlu0 %v4960, 32
  %v5240 = vpop.permute.xlu0 %5239
  %5241 = vrot.lane.b32.xlu0 %v4961, 32
  %v5242 = vpop.permute.xlu0 %5241
  %5243 = vrot.lane.b32.xlu0 %v4962, 32
  %v5244 = vpop.permute.xlu0 %5243
  %5245 = vrot.lane.b32.xlu0 %v4963, 32
  %v5246 = vpop.permute.xlu0 %5245
  %5247 = vrot.lane.b32.xlu0 %v4964, 32
  %v5248 = vpop.permute.xlu0 %5247
  %5249 = vrot.lane.b32.xlu0 %v4965, 32
  %v5250 = vpop.permute.xlu0 %5249
  %5251 = vrot.lane.b32.xlu0 %v4966, 32
  %v5252 = vpop.permute.xlu0 %5251
  %5253 = vrot.lane.b32.xlu0 %v4967, 32
  %v5254 = vpop.permute.xlu0 %5253
  %5255 = vrot.lane.b32.xlu0 %v4968, 32
  %v5256 = vpop.permute.xlu0 %5255
  %5257 = vrot.lane.b32.xlu0 %v4969, 32
  %v5258 = vpop.permute.xlu0 %5257
  %5291 = vrot.lane.b32.xlu0 %v4971, 64
  %v5292 = vpop.permute.xlu0 %5291
  %5293 = vrot.lane.b32.xlu0 %v4972, 64
  %v5294 = vpop.permute.xlu0 %5293
  %5295 = vrot.lane.b32.xlu0 %v4973, 64
  %v5296 = vpop.permute.xlu0 %5295
  %5297 = vrot.lane.b32.xlu0 %v4974, 64
  %v5298 = vpop.permute.xlu0 %5297
  %5299 = vrot.lane.b32.xlu0 %v4975, 64
  %v5300 = vpop.permute.xlu0 %5299
  %5301 = vrot.lane.b32.xlu0 %v4976, 64
  %v5302 = vpop.permute.xlu0 %5301
  %5303 = vrot.lane.b32.xlu0 %v4977, 64
  %v5304 = vpop.permute.xlu0 %5303
  %5305 = vrot.lane.b32.xlu0 %v4978, 64
  %v5306 = vpop.permute.xlu0 %5305
  %5307 = vrot.lane.b32.xlu0 %v4979, 64
  %v5308 = vpop.permute.xlu0 %5307
  %5309 = vrot.lane.b32.xlu0 %v4980, 64
  %v5310 = vpop.permute.xlu0 %5309
  %5311 = vrot.lane.b32.xlu0 %v4981, 64
  %v5312 = vpop.permute.xlu0 %5311
  %5313 = vrot.lane.b32.xlu0 %v4982, 64
  %v5314 = vpop.permute.xlu0 %5313
  %5315 = vrot.lane.b32.xlu0 %v4983, 64
  %v5316 = vpop.permute.xlu0 %5315
  %5317 = vrot.lane.b32.xlu0 %v4984, 64
  %v5318 = vpop.permute.xlu0 %5317
  %5319 = vrot.lane.b32.xlu0 %v4985, 64
  %v5320 = vpop.permute.xlu0 %5319
  %5321 = vrot.lane.b32.xlu0 %v4986, 64
  %v5322 = vpop.permute.xlu0 %5321
  %5355 = vrot.lane.b32.xlu0 %v4987, 96
  %v5356 = vpop.permute.xlu0 %5355
  %5357 = vrot.lane.b32.xlu0 %v4988, 96
  %v5358 = vpop.permute.xlu0 %5357
  %5359 = vrot.lane.b32.xlu0 %v4989, 96
  %v5360 = vpop.permute.xlu0 %5359
  %5361 = vrot.lane.b32.xlu0 %v4990, 96
  %v5362 = vpop.permute.xlu0 %5361
  %5363 = vrot.lane.b32.xlu0 %v4991, 96
  %v5364 = vpop.permute.xlu0 %5363
  %5365 = vrot.lane.b32.xlu0 %v4992, 96
  %v5366 = vpop.permute.xlu0 %5365
  %5367 = vrot.lane.b32.xlu0 %v4993, 96
  %v5368 = vpop.permute.xlu0 %5367
  %5369 = vrot.lane.b32.xlu0 %v4994, 96
  %v5370 = vpop.permute.xlu0 %5369
  %5371 = vrot.lane.b32.xlu0 %v4995, 96
  %v5372 = vpop.permute.xlu0 %5371
  %5373 = vrot.lane.b32.xlu0 %v4996, 96
  %v5374 = vpop.permute.xlu0 %5373
  %5375 = vrot.lane.b32.xlu0 %v4997, 96
  %v5376 = vpop.permute.xlu0 %5375
  %5377 = vrot.lane.b32.xlu0 %v4998, 96
  %v5378 = vpop.permute.xlu0 %5377
  %5379 = vrot.lane.b32.xlu0 %v4999, 96
  %v5380 = vpop.permute.xlu0 %5379
  %5381 = vrot.lane.b32.xlu0 %v5000, 96
  %v5382 = vpop.permute.xlu0 %5381
  %5383 = vrot.lane.b32.xlu0 %v5001, 96
  %v5384 = vpop.permute.xlu0 %5383
  %5385 = vrot.lane.b32.xlu0 %v5002, 96
  %v5386 = vpop.permute.xlu0 %5385
  %v5403 = vsel %vm3315, %v4874, %v5036
  %v5404 = vsel %vm3315, %v4875, %v5038
  %v5405 = vsel %vm3315, %v4876, %v5040
  %v5406 = vsel %vm3315, %v4877, %v5042
  %v5407 = vsel %vm3315, %v4878, %v5044
  %v5408 = vsel %vm3315, %v4879, %v5046
  %v5409 = vsel %vm3315, %v4880, %v5048
  %v5410 = vsel %vm3315, %v4881, %v5050
  %v5411 = vsel %vm3315, %v4882, %v5052
  %v5412 = vsel %vm3315, %v4883, %v5054
  %v5413 = vsel %vm3315, %v4884, %v5056
  %v5414 = vsel %vm3315, %v4885, %v5058
  %v5415 = vsel %vm3315, %v4886, %v5060
  %v5416 = vsel %vm3315, %v4887, %v5062
  %v5417 = vsel %vm3315, %v4888, %v5064
  %v5418 = vsel %vm3315, %v4889, %v5066
  %vm5419 = vcmask 523264
  %v5420 = vsel %vm5419, %v5403, %v5100
  %v5421 = vsel %vm5419, %v5404, %v5102
  %v5422 = vsel %vm5419, %v5405, %v5104
  %v5423 = vsel %vm5419, %v5406, %v5106
  %v5424 = vsel %vm5419, %v5407, %v5108
  %v5425 = vsel %vm5419, %v5408, %v5110
  %v5426 = vsel %vm5419, %v5409, %v5112
  %v5427 = vsel %vm5419, %v5410, %v5114
  %v5428 = vsel %vm5419, %v5411, %v5116
  %v5429 = vsel %vm5419, %v5412, %v5118
  %v5430 = vsel %vm5419, %v5413, %v5120
  %v5431 = vsel %vm5419, %v5414, %v5122
  %v5432 = vsel %vm5419, %v5415, %v5124
  %v5433 = vsel %vm5419, %v5416, %v5126
  %v5434 = vsel %vm5419, %v5417, %v5128
  %v5435 = vsel %vm5419, %v5418, %v5130
  %vm5436 = vcmask 785408
  %v5437 = vsel %vm5436, %v5420, %v5164
  %v5438 = vsel %vm5436, %v5421, %v5166
  %v5439 = vsel %vm5436, %v5422, %v5168
  %v5440 = vsel %vm5436, %v5423, %v5170
  %v5441 = vsel %vm5436, %v5424, %v5172
  %v5442 = vsel %vm5436, %v5425, %v5174
  %v5443 = vsel %vm5436, %v5426, %v5176
  %v5444 = vsel %vm5436, %v5427, %v5178
  %v5445 = vsel %vm5436, %v5428, %v5180
  %v5446 = vsel %vm5436, %v5429, %v5182
  %v5447 = vsel %vm5436, %v5430, %v5184
  %v5448 = vsel %vm5436, %v5431, %v5186
  %v5449 = vsel %vm5436, %v5432, %v5188
  %v5450 = vsel %vm5436, %v5433, %v5190
  %v5451 = vsel %vm5436, %v5434, %v5192
  %v5452 = vsel %vm5436, %v5435, %v5194
  %v5453 = vsel %vm3315, %v4938, %v5228
  %v5454 = vsel %vm3315, %v4939, %v5230
  %v5455 = vsel %vm3315, %v4940, %v5232
  %v5456 = vsel %vm3315, %v4941, %v5234
  %v5457 = vsel %vm3315, %v4942, %v5236
  %v5458 = vsel %vm3315, %v4943, %v5238
  %v5459 = vsel %vm3315, %v4944, %v5240
  %v5460 = vsel %vm3315, %v4945, %v5242
  %v5461 = vsel %vm3315, %v4946, %v5244
  %v5462 = vsel %vm3315, %v4947, %v5246
  %v5463 = vsel %vm3315, %v4948, %v5248
  %v5464 = vsel %vm3315, %v4949, %v5250
  %v5465 = vsel %vm3315, %v4950, %v5252
  %v5466 = vsel %vm3315, %v4951, %v5254
  %v5467 = vsel %vm3315, %v4952, %v5256
  %v5468 = vsel %vm3315, %v4953, %v5258
  %v5469 = vsel %vm5419, %v5453, %v5292
  %v5470 = vsel %vm5419, %v5454, %v5294
  %v5471 = vsel %vm5419, %v5455, %v5296
  %v5472 = vsel %vm5419, %v5456, %v5298
  %v5473 = vsel %vm5419, %v5457, %v5300
  %v5474 = vsel %vm5419, %v5458, %v5302
  %v5475 = vsel %vm5419, %v5459, %v5304
  %v5476 = vsel %vm5419, %v5460, %v5306
  %v5477 = vsel %vm5419, %v5461, %v5308
  %v5478 = vsel %vm5419, %v5462, %v5310
  %v5479 = vsel %vm5419, %v5463, %v5312
  %v5480 = vsel %vm5419, %v5464, %v5314
  %v5481 = vsel %vm5419, %v5465, %v5316
  %v5482 = vsel %vm5419, %v5466, %v5318
  %v5483 = vsel %vm5419, %v5467, %v5320
  %v5484 = vsel %vm5419, %v5468, %v5322
  %v5485 = vsel %vm5436, %v5469, %v5356
  %v5486 = vsel %vm5436, %v5470, %v5358
  %v5487 = vsel %vm5436, %v5471, %v5360
  %v5488 = vsel %vm5436, %v5472, %v5362
  %v5489 = vsel %vm5436, %v5473, %v5364
  %v5490 = vsel %vm5436, %v5474, %v5366
  %v5491 = vsel %vm5436, %v5475, %v5368
  %v5492 = vsel %vm5436, %v5476, %v5370
  %v5493 = vsel %vm5436, %v5477, %v5372
  %v5494 = vsel %vm5436, %v5478, %v5374
  %v5495 = vsel %vm5436, %v5479, %v5376
  %v5496 = vsel %vm5436, %v5480, %v5378
  %v5497 = vsel %vm5436, %v5481, %v5380
  %v5498 = vsel %vm5436, %v5482, %v5382
  %v5499 = vsel %vm5436, %v5483, %v5384
  %v5500 = vsel %vm5436, %v5484, %v5386
  %v5501 = vpack.c.bf16 %v5438, %v5437
  %v5502 = vpack.c.bf16 %v5486, %v5485
  %v5503 = vpack.c.bf16 %v5004, %v5003
  %v5504 = vpack.c.bf16 %v5440, %v5439
  %v5505 = vpack.c.bf16 %v5488, %v5487
  %v5506 = vpack.c.bf16 %v5006, %v5005
  %v5507 = vpack.c.bf16 %v5442, %v5441
  %v5508 = vpack.c.bf16 %v5490, %v5489
  %v5509 = vpack.c.bf16 %v5008, %v5007
  %v5510 = vpack.c.bf16 %v5444, %v5443
  %v5511 = vpack.c.bf16 %v5492, %v5491
  %v5512 = vpack.c.bf16 %v5010, %v5009
  %v5513 = vpack.c.bf16 %v5446, %v5445
  %v5514 = vpack.c.bf16 %v5494, %v5493
  %v5515 = vpack.c.bf16 %v5012, %v5011
  %v5516 = vpack.c.bf16 %v5448, %v5447
  %v5517 = vpack.c.bf16 %v5496, %v5495
  %v5518 = vpack.c.bf16 %v5014, %v5013
  %v5519 = vpack.c.bf16 %v5450, %v5449
  %v5520 = vpack.c.bf16 %v5498, %v5497
  %v5521 = vpack.c.bf16 %v5016, %v5015
  %v5522 = vpack.c.bf16 %v5452, %v5451
  %v5523 = vpack.c.bf16 %v5500, %v5499
  %v5524 = vpack.c.bf16 %v5018, %v5017
  %v5525 = vld [vmem:[%s2] sm:$0xf]
  %v5526 = vld [vmem:[%s2 + $0x4] sm:$0xf]
  %v5527 = vld [vmem:[%s2 + $0x8] sm:$0xf]
  %v5528 = vld [vmem:[%s2 + $0xc] sm:$0xf]
  %v5529 = vld [vmem:[%s2 + $0x10] sm:$0xf]
  %v5530 = vld [vmem:[%s2 + $0x14] sm:$0xf]
  %v5531 = vld [vmem:[%s2 + $0x18] sm:$0xf]
  %v5532 = vld [vmem:[%s2 + $0x1c] sm:$0xf]
  %v5533 = vld [vmem:[%s2 + $0x20] sm:$0xf]
  %v5534 = vld [vmem:[%s2 + $0x24] sm:$0xf]
  %v5535 = vld [vmem:[%s2 + $0x28] sm:$0xf]
  %v5536 = vld [vmem:[%s2 + $0x2c] sm:$0xf]
  %v5537 = vld [vmem:[%s2 + $0x30] sm:$0xf]
  %v5538 = vld [vmem:[%s2 + $0x34] sm:$0xf]
  %v5539 = vld [vmem:[%s2 + $0x38] sm:$0xf]
  %v5540 = vld [vmem:[%s2 + $0x3c] sm:$0xf]
  %v5541 = vld [vmem:[%s2 + $0x40] sm:$0xf]
  %v5542 = vld [vmem:[%s2 + $0x44] sm:$0xf]
  %v5543 = vld [vmem:[%s2 + $0x48] sm:$0xf]
  %v5544 = vld [vmem:[%s2 + $0x4c] sm:$0xf]
  %v5545 = vld [vmem:[%s2 + $0x50] sm:$0xf]
  %v5546 = vld [vmem:[%s2 + $0x54] sm:$0xf]
  %v5547 = vld [vmem:[%s2 + $0x58] sm:$0xf]
  %v5548 = vld [vmem:[%s2 + $0x5c] sm:$0xf]
  %v5549 = vld [vmem:[%s2 + $0x60] sm:$0xf]
  %v5550 = vld [vmem:[%s2 + $0x64] sm:$0xf]
  %v5551 = vld [vmem:[%s2 + $0x68] sm:$0xf]
  %v5552 = vld [vmem:[%s2 + $0x6c] sm:$0xf]
  %v5553 = vld [vmem:[%s2 + $0x70] sm:$0xf]
  %v5554 = vld [vmem:[%s2 + $0x74] sm:$0xf]
  %v5555 = vld [vmem:[%s2 + $0x78] sm:$0xf]
  %v5556 = vld [vmem:[%s2 + $0x7c] sm:$0xf]
  %v5557 = vld [vmem:[%s2 + $0x80] sm:$0xf]
  %v5558 = vld [vmem:[%s2 + $0x84] sm:$0xf]
  %v5559 = vld [vmem:[%s2 + $0x88] sm:$0xf]
  %v5560 = vld [vmem:[%s2 + $0x8c] sm:$0xf]
  %v5597 = vunpack.c.l.b16 %v5525
  %v5598 = vunpack.c.l.b16 %v5526
  %v5599 = vunpack.c.l.b16 %v5527
  %v5600 = vunpack.c.l.b16 %v5528
  %v5601 = vunpack.c.l.b16 %v5529
  %v5602 = vunpack.c.l.b16 %v5530
  %v5603 = vunpack.c.l.b16 %v5531
  %v5604 = vunpack.c.l.b16 %v5532
  %v5605 = vunpack.c.l.b16 %v5533
  %v5606 = vunpack.c.l.b16 %v5534
  %v5607 = vunpack.c.l.b16 %v5535
  %v5608 = vunpack.c.l.b16 %v5536
  %v5609 = vunpack.c.l.b16 %v5537
  %v5610 = vunpack.c.l.b16 %v5538
  %v5611 = vunpack.c.l.b16 %v5539
  %v5612 = vunpack.c.l.b16 %v5540
  %v5613 = vunpack.c.l.b16 %v5541
  %v5614 = vunpack.c.l.b16 %v5542
  %v5615 = vunpack.c.l.b16 %v5543
  %v5616 = vunpack.c.l.b16 %v5544
  %v5617 = vunpack.c.l.b16 %v5545
  %v5618 = vunpack.c.l.b16 %v5546
  %v5619 = vunpack.c.l.b16 %v5547
  %v5620 = vunpack.c.l.b16 %v5548
  %v5621 = vunpack.c.l.b16 %v5549
  %v5622 = vunpack.c.l.b16 %v5550
  %v5623 = vunpack.c.l.b16 %v5551
  %v5624 = vunpack.c.l.b16 %v5552
  %v5625 = vunpack.c.l.b16 %v5553
  %v5626 = vunpack.c.l.b16 %v5554
  %v5627 = vunpack.c.l.b16 %v5555
  %v5628 = vunpack.c.l.b16 %v5556
  %v5629 = vunpack.c.l.b16 %v5557
  %v5630 = vunpack.c.l.b16 %v5558
  %v5631 = vunpack.c.l.b16 %v5559
  %v5632 = vunpack.c.l.b16 %v5560
  %v5633 = vpack.c.b16 %v5598, %v5597
  %v5634 = vpack.c.b16 %v5600, %v5599
  %v5635 = vpack.c.b16 %v5602, %v5601
  %v5636 = vpack.c.b16 %v5604, %v5603
  %v5637 = vpack.c.b16 %v5606, %v5605
  %v5638 = vpack.c.b16 %v5608, %v5607
  %v5639 = vpack.c.b16 %v5610, %v5609
  %v5640 = vpack.c.b16 %v5612, %v5611
  %v5641 = vpack.c.b16 %v5614, %v5613
  %v5642 = vpack.c.b16 %v5616, %v5615
  %v5643 = vpack.c.b16 %v5618, %v5617
  %v5644 = vpack.c.b16 %v5620, %v5619
  %v5645 = vpack.c.b16 %v5622, %v5621
  %v5646 = vpack.c.b16 %v5624, %v5623
  %v5647 = vpack.c.b16 %v5626, %v5625
  %v5648 = vpack.c.b16 %v5628, %v5627
  %v5649 = vpack.c.b16 %v5630, %v5629
  %v5650 = vpack.c.b16 %v5632, %v5631
  %v5670 = vsel %vm3315, %v5503, 0
  %v5673 = vsel %vm3315, %v5506, 0
  %v5676 = vsel %vm3315, %v5509, 0
  %v5679 = vsel %vm3315, %v5512, 0
  %v5682 = vsel %vm3315, %v5515, 0
  %v5685 = vsel %vm3315, %v5518, 0
  %v5688 = vsel %vm3315, %v5521, 0
  %v5691 = vsel %vm3315, %v5524, 0
  %5693 = vmatpush.bf16.msra.mxu0 %v5640
  %5694 = vmatpush.bf16.msra.mxu0 %v5639
  %5695 = vmatpush.bf16.msra.mxu0 %v5638
  %5696 = vmatpush.bf16.msra.mxu0 %v5637
  %5697 = vmatpush.bf16.msra.mxu0 %v5636
  %5698 = vmatpush.bf16.msra.mxu0 %v5635
  %5699 = vmatpush.bf16.msra.mxu0 %v5634
  %5700 = vmatpush.bf16.msra.mxu0 %v5633
  %5701 = vmatmul.bf16.gmra.mxu0 %v5501
  %v5702 = vpop.f32.mrf.mxu0
  %v5703 = vadd.f32 0.0, %v5702
  %v5704 = vpop.f32.mrf.mxu0
  %v5705 = vadd.f32 0.0, %v5704
  %5706 = vmatmul.bf16.gmra.mxu0 %v5504
  %v5707 = vpop.f32.mrf.mxu0
  %v5708 = vadd.f32 0.0, %v5707
  %v5709 = vpop.f32.mrf.mxu0
  %v5710 = vadd.f32 0.0, %v5709
  %5711 = vmatmul.bf16.gmra.mxu0 %v5507
  %v5712 = vpop.f32.mrf.mxu0
  %v5713 = vadd.f32 0.0, %v5712
  %v5714 = vpop.f32.mrf.mxu0
  %v5715 = vadd.f32 0.0, %v5714
  %5716 = vmatmul.bf16.gmra.mxu0 %v5510
  %v5717 = vpop.f32.mrf.mxu0
  %v5718 = vadd.f32 0.0, %v5717
  %v5719 = vpop.f32.mrf.mxu0
  %v5720 = vadd.f32 0.0, %v5719
  %5721 = vmatmul.bf16.gmra.mxu0 %v5513
  %v5722 = vpop.f32.mrf.mxu0
  %v5723 = vadd.f32 0.0, %v5722
  %v5724 = vpop.f32.mrf.mxu0
  %v5725 = vadd.f32 0.0, %v5724
  %5726 = vmatmul.bf16.gmra.mxu0 %v5516
  %v5727 = vpop.f32.mrf.mxu0
  %v5728 = vadd.f32 0.0, %v5727
  %v5729 = vpop.f32.mrf.mxu0
  %v5730 = vadd.f32 0.0, %v5729
  %5731 = vmatmul.bf16.gmra.mxu0 %v5519
  %v5732 = vpop.f32.mrf.mxu0
  %v5733 = vadd.f32 0.0, %v5732
  %v5734 = vpop.f32.mrf.mxu0
  %v5735 = vadd.f32 0.0, %v5734
  %5736 = vmatmul.bf16.gmra.mxu0 %v5522
  %v5737 = vpop.f32.mrf.mxu0
  %v5738 = vadd.f32 0.0, %v5737
  %v5739 = vpop.f32.mrf.mxu0
  %v5740 = vadd.f32 0.0, %v5739
  %5741 = vdwg.mxu0
  %5742 = vmatpush.bf16.msra.mxu0 %v5648
  %5743 = vmatpush.bf16.msra.mxu0 %v5647
  %5744 = vmatpush.bf16.msra.mxu0 %v5646
  %5745 = vmatpush.bf16.msra.mxu0 %v5645
  %5746 = vmatpush.bf16.msra.mxu0 %v5644
  %5747 = vmatpush.bf16.msra.mxu0 %v5643
  %5748 = vmatpush.bf16.msra.mxu0 %v5642
  %5749 = vmatpush.bf16.msra.mxu0 %v5641
  %5750 = vmatmul.bf16.gmra.mxu0 %v5502
  %v5751 = vpop.f32.mrf.mxu0
  %v5752 = vadd.f32 %v5703, %v5751
  %v5753 = vpop.f32.mrf.mxu0
  %v5754 = vadd.f32 %v5705, %v5753
  %5755 = vmatmul.bf16.gmra.mxu0 %v5505
  %v5756 = vpop.f32.mrf.mxu0
  %v5757 = vadd.f32 %v5708, %v5756
  %v5758 = vpop.f32.mrf.mxu0
  %v5759 = vadd.f32 %v5710, %v5758
  %5760 = vmatmul.bf16.gmra.mxu0 %v5508
  %v5761 = vpop.f32.mrf.mxu0
  %v5762 = vadd.f32 %v5713, %v5761
  %v5763 = vpop.f32.mrf.mxu0
  %v5764 = vadd.f32 %v5715, %v5763
  %5765 = vmatmul.bf16.gmra.mxu0 %v5511
  %v5766 = vpop.f32.mrf.mxu0
  %v5767 = vadd.f32 %v5718, %v5766
  %v5768 = vpop.f32.mrf.mxu0
  %v5769 = vadd.f32 %v5720, %v5768
  %5770 = vmatmul.bf16.gmra.mxu0 %v5514
  %v5771 = vpop.f32.mrf.mxu0
  %v5772 = vadd.f32 %v5723, %v5771
  %v5773 = vpop.f32.mrf.mxu0
  %v5774 = vadd.f32 %v5725, %v5773
  %5775 = vmatmul.bf16.gmra.mxu0 %v5517
  %v5776 = vpop.f32.mrf.mxu0
  %v5777 = vadd.f32 %v5728, %v5776
  %v5778 = vpop.f32.mrf.mxu0
  %v5779 = vadd.f32 %v5730, %v5778
  %5780 = vmatmul.bf16.gmra.mxu0 %v5520
  %v5781 = vpop.f32.mrf.mxu0
  %v5782 = vadd.f32 %v5733, %v5781
  %v5783 = vpop.f32.mrf.mxu0
  %v5784 = vadd.f32 %v5735, %v5783
  %5785 = vmatmul.bf16.gmra.mxu0 %v5523
  %v5786 = vpop.f32.mrf.mxu0
  %v5787 = vadd.f32 %v5738, %v5786
  %v5788 = vpop.f32.mrf.mxu0
  %v5789 = vadd.f32 %v5740, %v5788
  %5790 = vdwg.mxu0
  %5791 = vmatpush.bf16.msra.mxu0 0
  %5792 = vmatpush.bf16.msra.mxu0 0
  %5793 = vmatpush.bf16.msra.mxu0 0
  %5794 = vmatpush.bf16.msra.mxu0 0
  %5795 = vmatpush.bf16.msra.mxu0 0
  %5796 = vmatpush.bf16.msra.mxu0 0
  %5797 = vmatpush.bf16.msra.mxu0 %v5650
  %5798 = vmatpush.bf16.msra.mxu0 %v5649
  %5799 = vmatmul.bf16.gmra.mxu0 %v5670
  %v5800 = vpop.f32.mrf.mxu0
  %v5801 = vadd.f32 %v5752, %v5800
  %v5802 = vpop.f32.mrf.mxu0
  %v5803 = vadd.f32 %v5754, %v5802
  %5804 = vmatmul.bf16.gmra.mxu0 %v5673
  %v5805 = vpop.f32.mrf.mxu0
  %v5806 = vadd.f32 %v5757, %v5805
  %v5807 = vpop.f32.mrf.mxu0
  %v5808 = vadd.f32 %v5759, %v5807
  %5809 = vmatmul.bf16.gmra.mxu0 %v5676
  %v5810 = vpop.f32.mrf.mxu0
  %v5811 = vadd.f32 %v5762, %v5810
  %v5812 = vpop.f32.mrf.mxu0
  %v5813 = vadd.f32 %v5764, %v5812
  %5814 = vmatmul.bf16.gmra.mxu0 %v5679
  %v5815 = vpop.f32.mrf.mxu0
  %v5816 = vadd.f32 %v5767, %v5815
  %v5817 = vpop.f32.mrf.mxu0
  %v5818 = vadd.f32 %v5769, %v5817
  %5819 = vmatmul.bf16.gmra.mxu0 %v5682
  %v5820 = vpop.f32.mrf.mxu0
  %v5821 = vadd.f32 %v5772, %v5820
  %v5822 = vpop.f32.mrf.mxu0
  %v5823 = vadd.f32 %v5774, %v5822
  %5824 = vmatmul.bf16.gmra.mxu0 %v5685
  %v5825 = vpop.f32.mrf.mxu0
  %v5826 = vadd.f32 %v5777, %v5825
  %v5827 = vpop.f32.mrf.mxu0
  %v5828 = vadd.f32 %v5779, %v5827
  %5829 = vmatmul.bf16.gmra.mxu0 %v5688
  %v5830 = vpop.f32.mrf.mxu0
  %v5831 = vadd.f32 %v5782, %v5830
  %v5832 = vpop.f32.mrf.mxu0
  %v5833 = vadd.f32 %v5784, %v5832
  %5834 = vmatmul.bf16.gmra.mxu0 %v5691
  %v5835 = vpop.f32.mrf.mxu0
  %v5836 = vadd.f32 %v5787, %v5835
  %v5837 = vpop.f32.mrf.mxu0
  %v5838 = vadd.f32 %v5789, %v5837
  %5839 = vdwg.mxu0
  %v5840 = vld [vmem:[%s5] sm:$0x1]
  %v5841 = vld [vmem:[%s6] sm:$0x1]
  %v5842 = vsel %vm3315, %v5801, 0.0
  %v5843 = vsel %vm3315, %v5803, 0.0
  %v5844 = vadd.f32 %v5842, %v5843
  %v5845 = vsel %vm3315, %v5806, 0.0
  %v5846 = vadd.f32 %v5844, %v5845
  %v5847 = vsel %vm3315, %v5808, 0.0
  %v5848 = vadd.f32 %v5846, %v5847
  %v5849 = vsel %vm3315, %v5811, 0.0
  %v5850 = vadd.f32 %v5848, %v5849
  %v5851 = vsel %vm3315, %v5813, 0.0
  %v5852 = vadd.f32 %v5850, %v5851
  %v5853 = vsel %vm3315, %v5816, 0.0
  %v5854 = vadd.f32 %v5852, %v5853
  %v5855 = vsel %vm3315, %v5818, 0.0
  %v5856 = vadd.f32 %v5854, %v5855
  %v5857 = vsel %vm3315, %v5821, 0.0
  %v5858 = vadd.f32 %v5856, %v5857
  %v5859 = vsel %vm3315, %v5823, 0.0
  %v5860 = vadd.f32 %v5858, %v5859
  %v5861 = vsel %vm3315, %v5826, 0.0
  %v5862 = vadd.f32 %v5860, %v5861
  %v5863 = vsel %vm3315, %v5828, 0.0
  %v5864 = vadd.f32 %v5862, %v5863
  %v5865 = vsel %vm3315, %v5831, 0.0
  %v5866 = vadd.f32 %v5864, %v5865
  %v5867 = vsel %vm3315, %v5833, 0.0
  %v5868 = vadd.f32 %v5866, %v5867
  %v5869 = vsel %vm3315, %v5836, 0.0
  %v5870 = vadd.f32 %v5868, %v5869
  %v5871 = vsel %vm3315, %v5838, 0.0
  %v5872 = vadd.f32 %v5870, %v5871
  %v5873 = vrot.slane %v5872, 4
  %v5874 = vadd.f32 %v5872, %v5873
  %v5875 = vrot.slane %v5874, 2
  %v5876 = vadd.f32 %v5874, %v5875
  %v5877 = vrot.slane %v5876, 1
  %v5878 = vadd.f32 %v5876, %v5877
  %v5879 = vmul.f32 %v5878, %v3986
  %v5880 = vsub.f32 %v5801, %v5879
  %v5881 = vsub.f32 %v5803, %v5879
  %v5882 = vsub.f32 %v5806, %v5879
  %v5883 = vsub.f32 %v5808, %v5879
  %v5884 = vsub.f32 %v5811, %v5879
  %v5885 = vsub.f32 %v5813, %v5879
  %v5886 = vsub.f32 %v5816, %v5879
  %v5887 = vsub.f32 %v5818, %v5879
  %v5888 = vsub.f32 %v5821, %v5879
  %v5889 = vsub.f32 %v5823, %v5879
  %v5890 = vsub.f32 %v5826, %v5879
  %v5891 = vsub.f32 %v5828, %v5879
  %v5892 = vsub.f32 %v5831, %v5879
  %v5893 = vsub.f32 %v5833, %v5879
  %v5894 = vsub.f32 %v5836, %v5879
  %v5895 = vsub.f32 %v5838, %v5879
  %v5896 = vmul.f32 %v5880, %v5880
  %v5897 = vmul.f32 %v5881, %v5881
  %v5898 = vmul.f32 %v5882, %v5882
  %v5899 = vmul.f32 %v5883, %v5883
  %v5900 = vmul.f32 %v5884, %v5884
  %v5901 = vmul.f32 %v5885, %v5885
  %v5902 = vmul.f32 %v5886, %v5886
  %v5903 = vmul.f32 %v5887, %v5887
  %v5904 = vmul.f32 %v5888, %v5888
  %v5905 = vmul.f32 %v5889, %v5889
  %v5906 = vmul.f32 %v5890, %v5890
  %v5907 = vmul.f32 %v5891, %v5891
  %v5908 = vmul.f32 %v5892, %v5892
  %v5909 = vmul.f32 %v5893, %v5893
  %v5910 = vmul.f32 %v5894, %v5894
  %v5911 = vmul.f32 %v5895, %v5895
  %v5912 = vsel %vm3315, %v5896, 0.0
  %v5913 = vsel %vm3315, %v5897, 0.0
  %v5914 = vadd.f32 %v5912, %v5913
  %v5915 = vsel %vm3315, %v5898, 0.0
  %v5916 = vadd.f32 %v5914, %v5915
  %v5917 = vsel %vm3315, %v5899, 0.0
  %v5918 = vadd.f32 %v5916, %v5917
  %v5919 = vsel %vm3315, %v5900, 0.0
  %v5920 = vadd.f32 %v5918, %v5919
  %v5921 = vsel %vm3315, %v5901, 0.0
  %v5922 = vadd.f32 %v5920, %v5921
  %v5923 = vsel %vm3315, %v5902, 0.0
  %v5924 = vadd.f32 %v5922, %v5923
  %v5925 = vsel %vm3315, %v5903, 0.0
  %v5926 = vadd.f32 %v5924, %v5925
  %v5927 = vsel %vm3315, %v5904, 0.0
  %v5928 = vadd.f32 %v5926, %v5927
  %v5929 = vsel %vm3315, %v5905, 0.0
  %v5930 = vadd.f32 %v5928, %v5929
  %v5931 = vsel %vm3315, %v5906, 0.0
  %v5932 = vadd.f32 %v5930, %v5931
  %v5933 = vsel %vm3315, %v5907, 0.0
  %v5934 = vadd.f32 %v5932, %v5933
  %v5935 = vsel %vm3315, %v5908, 0.0
  %v5936 = vadd.f32 %v5934, %v5935
  %v5937 = vsel %vm3315, %v5909, 0.0
  %v5938 = vadd.f32 %v5936, %v5937
  %v5939 = vsel %vm3315, %v5910, 0.0
  %v5940 = vadd.f32 %v5938, %v5939
  %v5941 = vsel %vm3315, %v5911, 0.0
  %v5942 = vadd.f32 %v5940, %v5941
  %v5943 = vrot.slane %v5942, 4
  %v5944 = vadd.f32 %v5942, %v5943
  %v5945 = vrot.slane %v5944, 2
  %v5946 = vadd.f32 %v5944, %v5945
  %v5947 = vrot.slane %v5946, 1
  %v5948 = vadd.f32 %v5946, %v5947
  %v5949 = vmul.f32 %v5948, %v3986
  %v5950 = vadd.f32 %v5949, 1e-12
  %v5951 = vrsqrt.pop %v5950
  %v5952 = vmul.f32 %v5951, %v5950
  %v5953 = vmul.f32 %v5952, %v5951
  %v5954 = vmul.f32 0.5, %v5953
  %v5955 = vsub.f32 1.5, %v5954
  %v5956 = vmul.f32 %v5951, %v5955
  %vm5957 = vweird.f32 %v5950
  %vm5958 = vweird.f32 %v5951
  %vm5959 = vmor %vm5957, %vm5958
  %v5960 = vsel %vm5959, %v5951, %v5956
  %v5961 = vmul.f32 %v5840, %v5960
  %v5962 = vmul.f32 %v5879, %v5961
  %v5963 = vsub.f32 %v5841, %v5962
  %v5965 = vperm.slane %v5961, 0
  %v5967 = vmul.f32 %v5801, %v5965
  %v5968 = vmul.f32 %v5803, %v5965
  %v5969 = vmul.f32 %v5806, %v5965
  %v5970 = vmul.f32 %v5808, %v5965
  %v5971 = vmul.f32 %v5811, %v5965
  %v5972 = vmul.f32 %v5813, %v5965
  %v5973 = vmul.f32 %v5816, %v5965
  %v5974 = vmul.f32 %v5818, %v5965
  %v5975 = vmul.f32 %v5821, %v5965
  %v5976 = vmul.f32 %v5823, %v5965
  %v5977 = vmul.f32 %v5826, %v5965
  %v5978 = vmul.f32 %v5828, %v5965
  %v5979 = vmul.f32 %v5831, %v5965
  %v5980 = vmul.f32 %v5833, %v5965
  %v5981 = vmul.f32 %v5836, %v5965
  %v5982 = vmul.f32 %v5838, %v5965
  %v5984 = vperm.slane %v5963, 0
  %v5986 = vadd.f32 %v5967, %v5984
  %v5987 = vadd.f32 %v5968, %v5984
  %v5988 = vadd.f32 %v5969, %v5984
  %v5989 = vadd.f32 %v5970, %v5984
  %v5990 = vadd.f32 %v5971, %v5984
  %v5991 = vadd.f32 %v5972, %v5984
  %v5992 = vadd.f32 %v5973, %v5984
  %v5993 = vadd.f32 %v5974, %v5984
  %v5994 = vadd.f32 %v5975, %v5984
  %v5995 = vadd.f32 %v5976, %v5984
  %v5996 = vadd.f32 %v5977, %v5984
  %v5997 = vadd.f32 %v5978, %v5984
  %v5998 = vadd.f32 %v5979, %v5984
  %v5999 = vadd.f32 %v5980, %v5984
  %v6000 = vadd.f32 %v5981, %v5984
  %v6001 = vadd.f32 %v5982, %v5984
  %v6002 = vmul.f32 %v5986, 0.5
  %v6003 = vmul.f32 %v5987, 0.5
  %v6004 = vmul.f32 %v5988, 0.5
  %v6005 = vmul.f32 %v5989, 0.5
  %v6006 = vmul.f32 %v5990, 0.5
  %v6007 = vmul.f32 %v5991, 0.5
  %v6008 = vmul.f32 %v5992, 0.5
  %v6009 = vmul.f32 %v5993, 0.5
  %v6010 = vmul.f32 %v5994, 0.5
  %v6011 = vmul.f32 %v5995, 0.5
  %v6012 = vmul.f32 %v5996, 0.5
  %v6013 = vmul.f32 %v5997, 0.5
  %v6014 = vmul.f32 %v5998, 0.5
  %v6015 = vmul.f32 %v5999, 0.5
  %v6016 = vmul.f32 %v6000, 0.5
  %v6017 = vmul.f32 %v6001, 0.5
  %v6018 = vmul.f32 %v5986, 0.70710677
  %v6019 = vmul.f32 %v5987, 0.70710677
  %v6020 = vmul.f32 %v5988, 0.70710677
  %v6021 = vmul.f32 %v5989, 0.70710677
  %v6022 = vmul.f32 %v5990, 0.70710677
  %v6023 = vmul.f32 %v5991, 0.70710677
  %v6024 = vmul.f32 %v5992, 0.70710677
  %v6025 = vmul.f32 %v5993, 0.70710677
  %v6026 = vmul.f32 %v5994, 0.70710677
  %v6027 = vmul.f32 %v5995, 0.70710677
  %v6028 = vmul.f32 %v5996, 0.70710677
  %v6029 = vmul.f32 %v5997, 0.70710677
  %v6030 = vmul.f32 %v5998, 0.70710677
  %v6031 = vmul.f32 %v5999, 0.70710677
  %v6032 = vmul.f32 %v6000, 0.70710677
  %v6033 = vmul.f32 %v6001, 0.70710677
  %v6034 = vmul.f32 %v6018, %v6018
  %v6035 = vmin.f32 16.0, %v6034
  %v6036 = vmul.f32 %v6035, 2.1237322e-06
  %v6037 = vadd.f32 %v6036, 0.00028619796
  %v6038 = vmul.f32 %v6035, %v6037
  %v6039 = vadd.f32 %v6038, 0.0036580483
  %v6040 = vmul.f32 %v6035, %v6039
  %v6041 = vadd.f32 %v6040, 0.05243302
  %v6042 = vmul.f32 %v6035, %v6041
  %v6043 = vadd.f32 %v6042, 0.18741608
  %v6044 = vmul.f32 %v6035, %v6043
  %v6045 = vadd.f32 %v6044, 1.1283791
  %v6046 = vmul.f32 %v6018, %v6045
  %v6047 = vmul.f32 %v6035, 3.8918573e-05
  %v6048 = vadd.f32 %v6047, 0.001143296
  %v6049 = vmul.f32 %v6035, %v6048
  %v6050 = vadd.f32 %v6049, 0.014752088
  %v6051 = vmul.f32 %v6035, %v6050
  %v6052 = vadd.f32 %v6051, 0.112945676
  %v6053 = vmul.f32 %v6035, %v6052
  %v6054 = vadd.f32 %v6053, 0.4994258
  %v6055 = vmul.f32 %v6035, %v6054
  %v6056 = vadd.f32 %v6055, 1.0
  %v6057 = vrcp.pop %v6056
  %v6058 = vmul.f32 %v6056, %v6057
  %v6059 = vsub.f32 1.0, %v6058
  %v6060 = vmul.f32 %v6057, %v6059
  %v6061 = vadd.f32 %v6057, %v6060
  %vm6062 = vweird.f32 %v6056
  %vm6063 = vweird.f32 %v6057
  %vm6064 = vmor %vm6062, %vm6063
  %v6065 = vsel %vm6064, %v6057, %v6061
  %v6066 = vand.u32 2147483647, %v6056
  %vm6067 = vcmp.eq.f32.partialorder %v6066, 8.507059e+37
  %v6068 = vand.u32 %v6056, 2147483648
  %v6069 = vor.u32 1.1754944e-38, %v6068
  %v6070 = vsel %vm6067, %v6069, %v6065
  %v6071 = vmul.f32 %v6046, %v6070
  %v6072 = vmin.f32 %v6071, 1.0
  %v6073 = vmax.f32 %v6072, -1.0
  %v6074 = vmul.f32 %v6019, %v6019
  %v6075 = vmin.f32 16.0, %v6074
  %v6076 = vmul.f32 %v6075, 2.1237322e-06
  %v6077 = vadd.f32 %v6076, 0.00028619796
  %v6078 = vmul.f32 %v6075, %v6077
  %v6079 = vadd.f32 %v6078, 0.0036580483
  %v6080 = vmul.f32 %v6075, %v6079
  %v6081 = vadd.f32 %v6080, 0.05243302
  %v6082 = vmul.f32 %v6075, %v6081
  %v6083 = vadd.f32 %v6082, 0.18741608
  %v6084 = vmul.f32 %v6075, %v6083
  %v6085 = vadd.f32 %v6084, 1.1283791
  %v6086 = vmul.f32 %v6019, %v6085
  %v6087 = vmul.f32 %v6075, 3.8918573e-05
  %v6088 = vadd.f32 %v6087, 0.001143296
  %v6089 = vmul.f32 %v6075, %v6088
  %v6090 = vadd.f32 %v6089, 0.014752088
  %v6091 = vmul.f32 %v6075, %v6090
  %v6092 = vadd.f32 %v6091, 0.112945676
  %v6093 = vmul.f32 %v6075, %v6092
  %v6094 = vadd.f32 %v6093, 0.4994258
  %v6095 = vmul.f32 %v6075, %v6094
  %v6096 = vadd.f32 %v6095, 1.0
  %v6097 = vrcp.pop %v6096
  %v6098 = vmul.f32 %v6096, %v6097
  %v6099 = vsub.f32 1.0, %v6098
  %v6100 = vmul.f32 %v6097, %v6099
  %v6101 = vadd.f32 %v6097, %v6100
  %vm6102 = vweird.f32 %v6096
  %vm6103 = vweird.f32 %v6097
  %vm6104 = vmor %vm6102, %vm6103
  %v6105 = vsel %vm6104, %v6097, %v6101
  %v6106 = vand.u32 2147483647, %v6096
  %vm6107 = vcmp.eq.f32.partialorder %v6106, 8.507059e+37
  %v6108 = vand.u32 %v6096, 2147483648
  %v6109 = vor.u32 1.1754944e-38, %v6108
  %v6110 = vsel %vm6107, %v6109, %v6105
  %v6111 = vmul.f32 %v6086, %v6110
  %v6112 = vmin.f32 %v6111, 1.0
  %v6113 = vmax.f32 %v6112, -1.0
  %v6114 = vmul.f32 %v6020, %v6020
  %v6115 = vmin.f32 16.0, %v6114
  %v6116 = vmul.f32 %v6115, 2.1237322e-06
  %v6117 = vadd.f32 %v6116, 0.00028619796
  %v6118 = vmul.f32 %v6115, %v6117
  %v6119 = vadd.f32 %v6118, 0.0036580483
  %v6120 = vmul.f32 %v6115, %v6119
  %v6121 = vadd.f32 %v6120, 0.05243302
  %v6122 = vmul.f32 %v6115, %v6121
  %v6123 = vadd.f32 %v6122, 0.18741608
  %v6124 = vmul.f32 %v6115, %v6123
  %v6125 = vadd.f32 %v6124, 1.1283791
  %v6126 = vmul.f32 %v6020, %v6125
  %v6127 = vmul.f32 %v6115, 3.8918573e-05
  %v6128 = vadd.f32 %v6127, 0.001143296
  %v6129 = vmul.f32 %v6115, %v6128
  %v6130 = vadd.f32 %v6129, 0.014752088
  %v6131 = vmul.f32 %v6115, %v6130
  %v6132 = vadd.f32 %v6131, 0.112945676
  %v6133 = vmul.f32 %v6115, %v6132
  %v6134 = vadd.f32 %v6133, 0.4994258
  %v6135 = vmul.f32 %v6115, %v6134
  %v6136 = vadd.f32 %v6135, 1.0
  %v6137 = vrcp.pop %v6136
  %v6138 = vmul.f32 %v6136, %v6137
  %v6139 = vsub.f32 1.0, %v6138
  %v6140 = vmul.f32 %v6137, %v6139
  %v6141 = vadd.f32 %v6137, %v6140
  %vm6142 = vweird.f32 %v6136
  %vm6143 = vweird.f32 %v6137
  %vm6144 = vmor %vm6142, %vm6143
  %v6145 = vsel %vm6144, %v6137, %v6141
  %v6146 = vand.u32 2147483647, %v6136
  %vm6147 = vcmp.eq.f32.partialorder %v6146, 8.507059e+37
  %v6148 = vand.u32 %v6136, 2147483648
  %v6149 = vor.u32 1.1754944e-38, %v6148
  %v6150 = vsel %vm6147, %v6149, %v6145
  %v6151 = vmul.f32 %v6126, %v6150
  %v6152 = vmin.f32 %v6151, 1.0
  %v6153 = vmax.f32 %v6152, -1.0
  %v6154 = vmul.f32 %v6021, %v6021
  %v6155 = vmin.f32 16.0, %v6154
  %v6156 = vmul.f32 %v6155, 2.1237322e-06
  %v6157 = vadd.f32 %v6156, 0.00028619796
  %v6158 = vmul.f32 %v6155, %v6157
  %v6159 = vadd.f32 %v6158, 0.0036580483
  %v6160 = vmul.f32 %v6155, %v6159
  %v6161 = vadd.f32 %v6160, 0.05243302
  %v6162 = vmul.f32 %v6155, %v6161
  %v6163 = vadd.f32 %v6162, 0.18741608
  %v6164 = vmul.f32 %v6155, %v6163
  %v6165 = vadd.f32 %v6164, 1.1283791
  %v6166 = vmul.f32 %v6021, %v6165
  %v6167 = vmul.f32 %v6155, 3.8918573e-05
  %v6168 = vadd.f32 %v6167, 0.001143296
  %v6169 = vmul.f32 %v6155, %v6168
  %v6170 = vadd.f32 %v6169, 0.014752088
  %v6171 = vmul.f32 %v6155, %v6170
  %v6172 = vadd.f32 %v6171, 0.112945676
  %v6173 = vmul.f32 %v6155, %v6172
  %v6174 = vadd.f32 %v6173, 0.4994258
  %v6175 = vmul.f32 %v6155, %v6174
  %v6176 = vadd.f32 %v6175, 1.0
  %v6177 = vrcp.pop %v6176
  %v6178 = vmul.f32 %v6176, %v6177
  %v6179 = vsub.f32 1.0, %v6178
  %v6180 = vmul.f32 %v6177, %v6179
  %v6181 = vadd.f32 %v6177, %v6180
  %vm6182 = vweird.f32 %v6176
  %vm6183 = vweird.f32 %v6177
  %vm6184 = vmor %vm6182, %vm6183
  %v6185 = vsel %vm6184, %v6177, %v6181
  %v6186 = vand.u32 2147483647, %v6176
  %vm6187 = vcmp.eq.f32.partialorder %v6186, 8.507059e+37
  %v6188 = vand.u32 %v6176, 2147483648
  %v6189 = vor.u32 1.1754944e-38, %v6188
  %v6190 = vsel %vm6187, %v6189, %v6185
  %v6191 = vmul.f32 %v6166, %v6190
  %v6192 = vmin.f32 %v6191, 1.0
  %v6193 = vmax.f32 %v6192, -1.0
  %v6194 = vmul.f32 %v6022, %v6022
  %v6195 = vmin.f32 16.0, %v6194
  %v6196 = vmul.f32 %v6195, 2.1237322e-06
  %v6197 = vadd.f32 %v6196, 0.00028619796
  %v6198 = vmul.f32 %v6195, %v6197
  %v6199 = vadd.f32 %v6198, 0.0036580483
  %v6200 = vmul.f32 %v6195, %v6199
  %v6201 = vadd.f32 %v6200, 0.05243302
  %v6202 = vmul.f32 %v6195, %v6201
  %v6203 = vadd.f32 %v6202, 0.18741608
  %v6204 = vmul.f32 %v6195, %v6203
  %v6205 = vadd.f32 %v6204, 1.1283791
  %v6206 = vmul.f32 %v6022, %v6205
  %v6207 = vmul.f32 %v6195, 3.8918573e-05
  %v6208 = vadd.f32 %v6207, 0.001143296
  %v6209 = vmul.f32 %v6195, %v6208
  %v6210 = vadd.f32 %v6209, 0.014752088
  %v6211 = vmul.f32 %v6195, %v6210
  %v6212 = vadd.f32 %v6211, 0.112945676
  %v6213 = vmul.f32 %v6195, %v6212
  %v6214 = vadd.f32 %v6213, 0.4994258
  %v6215 = vmul.f32 %v6195, %v6214
  %v6216 = vadd.f32 %v6215, 1.0
  %v6217 = vrcp.pop %v6216
  %v6218 = vmul.f32 %v6216, %v6217
  %v6219 = vsub.f32 1.0, %v6218
  %v6220 = vmul.f32 %v6217, %v6219
  %v6221 = vadd.f32 %v6217, %v6220
  %vm6222 = vweird.f32 %v6216
  %vm6223 = vweird.f32 %v6217
  %vm6224 = vmor %vm6222, %vm6223
  %v6225 = vsel %vm6224, %v6217, %v6221
  %v6226 = vand.u32 2147483647, %v6216
  %vm6227 = vcmp.eq.f32.partialorder %v6226, 8.507059e+37
  %v6228 = vand.u32 %v6216, 2147483648
  %v6229 = vor.u32 1.1754944e-38, %v6228
  %v6230 = vsel %vm6227, %v6229, %v6225
  %v6231 = vmul.f32 %v6206, %v6230
  %v6232 = vmin.f32 %v6231, 1.0
  %v6233 = vmax.f32 %v6232, -1.0
  %v6234 = vmul.f32 %v6023, %v6023
  %v6235 = vmin.f32 16.0, %v6234
  %v6236 = vmul.f32 %v6235, 2.1237322e-06
  %v6237 = vadd.f32 %v6236, 0.00028619796
  %v6238 = vmul.f32 %v6235, %v6237
  %v6239 = vadd.f32 %v6238, 0.0036580483
  %v6240 = vmul.f32 %v6235, %v6239
  %v6241 = vadd.f32 %v6240, 0.05243302
  %v6242 = vmul.f32 %v6235, %v6241
  %v6243 = vadd.f32 %v6242, 0.18741608
  %v6244 = vmul.f32 %v6235, %v6243
  %v6245 = vadd.f32 %v6244, 1.1283791
  %v6246 = vmul.f32 %v6023, %v6245
  %v6247 = vmul.f32 %v6235, 3.8918573e-05
  %v6248 = vadd.f32 %v6247, 0.001143296
  %v6249 = vmul.f32 %v6235, %v6248
  %v6250 = vadd.f32 %v6249, 0.014752088
  %v6251 = vmul.f32 %v6235, %v6250
  %v6252 = vadd.f32 %v6251, 0.112945676
  %v6253 = vmul.f32 %v6235, %v6252
  %v6254 = vadd.f32 %v6253, 0.4994258
  %v6255 = vmul.f32 %v6235, %v6254
  %v6256 = vadd.f32 %v6255, 1.0
  %v6257 = vrcp.pop %v6256
  %v6258 = vmul.f32 %v6256, %v6257
  %v6259 = vsub.f32 1.0, %v6258
  %v6260 = vmul.f32 %v6257, %v6259
  %v6261 = vadd.f32 %v6257, %v6260
  %vm6262 = vweird.f32 %v6256
  %vm6263 = vweird.f32 %v6257
  %vm6264 = vmor %vm6262, %vm6263
  %v6265 = vsel %vm6264, %v6257, %v6261
  %v6266 = vand.u32 2147483647, %v6256
  %vm6267 = vcmp.eq.f32.partialorder %v6266, 8.507059e+37
  %v6268 = vand.u32 %v6256, 2147483648
  %v6269 = vor.u32 1.1754944e-38, %v6268
  %v6270 = vsel %vm6267, %v6269, %v6265
  %v6271 = vmul.f32 %v6246, %v6270
  %v6272 = vmin.f32 %v6271, 1.0
  %v6273 = vmax.f32 %v6272, -1.0
  %v6274 = vmul.f32 %v6024, %v6024
  %v6275 = vmin.f32 16.0, %v6274
  %v6276 = vmul.f32 %v6275, 2.1237322e-06
  %v6277 = vadd.f32 %v6276, 0.00028619796
  %v6278 = vmul.f32 %v6275, %v6277
  %v6279 = vadd.f32 %v6278, 0.0036580483
  %v6280 = vmul.f32 %v6275, %v6279
  %v6281 = vadd.f32 %v6280, 0.05243302
  %v6282 = vmul.f32 %v6275, %v6281
  %v6283 = vadd.f32 %v6282, 0.18741608
  %v6284 = vmul.f32 %v6275, %v6283
  %v6285 = vadd.f32 %v6284, 1.1283791
  %v6286 = vmul.f32 %v6024, %v6285
  %v6287 = vmul.f32 %v6275, 3.8918573e-05
  %v6288 = vadd.f32 %v6287, 0.001143296
  %v6289 = vmul.f32 %v6275, %v6288
  %v6290 = vadd.f32 %v6289, 0.014752088
  %v6291 = vmul.f32 %v6275, %v6290
  %v6292 = vadd.f32 %v6291, 0.112945676
  %v6293 = vmul.f32 %v6275, %v6292
  %v6294 = vadd.f32 %v6293, 0.4994258
  %v6295 = vmul.f32 %v6275, %v6294
  %v6296 = vadd.f32 %v6295, 1.0
  %v6297 = vrcp.pop %v6296
  %v6298 = vmul.f32 %v6296, %v6297
  %v6299 = vsub.f32 1.0, %v6298
  %v6300 = vmul.f32 %v6297, %v6299
  %v6301 = vadd.f32 %v6297, %v6300
  %vm6302 = vweird.f32 %v6296
  %vm6303 = vweird.f32 %v6297
  %vm6304 = vmor %vm6302, %vm6303
  %v6305 = vsel %vm6304, %v6297, %v6301
  %v6306 = vand.u32 2147483647, %v6296
  %vm6307 = vcmp.eq.f32.partialorder %v6306, 8.507059e+37
  %v6308 = vand.u32 %v6296, 2147483648
  %v6309 = vor.u32 1.1754944e-38, %v6308
  %v6310 = vsel %vm6307, %v6309, %v6305
  %v6311 = vmul.f32 %v6286, %v6310
  %v6312 = vmin.f32 %v6311, 1.0
  %v6313 = vmax.f32 %v6312, -1.0
  %v6314 = vmul.f32 %v6025, %v6025
  %v6315 = vmin.f32 16.0, %v6314
  %v6316 = vmul.f32 %v6315, 2.1237322e-06
  %v6317 = vadd.f32 %v6316, 0.00028619796
  %v6318 = vmul.f32 %v6315, %v6317
  %v6319 = vadd.f32 %v6318, 0.0036580483
  %v6320 = vmul.f32 %v6315, %v6319
  %v6321 = vadd.f32 %v6320, 0.05243302
  %v6322 = vmul.f32 %v6315, %v6321
  %v6323 = vadd.f32 %v6322, 0.18741608
  %v6324 = vmul.f32 %v6315, %v6323
  %v6325 = vadd.f32 %v6324, 1.1283791
  %v6326 = vmul.f32 %v6025, %v6325
  %v6327 = vmul.f32 %v6315, 3.8918573e-05
  %v6328 = vadd.f32 %v6327, 0.001143296
  %v6329 = vmul.f32 %v6315, %v6328
  %v6330 = vadd.f32 %v6329, 0.014752088
  %v6331 = vmul.f32 %v6315, %v6330
  %v6332 = vadd.f32 %v6331, 0.112945676
  %v6333 = vmul.f32 %v6315, %v6332
  %v6334 = vadd.f32 %v6333, 0.4994258
  %v6335 = vmul.f32 %v6315, %v6334
  %v6336 = vadd.f32 %v6335, 1.0
  %v6337 = vrcp.pop %v6336
  %v6338 = vmul.f32 %v6336, %v6337
  %v6339 = vsub.f32 1.0, %v6338
  %v6340 = vmul.f32 %v6337, %v6339
  %v6341 = vadd.f32 %v6337, %v6340
  %vm6342 = vweird.f32 %v6336
  %vm6343 = vweird.f32 %v6337
  %vm6344 = vmor %vm6342, %vm6343
  %v6345 = vsel %vm6344, %v6337, %v6341
  %v6346 = vand.u32 2147483647, %v6336
  %vm6347 = vcmp.eq.f32.partialorder %v6346, 8.507059e+37
  %v6348 = vand.u32 %v6336, 2147483648
  %v6349 = vor.u32 1.1754944e-38, %v6348
  %v6350 = vsel %vm6347, %v6349, %v6345
  %v6351 = vmul.f32 %v6326, %v6350
  %v6352 = vmin.f32 %v6351, 1.0
  %v6353 = vmax.f32 %v6352, -1.0
  %v6354 = vmul.f32 %v6026, %v6026
  %v6355 = vmin.f32 16.0, %v6354
  %v6356 = vmul.f32 %v6355, 2.1237322e-06
  %v6357 = vadd.f32 %v6356, 0.00028619796
  %v6358 = vmul.f32 %v6355, %v6357
  %v6359 = vadd.f32 %v6358, 0.0036580483
  %v6360 = vmul.f32 %v6355, %v6359
  %v6361 = vadd.f32 %v6360, 0.05243302
  %v6362 = vmul.f32 %v6355, %v6361
  %v6363 = vadd.f32 %v6362, 0.18741608
  %v6364 = vmul.f32 %v6355, %v6363
  %v6365 = vadd.f32 %v6364, 1.1283791
  %v6366 = vmul.f32 %v6026, %v6365
  %v6367 = vmul.f32 %v6355, 3.8918573e-05
  %v6368 = vadd.f32 %v6367, 0.001143296
  %v6369 = vmul.f32 %v6355, %v6368
  %v6370 = vadd.f32 %v6369, 0.014752088
  %v6371 = vmul.f32 %v6355, %v6370
  %v6372 = vadd.f32 %v6371, 0.112945676
  %v6373 = vmul.f32 %v6355, %v6372
  %v6374 = vadd.f32 %v6373, 0.4994258
  %v6375 = vmul.f32 %v6355, %v6374
  %v6376 = vadd.f32 %v6375, 1.0
  %v6377 = vrcp.pop %v6376
  %v6378 = vmul.f32 %v6376, %v6377
  %v6379 = vsub.f32 1.0, %v6378
  %v6380 = vmul.f32 %v6377, %v6379
  %v6381 = vadd.f32 %v6377, %v6380
  %vm6382 = vweird.f32 %v6376
  %vm6383 = vweird.f32 %v6377
  %vm6384 = vmor %vm6382, %vm6383
  %v6385 = vsel %vm6384, %v6377, %v6381
  %v6386 = vand.u32 2147483647, %v6376
  %vm6387 = vcmp.eq.f32.partialorder %v6386, 8.507059e+37
  %v6388 = vand.u32 %v6376, 2147483648
  %v6389 = vor.u32 1.1754944e-38, %v6388
  %v6390 = vsel %vm6387, %v6389, %v6385
  %v6391 = vmul.f32 %v6366, %v6390
  %v6392 = vmin.f32 %v6391, 1.0
  %v6393 = vmax.f32 %v6392, -1.0
  %v6394 = vmul.f32 %v6027, %v6027
  %v6395 = vmin.f32 16.0, %v6394
  %v6396 = vmul.f32 %v6395, 2.1237322e-06
  %v6397 = vadd.f32 %v6396, 0.00028619796
  %v6398 = vmul.f32 %v6395, %v6397
  %v6399 = vadd.f32 %v6398, 0.0036580483
  %v6400 = vmul.f32 %v6395, %v6399
  %v6401 = vadd.f32 %v6400, 0.05243302
  %v6402 = vmul.f32 %v6395, %v6401
  %v6403 = vadd.f32 %v6402, 0.18741608
  %v6404 = vmul.f32 %v6395, %v6403
  %v6405 = vadd.f32 %v6404, 1.1283791
  %v6406 = vmul.f32 %v6027, %v6405
  %v6407 = vmul.f32 %v6395, 3.8918573e-05
  %v6408 = vadd.f32 %v6407, 0.001143296
  %v6409 = vmul.f32 %v6395, %v6408
  %v6410 = vadd.f32 %v6409, 0.014752088
  %v6411 = vmul.f32 %v6395, %v6410
  %v6412 = vadd.f32 %v6411, 0.112945676
  %v6413 = vmul.f32 %v6395, %v6412
  %v6414 = vadd.f32 %v6413, 0.4994258
  %v6415 = vmul.f32 %v6395, %v6414
  %v6416 = vadd.f32 %v6415, 1.0
  %v6417 = vrcp.pop %v6416
  %v6418 = vmul.f32 %v6416, %v6417
  %v6419 = vsub.f32 1.0, %v6418
  %v6420 = vmul.f32 %v6417, %v6419
  %v6421 = vadd.f32 %v6417, %v6420
  %vm6422 = vweird.f32 %v6416
  %vm6423 = vweird.f32 %v6417
  %vm6424 = vmor %vm6422, %vm6423
  %v6425 = vsel %vm6424, %v6417, %v6421
  %v6426 = vand.u32 2147483647, %v6416
  %vm6427 = vcmp.eq.f32.partialorder %v6426, 8.507059e+37
  %v6428 = vand.u32 %v6416, 2147483648
  %v6429 = vor.u32 1.1754944e-38, %v6428
  %v6430 = vsel %vm6427, %v6429, %v6425
  %v6431 = vmul.f32 %v6406, %v6430
  %v6432 = vmin.f32 %v6431, 1.0
  %v6433 = vmax.f32 %v6432, -1.0
  %v6434 = vmul.f32 %v6028, %v6028
  %v6435 = vmin.f32 16.0, %v6434
  %v6436 = vmul.f32 %v6435, 2.1237322e-06
  %v6437 = vadd.f32 %v6436, 0.00028619796
  %v6438 = vmul.f32 %v6435, %v6437
  %v6439 = vadd.f32 %v6438, 0.0036580483
  %v6440 = vmul.f32 %v6435, %v6439
  %v6441 = vadd.f32 %v6440, 0.05243302
  %v6442 = vmul.f32 %v6435, %v6441
  %v6443 = vadd.f32 %v6442, 0.18741608
  %v6444 = vmul.f32 %v6435, %v6443
  %v6445 = vadd.f32 %v6444, 1.1283791
  %v6446 = vmul.f32 %v6028, %v6445
  %v6447 = vmul.f32 %v6435, 3.8918573e-05
  %v6448 = vadd.f32 %v6447, 0.001143296
  %v6449 = vmul.f32 %v6435, %v6448
  %v6450 = vadd.f32 %v6449, 0.014752088
  %v6451 = vmul.f32 %v6435, %v6450
  %v6452 = vadd.f32 %v6451, 0.112945676
  %v6453 = vmul.f32 %v6435, %v6452
  %v6454 = vadd.f32 %v6453, 0.4994258
  %v6455 = vmul.f32 %v6435, %v6454
  %v6456 = vadd.f32 %v6455, 1.0
  %v6457 = vrcp.pop %v6456
  %v6458 = vmul.f32 %v6456, %v6457
  %v6459 = vsub.f32 1.0, %v6458
  %v6460 = vmul.f32 %v6457, %v6459
  %v6461 = vadd.f32 %v6457, %v6460
  %vm6462 = vweird.f32 %v6456
  %vm6463 = vweird.f32 %v6457
  %vm6464 = vmor %vm6462, %vm6463
  %v6465 = vsel %vm6464, %v6457, %v6461
  %v6466 = vand.u32 2147483647, %v6456
  %vm6467 = vcmp.eq.f32.partialorder %v6466, 8.507059e+37
  %v6468 = vand.u32 %v6456, 2147483648
  %v6469 = vor.u32 1.1754944e-38, %v6468
  %v6470 = vsel %vm6467, %v6469, %v6465
  %v6471 = vmul.f32 %v6446, %v6470
  %v6472 = vmin.f32 %v6471, 1.0
  %v6473 = vmax.f32 %v6472, -1.0
  %v6474 = vmul.f32 %v6029, %v6029
  %v6475 = vmin.f32 16.0, %v6474
  %v6476 = vmul.f32 %v6475, 2.1237322e-06
  %v6477 = vadd.f32 %v6476, 0.00028619796
  %v6478 = vmul.f32 %v6475, %v6477
  %v6479 = vadd.f32 %v6478, 0.0036580483
  %v6480 = vmul.f32 %v6475, %v6479
  %v6481 = vadd.f32 %v6480, 0.05243302
  %v6482 = vmul.f32 %v6475, %v6481
  %v6483 = vadd.f32 %v6482, 0.18741608
  %v6484 = vmul.f32 %v6475, %v6483
  %v6485 = vadd.f32 %v6484, 1.1283791
  %v6486 = vmul.f32 %v6029, %v6485
  %v6487 = vmul.f32 %v6475, 3.8918573e-05
  %v6488 = vadd.f32 %v6487, 0.001143296
  %v6489 = vmul.f32 %v6475, %v6488
  %v6490 = vadd.f32 %v6489, 0.014752088
  %v6491 = vmul.f32 %v6475, %v6490
  %v6492 = vadd.f32 %v6491, 0.112945676
  %v6493 = vmul.f32 %v6475, %v6492
  %v6494 = vadd.f32 %v6493, 0.4994258
  %v6495 = vmul.f32 %v6475, %v6494
  %v6496 = vadd.f32 %v6495, 1.0
  %v6497 = vrcp.pop %v6496
  %v6498 = vmul.f32 %v6496, %v6497
  %v6499 = vsub.f32 1.0, %v6498
  %v6500 = vmul.f32 %v6497, %v6499
  %v6501 = vadd.f32 %v6497, %v6500
  %vm6502 = vweird.f32 %v6496
  %vm6503 = vweird.f32 %v6497
  %vm6504 = vmor %vm6502, %vm6503
  %v6505 = vsel %vm6504, %v6497, %v6501
  %v6506 = vand.u32 2147483647, %v6496
  %vm6507 = vcmp.eq.f32.partialorder %v6506, 8.507059e+37
  %v6508 = vand.u32 %v6496, 2147483648
  %v6509 = vor.u32 1.1754944e-38, %v6508
  %v6510 = vsel %vm6507, %v6509, %v6505
  %v6511 = vmul.f32 %v6486, %v6510
  %v6512 = vmin.f32 %v6511, 1.0
  %v6513 = vmax.f32 %v6512, -1.0
  %v6514 = vmul.f32 %v6030, %v6030
  %v6515 = vmin.f32 16.0, %v6514
  %v6516 = vmul.f32 %v6515, 2.1237322e-06
  %v6517 = vadd.f32 %v6516, 0.00028619796
  %v6518 = vmul.f32 %v6515, %v6517
  %v6519 = vadd.f32 %v6518, 0.0036580483
  %v6520 = vmul.f32 %v6515, %v6519
  %v6521 = vadd.f32 %v6520, 0.05243302
  %v6522 = vmul.f32 %v6515, %v6521
  %v6523 = vadd.f32 %v6522, 0.18741608
  %v6524 = vmul.f32 %v6515, %v6523
  %v6525 = vadd.f32 %v6524, 1.1283791
  %v6526 = vmul.f32 %v6030, %v6525
  %v6527 = vmul.f32 %v6515, 3.8918573e-05
  %v6528 = vadd.f32 %v6527, 0.001143296
  %v6529 = vmul.f32 %v6515, %v6528
  %v6530 = vadd.f32 %v6529, 0.014752088
  %v6531 = vmul.f32 %v6515, %v6530
  %v6532 = vadd.f32 %v6531, 0.112945676
  %v6533 = vmul.f32 %v6515, %v6532
  %v6534 = vadd.f32 %v6533, 0.4994258
  %v6535 = vmul.f32 %v6515, %v6534
  %v6536 = vadd.f32 %v6535, 1.0
  %v6537 = vrcp.pop %v6536
  %v6538 = vmul.f32 %v6536, %v6537
  %v6539 = vsub.f32 1.0, %v6538
  %v6540 = vmul.f32 %v6537, %v6539
  %v6541 = vadd.f32 %v6537, %v6540
  %vm6542 = vweird.f32 %v6536
  %vm6543 = vweird.f32 %v6537
  %vm6544 = vmor %vm6542, %vm6543
  %v6545 = vsel %vm6544, %v6537, %v6541
  %v6546 = vand.u32 2147483647, %v6536
  %vm6547 = vcmp.eq.f32.partialorder %v6546, 8.507059e+37
  %v6548 = vand.u32 %v6536, 2147483648
  %v6549 = vor.u32 1.1754944e-38, %v6548
  %v6550 = vsel %vm6547, %v6549, %v6545
  %v6551 = vmul.f32 %v6526, %v6550
  %v6552 = vmin.f32 %v6551, 1.0
  %v6553 = vmax.f32 %v6552, -1.0
  %v6554 = vmul.f32 %v6031, %v6031
  %v6555 = vmin.f32 16.0, %v6554
  %v6556 = vmul.f32 %v6555, 2.1237322e-06
  %v6557 = vadd.f32 %v6556, 0.00028619796
  %v6558 = vmul.f32 %v6555, %v6557
  %v6559 = vadd.f32 %v6558, 0.0036580483
  %v6560 = vmul.f32 %v6555, %v6559
  %v6561 = vadd.f32 %v6560, 0.05243302
  %v6562 = vmul.f32 %v6555, %v6561
  %v6563 = vadd.f32 %v6562, 0.18741608
  %v6564 = vmul.f32 %v6555, %v6563
  %v6565 = vadd.f32 %v6564, 1.1283791
  %v6566 = vmul.f32 %v6031, %v6565
  %v6567 = vmul.f32 %v6555, 3.8918573e-05
  %v6568 = vadd.f32 %v6567, 0.001143296
  %v6569 = vmul.f32 %v6555, %v6568
  %v6570 = vadd.f32 %v6569, 0.014752088
  %v6571 = vmul.f32 %v6555, %v6570
  %v6572 = vadd.f32 %v6571, 0.112945676
  %v6573 = vmul.f32 %v6555, %v6572
  %v6574 = vadd.f32 %v6573, 0.4994258
  %v6575 = vmul.f32 %v6555, %v6574
  %v6576 = vadd.f32 %v6575, 1.0
  %v6577 = vrcp.pop %v6576
  %v6578 = vmul.f32 %v6576, %v6577
  %v6579 = vsub.f32 1.0, %v6578
  %v6580 = vmul.f32 %v6577, %v6579
  %v6581 = vadd.f32 %v6577, %v6580
  %vm6582 = vweird.f32 %v6576
  %vm6583 = vweird.f32 %v6577
  %vm6584 = vmor %vm6582, %vm6583
  %v6585 = vsel %vm6584, %v6577, %v6581
  %v6586 = vand.u32 2147483647, %v6576
  %vm6587 = vcmp.eq.f32.partialorder %v6586, 8.507059e+37
  %v6588 = vand.u32 %v6576, 2147483648
  %v6589 = vor.u32 1.1754944e-38, %v6588
  %v6590 = vsel %vm6587, %v6589, %v6585
  %v6591 = vmul.f32 %v6566, %v6590
  %v6592 = vmin.f32 %v6591, 1.0
  %v6593 = vmax.f32 %v6592, -1.0
  %v6594 = vmul.f32 %v6032, %v6032
  %v6595 = vmin.f32 16.0, %v6594
  %v6596 = vmul.f32 %v6595, 2.1237322e-06
  %v6597 = vadd.f32 %v6596, 0.00028619796
  %v6598 = vmul.f32 %v6595, %v6597
  %v6599 = vadd.f32 %v6598, 0.0036580483
  %v6600 = vmul.f32 %v6595, %v6599
  %v6601 = vadd.f32 %v6600, 0.05243302
  %v6602 = vmul.f32 %v6595, %v6601
  %v6603 = vadd.f32 %v6602, 0.18741608
  %v6604 = vmul.f32 %v6595, %v6603
  %v6605 = vadd.f32 %v6604, 1.1283791
  %v6606 = vmul.f32 %v6032, %v6605
  %v6607 = vmul.f32 %v6595, 3.8918573e-05
  %v6608 = vadd.f32 %v6607, 0.001143296
  %v6609 = vmul.f32 %v6595, %v6608
  %v6610 = vadd.f32 %v6609, 0.014752088
  %v6611 = vmul.f32 %v6595, %v6610
  %v6612 = vadd.f32 %v6611, 0.112945676
  %v6613 = vmul.f32 %v6595, %v6612
  %v6614 = vadd.f32 %v6613, 0.4994258
  %v6615 = vmul.f32 %v6595, %v6614
  %v6616 = vadd.f32 %v6615, 1.0
  %v6617 = vrcp.pop %v6616
  %v6618 = vmul.f32 %v6616, %v6617
  %v6619 = vsub.f32 1.0, %v6618
  %v6620 = vmul.f32 %v6617, %v6619
  %v6621 = vadd.f32 %v6617, %v6620
  %vm6622 = vweird.f32 %v6616
  %vm6623 = vweird.f32 %v6617
  %vm6624 = vmor %vm6622, %vm6623
  %v6625 = vsel %vm6624, %v6617, %v6621
  %v6626 = vand.u32 2147483647, %v6616
  %vm6627 = vcmp.eq.f32.partialorder %v6626, 8.507059e+37
  %v6628 = vand.u32 %v6616, 2147483648
  %v6629 = vor.u32 1.1754944e-38, %v6628
  %v6630 = vsel %vm6627, %v6629, %v6625
  %v6631 = vmul.f32 %v6606, %v6630
  %v6632 = vmin.f32 %v6631, 1.0
  %v6633 = vmax.f32 %v6632, -1.0
  %v6634 = vmul.f32 %v6033, %v6033
  %v6635 = vmin.f32 16.0, %v6634
  %v6636 = vmul.f32 %v6635, 2.1237322e-06
  %v6637 = vadd.f32 %v6636, 0.00028619796
  %v6638 = vmul.f32 %v6635, %v6637
  %v6639 = vadd.f32 %v6638, 0.0036580483
  %v6640 = vmul.f32 %v6635, %v6639
  %v6641 = vadd.f32 %v6640, 0.05243302
  %v6642 = vmul.f32 %v6635, %v6641
  %v6643 = vadd.f32 %v6642, 0.18741608
  %v6644 = vmul.f32 %v6635, %v6643
  %v6645 = vadd.f32 %v6644, 1.1283791
  %v6646 = vmul.f32 %v6033, %v6645
  %v6647 = vmul.f32 %v6635, 3.8918573e-05
  %v6648 = vadd.f32 %v6647, 0.001143296
  %v6649 = vmul.f32 %v6635, %v6648
  %v6650 = vadd.f32 %v6649, 0.014752088
  %v6651 = vmul.f32 %v6635, %v6650
  %v6652 = vadd.f32 %v6651, 0.112945676
  %v6653 = vmul.f32 %v6635, %v6652
  %v6654 = vadd.f32 %v6653, 0.4994258
  %v6655 = vmul.f32 %v6635, %v6654
  %v6656 = vadd.f32 %v6655, 1.0
  %v6657 = vrcp.pop %v6656
  %v6658 = vmul.f32 %v6656, %v6657
  %v6659 = vsub.f32 1.0, %v6658
  %v6660 = vmul.f32 %v6657, %v6659
  %v6661 = vadd.f32 %v6657, %v6660
  %vm6662 = vweird.f32 %v6656
  %vm6663 = vweird.f32 %v6657
  %vm6664 = vmor %vm6662, %vm6663
  %v6665 = vsel %vm6664, %v6657, %v6661
  %v6666 = vand.u32 2147483647, %v6656
  %vm6667 = vcmp.eq.f32.partialorder %v6666, 8.507059e+37
  %v6668 = vand.u32 %v6656, 2147483648
  %v6669 = vor.u32 1.1754944e-38, %v6668
  %v6670 = vsel %vm6667, %v6669, %v6665
  %v6671 = vmul.f32 %v6646, %v6670
  %v6672 = vmin.f32 %v6671, 1.0
  %v6673 = vmax.f32 %v6672, -1.0
  %v6674 = vadd.f32 %v6073, 1.0
  %v6675 = vadd.f32 %v6113, 1.0
  %v6676 = vadd.f32 %v6153, 1.0
  %v6677 = vadd.f32 %v6193, 1.0
  %v6678 = vadd.f32 %v6233, 1.0
  %v6679 = vadd.f32 %v6273, 1.0
  %v6680 = vadd.f32 %v6313, 1.0
  %v6681 = vadd.f32 %v6353, 1.0
  %v6682 = vadd.f32 %v6393, 1.0
  %v6683 = vadd.f32 %v6433, 1.0
  %v6684 = vadd.f32 %v6473, 1.0
  %v6685 = vadd.f32 %v6513, 1.0
  %v6686 = vadd.f32 %v6553, 1.0
  %v6687 = vadd.f32 %v6593, 1.0
  %v6688 = vadd.f32 %v6633, 1.0
  %v6689 = vadd.f32 %v6673, 1.0
  %v6690 = vmul.f32 %v6002, %v6674
  %v6691 = vmul.f32 %v6003, %v6675
  %v6692 = vmul.f32 %v6004, %v6676
  %v6693 = vmul.f32 %v6005, %v6677
  %v6694 = vmul.f32 %v6006, %v6678
  %v6695 = vmul.f32 %v6007, %v6679
  %v6696 = vmul.f32 %v6008, %v6680
  %v6697 = vmul.f32 %v6009, %v6681
  %v6698 = vmul.f32 %v6010, %v6682
  %v6699 = vmul.f32 %v6011, %v6683
  %v6700 = vmul.f32 %v6012, %v6684
  %v6701 = vmul.f32 %v6013, %v6685
  %v6702 = vmul.f32 %v6014, %v6686
  %v6703 = vmul.f32 %v6015, %v6687
  %v6704 = vmul.f32 %v6016, %v6688
  %v6705 = vmul.f32 %v6017, %v6689
  %6706 = vst.msk [vmem:[#allocation4] sm:$0xff] %vm3315, %v6690
  %6707 = vst.msk [vmem:[#allocation4 + $0x8] sm:$0xff] %vm3315, %v6691
  %6708 = vst.msk [vmem:[#allocation4 + $0x10] sm:$0xff] %vm3315, %v6692
  %6709 = vst.msk [vmem:[#allocation4 + $0x18] sm:$0xff] %vm3315, %v6693
  %6710 = vst.msk [vmem:[#allocation4 + $0x20] sm:$0xff] %vm3315, %v6694
  %6711 = vst.msk [vmem:[#allocation4 + $0x28] sm:$0xff] %vm3315, %v6695
  %6712 = vst.msk [vmem:[#allocation4 + $0x30] sm:$0xff] %vm3315, %v6696
  %6713 = vst.msk [vmem:[#allocation4 + $0x38] sm:$0xff] %vm3315, %v6697
  %6714 = vst.msk [vmem:[#allocation4 + $0x40] sm:$0xff] %vm3315, %v6698
  %6715 = vst.msk [vmem:[#allocation4 + $0x48] sm:$0xff] %vm3315, %v6699
  %6716 = vst.msk [vmem:[#allocation4 + $0x50] sm:$0xff] %vm3315, %v6700
  %6717 = vst.msk [vmem:[#allocation4 + $0x58] sm:$0xff] %vm3315, %v6701
  %6718 = vst.msk [vmem:[#allocation4 + $0x60] sm:$0xff] %vm3315, %v6702
  %6719 = vst.msk [vmem:[#allocation4 + $0x68] sm:$0xff] %vm3315, %v6703
  %6720 = vst.msk [vmem:[#allocation4 + $0x70] sm:$0xff] %vm3315, %v6704
  %6721 = vst.msk [vmem:[#allocation4 + $0x78] sm:$0xff] %vm3315, %v6705
  %v6722 = vld [vmem:[#allocation4] ss:$8 sm:$0xf]
  %v6723 = vld [vmem:[#allocation4] ss:$8 sm:$0xf0]
  %v6724 = vor.u32 %v6722, %v6723
  %v6725 = vld [vmem:[%s3773] ss:$8 sm:$0xf]
  %v6726 = vld [vmem:[%s3773] ss:$8 sm:$0xf0]
  %v6727 = vor.u32 %v6725, %v6726
  %v6728 = vld [vmem:[%s3829] ss:$8 sm:$0xf]
  %v6729 = vld [vmem:[%s3829] ss:$8 sm:$0xf0]
  %v6730 = vor.u32 %v6728, %v6729
  %v6731 = vld [vmem:[%s3837] ss:$8 sm:$0xf]
  %v6732 = vld [vmem:[%s3837] ss:$8 sm:$0xf0]
  %v6733 = vor.u32 %v6731, %v6732
  %s6734 = scalar_lea.vmem [#allocation4], 2
  %v6735 = vld [vmem:[%s6734] ss:$8 sm:$0xf]
  %v6736 = vld [vmem:[%s6734] ss:$8 sm:$0xf0]
  %v6737 = vor.u32 %v6735, %v6736
  %s6738 = scalar_lea.vmem [#allocation4], 66
  %v6739 = vld [vmem:[%s6738] ss:$8 sm:$0xf]
  %v6740 = vld [vmem:[%s6738] ss:$8 sm:$0xf0]
  %v6741 = vor.u32 %v6739, %v6740
  %s6742 = scalar_lea.vmem [#allocation4], 3
  %v6743 = vld [vmem:[%s6742] ss:$8 sm:$0xf]
  %v6744 = vld [vmem:[%s6742] ss:$8 sm:$0xf0]
  %v6745 = vor.u32 %v6743, %v6744
  %s6746 = scalar_lea.vmem [#allocation4], 67
  %v6747 = vld [vmem:[%s6746] ss:$8 sm:$0xf]
  %v6748 = vld [vmem:[%s6746] ss:$8 sm:$0xf0]
  %v6749 = vor.u32 %v6747, %v6748
  %s6750 = scalar_lea.vmem [#allocation4], 4
  %v6751 = vld [vmem:[%s6750] ss:$8 sm:$0xf]
  %v6752 = vld [vmem:[%s6750] ss:$8 sm:$0xf0]
  %v6753 = vor.u32 %v6751, %v6752
  %s6754 = scalar_lea.vmem [#allocation4], 68
  %v6755 = vld [vmem:[%s6754] ss:$8 sm:$0xf]
  %v6756 = vld [vmem:[%s6754] ss:$8 sm:$0xf0]
  %v6757 = vor.u32 %v6755, %v6756
  %s6758 = scalar_lea.vmem [#allocation4], 5
  %v6759 = vld [vmem:[%s6758] ss:$8 sm:$0xf]
  %v6760 = vld [vmem:[%s6758] ss:$8 sm:$0xf0]
  %v6761 = vor.u32 %v6759, %v6760
  %s6762 = scalar_lea.vmem [#allocation4], 69
  %v6763 = vld [vmem:[%s6762] ss:$8 sm:$0xf]
  %v6764 = vld [vmem:[%s6762] ss:$8 sm:$0xf0]
  %v6765 = vor.u32 %v6763, %v6764
  %s6766 = scalar_lea.vmem [#allocation4], 6
  %v6767 = vld [vmem:[%s6766] ss:$8 sm:$0xf]
  %v6768 = vld [vmem:[%s6766] ss:$8 sm:$0xf0]
  %v6769 = vor.u32 %v6767, %v6768
  %s6770 = scalar_lea.vmem [#allocation4], 70
  %v6771 = vld [vmem:[%s6770] ss:$8 sm:$0xf]
  %v6772 = vld [vmem:[%s6770] ss:$8 sm:$0xf0]
  %v6773 = vor.u32 %v6771, %v6772
  %s6774 = scalar_lea.vmem [#allocation4], 7
  %v6775 = vld [vmem:[%s6774] ss:$8 sm:$0xf]
  %v6776 = vld [vmem:[%s6774] ss:$8 sm:$0xf0]
  %v6777 = vor.u32 %v6775, %v6776
  %s6778 = scalar_lea.vmem [#allocation4], 71
  %v6779 = vld [vmem:[%s6778] ss:$8 sm:$0xf]
  %v6780 = vld [vmem:[%s6778] ss:$8 sm:$0xf0]
  %v6781 = vor.u32 %v6779, %v6780
  %6784 = vrot.lane.b32.xlu0 %v6730, 32
  %v6785 = vpop.permute.xlu0 %6784
  %6786 = vrot.lane.b32.xlu0 %v6733, 32
  %v6787 = vpop.permute.xlu0 %6786
  %6792 = vrot.lane.b32.xlu0 %v6737, 64
  %v6793 = vpop.permute.xlu0 %6792
  %6794 = vrot.lane.b32.xlu0 %v6741, 64
  %v6795 = vpop.permute.xlu0 %6794
  %6800 = vrot.lane.b32.xlu0 %v6745, 96
  %v6801 = vpop.permute.xlu0 %6800
  %6802 = vrot.lane.b32.xlu0 %v6749, 96
  %v6803 = vpop.permute.xlu0 %6802
  %6808 = vrot.lane.b32.xlu0 %v6761, 32
  %v6809 = vpop.permute.xlu0 %6808
  %6810 = vrot.lane.b32.xlu0 %v6765, 32
  %v6811 = vpop.permute.xlu0 %6810
  %6816 = vrot.lane.b32.xlu0 %v6769, 64
  %v6817 = vpop.permute.xlu0 %6816
  %6818 = vrot.lane.b32.xlu0 %v6773, 64
  %v6819 = vpop.permute.xlu0 %6818
  %6824 = vrot.lane.b32.xlu0 %v6777, 96
  %v6825 = vpop.permute.xlu0 %6824
  %6826 = vrot.lane.b32.xlu0 %v6781, 96
  %v6827 = vpop.permute.xlu0 %6826
  %v6830 = vsel %vm3315, %v6724, %v6785
  %v6831 = vsel %vm3315, %v6727, %v6787
  %v6832 = vsel %vm5419, %v6830, %v6793
  %v6833 = vsel %vm5419, %v6831, %v6795
  %v6834 = vsel %vm5436, %v6832, %v6801
  %v6835 = vsel %vm5436, %v6833, %v6803
  %v6836 = vsel %vm3315, %v6753, %v6809
  %v6837 = vsel %vm3315, %v6757, %v6811
  %v6838 = vsel %vm5419, %v6836, %v6817
  %v6839 = vsel %vm5419, %v6837, %v6819
  %v6840 = vsel %vm5436, %v6838, %v6825
  %v6841 = vsel %vm5436, %v6839, %v6827
  %6842 = vst [vmem:[%s7] sm:$0xff] %v6834
  %6843 = vst [vmem:[%s7 + $0x8] sm:$0xff] %v6840
  %6844 = vst [vmem:[%s7 + $0x10] sm:$0xff] %v6835
  %6845 = vst [vmem:[%s7 + $0x18] sm:$0xff] %v6841
  // Predicated region
  $region30: #{conv_group_forward.1} parent=0 // pred_check
    _
  $region31: #{conv_group_forward.1} parent=0 // pred_check_branch
    %6847 = sbr.rel (0) target = $region33
  $region32: #{conv_group_forward.1} parent=0 // pred_region
    _
  $region33: #{conv_group_forward.1} parent=0 // pred_fallthru
    _
  // Predicated region
  $region34: #{conv_group_forward.1} parent=0 // pred_check
    _
  $region35: #{conv_group_forward.1} parent=0 // pred_check_branch
    %6849 = sbr.rel (0) target = $region37
  $region36: #{conv_group_forward.1} parent=0 // pred_region
    _
  $region37: #{conv_group_forward.1} parent=0 // pred_fallthru
    _

</llo_original>
